<compile_context>
chip_gen: v7x
topology: tpu7x:2x2x1
jax: 0.10.0
libtpu: 0.0.40
codegen_flags: <defaults>
</compile_context>

<pallas_src>
import math
import jax
import jax.numpy as jnp
from jax import lax
from jax.experimental import pallas as pl
from jax.experimental.pallas import tpu as pltpu


def _round_up(x, m):
    return ((x + m - 1) // m) * m


# ----------------------------------------------------------------------------
# Pallas kernels
# ----------------------------------------------------------------------------
def gru_stack_kernel(len_ref, x_ref, wih0_ref, bih0_ref, wihr_ref, bihr_ref,
                     whh_ref, bhh_ref, hn_ref, act_buf, gi_buf):
    """All GRU layers over one T-block.

    len_ref:  (Bp, 1)  int32      sequence lengths (padded rows = 0)
    x_ref:    (TB, Bp, Dp)        pipelined input block for this grid step
    wih0_ref: (Dp, 3*Hp)          layer-0 W_ih^T (gate order [r, z, n], per-gate padded)
    bih0_ref: (1, 3*Hp)
    wihr_ref: (max(L-1,1), Hp, 3*Hp)   W_ih^T for layers 1..L-1
    bihr_ref: (max(L-1,1), 1, 3*Hp)
    whh_ref:  (L, Hp, 3*Hp)       W_hh^T per layer
    bhh_ref:  (L, 1, 3*Hp)
    hn_ref:   (L, Bp, Hp)         resident hidden-state accumulator (output)
    act_buf:  (TB, Bp, Hp)        VMEM scratch: inter-layer activations
    gi_buf:   (TB, Bp, 3*Hp)      VMEM scratch: hoisted input-gate pre-activations
    """
    TB, Bp, Dp = x_ref.shape
    L = whh_ref.shape[0]
    three_hp = whh_ref.shape[2]
    Hp = three_hp // 3

    tb = pl.program_id(0)
    t0 = tb * TB

    @pl.when(tb == 0)
    def _init():
        hn_ref[...] = jnp.zeros_like(hn_ref)     # h0 = 0 for every layer

    lengths = len_ref[...]                       # (Bp, 1) int32

    def run_layer(layer, in_rows):
        """in_rows: (TB*Bp, feat) block input for this layer (already in vregs)."""
        if layer == 0:
            wih = wih0_ref[...]
            bih = bih0_ref[...]
        else:
            wih = wihr_ref[layer - 1]
            bih = bihr_ref[layer - 1]

        # Hoisted input projection: one MXU-friendly matmul per block.
        gi = jnp.dot(in_rows, wih, preferred_element_type=jnp.float32) + bih
        gi_buf[...] = gi.reshape(TB, Bp, three_hp)

        h_init = hn_ref[layer]                   # (Bp, Hp), resident across blocks

        def step(t, h_prev):
            gi_t = gi_buf[t]                     # (Bp, 3*Hp)
            gh = jnp.dot(h_prev, whh_ref[layer],
                         preferred_element_type=jnp.float32) + bhh_ref[layer]
            # Gate slices are lane-aligned (Hp is a multiple of 128).
            r = jax.nn.sigmoid(gi_t[:, 0:Hp] + gh[:, 0:Hp])
            z = jax.nn.sigmoid(gi_t[:, Hp:2 * Hp] + gh[:, Hp:2 * Hp])
            n = jnp.tanh(gi_t[:, 2 * Hp:3 * Hp] + r * gh[:, 2 * Hp:3 * Hp])
            h_new = (1.0 - z) * n + z * h_prev
            # pack_padded_sequence semantics: freeze h past each sequence's length.
            valid = (t0 + t) < lengths           # (Bp, 1) bool
            h_t = jnp.where(valid, h_new, h_prev)
            act_buf[t] = h_t                     # lane-dense (Bp, Hp) store
            return h_t

        h_last = lax.fori_loop(0, TB, step, h_init, unroll=True)
        hn_ref[layer] = h_last

    # Layer 0 consumes the pipelined x block; deeper layers consume act_buf —
    # intermediate activations never touch HBM.
    run_layer(0, x_ref[...].reshape(TB * Bp, Dp))
    for layer in range(1, L):
        run_layer(layer, act_buf[...].reshape(TB * Bp, Hp))


def linear_kernel(h_ref, w_ref, b_ref, o_ref):
    """Output projection on padded shapes: (N, Hp) @ (Hp, 128) + (1, 128)."""
    o_ref[...] = (
        jnp.dot(h_ref[...], w_ref[...], preferred_element_type=jnp.float32)
        + b_ref[...]
    )


# ----------------------------------------------------------------------------
# Padding helpers (XLA glue, outside the kernels)
# ----------------------------------------------------------------------------
def _pad_gate_mat(w, rows_pad, h_pad):
    """(rows, 3H) -> (rows_pad, 3*h_pad), padding each gate block separately."""
    rows, three_h = w.shape
    h = three_h // 3
    w3 = w.reshape(rows, 3, h)
    out = jnp.zeros((rows_pad, 3, h_pad), w.dtype)
    out = out.at[:rows, :, :h].set(w3)
    return out.reshape(rows_pad, 3 * h_pad)


def _pad_gate_bias(b, h_pad):
    """(1, 3H) -> (1, 3*h_pad), per-gate padding."""
    h = b.shape[1] // 3
    b3 = b.reshape(1, 3, h)
    out = jnp.zeros((1, 3, h_pad), b.dtype)
    out = out.at[:, :, :h].set(b3)
    return out.reshape(1, 3 * h_pad)


# ----------------------------------------------------------------------------
# Wrappers
# ----------------------------------------------------------------------------
def pure_gru_forward(padded, lengths, params, *, block_t=8):
    """Full PureGRU forward. padded: (T, B, D) f32, lengths: (B,) int32."""
    T, B, D = padded.shape
    gru_layers = params["gru_layers"]
    L = len(gru_layers)
    H = gru_layers[0][1].shape[0]        # w_hh_t is (H, 3H)

    Hp = _round_up(H, 128)
    Dp = _round_up(D, 128)
    Bp = _round_up(B, 8)
    TB = int(block_t)
    Tp = _round_up(T, TB)
    num_blocks = Tp // TB

    # --- pad inputs --------------------------------------------------------
    x_p = jnp.zeros((Tp, Bp, Dp), jnp.float32).at[:T, :B, :D].set(padded)
    len_p = jnp.zeros((Bp, 1), jnp.int32).at[:B, 0].set(lengths.astype(jnp.int32))

    # --- pad / stack parameters -------------------------------------------
    wih0, _, bih0, _ = gru_layers[0]
    wih0_p = _pad_gate_mat(wih0, Dp, Hp)
    bih0_p = _pad_gate_bias(bih0, Hp)
    whh_p = jnp.stack([_pad_gate_mat(whh, Hp, Hp) for (_, whh, _, _) in gru_layers])
    bhh_p = jnp.stack([_pad_gate_bias(bhh, Hp) for (_, _, _, bhh) in gru_layers])
    if L > 1:
        wihr_p = jnp.stack([_pad_gate_mat(wih, Hp, Hp)
                            for (wih, _, _, _) in gru_layers[1:]])
        bihr_p = jnp.stack([_pad_gate_bias(bih, Hp)
                            for (_, _, bih, _) in gru_layers[1:]])
    else:
        wihr_p = jnp.zeros((1, Hp, 3 * Hp), jnp.float32)
        bihr_p = jnp.zeros((1, 1, 3 * Hp), jnp.float32)
    Lr = wihr_p.shape[0]

    # --- GRU stack kernel: grid over T-blocks ------------------------------
    grid_spec = pltpu.PrefetchScalarGridSpec(
        num_scalar_prefetch=0,
        grid=(num_blocks,),
        in_specs=[
            pl.BlockSpec((Bp, 1), lambda tb: (0, 0)),               # lengths
            pl.BlockSpec((TB, Bp, Dp), lambda tb: (tb, 0, 0)),      # x, pipelined over T
            pl.BlockSpec((Dp, 3 * Hp), lambda tb: (0, 0)),          # W_ih layer 0
            pl.BlockSpec((1, 3 * Hp), lambda tb: (0, 0)),           # b_ih layer 0
            pl.BlockSpec((Lr, Hp, 3 * Hp), lambda tb: (0, 0, 0)),   # W_ih layers 1..L-1
            pl.BlockSpec((Lr, 1, 3 * Hp), lambda tb: (0, 0, 0)),    # b_ih layers 1..L-1
            pl.BlockSpec((L, Hp, 3 * Hp), lambda tb: (0, 0, 0)),    # W_hh all layers
            pl.BlockSpec((L, 1, 3 * Hp), lambda tb: (0, 0, 0)),     # b_hh all layers
        ],
        out_specs=pl.BlockSpec((L, Bp, Hp), lambda tb: (0, 0, 0)),  # hn: resident acc
        scratch_shapes=[
            pltpu.VMEM((TB, Bp, Hp), jnp.float32),        # inter-layer activations
            pltpu.VMEM((TB, Bp, 3 * Hp), jnp.float32),    # hoisted input projections
        ],
    )
    hn_pad = pl.pallas_call(
        gru_stack_kernel,
        out_shape=jax.ShapeDtypeStruct((L, Bp, Hp), jnp.float32),
        grid_spec=grid_spec,
        compiler_params=pltpu.CompilerParams(
            dimension_semantics=("arbitrary",)),      # sequential recurrence over T
    )(len_p, x_p, wih0_p, bih0_p, wihr_p, bihr_p, whh_p, bhh_p)

    # --- output Linear (padded to 128 output lanes) ------------------------
    Op = 128
    w_out_p = jnp.zeros((Hp, Op), jnp.float32).at[:H, :4].set(params["w_out_t"])
    b_out_p = jnp.zeros((1, Op), jnp.float32).at[:, :4].set(params["b_out"])

    flat = hn_pad.reshape(L * Bp, Hp)
    out = pl.pallas_call(
        linear_kernel,
        out_shape=jax.ShapeDtypeStruct((L * Bp, Op), jnp.float32),
        in_specs=[pl.BlockSpec(memory_space=pltpu.MemorySpace.VMEM)] * 3,
        out_specs=pl.BlockSpec(memory_space=pltpu.MemorySpace.VMEM),
    )(flat, w_out_p, b_out_p)
    out = out.reshape(L, Bp, Op)
    return out[:, :B, :4]


# ----------------------------------------------------------------------------
# Pure-JAX reference (for correctness check)
# ----------------------------------------------------------------------------
def pure_gru_reference(padded, lengths, params):
    T, B, _ = padded.shape
    H = params["gru_layers"][0][1].shape[0]
    t_idx = jnp.arange(T, dtype=jnp.int32)[:, None]
    mask = (t_idx < lengths[None, :]).astype(jnp.float32)[..., None]  # (T, B, 1)

    layer_in = padded
    hns = []
    for (w_ih_t, w_hh_t, b_ih, b_hh) in params["gru_layers"]:
        def step(h, inp):
            x_t, m_t = inp
            gi = x_t @ w_ih_t + b_ih
            gh = h @ w_hh_t + b_hh
            r = jax.nn.sigmoid(gi[:, 0:H] + gh[:, 0:H])
            z = jax.nn.sigmoid(gi[:, H:2 * H] + gh[:, H:2 * H])
            n = jnp.tanh(gi[:, 2 * H:] + r * gh[:, 2 * H:])
            h_new = (1.0 - z) * n + z * h
            h_t = jnp.where(m_t > 0, h_new, h)
            return h_t, h_t

        hn, outs = lax.scan(step, jnp.zeros((B, H), jnp.float32), (layer_in, mask))
        layer_in = outs
        hns.append(hn)
    hn_stack = jnp.stack(hns, axis=0)
    return hn_stack @ params["w_out_t"] + params["b_out"]


# ----------------------------------------------------------------------------
# Parameter init (deterministic, mirrors nn.GRU / nn.Linear shapes)
# ----------------------------------------------------------------------------
def init_params(key, input_size, hidden_size, num_layers):
    k = 1.0 / math.sqrt(hidden_size)
    layers = []
    for layer in range(num_layers):
        d_in = input_size if layer == 0 else hidden_size
        key, k1, k2, k3, k4 = jax.random.split(key, 5)
        w_ih = jax.random.uniform(k1, (3 * hidden_size, d_in), jnp.float32, -k, k)
        w_hh = jax.random.uniform(k2, (3 * hidden_size, hidden_size), jnp.float32, -k, k)
        b_ih = jax.random.uniform(k3, (3 * hidden_size,), jnp.float32, -k, k)
        b_hh = jax.random.uniform(k4, (3 * hidden_size,), jnp.float32, -k, k)
        layers.append((w_ih.T, w_hh.T, b_ih[None, :], b_hh[None, :]))

    key, k5, k6 = jax.random.split(key, 3)
    ko = 1.0 / math.sqrt(hidden_size)
    w_out = jax.random.uniform(k5, (4, hidden_size), jnp.float32, -ko, ko)
    b_out = jax.random.uniform(k6, (4,), jnp.float32, -ko, ko)
    return {"gru_layers": layers, "w_out_t": w_out.T, "b_out": b_out[None, :]}


# ----------------------------------------------------------------------------
if __name__ == "__main__":
    # padded is (T, B, input_size), seq-first like PyTorch nn.GRU default.
    T, B = 24, 4
    input_size, hidden_size, num_layers = 32, 32, 2

    key = jax.random.PRNGKey(0)
    key, kx = jax.random.split(key)
    padded = jax.random.normal(kx, (T, B, input_size), jnp.float32)
    lengths = jnp.array([24, 17, 9, 5], dtype=jnp.int32)  # sorted descending

    params = init_params(key, input_size, hidden_size, num_layers)

    preds = pure_gru_forward(padded, lengths, params, block_t=8)  # (num_layers, B, 4)
    preds = jax.block_until_ready(preds)

    ref = jax.block_until_ready(pure_gru_reference(padded, lengths, params))
    assert preds.shape == (num_layers, B, 4)
    assert jnp.allclose(preds, ref, atol=1e-4, rtol=1e-4), "mismatch vs JAX reference"

    print("KERNEL_OK")
</pallas_src>

<mosaic_0001>
module attributes {stable_mosaic.version = 11 : i64} {
  func.func @gru_stack_kernel(%arg0: i32, %arg1: memref<8x1xi32, #tpu.memory_space<vmem>>, %arg2: memref<8x8x128xf32, #tpu.memory_space<vmem>>, %arg3: memref<128x384xf32, #tpu.memory_space<vmem>>, %arg4: memref<1x384xf32, #tpu.memory_space<vmem>>, %arg5: memref<1x128x384xf32, #tpu.memory_space<vmem>>, %arg6: memref<1x1x384xf32, #tpu.memory_space<vmem>>, %arg7: memref<2x128x384xf32, #tpu.memory_space<vmem>>, %arg8: memref<2x1x384xf32, #tpu.memory_space<vmem>>, %arg9: memref<2x8x128xf32, #tpu.memory_space<vmem>>, %arg10: memref<8x8x128xf32, #tpu.memory_space<vmem>>, %arg11: memref<8x8x384xf32, #tpu.memory_space<vmem>>) attributes {dimension_semantics = [#tpu.dimension_semantics<arbitrary>], iteration_bounds = array<i64: 3>, scalar_prefetch = 0 : i64, scratch_operands = 2 : i64, tpu.core_type = #tpu.core_type<tc>, window_params = [{pipeline_mode = #tpu.pipeline_mode<synchronous>, transform_indices = @transform_0, window_bounds = array<i64: 8, 1>}, {transform_indices = @transform_1, window_bounds = array<i64: 8, 8, 128>}, {pipeline_mode = #tpu.pipeline_mode<synchronous>, transform_indices = @transform_2, window_bounds = array<i64: 128, 384>}, {pipeline_mode = #tpu.pipeline_mode<synchronous>, transform_indices = @transform_3, window_bounds = array<i64: 1, 384>}, {pipeline_mode = #tpu.pipeline_mode<synchronous>, transform_indices = @transform_4, window_bounds = array<i64: 1, 128, 384>}, {pipeline_mode = #tpu.pipeline_mode<synchronous>, transform_indices = @transform_5, window_bounds = array<i64: 1, 1, 384>}, {pipeline_mode = #tpu.pipeline_mode<synchronous>, transform_indices = @transform_6, window_bounds = array<i64: 2, 128, 384>}, {pipeline_mode = #tpu.pipeline_mode<synchronous>, transform_indices = @transform_7, window_bounds = array<i64: 2, 1, 384>}, {pipeline_mode = #tpu.pipeline_mode<synchronous>, transform_indices = @transform_8, window_bounds = array<i64: 2, 8, 128>}]} {
    %c8_i32 = arith.constant 8 : i32
    %0 = arith.muli %arg0, %c8_i32 : i32
    %c0_i32 = arith.constant 0 : i32
    %1 = arith.cmpi eq, %arg0, %c0_i32 : i32
    %2 = arith.extui %1 : i1 to i32
    %c0_i32_0 = arith.constant 0 : i32
    %3 = arith.cmpi ne, %2, %c0_i32_0 : i32
    scf.if %3 {
      %cst_271 = arith.constant 0.000000e+00 : f32
      %771 = vector.broadcast %cst_271 : f32 to vector<2x8x128xf32>
      %c0_272 = arith.constant 0 : index
      %c0_273 = arith.constant 0 : index
      %c0_274 = arith.constant 0 : index
      %772 = vector.load %arg9[%c0_272, %c0_273, %c0_274] : memref<2x8x128xf32, #tpu.memory_space<vmem>>, vector<2x8x128xf32>
      tpu.vector_store %arg9[%c0_272, %c0_273, %c0_274], %771 {strides = array<i32>} : memref<2x8x128xf32, #tpu.memory_space<vmem>>, vector<2x8x128xf32>,
    } else {
    }
    %c0 = arith.constant 0 : index
    %c0_1 = arith.constant 0 : index
    %4 = vector.load %arg1[%c0, %c0_1] : memref<8x1xi32, #tpu.memory_space<vmem>>, vector<8x1xi32>
    %c0_2 = arith.constant 0 : index
    %c0_3 = arith.constant 0 : index
    %c0_4 = arith.constant 0 : index
    %5 = vector.load %arg2[%c0_2, %c0_3, %c0_4] : memref<8x8x128xf32, #tpu.memory_space<vmem>>, vector<8x8x128xf32>
    %6 = vector.shape_cast %5 : vector<8x8x128xf32> to vector<64x128xf32>
    %c0_5 = arith.constant 0 : index
    %c0_6 = arith.constant 0 : index
    %7 = vector.load %arg3[%c0_5, %c0_6] : memref<128x384xf32, #tpu.memory_space<vmem>>, vector<128x384xf32>
    %c0_7 = arith.constant 0 : index
    %c0_8 = arith.constant 0 : index
    %8 = vector.load %arg4[%c0_7, %c0_8] : memref<1x384xf32, #tpu.memory_space<vmem>>, vector<1x384xf32>
    %cst = arith.constant dense<0.000000e+00> : vector<64x384xf32>
    %9 = tpu.matmul %6, %7, %cst {dimension_numbers = #tpu.dot_dimension_numbers<[1], [0], [0], [1], [0, 0, 1, 1], [], []>} : vector<64x128xf32>, vector<128x384xf32>, vector<64x384xf32> -> vector<64x384xf32>
    %10 = vector.broadcast %8 : vector<1x384xf32> to vector<64x384xf32>
    %11 = arith.addf %9, %10 : vector<64x384xf32>
    %12 = vector.shape_cast %11 : vector<64x384xf32> to vector<8x8x384xf32>
    %c0_9 = arith.constant 0 : index
    %c0_10 = arith.constant 0 : index
    %c0_11 = arith.constant 0 : index
    %13 = vector.load %arg11[%c0_9, %c0_10, %c0_11] : memref<8x8x384xf32, #tpu.memory_space<vmem>>, vector<8x8x384xf32>
    tpu.vector_store %arg11[%c0_9, %c0_10, %c0_11], %12 {strides = array<i32>} : memref<8x8x384xf32, #tpu.memory_space<vmem>>, vector<8x8x384xf32>,
    %c0_12 = arith.constant 0 : index
    %c0_13 = arith.constant 0 : index
    %c0_14 = arith.constant 0 : index
    %14 = vector.load %arg9[%c0_12, %c0_13, %c0_14] : memref<2x8x128xf32, #tpu.memory_space<vmem>>, vector<1x8x128xf32>
    %15 = vector.shape_cast %14 : vector<1x8x128xf32> to vector<8x128xf32>
    %c0_i32_15 = arith.constant 0 : i32
    %16 = arith.index_cast %c0_i32_15 : i32 to index
    %c0_16 = arith.constant 0 : index
    %c0_17 = arith.constant 0 : index
    %17 = vector.load %arg11[%16, %c0_16, %c0_17] : memref<8x8x384xf32, #tpu.memory_space<vmem>>, vector<1x8x384xf32>
    %18 = vector.shape_cast %17 : vector<1x8x384xf32> to vector<8x384xf32>
    %c0_18 = arith.constant 0 : index
    %c0_19 = arith.constant 0 : index
    %c0_20 = arith.constant 0 : index
    %19 = vector.load %arg7[%c0_18, %c0_19, %c0_20] : memref<2x128x384xf32, #tpu.memory_space<vmem>>, vector<1x128x384xf32>
    %20 = vector.shape_cast %19 : vector<1x128x384xf32> to vector<128x384xf32>
    %cst_21 = arith.constant dense<0.000000e+00> : vector<8x384xf32>
    %21 = tpu.matmul %15, %20, %cst_21 {dimension_numbers = #tpu.dot_dimension_numbers<[1], [0], [0], [1], [0, 0, 1, 1], [], []>} : vector<8x128xf32>, vector<128x384xf32>, vector<8x384xf32> -> vector<8x384xf32>
    %c0_22 = arith.constant 0 : index
    %c0_23 = arith.constant 0 : index
    %c0_24 = arith.constant 0 : index
    %22 = vector.load %arg8[%c0_22, %c0_23, %c0_24] : memref<2x1x384xf32, #tpu.memory_space<vmem>>, vector<1x1x384xf32>
    %23 = vector.shape_cast %22 : vector<1x1x384xf32> to vector<1x384xf32>
    %24 = vector.broadcast %23 : vector<1x384xf32> to vector<8x384xf32>
    %25 = arith.addf %21, %24 : vector<8x384xf32>
    %26 = vector.extract_strided_slice %18 {offsets = [0, 0], sizes = [8, 128], strides = [1, 1]} : vector<8x384xf32> to vector<8x128xf32>
    %27 = vector.extract_strided_slice %25 {offsets = [0, 0], sizes = [8, 128], strides = [1, 1]} : vector<8x384xf32> to vector<8x128xf32>
    %28 = arith.addf %26, %27 : vector<8x128xf32>
    %29 = arith.negf %28 : vector<8x128xf32>
    %30 = math.exp %29 : vector<8x128xf32>
    %cst_25 = arith.constant 1.000000e+00 : f32
    %31 = vector.broadcast %cst_25 : f32 to vector<8x128xf32>
    %32 = arith.addf %31, %30 : vector<8x128xf32>
    %33 = arith.divf %31, %32 : vector<8x128xf32>
    %34 = vector.extract_strided_slice %18 {offsets = [0, 128], sizes = [8, 128], strides = [1, 1]} : vector<8x384xf32> to vector<8x128xf32>
    %35 = vector.extract_strided_slice %25 {offsets = [0, 128], sizes = [8, 128], strides = [1, 1]} : vector<8x384xf32> to vector<8x128xf32>
    %36 = arith.addf %34, %35 : vector<8x128xf32>
    %37 = arith.negf %36 : vector<8x128xf32>
    %38 = math.exp %37 : vector<8x128xf32>
    %cst_26 = arith.constant 1.000000e+00 : f32
    %39 = vector.broadcast %cst_26 : f32 to vector<8x128xf32>
    %40 = arith.addf %39, %38 : vector<8x128xf32>
    %41 = arith.divf %39, %40 : vector<8x128xf32>
    %42 = vector.extract_strided_slice %18 {offsets = [0, 256], sizes = [8, 128], strides = [1, 1]} : vector<8x384xf32> to vector<8x128xf32>
    %43 = vector.extract_strided_slice %25 {offsets = [0, 256], sizes = [8, 128], strides = [1, 1]} : vector<8x384xf32> to vector<8x128xf32>
    %44 = arith.mulf %33, %43 : vector<8x128xf32>
    %45 = arith.addf %42, %44 : vector<8x128xf32>
    %46 = math.tanh %45 : vector<8x128xf32>
    %cst_27 = arith.constant 1.000000e+00 : f32
    %47 = vector.broadcast %cst_27 : f32 to vector<8x128xf32>
    %48 = arith.subf %47, %41 : vector<8x128xf32>
    %49 = arith.mulf %48, %46 : vector<8x128xf32>
    %50 = arith.mulf %41, %15 : vector<8x128xf32>
    %51 = arith.addf %49, %50 : vector<8x128xf32>
    %52 = arith.addi %0, %c0_i32_15 : i32
    %53 = vector.broadcast %52 : i32 to vector<8x1xi32>
    %54 = arith.cmpi slt, %53, %4 : vector<8x1xi32>
    %55 = vector.shape_cast %54 : vector<8x1xi1> to vector<8x1xi1>
    %56 = vector.broadcast %55 : vector<8x1xi1> to vector<8x128xi1>
    %57 = arith.select %56, %51, %15 : vector<8x128xi1>, vector<8x128xf32>
    %58 = arith.index_cast %c0_i32_15 : i32 to index
    %c0_28 = arith.constant 0 : index
    %c0_29 = arith.constant 0 : index
    %59 = vector.load %arg10[%58, %c0_28, %c0_29] : memref<8x8x128xf32, #tpu.memory_space<vmem>>, vector<1x8x128xf32>
    %60 = vector.shape_cast %59 : vector<1x8x128xf32> to vector<8x128xf32>
    %61 = vector.shape_cast %57 : vector<8x128xf32> to vector<1x8x128xf32>
    tpu.vector_store %arg10[%58, %c0_28, %c0_29], %61 {strides = array<i32>} : memref<8x8x128xf32, #tpu.memory_space<vmem>>, vector<1x8x128xf32>,
    %c1_i32 = arith.constant 1 : i32
    %62 = arith.index_cast %c1_i32 : i32 to index
    %c0_30 = arith.constant 0 : index
    %c0_31 = arith.constant 0 : index
    %63 = vector.load %arg11[%62, %c0_30, %c0_31] : memref<8x8x384xf32, #tpu.memory_space<vmem>>, vector<1x8x384xf32>
    %64 = vector.shape_cast %63 : vector<1x8x384xf32> to vector<8x384xf32>
    %c0_32 = arith.constant 0 : index
    %c0_33 = arith.constant 0 : index
    %c0_34 = arith.constant 0 : index
    %65 = vector.load %arg7[%c0_32, %c0_33, %c0_34] : memref<2x128x384xf32, #tpu.memory_space<vmem>>, vector<1x128x384xf32>
    %66 = vector.shape_cast %65 : vector<1x128x384xf32> to vector<128x384xf32>
    %cst_35 = arith.constant dense<0.000000e+00> : vector<8x384xf32>
    %67 = tpu.matmul %57, %66, %cst_35 {dimension_numbers = #tpu.dot_dimension_numbers<[1], [0], [0], [1], [0, 0, 1, 1], [], []>} : vector<8x128xf32>, vector<128x384xf32>, vector<8x384xf32> -> vector<8x384xf32>
    %c0_36 = arith.constant 0 : index
    %c0_37 = arith.constant 0 : index
    %c0_38 = arith.constant 0 : index
    %68 = vector.load %arg8[%c0_36, %c0_37, %c0_38] : memref<2x1x384xf32, #tpu.memory_space<vmem>>, vector<1x1x384xf32>
    %69 = vector.shape_cast %68 : vector<1x1x384xf32> to vector<1x384xf32>
    %70 = vector.broadcast %69 : vector<1x384xf32> to vector<8x384xf32>
    %71 = arith.addf %67, %70 : vector<8x384xf32>
    %72 = vector.extract_strided_slice %64 {offsets = [0, 0], sizes = [8, 128], strides = [1, 1]} : vector<8x384xf32> to vector<8x128xf32>
    %73 = vector.extract_strided_slice %71 {offsets = [0, 0], sizes = [8, 128], strides = [1, 1]} : vector<8x384xf32> to vector<8x128xf32>
    %74 = arith.addf %72, %73 : vector<8x128xf32>
    %75 = arith.negf %74 : vector<8x128xf32>
    %76 = math.exp %75 : vector<8x128xf32>
    %cst_39 = arith.constant 1.000000e+00 : f32
    %77 = vector.broadcast %cst_39 : f32 to vector<8x128xf32>
    %78 = arith.addf %77, %76 : vector<8x128xf32>
    %79 = arith.divf %77, %78 : vector<8x128xf32>
    %80 = vector.extract_strided_slice %64 {offsets = [0, 128], sizes = [8, 128], strides = [1, 1]} : vector<8x384xf32> to vector<8x128xf32>
    %81 = vector.extract_strided_slice %71 {offsets = [0, 128], sizes = [8, 128], strides = [1, 1]} : vector<8x384xf32> to vector<8x128xf32>
    %82 = arith.addf %80, %81 : vector<8x128xf32>
    %83 = arith.negf %82 : vector<8x128xf32>
    %84 = math.exp %83 : vector<8x128xf32>
    %cst_40 = arith.constant 1.000000e+00 : f32
    %85 = vector.broadcast %cst_40 : f32 to vector<8x128xf32>
    %86 = arith.addf %85, %84 : vector<8x128xf32>
    %87 = arith.divf %85, %86 : vector<8x128xf32>
    %88 = vector.extract_strided_slice %64 {offsets = [0, 256], sizes = [8, 128], strides = [1, 1]} : vector<8x384xf32> to vector<8x128xf32>
    %89 = vector.extract_strided_slice %71 {offsets = [0, 256], sizes = [8, 128], strides = [1, 1]} : vector<8x384xf32> to vector<8x128xf32>
    %90 = arith.mulf %79, %89 : vector<8x128xf32>
    %91 = arith.addf %88, %90 : vector<8x128xf32>
    %92 = math.tanh %91 : vector<8x128xf32>
    %cst_41 = arith.constant 1.000000e+00 : f32
    %93 = vector.broadcast %cst_41 : f32 to vector<8x128xf32>
    %94 = arith.subf %93, %87 : vector<8x128xf32>
    %95 = arith.mulf %94, %92 : vector<8x128xf32>
    %96 = arith.mulf %87, %57 : vector<8x128xf32>
    %97 = arith.addf %95, %96 : vector<8x128xf32>
    %98 = arith.addi %0, %c1_i32 : i32
    %99 = vector.broadcast %98 : i32 to vector<8x1xi32>
    %100 = arith.cmpi slt, %99, %4 : vector<8x1xi32>
    %101 = vector.shape_cast %100 : vector<8x1xi1> to vector<8x1xi1>
    %102 = vector.broadcast %101 : vector<8x1xi1> to vector<8x128xi1>
    %103 = arith.select %102, %97, %57 : vector<8x128xi1>, vector<8x128xf32>
    %104 = arith.index_cast %c1_i32 : i32 to index
    %c0_42 = arith.constant 0 : index
    %c0_43 = arith.constant 0 : index
    %105 = vector.load %arg10[%104, %c0_42, %c0_43] : memref<8x8x128xf32, #tpu.memory_space<vmem>>, vector<1x8x128xf32>
    %106 = vector.shape_cast %105 : vector<1x8x128xf32> to vector<8x128xf32>
    %107 = vector.shape_cast %103 : vector<8x128xf32> to vector<1x8x128xf32>
    tpu.vector_store %arg10[%104, %c0_42, %c0_43], %107 {strides = array<i32>} : memref<8x8x128xf32, #tpu.memory_space<vmem>>, vector<1x8x128xf32>,
    %c2_i32 = arith.constant 2 : i32
    %108 = arith.index_cast %c2_i32 : i32 to index
    %c0_44 = arith.constant 0 : index
    %c0_45 = arith.constant 0 : index
    %109 = vector.load %arg11[%108, %c0_44, %c0_45] : memref<8x8x384xf32, #tpu.memory_space<vmem>>, vector<1x8x384xf32>
    %110 = vector.shape_cast %109 : vector<1x8x384xf32> to vector<8x384xf32>
    %c0_46 = arith.constant 0 : index
    %c0_47 = arith.constant 0 : index
    %c0_48 = arith.constant 0 : index
    %111 = vector.load %arg7[%c0_46, %c0_47, %c0_48] : memref<2x128x384xf32, #tpu.memory_space<vmem>>, vector<1x128x384xf32>
    %112 = vector.shape_cast %111 : vector<1x128x384xf32> to vector<128x384xf32>
    %cst_49 = arith.constant dense<0.000000e+00> : vector<8x384xf32>
    %113 = tpu.matmul %103, %112, %cst_49 {dimension_numbers = #tpu.dot_dimension_numbers<[1], [0], [0], [1], [0, 0, 1, 1], [], []>} : vector<8x128xf32>, vector<128x384xf32>, vector<8x384xf32> -> vector<8x384xf32>
    %c0_50 = arith.constant 0 : index
    %c0_51 = arith.constant 0 : index
    %c0_52 = arith.constant 0 : index
    %114 = vector.load %arg8[%c0_50, %c0_51, %c0_52] : memref<2x1x384xf32, #tpu.memory_space<vmem>>, vector<1x1x384xf32>
    %115 = vector.shape_cast %114 : vector<1x1x384xf32> to vector<1x384xf32>
    %116 = vector.broadcast %115 : vector<1x384xf32> to vector<8x384xf32>
    %117 = arith.addf %113, %116 : vector<8x384xf32>
    %118 = vector.extract_strided_slice %110 {offsets = [0, 0], sizes = [8, 128], strides = [1, 1]} : vector<8x384xf32> to vector<8x128xf32>
    %119 = vector.extract_strided_slice %117 {offsets = [0, 0], sizes = [8, 128], strides = [1, 1]} : vector<8x384xf32> to vector<8x128xf32>
    %120 = arith.addf %118, %119 : vector<8x128xf32>
    %121 = arith.negf %120 : vector<8x128xf32>
    %122 = math.exp %121 : vector<8x128xf32>
    %cst_53 = arith.constant 1.000000e+00 : f32
    %123 = vector.broadcast %cst_53 : f32 to vector<8x128xf32>
    %124 = arith.addf %123, %122 : vector<8x128xf32>
    %125 = arith.divf %123, %124 : vector<8x128xf32>
    %126 = vector.extract_strided_slice %110 {offsets = [0, 128], sizes = [8, 128], strides = [1, 1]} : vector<8x384xf32> to vector<8x128xf32>
    %127 = vector.extract_strided_slice %117 {offsets = [0, 128], sizes = [8, 128], strides = [1, 1]} : vector<8x384xf32> to vector<8x128xf32>
    %128 = arith.addf %126, %127 : vector<8x128xf32>
    %129 = arith.negf %128 : vector<8x128xf32>
    %130 = math.exp %129 : vector<8x128xf32>
    %cst_54 = arith.constant 1.000000e+00 : f32
    %131 = vector.broadcast %cst_54 : f32 to vector<8x128xf32>
    %132 = arith.addf %131, %130 : vector<8x128xf32>
    %133 = arith.divf %131, %132 : vector<8x128xf32>
    %134 = vector.extract_strided_slice %110 {offsets = [0, 256], sizes = [8, 128], strides = [1, 1]} : vector<8x384xf32> to vector<8x128xf32>
    %135 = vector.extract_strided_slice %117 {offsets = [0, 256], sizes = [8, 128], strides = [1, 1]} : vector<8x384xf32> to vector<8x128xf32>
    %136 = arith.mulf %125, %135 : vector<8x128xf32>
    %137 = arith.addf %134, %136 : vector<8x128xf32>
    %138 = math.tanh %137 : vector<8x128xf32>
    %cst_55 = arith.constant 1.000000e+00 : f32
    %139 = vector.broadcast %cst_55 : f32 to vector<8x128xf32>
    %140 = arith.subf %139, %133 : vector<8x128xf32>
    %141 = arith.mulf %140, %138 : vector<8x128xf32>
    %142 = arith.mulf %133, %103 : vector<8x128xf32>
    %143 = arith.addf %141, %142 : vector<8x128xf32>
    %144 = arith.addi %0, %c2_i32 : i32
    %145 = vector.broadcast %144 : i32 to vector<8x1xi32>
    %146 = arith.cmpi slt, %145, %4 : vector<8x1xi32>
    %147 = vector.shape_cast %146 : vector<8x1xi1> to vector<8x1xi1>
    %148 = vector.broadcast %147 : vector<8x1xi1> to vector<8x128xi1>
    %149 = arith.select %148, %143, %103 : vector<8x128xi1>, vector<8x128xf32>
    %150 = arith.index_cast %c2_i32 : i32 to index
    %c0_56 = arith.constant 0 : index
    %c0_57 = arith.constant 0 : index
    %151 = vector.load %arg10[%150, %c0_56, %c0_57] : memref<8x8x128xf32, #tpu.memory_space<vmem>>, vector<1x8x128xf32>
    %152 = vector.shape_cast %151 : vector<1x8x128xf32> to vector<8x128xf32>
    %153 = vector.shape_cast %149 : vector<8x128xf32> to vector<1x8x128xf32>
    tpu.vector_store %arg10[%150, %c0_56, %c0_57], %153 {strides = array<i32>} : memref<8x8x128xf32, #tpu.memory_space<vmem>>, vector<1x8x128xf32>,
    %c3_i32 = arith.constant 3 : i32
    %154 = arith.index_cast %c3_i32 : i32 to index
    %c0_58 = arith.constant 0 : index
    %c0_59 = arith.constant 0 : index
    %155 = vector.load %arg11[%154, %c0_58, %c0_59] : memref<8x8x384xf32, #tpu.memory_space<vmem>>, vector<1x8x384xf32>
    %156 = vector.shape_cast %155 : vector<1x8x384xf32> to vector<8x384xf32>
    %c0_60 = arith.constant 0 : index
    %c0_61 = arith.constant 0 : index
    %c0_62 = arith.constant 0 : index
    %157 = vector.load %arg7[%c0_60, %c0_61, %c0_62] : memref<2x128x384xf32, #tpu.memory_space<vmem>>, vector<1x128x384xf32>
    %158 = vector.shape_cast %157 : vector<1x128x384xf32> to vector<128x384xf32>
    %cst_63 = arith.constant dense<0.000000e+00> : vector<8x384xf32>
    %159 = tpu.matmul %149, %158, %cst_63 {dimension_numbers = #tpu.dot_dimension_numbers<[1], [0], [0], [1], [0, 0, 1, 1], [], []>} : vector<8x128xf32>, vector<128x384xf32>, vector<8x384xf32> -> vector<8x384xf32>
    %c0_64 = arith.constant 0 : index
    %c0_65 = arith.constant 0 : index
    %c0_66 = arith.constant 0 : index
    %160 = vector.load %arg8[%c0_64, %c0_65, %c0_66] : memref<2x1x384xf32, #tpu.memory_space<vmem>>, vector<1x1x384xf32>
    %161 = vector.shape_cast %160 : vector<1x1x384xf32> to vector<1x384xf32>
    %162 = vector.broadcast %161 : vector<1x384xf32> to vector<8x384xf32>
    %163 = arith.addf %159, %162 : vector<8x384xf32>
    %164 = vector.extract_strided_slice %156 {offsets = [0, 0], sizes = [8, 128], strides = [1, 1]} : vector<8x384xf32> to vector<8x128xf32>
    %165 = vector.extract_strided_slice %163 {offsets = [0, 0], sizes = [8, 128], strides = [1, 1]} : vector<8x384xf32> to vector<8x128xf32>
    %166 = arith.addf %164, %165 : vector<8x128xf32>
    %167 = arith.negf %166 : vector<8x128xf32>
    %168 = math.exp %167 : vector<8x128xf32>
    %cst_67 = arith.constant 1.000000e+00 : f32
    %169 = vector.broadcast %cst_67 : f32 to vector<8x128xf32>
    %170 = arith.addf %169, %168 : vector<8x128xf32>
    %171 = arith.divf %169, %170 : vector<8x128xf32>
    %172 = vector.extract_strided_slice %156 {offsets = [0, 128], sizes = [8, 128], strides = [1, 1]} : vector<8x384xf32> to vector<8x128xf32>
    %173 = vector.extract_strided_slice %163 {offsets = [0, 128], sizes = [8, 128], strides = [1, 1]} : vector<8x384xf32> to vector<8x128xf32>
    %174 = arith.addf %172, %173 : vector<8x128xf32>
    %175 = arith.negf %174 : vector<8x128xf32>
    %176 = math.exp %175 : vector<8x128xf32>
    %cst_68 = arith.constant 1.000000e+00 : f32
    %177 = vector.broadcast %cst_68 : f32 to vector<8x128xf32>
    %178 = arith.addf %177, %176 : vector<8x128xf32>
    %179 = arith.divf %177, %178 : vector<8x128xf32>
    %180 = vector.extract_strided_slice %156 {offsets = [0, 256], sizes = [8, 128], strides = [1, 1]} : vector<8x384xf32> to vector<8x128xf32>
    %181 = vector.extract_strided_slice %163 {offsets = [0, 256], sizes = [8, 128], strides = [1, 1]} : vector<8x384xf32> to vector<8x128xf32>
    %182 = arith.mulf %171, %181 : vector<8x128xf32>
    %183 = arith.addf %180, %182 : vector<8x128xf32>
    %184 = math.tanh %183 : vector<8x128xf32>
    %cst_69 = arith.constant 1.000000e+00 : f32
    %185 = vector.broadcast %cst_69 : f32 to vector<8x128xf32>
    %186 = arith.subf %185, %179 : vector<8x128xf32>
    %187 = arith.mulf %186, %184 : vector<8x128xf32>
    %188 = arith.mulf %179, %149 : vector<8x128xf32>
    %189 = arith.addf %187, %188 : vector<8x128xf32>
    %190 = arith.addi %0, %c3_i32 : i32
    %191 = vector.broadcast %190 : i32 to vector<8x1xi32>
    %192 = arith.cmpi slt, %191, %4 : vector<8x1xi32>
    %193 = vector.shape_cast %192 : vector<8x1xi1> to vector<8x1xi1>
    %194 = vector.broadcast %193 : vector<8x1xi1> to vector<8x128xi1>
    %195 = arith.select %194, %189, %149 : vector<8x128xi1>, vector<8x128xf32>
    %196 = arith.index_cast %c3_i32 : i32 to index
    %c0_70 = arith.constant 0 : index
    %c0_71 = arith.constant 0 : index
    %197 = vector.load %arg10[%196, %c0_70, %c0_71] : memref<8x8x128xf32, #tpu.memory_space<vmem>>, vector<1x8x128xf32>
    %198 = vector.shape_cast %197 : vector<1x8x128xf32> to vector<8x128xf32>
    %199 = vector.shape_cast %195 : vector<8x128xf32> to vector<1x8x128xf32>
    tpu.vector_store %arg10[%196, %c0_70, %c0_71], %199 {strides = array<i32>} : memref<8x8x128xf32, #tpu.memory_space<vmem>>, vector<1x8x128xf32>,
    %c4_i32 = arith.constant 4 : i32
    %200 = arith.index_cast %c4_i32 : i32 to index
    %c0_72 = arith.constant 0 : index
    %c0_73 = arith.constant 0 : index
    %201 = vector.load %arg11[%200, %c0_72, %c0_73] : memref<8x8x384xf32, #tpu.memory_space<vmem>>, vector<1x8x384xf32>
    %202 = vector.shape_cast %201 : vector<1x8x384xf32> to vector<8x384xf32>
    %c0_74 = arith.constant 0 : index
    %c0_75 = arith.constant 0 : index
    %c0_76 = arith.constant 0 : index
    %203 = vector.load %arg7[%c0_74, %c0_75, %c0_76] : memref<2x128x384xf32, #tpu.memory_space<vmem>>, vector<1x128x384xf32>
    %204 = vector.shape_cast %203 : vector<1x128x384xf32> to vector<128x384xf32>
    %cst_77 = arith.constant dense<0.000000e+00> : vector<8x384xf32>
    %205 = tpu.matmul %195, %204, %cst_77 {dimension_numbers = #tpu.dot_dimension_numbers<[1], [0], [0], [1], [0, 0, 1, 1], [], []>} : vector<8x128xf32>, vector<128x384xf32>, vector<8x384xf32> -> vector<8x384xf32>
    %c0_78 = arith.constant 0 : index
    %c0_79 = arith.constant 0 : index
    %c0_80 = arith.constant 0 : index
    %206 = vector.load %arg8[%c0_78, %c0_79, %c0_80] : memref<2x1x384xf32, #tpu.memory_space<vmem>>, vector<1x1x384xf32>
    %207 = vector.shape_cast %206 : vector<1x1x384xf32> to vector<1x384xf32>
    %208 = vector.broadcast %207 : vector<1x384xf32> to vector<8x384xf32>
    %209 = arith.addf %205, %208 : vector<8x384xf32>
    %210 = vector.extract_strided_slice %202 {offsets = [0, 0], sizes = [8, 128], strides = [1, 1]} : vector<8x384xf32> to vector<8x128xf32>
    %211 = vector.extract_strided_slice %209 {offsets = [0, 0], sizes = [8, 128], strides = [1, 1]} : vector<8x384xf32> to vector<8x128xf32>
    %212 = arith.addf %210, %211 : vector<8x128xf32>
    %213 = arith.negf %212 : vector<8x128xf32>
    %214 = math.exp %213 : vector<8x128xf32>
    %cst_81 = arith.constant 1.000000e+00 : f32
    %215 = vector.broadcast %cst_81 : f32 to vector<8x128xf32>
    %216 = arith.addf %215, %214 : vector<8x128xf32>
    %217 = arith.divf %215, %216 : vector<8x128xf32>
    %218 = vector.extract_strided_slice %202 {offsets = [0, 128], sizes = [8, 128], strides = [1, 1]} : vector<8x384xf32> to vector<8x128xf32>
    %219 = vector.extract_strided_slice %209 {offsets = [0, 128], sizes = [8, 128], strides = [1, 1]} : vector<8x384xf32> to vector<8x128xf32>
    %220 = arith.addf %218, %219 : vector<8x128xf32>
    %221 = arith.negf %220 : vector<8x128xf32>
    %222 = math.exp %221 : vector<8x128xf32>
    %cst_82 = arith.constant 1.000000e+00 : f32
    %223 = vector.broadcast %cst_82 : f32 to vector<8x128xf32>
    %224 = arith.addf %223, %222 : vector<8x128xf32>
    %225 = arith.divf %223, %224 : vector<8x128xf32>
    %226 = vector.extract_strided_slice %202 {offsets = [0, 256], sizes = [8, 128], strides = [1, 1]} : vector<8x384xf32> to vector<8x128xf32>
    %227 = vector.extract_strided_slice %209 {offsets = [0, 256], sizes = [8, 128], strides = [1, 1]} : vector<8x384xf32> to vector<8x128xf32>
    %228 = arith.mulf %217, %227 : vector<8x128xf32>
    %229 = arith.addf %226, %228 : vector<8x128xf32>
    %230 = math.tanh %229 : vector<8x128xf32>
    %cst_83 = arith.constant 1.000000e+00 : f32
    %231 = vector.broadcast %cst_83 : f32 to vector<8x128xf32>
    %232 = arith.subf %231, %225 : vector<8x128xf32>
    %233 = arith.mulf %232, %230 : vector<8x128xf32>
    %234 = arith.mulf %225, %195 : vector<8x128xf32>
    %235 = arith.addf %233, %234 : vector<8x128xf32>
    %236 = arith.addi %0, %c4_i32 : i32
    %237 = vector.broadcast %236 : i32 to vector<8x1xi32>
    %238 = arith.cmpi slt, %237, %4 : vector<8x1xi32>
    %239 = vector.shape_cast %238 : vector<8x1xi1> to vector<8x1xi1>
    %240 = vector.broadcast %239 : vector<8x1xi1> to vector<8x128xi1>
    %241 = arith.select %240, %235, %195 : vector<8x128xi1>, vector<8x128xf32>
    %242 = arith.index_cast %c4_i32 : i32 to index
    %c0_84 = arith.constant 0 : index
    %c0_85 = arith.constant 0 : index
    %243 = vector.load %arg10[%242, %c0_84, %c0_85] : memref<8x8x128xf32, #tpu.memory_space<vmem>>, vector<1x8x128xf32>
    %244 = vector.shape_cast %243 : vector<1x8x128xf32> to vector<8x128xf32>
    %245 = vector.shape_cast %241 : vector<8x128xf32> to vector<1x8x128xf32>
    tpu.vector_store %arg10[%242, %c0_84, %c0_85], %245 {strides = array<i32>} : memref<8x8x128xf32, #tpu.memory_space<vmem>>, vector<1x8x128xf32>,
    %c5_i32 = arith.constant 5 : i32
    %246 = arith.index_cast %c5_i32 : i32 to index
    %c0_86 = arith.constant 0 : index
    %c0_87 = arith.constant 0 : index
    %247 = vector.load %arg11[%246, %c0_86, %c0_87] : memref<8x8x384xf32, #tpu.memory_space<vmem>>, vector<1x8x384xf32>
    %248 = vector.shape_cast %247 : vector<1x8x384xf32> to vector<8x384xf32>
    %c0_88 = arith.constant 0 : index
    %c0_89 = arith.constant 0 : index
    %c0_90 = arith.constant 0 : index
    %249 = vector.load %arg7[%c0_88, %c0_89, %c0_90] : memref<2x128x384xf32, #tpu.memory_space<vmem>>, vector<1x128x384xf32>
    %250 = vector.shape_cast %249 : vector<1x128x384xf32> to vector<128x384xf32>
    %cst_91 = arith.constant dense<0.000000e+00> : vector<8x384xf32>
    %251 = tpu.matmul %241, %250, %cst_91 {dimension_numbers = #tpu.dot_dimension_numbers<[1], [0], [0], [1], [0, 0, 1, 1], [], []>} : vector<8x128xf32>, vector<128x384xf32>, vector<8x384xf32> -> vector<8x384xf32>
    %c0_92 = arith.constant 0 : index
    %c0_93 = arith.constant 0 : index
    %c0_94 = arith.constant 0 : index
    %252 = vector.load %arg8[%c0_92, %c0_93, %c0_94] : memref<2x1x384xf32, #tpu.memory_space<vmem>>, vector<1x1x384xf32>
    %253 = vector.shape_cast %252 : vector<1x1x384xf32> to vector<1x384xf32>
    %254 = vector.broadcast %253 : vector<1x384xf32> to vector<8x384xf32>
    %255 = arith.addf %251, %254 : vector<8x384xf32>
    %256 = vector.extract_strided_slice %248 {offsets = [0, 0], sizes = [8, 128], strides = [1, 1]} : vector<8x384xf32> to vector<8x128xf32>
    %257 = vector.extract_strided_slice %255 {offsets = [0, 0], sizes = [8, 128], strides = [1, 1]} : vector<8x384xf32> to vector<8x128xf32>
    %258 = arith.addf %256, %257 : vector<8x128xf32>
    %259 = arith.negf %258 : vector<8x128xf32>
    %260 = math.exp %259 : vector<8x128xf32>
    %cst_95 = arith.constant 1.000000e+00 : f32
    %261 = vector.broadcast %cst_95 : f32 to vector<8x128xf32>
    %262 = arith.addf %261, %260 : vector<8x128xf32>
    %263 = arith.divf %261, %262 : vector<8x128xf32>
    %264 = vector.extract_strided_slice %248 {offsets = [0, 128], sizes = [8, 128], strides = [1, 1]} : vector<8x384xf32> to vector<8x128xf32>
    %265 = vector.extract_strided_slice %255 {offsets = [0, 128], sizes = [8, 128], strides = [1, 1]} : vector<8x384xf32> to vector<8x128xf32>
    %266 = arith.addf %264, %265 : vector<8x128xf32>
    %267 = arith.negf %266 : vector<8x128xf32>
    %268 = math.exp %267 : vector<8x128xf32>
    %cst_96 = arith.constant 1.000000e+00 : f32
    %269 = vector.broadcast %cst_96 : f32 to vector<8x128xf32>
    %270 = arith.addf %269, %268 : vector<8x128xf32>
    %271 = arith.divf %269, %270 : vector<8x128xf32>
    %272 = vector.extract_strided_slice %248 {offsets = [0, 256], sizes = [8, 128], strides = [1, 1]} : vector<8x384xf32> to vector<8x128xf32>
    %273 = vector.extract_strided_slice %255 {offsets = [0, 256], sizes = [8, 128], strides = [1, 1]} : vector<8x384xf32> to vector<8x128xf32>
    %274 = arith.mulf %263, %273 : vector<8x128xf32>
    %275 = arith.addf %272, %274 : vector<8x128xf32>
    %276 = math.tanh %275 : vector<8x128xf32>
    %cst_97 = arith.constant 1.000000e+00 : f32
    %277 = vector.broadcast %cst_97 : f32 to vector<8x128xf32>
    %278 = arith.subf %277, %271 : vector<8x128xf32>
    %279 = arith.mulf %278, %276 : vector<8x128xf32>
    %280 = arith.mulf %271, %241 : vector<8x128xf32>
    %281 = arith.addf %279, %280 : vector<8x128xf32>
    %282 = arith.addi %0, %c5_i32 : i32
    %283 = vector.broadcast %282 : i32 to vector<8x1xi32>
    %284 = arith.cmpi slt, %283, %4 : vector<8x1xi32>
    %285 = vector.shape_cast %284 : vector<8x1xi1> to vector<8x1xi1>
    %286 = vector.broadcast %285 : vector<8x1xi1> to vector<8x128xi1>
    %287 = arith.select %286, %281, %241 : vector<8x128xi1>, vector<8x128xf32>
    %288 = arith.index_cast %c5_i32 : i32 to index
    %c0_98 = arith.constant 0 : index
    %c0_99 = arith.constant 0 : index
    %289 = vector.load %arg10[%288, %c0_98, %c0_99] : memref<8x8x128xf32, #tpu.memory_space<vmem>>, vector<1x8x128xf32>
    %290 = vector.shape_cast %289 : vector<1x8x128xf32> to vector<8x128xf32>
    %291 = vector.shape_cast %287 : vector<8x128xf32> to vector<1x8x128xf32>
    tpu.vector_store %arg10[%288, %c0_98, %c0_99], %291 {strides = array<i32>} : memref<8x8x128xf32, #tpu.memory_space<vmem>>, vector<1x8x128xf32>,
    %c6_i32 = arith.constant 6 : i32
    %292 = arith.index_cast %c6_i32 : i32 to index
    %c0_100 = arith.constant 0 : index
    %c0_101 = arith.constant 0 : index
    %293 = vector.load %arg11[%292, %c0_100, %c0_101] : memref<8x8x384xf32, #tpu.memory_space<vmem>>, vector<1x8x384xf32>
    %294 = vector.shape_cast %293 : vector<1x8x384xf32> to vector<8x384xf32>
    %c0_102 = arith.constant 0 : index
    %c0_103 = arith.constant 0 : index
    %c0_104 = arith.constant 0 : index
    %295 = vector.load %arg7[%c0_102, %c0_103, %c0_104] : memref<2x128x384xf32, #tpu.memory_space<vmem>>, vector<1x128x384xf32>
    %296 = vector.shape_cast %295 : vector<1x128x384xf32> to vector<128x384xf32>
    %cst_105 = arith.constant dense<0.000000e+00> : vector<8x384xf32>
    %297 = tpu.matmul %287, %296, %cst_105 {dimension_numbers = #tpu.dot_dimension_numbers<[1], [0], [0], [1], [0, 0, 1, 1], [], []>} : vector<8x128xf32>, vector<128x384xf32>, vector<8x384xf32> -> vector<8x384xf32>
    %c0_106 = arith.constant 0 : index
    %c0_107 = arith.constant 0 : index
    %c0_108 = arith.constant 0 : index
    %298 = vector.load %arg8[%c0_106, %c0_107, %c0_108] : memref<2x1x384xf32, #tpu.memory_space<vmem>>, vector<1x1x384xf32>
    %299 = vector.shape_cast %298 : vector<1x1x384xf32> to vector<1x384xf32>
    %300 = vector.broadcast %299 : vector<1x384xf32> to vector<8x384xf32>
    %301 = arith.addf %297, %300 : vector<8x384xf32>
    %302 = vector.extract_strided_slice %294 {offsets = [0, 0], sizes = [8, 128], strides = [1, 1]} : vector<8x384xf32> to vector<8x128xf32>
    %303 = vector.extract_strided_slice %301 {offsets = [0, 0], sizes = [8, 128], strides = [1, 1]} : vector<8x384xf32> to vector<8x128xf32>
    %304 = arith.addf %302, %303 : vector<8x128xf32>
    %305 = arith.negf %304 : vector<8x128xf32>
    %306 = math.exp %305 : vector<8x128xf32>
    %cst_109 = arith.constant 1.000000e+00 : f32
    %307 = vector.broadcast %cst_109 : f32 to vector<8x128xf32>
    %308 = arith.addf %307, %306 : vector<8x128xf32>
    %309 = arith.divf %307, %308 : vector<8x128xf32>
    %310 = vector.extract_strided_slice %294 {offsets = [0, 128], sizes = [8, 128], strides = [1, 1]} : vector<8x384xf32> to vector<8x128xf32>
    %311 = vector.extract_strided_slice %301 {offsets = [0, 128], sizes = [8, 128], strides = [1, 1]} : vector<8x384xf32> to vector<8x128xf32>
    %312 = arith.addf %310, %311 : vector<8x128xf32>
    %313 = arith.negf %312 : vector<8x128xf32>
    %314 = math.exp %313 : vector<8x128xf32>
    %cst_110 = arith.constant 1.000000e+00 : f32
    %315 = vector.broadcast %cst_110 : f32 to vector<8x128xf32>
    %316 = arith.addf %315, %314 : vector<8x128xf32>
    %317 = arith.divf %315, %316 : vector<8x128xf32>
    %318 = vector.extract_strided_slice %294 {offsets = [0, 256], sizes = [8, 128], strides = [1, 1]} : vector<8x384xf32> to vector<8x128xf32>
    %319 = vector.extract_strided_slice %301 {offsets = [0, 256], sizes = [8, 128], strides = [1, 1]} : vector<8x384xf32> to vector<8x128xf32>
    %320 = arith.mulf %309, %319 : vector<8x128xf32>
    %321 = arith.addf %318, %320 : vector<8x128xf32>
    %322 = math.tanh %321 : vector<8x128xf32>
    %cst_111 = arith.constant 1.000000e+00 : f32
    %323 = vector.broadcast %cst_111 : f32 to vector<8x128xf32>
    %324 = arith.subf %323, %317 : vector<8x128xf32>
    %325 = arith.mulf %324, %322 : vector<8x128xf32>
    %326 = arith.mulf %317, %287 : vector<8x128xf32>
    %327 = arith.addf %325, %326 : vector<8x128xf32>
    %328 = arith.addi %0, %c6_i32 : i32
    %329 = vector.broadcast %328 : i32 to vector<8x1xi32>
    %330 = arith.cmpi slt, %329, %4 : vector<8x1xi32>
    %331 = vector.shape_cast %330 : vector<8x1xi1> to vector<8x1xi1>
    %332 = vector.broadcast %331 : vector<8x1xi1> to vector<8x128xi1>
    %333 = arith.select %332, %327, %287 : vector<8x128xi1>, vector<8x128xf32>
    %334 = arith.index_cast %c6_i32 : i32 to index
    %c0_112 = arith.constant 0 : index
    %c0_113 = arith.constant 0 : index
    %335 = vector.load %arg10[%334, %c0_112, %c0_113] : memref<8x8x128xf32, #tpu.memory_space<vmem>>, vector<1x8x128xf32>
    %336 = vector.shape_cast %335 : vector<1x8x128xf32> to vector<8x128xf32>
    %337 = vector.shape_cast %333 : vector<8x128xf32> to vector<1x8x128xf32>
    tpu.vector_store %arg10[%334, %c0_112, %c0_113], %337 {strides = array<i32>} : memref<8x8x128xf32, #tpu.memory_space<vmem>>, vector<1x8x128xf32>,
    %c7_i32 = arith.constant 7 : i32
    %338 = arith.index_cast %c7_i32 : i32 to index
    %c0_114 = arith.constant 0 : index
    %c0_115 = arith.constant 0 : index
    %339 = vector.load %arg11[%338, %c0_114, %c0_115] : memref<8x8x384xf32, #tpu.memory_space<vmem>>, vector<1x8x384xf32>
    %340 = vector.shape_cast %339 : vector<1x8x384xf32> to vector<8x384xf32>
    %c0_116 = arith.constant 0 : index
    %c0_117 = arith.constant 0 : index
    %c0_118 = arith.constant 0 : index
    %341 = vector.load %arg7[%c0_116, %c0_117, %c0_118] : memref<2x128x384xf32, #tpu.memory_space<vmem>>, vector<1x128x384xf32>
    %342 = vector.shape_cast %341 : vector<1x128x384xf32> to vector<128x384xf32>
    %cst_119 = arith.constant dense<0.000000e+00> : vector<8x384xf32>
    %343 = tpu.matmul %333, %342, %cst_119 {dimension_numbers = #tpu.dot_dimension_numbers<[1], [0], [0], [1], [0, 0, 1, 1], [], []>} : vector<8x128xf32>, vector<128x384xf32>, vector<8x384xf32> -> vector<8x384xf32>
    %c0_120 = arith.constant 0 : index
    %c0_121 = arith.constant 0 : index
    %c0_122 = arith.constant 0 : index
    %344 = vector.load %arg8[%c0_120, %c0_121, %c0_122] : memref<2x1x384xf32, #tpu.memory_space<vmem>>, vector<1x1x384xf32>
    %345 = vector.shape_cast %344 : vector<1x1x384xf32> to vector<1x384xf32>
    %346 = vector.broadcast %345 : vector<1x384xf32> to vector<8x384xf32>
    %347 = arith.addf %343, %346 : vector<8x384xf32>
    %348 = vector.extract_strided_slice %340 {offsets = [0, 0], sizes = [8, 128], strides = [1, 1]} : vector<8x384xf32> to vector<8x128xf32>
    %349 = vector.extract_strided_slice %347 {offsets = [0, 0], sizes = [8, 128], strides = [1, 1]} : vector<8x384xf32> to vector<8x128xf32>
    %350 = arith.addf %348, %349 : vector<8x128xf32>
    %351 = arith.negf %350 : vector<8x128xf32>
    %352 = math.exp %351 : vector<8x128xf32>
    %cst_123 = arith.constant 1.000000e+00 : f32
    %353 = vector.broadcast %cst_123 : f32 to vector<8x128xf32>
    %354 = arith.addf %353, %352 : vector<8x128xf32>
    %355 = arith.divf %353, %354 : vector<8x128xf32>
    %356 = vector.extract_strided_slice %340 {offsets = [0, 128], sizes = [8, 128], strides = [1, 1]} : vector<8x384xf32> to vector<8x128xf32>
    %357 = vector.extract_strided_slice %347 {offsets = [0, 128], sizes = [8, 128], strides = [1, 1]} : vector<8x384xf32> to vector<8x128xf32>
    %358 = arith.addf %356, %357 : vector<8x128xf32>
    %359 = arith.negf %358 : vector<8x128xf32>
    %360 = math.exp %359 : vector<8x128xf32>
    %cst_124 = arith.constant 1.000000e+00 : f32
    %361 = vector.broadcast %cst_124 : f32 to vector<8x128xf32>
    %362 = arith.addf %361, %360 : vector<8x128xf32>
    %363 = arith.divf %361, %362 : vector<8x128xf32>
    %364 = vector.extract_strided_slice %340 {offsets = [0, 256], sizes = [8, 128], strides = [1, 1]} : vector<8x384xf32> to vector<8x128xf32>
    %365 = vector.extract_strided_slice %347 {offsets = [0, 256], sizes = [8, 128], strides = [1, 1]} : vector<8x384xf32> to vector<8x128xf32>
    %366 = arith.mulf %355, %365 : vector<8x128xf32>
    %367 = arith.addf %364, %366 : vector<8x128xf32>
    %368 = math.tanh %367 : vector<8x128xf32>
    %cst_125 = arith.constant 1.000000e+00 : f32
    %369 = vector.broadcast %cst_125 : f32 to vector<8x128xf32>
    %370 = arith.subf %369, %363 : vector<8x128xf32>
    %371 = arith.mulf %370, %368 : vector<8x128xf32>
    %372 = arith.mulf %363, %333 : vector<8x128xf32>
    %373 = arith.addf %371, %372 : vector<8x128xf32>
    %374 = arith.addi %0, %c7_i32 : i32
    %375 = vector.broadcast %374 : i32 to vector<8x1xi32>
    %376 = arith.cmpi slt, %375, %4 : vector<8x1xi32>
    %377 = vector.shape_cast %376 : vector<8x1xi1> to vector<8x1xi1>
    %378 = vector.broadcast %377 : vector<8x1xi1> to vector<8x128xi1>
    %379 = arith.select %378, %373, %333 : vector<8x128xi1>, vector<8x128xf32>
    %380 = arith.index_cast %c7_i32 : i32 to index
    %c0_126 = arith.constant 0 : index
    %c0_127 = arith.constant 0 : index
    %381 = vector.load %arg10[%380, %c0_126, %c0_127] : memref<8x8x128xf32, #tpu.memory_space<vmem>>, vector<1x8x128xf32>
    %382 = vector.shape_cast %381 : vector<1x8x128xf32> to vector<8x128xf32>
    %383 = vector.shape_cast %379 : vector<8x128xf32> to vector<1x8x128xf32>
    tpu.vector_store %arg10[%380, %c0_126, %c0_127], %383 {strides = array<i32>} : memref<8x8x128xf32, #tpu.memory_space<vmem>>, vector<1x8x128xf32>,
    %c8_i32_128 = arith.constant 8 : i32
    %c0_129 = arith.constant 0 : index
    %c0_130 = arith.constant 0 : index
    %c0_131 = arith.constant 0 : index
    %384 = vector.load %arg9[%c0_129, %c0_130, %c0_131] : memref<2x8x128xf32, #tpu.memory_space<vmem>>, vector<1x8x128xf32>
    %385 = vector.shape_cast %384 : vector<1x8x128xf32> to vector<8x128xf32>
    %386 = vector.shape_cast %379 : vector<8x128xf32> to vector<1x8x128xf32>
    tpu.vector_store %arg9[%c0_129, %c0_130, %c0_131], %386 {strides = array<i32>} : memref<2x8x128xf32, #tpu.memory_space<vmem>>, vector<1x8x128xf32>,
    %c0_132 = arith.constant 0 : index
    %c0_133 = arith.constant 0 : index
    %c0_134 = arith.constant 0 : index
    %387 = vector.load %arg10[%c0_132, %c0_133, %c0_134] : memref<8x8x128xf32, #tpu.memory_space<vmem>>, vector<8x8x128xf32>
    %388 = vector.shape_cast %387 : vector<8x8x128xf32> to vector<64x128xf32>
    %c0_135 = arith.constant 0 : index
    %c0_136 = arith.constant 0 : index
    %c0_137 = arith.constant 0 : index
    %389 = vector.load %arg5[%c0_135, %c0_136, %c0_137] : memref<1x128x384xf32, #tpu.memory_space<vmem>>, vector<1x128x384xf32>
    %390 = vector.shape_cast %389 : vector<1x128x384xf32> to vector<128x384xf32>
    %c0_138 = arith.constant 0 : index
    %c0_139 = arith.constant 0 : index
    %c0_140 = arith.constant 0 : index
    %391 = vector.load %arg6[%c0_138, %c0_139, %c0_140] : memref<1x1x384xf32, #tpu.memory_space<vmem>>, vector<1x1x384xf32>
    %392 = vector.shape_cast %391 : vector<1x1x384xf32> to vector<1x384xf32>
    %cst_141 = arith.constant dense<0.000000e+00> : vector<64x384xf32>
    %393 = tpu.matmul %388, %390, %cst_141 {dimension_numbers = #tpu.dot_dimension_numbers<[1], [0], [0], [1], [0, 0, 1, 1], [], []>} : vector<64x128xf32>, vector<128x384xf32>, vector<64x384xf32> -> vector<64x384xf32>
    %394 = vector.broadcast %392 : vector<1x384xf32> to vector<64x384xf32>
    %395 = arith.addf %393, %394 : vector<64x384xf32>
    %396 = vector.shape_cast %395 : vector<64x384xf32> to vector<8x8x384xf32>
    %c0_142 = arith.constant 0 : index
    %c0_143 = arith.constant 0 : index
    %c0_144 = arith.constant 0 : index
    %397 = vector.load %arg11[%c0_142, %c0_143, %c0_144] : memref<8x8x384xf32, #tpu.memory_space<vmem>>, vector<8x8x384xf32>
    tpu.vector_store %arg11[%c0_142, %c0_143, %c0_144], %396 {strides = array<i32>} : memref<8x8x384xf32, #tpu.memory_space<vmem>>, vector<8x8x384xf32>,
    %c1 = arith.constant 1 : index
    %c0_145 = arith.constant 0 : index
    %c0_146 = arith.constant 0 : index
    %398 = vector.load %arg9[%c1, %c0_145, %c0_146] : memref<2x8x128xf32, #tpu.memory_space<vmem>>, vector<1x8x128xf32>
    %399 = vector.shape_cast %398 : vector<1x8x128xf32> to vector<8x128xf32>
    %c0_i32_147 = arith.constant 0 : i32
    %400 = arith.index_cast %c0_i32_147 : i32 to index
    %c0_148 = arith.constant 0 : index
    %c0_149 = arith.constant 0 : index
    %401 = vector.load %arg11[%400, %c0_148, %c0_149] : memref<8x8x384xf32, #tpu.memory_space<vmem>>, vector<1x8x384xf32>
    %402 = vector.shape_cast %401 : vector<1x8x384xf32> to vector<8x384xf32>
    %c1_150 = arith.constant 1 : index
    %c0_151 = arith.constant 0 : index
    %c0_152 = arith.constant 0 : index
    %403 = vector.load %arg7[%c1_150, %c0_151, %c0_152] : memref<2x128x384xf32, #tpu.memory_space<vmem>>, vector<1x128x384xf32>
    %404 = vector.shape_cast %403 : vector<1x128x384xf32> to vector<128x384xf32>
    %cst_153 = arith.constant dense<0.000000e+00> : vector<8x384xf32>
    %405 = tpu.matmul %399, %404, %cst_153 {dimension_numbers = #tpu.dot_dimension_numbers<[1], [0], [0], [1], [0, 0, 1, 1], [], []>} : vector<8x128xf32>, vector<128x384xf32>, vector<8x384xf32> -> vector<8x384xf32>
    %c1_154 = arith.constant 1 : index
    %c0_155 = arith.constant 0 : index
    %c0_156 = arith.constant 0 : index
    %406 = vector.load %arg8[%c1_154, %c0_155, %c0_156] : memref<2x1x384xf32, #tpu.memory_space<vmem>>, vector<1x1x384xf32>
    %407 = vector.shape_cast %406 : vector<1x1x384xf32> to vector<1x384xf32>
    %408 = vector.broadcast %407 : vector<1x384xf32> to vector<8x384xf32>
    %409 = arith.addf %405, %408 : vector<8x384xf32>
    %410 = vector.extract_strided_slice %402 {offsets = [0, 0], sizes = [8, 128], strides = [1, 1]} : vector<8x384xf32> to vector<8x128xf32>
    %411 = vector.extract_strided_slice %409 {offsets = [0, 0], sizes = [8, 128], strides = [1, 1]} : vector<8x384xf32> to vector<8x128xf32>
    %412 = arith.addf %410, %411 : vector<8x128xf32>
    %413 = arith.negf %412 : vector<8x128xf32>
    %414 = math.exp %413 : vector<8x128xf32>
    %cst_157 = arith.constant 1.000000e+00 : f32
    %415 = vector.broadcast %cst_157 : f32 to vector<8x128xf32>
    %416 = arith.addf %415, %414 : vector<8x128xf32>
    %417 = arith.divf %415, %416 : vector<8x128xf32>
    %418 = vector.extract_strided_slice %402 {offsets = [0, 128], sizes = [8, 128], strides = [1, 1]} : vector<8x384xf32> to vector<8x128xf32>
    %419 = vector.extract_strided_slice %409 {offsets = [0, 128], sizes = [8, 128], strides = [1, 1]} : vector<8x384xf32> to vector<8x128xf32>
    %420 = arith.addf %418, %419 : vector<8x128xf32>
    %421 = arith.negf %420 : vector<8x128xf32>
    %422 = math.exp %421 : vector<8x128xf32>
    %cst_158 = arith.constant 1.000000e+00 : f32
    %423 = vector.broadcast %cst_158 : f32 to vector<8x128xf32>
    %424 = arith.addf %423, %422 : vector<8x128xf32>
    %425 = arith.divf %423, %424 : vector<8x128xf32>
    %426 = vector.extract_strided_slice %402 {offsets = [0, 256], sizes = [8, 128], strides = [1, 1]} : vector<8x384xf32> to vector<8x128xf32>
    %427 = vector.extract_strided_slice %409 {offsets = [0, 256], sizes = [8, 128], strides = [1, 1]} : vector<8x384xf32> to vector<8x128xf32>
    %428 = arith.mulf %417, %427 : vector<8x128xf32>
    %429 = arith.addf %426, %428 : vector<8x128xf32>
    %430 = math.tanh %429 : vector<8x128xf32>
    %cst_159 = arith.constant 1.000000e+00 : f32
    %431 = vector.broadcast %cst_159 : f32 to vector<8x128xf32>
    %432 = arith.subf %431, %425 : vector<8x128xf32>
    %433 = arith.mulf %432, %430 : vector<8x128xf32>
    %434 = arith.mulf %425, %399 : vector<8x128xf32>
    %435 = arith.addf %433, %434 : vector<8x128xf32>
    %436 = arith.addi %0, %c0_i32_147 : i32
    %437 = vector.broadcast %436 : i32 to vector<8x1xi32>
    %438 = arith.cmpi slt, %437, %4 : vector<8x1xi32>
    %439 = vector.shape_cast %438 : vector<8x1xi1> to vector<8x1xi1>
    %440 = vector.broadcast %439 : vector<8x1xi1> to vector<8x128xi1>
    %441 = arith.select %440, %435, %399 : vector<8x128xi1>, vector<8x128xf32>
    %442 = arith.index_cast %c0_i32_147 : i32 to index
    %c0_160 = arith.constant 0 : index
    %c0_161 = arith.constant 0 : index
    %443 = vector.load %arg10[%442, %c0_160, %c0_161] : memref<8x8x128xf32, #tpu.memory_space<vmem>>, vector<1x8x128xf32>
    %444 = vector.shape_cast %443 : vector<1x8x128xf32> to vector<8x128xf32>
    %445 = vector.shape_cast %441 : vector<8x128xf32> to vector<1x8x128xf32>
    tpu.vector_store %arg10[%442, %c0_160, %c0_161], %445 {strides = array<i32>} : memref<8x8x128xf32, #tpu.memory_space<vmem>>, vector<1x8x128xf32>,
    %c1_i32_162 = arith.constant 1 : i32
    %446 = arith.index_cast %c1_i32_162 : i32 to index
    %c0_163 = arith.constant 0 : index
    %c0_164 = arith.constant 0 : index
    %447 = vector.load %arg11[%446, %c0_163, %c0_164] : memref<8x8x384xf32, #tpu.memory_space<vmem>>, vector<1x8x384xf32>
    %448 = vector.shape_cast %447 : vector<1x8x384xf32> to vector<8x384xf32>
    %c1_165 = arith.constant 1 : index
    %c0_166 = arith.constant 0 : index
    %c0_167 = arith.constant 0 : index
    %449 = vector.load %arg7[%c1_165, %c0_166, %c0_167] : memref<2x128x384xf32, #tpu.memory_space<vmem>>, vector<1x128x384xf32>
    %450 = vector.shape_cast %449 : vector<1x128x384xf32> to vector<128x384xf32>
    %cst_168 = arith.constant dense<0.000000e+00> : vector<8x384xf32>
    %451 = tpu.matmul %441, %450, %cst_168 {dimension_numbers = #tpu.dot_dimension_numbers<[1], [0], [0], [1], [0, 0, 1, 1], [], []>} : vector<8x128xf32>, vector<128x384xf32>, vector<8x384xf32> -> vector<8x384xf32>
    %c1_169 = arith.constant 1 : index
    %c0_170 = arith.constant 0 : index
    %c0_171 = arith.constant 0 : index
    %452 = vector.load %arg8[%c1_169, %c0_170, %c0_171] : memref<2x1x384xf32, #tpu.memory_space<vmem>>, vector<1x1x384xf32>
    %453 = vector.shape_cast %452 : vector<1x1x384xf32> to vector<1x384xf32>
    %454 = vector.broadcast %453 : vector<1x384xf32> to vector<8x384xf32>
    %455 = arith.addf %451, %454 : vector<8x384xf32>
    %456 = vector.extract_strided_slice %448 {offsets = [0, 0], sizes = [8, 128], strides = [1, 1]} : vector<8x384xf32> to vector<8x128xf32>
    %457 = vector.extract_strided_slice %455 {offsets = [0, 0], sizes = [8, 128], strides = [1, 1]} : vector<8x384xf32> to vector<8x128xf32>
    %458 = arith.addf %456, %457 : vector<8x128xf32>
    %459 = arith.negf %458 : vector<8x128xf32>
    %460 = math.exp %459 : vector<8x128xf32>
    %cst_172 = arith.constant 1.000000e+00 : f32
    %461 = vector.broadcast %cst_172 : f32 to vector<8x128xf32>
    %462 = arith.addf %461, %460 : vector<8x128xf32>
    %463 = arith.divf %461, %462 : vector<8x128xf32>
    %464 = vector.extract_strided_slice %448 {offsets = [0, 128], sizes = [8, 128], strides = [1, 1]} : vector<8x384xf32> to vector<8x128xf32>
    %465 = vector.extract_strided_slice %455 {offsets = [0, 128], sizes = [8, 128], strides = [1, 1]} : vector<8x384xf32> to vector<8x128xf32>
    %466 = arith.addf %464, %465 : vector<8x128xf32>
    %467 = arith.negf %466 : vector<8x128xf32>
    %468 = math.exp %467 : vector<8x128xf32>
    %cst_173 = arith.constant 1.000000e+00 : f32
    %469 = vector.broadcast %cst_173 : f32 to vector<8x128xf32>
    %470 = arith.addf %469, %468 : vector<8x128xf32>
    %471 = arith.divf %469, %470 : vector<8x128xf32>
    %472 = vector.extract_strided_slice %448 {offsets = [0, 256], sizes = [8, 128], strides = [1, 1]} : vector<8x384xf32> to vector<8x128xf32>
    %473 = vector.extract_strided_slice %455 {offsets = [0, 256], sizes = [8, 128], strides = [1, 1]} : vector<8x384xf32> to vector<8x128xf32>
    %474 = arith.mulf %463, %473 : vector<8x128xf32>
    %475 = arith.addf %472, %474 : vector<8x128xf32>
    %476 = math.tanh %475 : vector<8x128xf32>
    %cst_174 = arith.constant 1.000000e+00 : f32
    %477 = vector.broadcast %cst_174 : f32 to vector<8x128xf32>
    %478 = arith.subf %477, %471 : vector<8x128xf32>
    %479 = arith.mulf %478, %476 : vector<8x128xf32>
    %480 = arith.mulf %471, %441 : vector<8x128xf32>
    %481 = arith.addf %479, %480 : vector<8x128xf32>
    %482 = arith.addi %0, %c1_i32_162 : i32
    %483 = vector.broadcast %482 : i32 to vector<8x1xi32>
    %484 = arith.cmpi slt, %483, %4 : vector<8x1xi32>
    %485 = vector.shape_cast %484 : vector<8x1xi1> to vector<8x1xi1>
    %486 = vector.broadcast %485 : vector<8x1xi1> to vector<8x128xi1>
    %487 = arith.select %486, %481, %441 : vector<8x128xi1>, vector<8x128xf32>
    %488 = arith.index_cast %c1_i32_162 : i32 to index
    %c0_175 = arith.constant 0 : index
    %c0_176 = arith.constant 0 : index
    %489 = vector.load %arg10[%488, %c0_175, %c0_176] : memref<8x8x128xf32, #tpu.memory_space<vmem>>, vector<1x8x128xf32>
    %490 = vector.shape_cast %489 : vector<1x8x128xf32> to vector<8x128xf32>
    %491 = vector.shape_cast %487 : vector<8x128xf32> to vector<1x8x128xf32>
    tpu.vector_store %arg10[%488, %c0_175, %c0_176], %491 {strides = array<i32>} : memref<8x8x128xf32, #tpu.memory_space<vmem>>, vector<1x8x128xf32>,
    %c2_i32_177 = arith.constant 2 : i32
    %492 = arith.index_cast %c2_i32_177 : i32 to index
    %c0_178 = arith.constant 0 : index
    %c0_179 = arith.constant 0 : index
    %493 = vector.load %arg11[%492, %c0_178, %c0_179] : memref<8x8x384xf32, #tpu.memory_space<vmem>>, vector<1x8x384xf32>
    %494 = vector.shape_cast %493 : vector<1x8x384xf32> to vector<8x384xf32>
    %c1_180 = arith.constant 1 : index
    %c0_181 = arith.constant 0 : index
    %c0_182 = arith.constant 0 : index
    %495 = vector.load %arg7[%c1_180, %c0_181, %c0_182] : memref<2x128x384xf32, #tpu.memory_space<vmem>>, vector<1x128x384xf32>
    %496 = vector.shape_cast %495 : vector<1x128x384xf32> to vector<128x384xf32>
    %cst_183 = arith.constant dense<0.000000e+00> : vector<8x384xf32>
    %497 = tpu.matmul %487, %496, %cst_183 {dimension_numbers = #tpu.dot_dimension_numbers<[1], [0], [0], [1], [0, 0, 1, 1], [], []>} : vector<8x128xf32>, vector<128x384xf32>, vector<8x384xf32> -> vector<8x384xf32>
    %c1_184 = arith.constant 1 : index
    %c0_185 = arith.constant 0 : index
    %c0_186 = arith.constant 0 : index
    %498 = vector.load %arg8[%c1_184, %c0_185, %c0_186] : memref<2x1x384xf32, #tpu.memory_space<vmem>>, vector<1x1x384xf32>
    %499 = vector.shape_cast %498 : vector<1x1x384xf32> to vector<1x384xf32>
    %500 = vector.broadcast %499 : vector<1x384xf32> to vector<8x384xf32>
    %501 = arith.addf %497, %500 : vector<8x384xf32>
    %502 = vector.extract_strided_slice %494 {offsets = [0, 0], sizes = [8, 128], strides = [1, 1]} : vector<8x384xf32> to vector<8x128xf32>
    %503 = vector.extract_strided_slice %501 {offsets = [0, 0], sizes = [8, 128], strides = [1, 1]} : vector<8x384xf32> to vector<8x128xf32>
    %504 = arith.addf %502, %503 : vector<8x128xf32>
    %505 = arith.negf %504 : vector<8x128xf32>
    %506 = math.exp %505 : vector<8x128xf32>
    %cst_187 = arith.constant 1.000000e+00 : f32
    %507 = vector.broadcast %cst_187 : f32 to vector<8x128xf32>
    %508 = arith.addf %507, %506 : vector<8x128xf32>
    %509 = arith.divf %507, %508 : vector<8x128xf32>
    %510 = vector.extract_strided_slice %494 {offsets = [0, 128], sizes = [8, 128], strides = [1, 1]} : vector<8x384xf32> to vector<8x128xf32>
    %511 = vector.extract_strided_slice %501 {offsets = [0, 128], sizes = [8, 128], strides = [1, 1]} : vector<8x384xf32> to vector<8x128xf32>
    %512 = arith.addf %510, %511 : vector<8x128xf32>
    %513 = arith.negf %512 : vector<8x128xf32>
    %514 = math.exp %513 : vector<8x128xf32>
    %cst_188 = arith.constant 1.000000e+00 : f32
    %515 = vector.broadcast %cst_188 : f32 to vector<8x128xf32>
    %516 = arith.addf %515, %514 : vector<8x128xf32>
    %517 = arith.divf %515, %516 : vector<8x128xf32>
    %518 = vector.extract_strided_slice %494 {offsets = [0, 256], sizes = [8, 128], strides = [1, 1]} : vector<8x384xf32> to vector<8x128xf32>
    %519 = vector.extract_strided_slice %501 {offsets = [0, 256], sizes = [8, 128], strides = [1, 1]} : vector<8x384xf32> to vector<8x128xf32>
    %520 = arith.mulf %509, %519 : vector<8x128xf32>
    %521 = arith.addf %518, %520 : vector<8x128xf32>
    %522 = math.tanh %521 : vector<8x128xf32>
    %cst_189 = arith.constant 1.000000e+00 : f32
    %523 = vector.broadcast %cst_189 : f32 to vector<8x128xf32>
    %524 = arith.subf %523, %517 : vector<8x128xf32>
    %525 = arith.mulf %524, %522 : vector<8x128xf32>
    %526 = arith.mulf %517, %487 : vector<8x128xf32>
    %527 = arith.addf %525, %526 : vector<8x128xf32>
    %528 = arith.addi %0, %c2_i32_177 : i32
    %529 = vector.broadcast %528 : i32 to vector<8x1xi32>
    %530 = arith.cmpi slt, %529, %4 : vector<8x1xi32>
    %531 = vector.shape_cast %530 : vector<8x1xi1> to vector<8x1xi1>
    %532 = vector.broadcast %531 : vector<8x1xi1> to vector<8x128xi1>
    %533 = arith.select %532, %527, %487 : vector<8x128xi1>, vector<8x128xf32>
    %534 = arith.index_cast %c2_i32_177 : i32 to index
    %c0_190 = arith.constant 0 : index
    %c0_191 = arith.constant 0 : index
    %535 = vector.load %arg10[%534, %c0_190, %c0_191] : memref<8x8x128xf32, #tpu.memory_space<vmem>>, vector<1x8x128xf32>
    %536 = vector.shape_cast %535 : vector<1x8x128xf32> to vector<8x128xf32>
    %537 = vector.shape_cast %533 : vector<8x128xf32> to vector<1x8x128xf32>
    tpu.vector_store %arg10[%534, %c0_190, %c0_191], %537 {strides = array<i32>} : memref<8x8x128xf32, #tpu.memory_space<vmem>>, vector<1x8x128xf32>,
    %c3_i32_192 = arith.constant 3 : i32
    %538 = arith.index_cast %c3_i32_192 : i32 to index
    %c0_193 = arith.constant 0 : index
    %c0_194 = arith.constant 0 : index
    %539 = vector.load %arg11[%538, %c0_193, %c0_194] : memref<8x8x384xf32, #tpu.memory_space<vmem>>, vector<1x8x384xf32>
    %540 = vector.shape_cast %539 : vector<1x8x384xf32> to vector<8x384xf32>
    %c1_195 = arith.constant 1 : index
    %c0_196 = arith.constant 0 : index
    %c0_197 = arith.constant 0 : index
    %541 = vector.load %arg7[%c1_195, %c0_196, %c0_197] : memref<2x128x384xf32, #tpu.memory_space<vmem>>, vector<1x128x384xf32>
    %542 = vector.shape_cast %541 : vector<1x128x384xf32> to vector<128x384xf32>
    %cst_198 = arith.constant dense<0.000000e+00> : vector<8x384xf32>
    %543 = tpu.matmul %533, %542, %cst_198 {dimension_numbers = #tpu.dot_dimension_numbers<[1], [0], [0], [1], [0, 0, 1, 1], [], []>} : vector<8x128xf32>, vector<128x384xf32>, vector<8x384xf32> -> vector<8x384xf32>
    %c1_199 = arith.constant 1 : index
    %c0_200 = arith.constant 0 : index
    %c0_201 = arith.constant 0 : index
    %544 = vector.load %arg8[%c1_199, %c0_200, %c0_201] : memref<2x1x384xf32, #tpu.memory_space<vmem>>, vector<1x1x384xf32>
    %545 = vector.shape_cast %544 : vector<1x1x384xf32> to vector<1x384xf32>
    %546 = vector.broadcast %545 : vector<1x384xf32> to vector<8x384xf32>
    %547 = arith.addf %543, %546 : vector<8x384xf32>
    %548 = vector.extract_strided_slice %540 {offsets = [0, 0], sizes = [8, 128], strides = [1, 1]} : vector<8x384xf32> to vector<8x128xf32>
    %549 = vector.extract_strided_slice %547 {offsets = [0, 0], sizes = [8, 128], strides = [1, 1]} : vector<8x384xf32> to vector<8x128xf32>
    %550 = arith.addf %548, %549 : vector<8x128xf32>
    %551 = arith.negf %550 : vector<8x128xf32>
    %552 = math.exp %551 : vector<8x128xf32>
    %cst_202 = arith.constant 1.000000e+00 : f32
    %553 = vector.broadcast %cst_202 : f32 to vector<8x128xf32>
    %554 = arith.addf %553, %552 : vector<8x128xf32>
    %555 = arith.divf %553, %554 : vector<8x128xf32>
    %556 = vector.extract_strided_slice %540 {offsets = [0, 128], sizes = [8, 128], strides = [1, 1]} : vector<8x384xf32> to vector<8x128xf32>
    %557 = vector.extract_strided_slice %547 {offsets = [0, 128], sizes = [8, 128], strides = [1, 1]} : vector<8x384xf32> to vector<8x128xf32>
    %558 = arith.addf %556, %557 : vector<8x128xf32>
    %559 = arith.negf %558 : vector<8x128xf32>
    %560 = math.exp %559 : vector<8x128xf32>
    %cst_203 = arith.constant 1.000000e+00 : f32
    %561 = vector.broadcast %cst_203 : f32 to vector<8x128xf32>
    %562 = arith.addf %561, %560 : vector<8x128xf32>
    %563 = arith.divf %561, %562 : vector<8x128xf32>
    %564 = vector.extract_strided_slice %540 {offsets = [0, 256], sizes = [8, 128], strides = [1, 1]} : vector<8x384xf32> to vector<8x128xf32>
    %565 = vector.extract_strided_slice %547 {offsets = [0, 256], sizes = [8, 128], strides = [1, 1]} : vector<8x384xf32> to vector<8x128xf32>
    %566 = arith.mulf %555, %565 : vector<8x128xf32>
    %567 = arith.addf %564, %566 : vector<8x128xf32>
    %568 = math.tanh %567 : vector<8x128xf32>
    %cst_204 = arith.constant 1.000000e+00 : f32
    %569 = vector.broadcast %cst_204 : f32 to vector<8x128xf32>
    %570 = arith.subf %569, %563 : vector<8x128xf32>
    %571 = arith.mulf %570, %568 : vector<8x128xf32>
    %572 = arith.mulf %563, %533 : vector<8x128xf32>
    %573 = arith.addf %571, %572 : vector<8x128xf32>
    %574 = arith.addi %0, %c3_i32_192 : i32
    %575 = vector.broadcast %574 : i32 to vector<8x1xi32>
    %576 = arith.cmpi slt, %575, %4 : vector<8x1xi32>
    %577 = vector.shape_cast %576 : vector<8x1xi1> to vector<8x1xi1>
    %578 = vector.broadcast %577 : vector<8x1xi1> to vector<8x128xi1>
    %579 = arith.select %578, %573, %533 : vector<8x128xi1>, vector<8x128xf32>
    %580 = arith.index_cast %c3_i32_192 : i32 to index
    %c0_205 = arith.constant 0 : index
    %c0_206 = arith.constant 0 : index
    %581 = vector.load %arg10[%580, %c0_205, %c0_206] : memref<8x8x128xf32, #tpu.memory_space<vmem>>, vector<1x8x128xf32>
    %582 = vector.shape_cast %581 : vector<1x8x128xf32> to vector<8x128xf32>
    %583 = vector.shape_cast %579 : vector<8x128xf32> to vector<1x8x128xf32>
    tpu.vector_store %arg10[%580, %c0_205, %c0_206], %583 {strides = array<i32>} : memref<8x8x128xf32, #tpu.memory_space<vmem>>, vector<1x8x128xf32>,
    %c4_i32_207 = arith.constant 4 : i32
    %584 = arith.index_cast %c4_i32_207 : i32 to index
    %c0_208 = arith.constant 0 : index
    %c0_209 = arith.constant 0 : index
    %585 = vector.load %arg11[%584, %c0_208, %c0_209] : memref<8x8x384xf32, #tpu.memory_space<vmem>>, vector<1x8x384xf32>
    %586 = vector.shape_cast %585 : vector<1x8x384xf32> to vector<8x384xf32>
    %c1_210 = arith.constant 1 : index
    %c0_211 = arith.constant 0 : index
    %c0_212 = arith.constant 0 : index
    %587 = vector.load %arg7[%c1_210, %c0_211, %c0_212] : memref<2x128x384xf32, #tpu.memory_space<vmem>>, vector<1x128x384xf32>
    %588 = vector.shape_cast %587 : vector<1x128x384xf32> to vector<128x384xf32>
    %cst_213 = arith.constant dense<0.000000e+00> : vector<8x384xf32>
    %589 = tpu.matmul %579, %588, %cst_213 {dimension_numbers = #tpu.dot_dimension_numbers<[1], [0], [0], [1], [0, 0, 1, 1], [], []>} : vector<8x128xf32>, vector<128x384xf32>, vector<8x384xf32> -> vector<8x384xf32>
    %c1_214 = arith.constant 1 : index
    %c0_215 = arith.constant 0 : index
    %c0_216 = arith.constant 0 : index
    %590 = vector.load %arg8[%c1_214, %c0_215, %c0_216] : memref<2x1x384xf32, #tpu.memory_space<vmem>>, vector<1x1x384xf32>
    %591 = vector.shape_cast %590 : vector<1x1x384xf32> to vector<1x384xf32>
    %592 = vector.broadcast %591 : vector<1x384xf32> to vector<8x384xf32>
    %593 = arith.addf %589, %592 : vector<8x384xf32>
    %594 = vector.extract_strided_slice %586 {offsets = [0, 0], sizes = [8, 128], strides = [1, 1]} : vector<8x384xf32> to vector<8x128xf32>
    %595 = vector.extract_strided_slice %593 {offsets = [0, 0], sizes = [8, 128], strides = [1, 1]} : vector<8x384xf32> to vector<8x128xf32>
    %596 = arith.addf %594, %595 : vector<8x128xf32>
    %597 = arith.negf %596 : vector<8x128xf32>
    %598 = math.exp %597 : vector<8x128xf32>
    %cst_217 = arith.constant 1.000000e+00 : f32
    %599 = vector.broadcast %cst_217 : f32 to vector<8x128xf32>
    %600 = arith.addf %599, %598 : vector<8x128xf32>
    %601 = arith.divf %599, %600 : vector<8x128xf32>
    %602 = vector.extract_strided_slice %586 {offsets = [0, 128], sizes = [8, 128], strides = [1, 1]} : vector<8x384xf32> to vector<8x128xf32>
    %603 = vector.extract_strided_slice %593 {offsets = [0, 128], sizes = [8, 128], strides = [1, 1]} : vector<8x384xf32> to vector<8x128xf32>
    %604 = arith.addf %602, %603 : vector<8x128xf32>
    %605 = arith.negf %604 : vector<8x128xf32>
    %606 = math.exp %605 : vector<8x128xf32>
    %cst_218 = arith.constant 1.000000e+00 : f32
    %607 = vector.broadcast %cst_218 : f32 to vector<8x128xf32>
    %608 = arith.addf %607, %606 : vector<8x128xf32>
    %609 = arith.divf %607, %608 : vector<8x128xf32>
    %610 = vector.extract_strided_slice %586 {offsets = [0, 256], sizes = [8, 128], strides = [1, 1]} : vector<8x384xf32> to vector<8x128xf32>
    %611 = vector.extract_strided_slice %593 {offsets = [0, 256], sizes = [8, 128], strides = [1, 1]} : vector<8x384xf32> to vector<8x128xf32>
    %612 = arith.mulf %601, %611 : vector<8x128xf32>
    %613 = arith.addf %610, %612 : vector<8x128xf32>
    %614 = math.tanh %613 : vector<8x128xf32>
    %cst_219 = arith.constant 1.000000e+00 : f32
    %615 = vector.broadcast %cst_219 : f32 to vector<8x128xf32>
    %616 = arith.subf %615, %609 : vector<8x128xf32>
    %617 = arith.mulf %616, %614 : vector<8x128xf32>
    %618 = arith.mulf %609, %579 : vector<8x128xf32>
    %619 = arith.addf %617, %618 : vector<8x128xf32>
    %620 = arith.addi %0, %c4_i32_207 : i32
    %621 = vector.broadcast %620 : i32 to vector<8x1xi32>
    %622 = arith.cmpi slt, %621, %4 : vector<8x1xi32>
    %623 = vector.shape_cast %622 : vector<8x1xi1> to vector<8x1xi1>
    %624 = vector.broadcast %623 : vector<8x1xi1> to vector<8x128xi1>
    %625 = arith.select %624, %619, %579 : vector<8x128xi1>, vector<8x128xf32>
    %626 = arith.index_cast %c4_i32_207 : i32 to index
    %c0_220 = arith.constant 0 : index
    %c0_221 = arith.constant 0 : index
    %627 = vector.load %arg10[%626, %c0_220, %c0_221] : memref<8x8x128xf32, #tpu.memory_space<vmem>>, vector<1x8x128xf32>
    %628 = vector.shape_cast %627 : vector<1x8x128xf32> to vector<8x128xf32>
    %629 = vector.shape_cast %625 : vector<8x128xf32> to vector<1x8x128xf32>
    tpu.vector_store %arg10[%626, %c0_220, %c0_221], %629 {strides = array<i32>} : memref<8x8x128xf32, #tpu.memory_space<vmem>>, vector<1x8x128xf32>,
    %c5_i32_222 = arith.constant 5 : i32
    %630 = arith.index_cast %c5_i32_222 : i32 to index
    %c0_223 = arith.constant 0 : index
    %c0_224 = arith.constant 0 : index
    %631 = vector.load %arg11[%630, %c0_223, %c0_224] : memref<8x8x384xf32, #tpu.memory_space<vmem>>, vector<1x8x384xf32>
    %632 = vector.shape_cast %631 : vector<1x8x384xf32> to vector<8x384xf32>
    %c1_225 = arith.constant 1 : index
    %c0_226 = arith.constant 0 : index
    %c0_227 = arith.constant 0 : index
    %633 = vector.load %arg7[%c1_225, %c0_226, %c0_227] : memref<2x128x384xf32, #tpu.memory_space<vmem>>, vector<1x128x384xf32>
    %634 = vector.shape_cast %633 : vector<1x128x384xf32> to vector<128x384xf32>
    %cst_228 = arith.constant dense<0.000000e+00> : vector<8x384xf32>
    %635 = tpu.matmul %625, %634, %cst_228 {dimension_numbers = #tpu.dot_dimension_numbers<[1], [0], [0], [1], [0, 0, 1, 1], [], []>} : vector<8x128xf32>, vector<128x384xf32>, vector<8x384xf32> -> vector<8x384xf32>
    %c1_229 = arith.constant 1 : index
    %c0_230 = arith.constant 0 : index
    %c0_231 = arith.constant 0 : index
    %636 = vector.load %arg8[%c1_229, %c0_230, %c0_231] : memref<2x1x384xf32, #tpu.memory_space<vmem>>, vector<1x1x384xf32>
    %637 = vector.shape_cast %636 : vector<1x1x384xf32> to vector<1x384xf32>
    %638 = vector.broadcast %637 : vector<1x384xf32> to vector<8x384xf32>
    %639 = arith.addf %635, %638 : vector<8x384xf32>
    %640 = vector.extract_strided_slice %632 {offsets = [0, 0], sizes = [8, 128], strides = [1, 1]} : vector<8x384xf32> to vector<8x128xf32>
    %641 = vector.extract_strided_slice %639 {offsets = [0, 0], sizes = [8, 128], strides = [1, 1]} : vector<8x384xf32> to vector<8x128xf32>
    %642 = arith.addf %640, %641 : vector<8x128xf32>
    %643 = arith.negf %642 : vector<8x128xf32>
    %644 = math.exp %643 : vector<8x128xf32>
    %cst_232 = arith.constant 1.000000e+00 : f32
    %645 = vector.broadcast %cst_232 : f32 to vector<8x128xf32>
    %646 = arith.addf %645, %644 : vector<8x128xf32>
    %647 = arith.divf %645, %646 : vector<8x128xf32>
    %648 = vector.extract_strided_slice %632 {offsets = [0, 128], sizes = [8, 128], strides = [1, 1]} : vector<8x384xf32> to vector<8x128xf32>
    %649 = vector.extract_strided_slice %639 {offsets = [0, 128], sizes = [8, 128], strides = [1, 1]} : vector<8x384xf32> to vector<8x128xf32>
    %650 = arith.addf %648, %649 : vector<8x128xf32>
    %651 = arith.negf %650 : vector<8x128xf32>
    %652 = math.exp %651 : vector<8x128xf32>
    %cst_233 = arith.constant 1.000000e+00 : f32
    %653 = vector.broadcast %cst_233 : f32 to vector<8x128xf32>
    %654 = arith.addf %653, %652 : vector<8x128xf32>
    %655 = arith.divf %653, %654 : vector<8x128xf32>
    %656 = vector.extract_strided_slice %632 {offsets = [0, 256], sizes = [8, 128], strides = [1, 1]} : vector<8x384xf32> to vector<8x128xf32>
    %657 = vector.extract_strided_slice %639 {offsets = [0, 256], sizes = [8, 128], strides = [1, 1]} : vector<8x384xf32> to vector<8x128xf32>
    %658 = arith.mulf %647, %657 : vector<8x128xf32>
    %659 = arith.addf %656, %658 : vector<8x128xf32>
    %660 = math.tanh %659 : vector<8x128xf32>
    %cst_234 = arith.constant 1.000000e+00 : f32
    %661 = vector.broadcast %cst_234 : f32 to vector<8x128xf32>
    %662 = arith.subf %661, %655 : vector<8x128xf32>
    %663 = arith.mulf %662, %660 : vector<8x128xf32>
    %664 = arith.mulf %655, %625 : vector<8x128xf32>
    %665 = arith.addf %663, %664 : vector<8x128xf32>
    %666 = arith.addi %0, %c5_i32_222 : i32
    %667 = vector.broadcast %666 : i32 to vector<8x1xi32>
    %668 = arith.cmpi slt, %667, %4 : vector<8x1xi32>
    %669 = vector.shape_cast %668 : vector<8x1xi1> to vector<8x1xi1>
    %670 = vector.broadcast %669 : vector<8x1xi1> to vector<8x128xi1>
    %671 = arith.select %670, %665, %625 : vector<8x128xi1>, vector<8x128xf32>
    %672 = arith.index_cast %c5_i32_222 : i32 to index
    %c0_235 = arith.constant 0 : index
    %c0_236 = arith.constant 0 : index
    %673 = vector.load %arg10[%672, %c0_235, %c0_236] : memref<8x8x128xf32, #tpu.memory_space<vmem>>, vector<1x8x128xf32>
    %674 = vector.shape_cast %673 : vector<1x8x128xf32> to vector<8x128xf32>
    %675 = vector.shape_cast %671 : vector<8x128xf32> to vector<1x8x128xf32>
    tpu.vector_store %arg10[%672, %c0_235, %c0_236], %675 {strides = array<i32>} : memref<8x8x128xf32, #tpu.memory_space<vmem>>, vector<1x8x128xf32>,
    %c6_i32_237 = arith.constant 6 : i32
    %676 = arith.index_cast %c6_i32_237 : i32 to index
    %c0_238 = arith.constant 0 : index
    %c0_239 = arith.constant 0 : index
    %677 = vector.load %arg11[%676, %c0_238, %c0_239] : memref<8x8x384xf32, #tpu.memory_space<vmem>>, vector<1x8x384xf32>
    %678 = vector.shape_cast %677 : vector<1x8x384xf32> to vector<8x384xf32>
    %c1_240 = arith.constant 1 : index
    %c0_241 = arith.constant 0 : index
    %c0_242 = arith.constant 0 : index
    %679 = vector.load %arg7[%c1_240, %c0_241, %c0_242] : memref<2x128x384xf32, #tpu.memory_space<vmem>>, vector<1x128x384xf32>
    %680 = vector.shape_cast %679 : vector<1x128x384xf32> to vector<128x384xf32>
    %cst_243 = arith.constant dense<0.000000e+00> : vector<8x384xf32>
    %681 = tpu.matmul %671, %680, %cst_243 {dimension_numbers = #tpu.dot_dimension_numbers<[1], [0], [0], [1], [0, 0, 1, 1], [], []>} : vector<8x128xf32>, vector<128x384xf32>, vector<8x384xf32> -> vector<8x384xf32>
    %c1_244 = arith.constant 1 : index
    %c0_245 = arith.constant 0 : index
    %c0_246 = arith.constant 0 : index
    %682 = vector.load %arg8[%c1_244, %c0_245, %c0_246] : memref<2x1x384xf32, #tpu.memory_space<vmem>>, vector<1x1x384xf32>
    %683 = vector.shape_cast %682 : vector<1x1x384xf32> to vector<1x384xf32>
    %684 = vector.broadcast %683 : vector<1x384xf32> to vector<8x384xf32>
    %685 = arith.addf %681, %684 : vector<8x384xf32>
    %686 = vector.extract_strided_slice %678 {offsets = [0, 0], sizes = [8, 128], strides = [1, 1]} : vector<8x384xf32> to vector<8x128xf32>
    %687 = vector.extract_strided_slice %685 {offsets = [0, 0], sizes = [8, 128], strides = [1, 1]} : vector<8x384xf32> to vector<8x128xf32>
    %688 = arith.addf %686, %687 : vector<8x128xf32>
    %689 = arith.negf %688 : vector<8x128xf32>
    %690 = math.exp %689 : vector<8x128xf32>
    %cst_247 = arith.constant 1.000000e+00 : f32
    %691 = vector.broadcast %cst_247 : f32 to vector<8x128xf32>
    %692 = arith.addf %691, %690 : vector<8x128xf32>
    %693 = arith.divf %691, %692 : vector<8x128xf32>
    %694 = vector.extract_strided_slice %678 {offsets = [0, 128], sizes = [8, 128], strides = [1, 1]} : vector<8x384xf32> to vector<8x128xf32>
    %695 = vector.extract_strided_slice %685 {offsets = [0, 128], sizes = [8, 128], strides = [1, 1]} : vector<8x384xf32> to vector<8x128xf32>
    %696 = arith.addf %694, %695 : vector<8x128xf32>
    %697 = arith.negf %696 : vector<8x128xf32>
    %698 = math.exp %697 : vector<8x128xf32>
    %cst_248 = arith.constant 1.000000e+00 : f32
    %699 = vector.broadcast %cst_248 : f32 to vector<8x128xf32>
    %700 = arith.addf %699, %698 : vector<8x128xf32>
    %701 = arith.divf %699, %700 : vector<8x128xf32>
    %702 = vector.extract_strided_slice %678 {offsets = [0, 256], sizes = [8, 128], strides = [1, 1]} : vector<8x384xf32> to vector<8x128xf32>
    %703 = vector.extract_strided_slice %685 {offsets = [0, 256], sizes = [8, 128], strides = [1, 1]} : vector<8x384xf32> to vector<8x128xf32>
    %704 = arith.mulf %693, %703 : vector<8x128xf32>
    %705 = arith.addf %702, %704 : vector<8x128xf32>
    %706 = math.tanh %705 : vector<8x128xf32>
    %cst_249 = arith.constant 1.000000e+00 : f32
    %707 = vector.broadcast %cst_249 : f32 to vector<8x128xf32>
    %708 = arith.subf %707, %701 : vector<8x128xf32>
    %709 = arith.mulf %708, %706 : vector<8x128xf32>
    %710 = arith.mulf %701, %671 : vector<8x128xf32>
    %711 = arith.addf %709, %710 : vector<8x128xf32>
    %712 = arith.addi %0, %c6_i32_237 : i32
    %713 = vector.broadcast %712 : i32 to vector<8x1xi32>
    %714 = arith.cmpi slt, %713, %4 : vector<8x1xi32>
    %715 = vector.shape_cast %714 : vector<8x1xi1> to vector<8x1xi1>
    %716 = vector.broadcast %715 : vector<8x1xi1> to vector<8x128xi1>
    %717 = arith.select %716, %711, %671 : vector<8x128xi1>, vector<8x128xf32>
    %718 = arith.index_cast %c6_i32_237 : i32 to index
    %c0_250 = arith.constant 0 : index
    %c0_251 = arith.constant 0 : index
    %719 = vector.load %arg10[%718, %c0_250, %c0_251] : memref<8x8x128xf32, #tpu.memory_space<vmem>>, vector<1x8x128xf32>
    %720 = vector.shape_cast %719 : vector<1x8x128xf32> to vector<8x128xf32>
    %721 = vector.shape_cast %717 : vector<8x128xf32> to vector<1x8x128xf32>
    tpu.vector_store %arg10[%718, %c0_250, %c0_251], %721 {strides = array<i32>} : memref<8x8x128xf32, #tpu.memory_space<vmem>>, vector<1x8x128xf32>,
    %c7_i32_252 = arith.constant 7 : i32
    %722 = arith.index_cast %c7_i32_252 : i32 to index
    %c0_253 = arith.constant 0 : index
    %c0_254 = arith.constant 0 : index
    %723 = vector.load %arg11[%722, %c0_253, %c0_254] : memref<8x8x384xf32, #tpu.memory_space<vmem>>, vector<1x8x384xf32>
    %724 = vector.shape_cast %723 : vector<1x8x384xf32> to vector<8x384xf32>
    %c1_255 = arith.constant 1 : index
    %c0_256 = arith.constant 0 : index
    %c0_257 = arith.constant 0 : index
    %725 = vector.load %arg7[%c1_255, %c0_256, %c0_257] : memref<2x128x384xf32, #tpu.memory_space<vmem>>, vector<1x128x384xf32>
    %726 = vector.shape_cast %725 : vector<1x128x384xf32> to vector<128x384xf32>
    %cst_258 = arith.constant dense<0.000000e+00> : vector<8x384xf32>
    %727 = tpu.matmul %717, %726, %cst_258 {dimension_numbers = #tpu.dot_dimension_numbers<[1], [0], [0], [1], [0, 0, 1, 1], [], []>} : vector<8x128xf32>, vector<128x384xf32>, vector<8x384xf32> -> vector<8x384xf32>
    %c1_259 = arith.constant 1 : index
    %c0_260 = arith.constant 0 : index
    %c0_261 = arith.constant 0 : index
    %728 = vector.load %arg8[%c1_259, %c0_260, %c0_261] : memref<2x1x384xf32, #tpu.memory_space<vmem>>, vector<1x1x384xf32>
    %729 = vector.shape_cast %728 : vector<1x1x384xf32> to vector<1x384xf32>
    %730 = vector.broadcast %729 : vector<1x384xf32> to vector<8x384xf32>
    %731 = arith.addf %727, %730 : vector<8x384xf32>
    %732 = vector.extract_strided_slice %724 {offsets = [0, 0], sizes = [8, 128], strides = [1, 1]} : vector<8x384xf32> to vector<8x128xf32>
    %733 = vector.extract_strided_slice %731 {offsets = [0, 0], sizes = [8, 128], strides = [1, 1]} : vector<8x384xf32> to vector<8x128xf32>
    %734 = arith.addf %732, %733 : vector<8x128xf32>
    %735 = arith.negf %734 : vector<8x128xf32>
    %736 = math.exp %735 : vector<8x128xf32>
    %cst_262 = arith.constant 1.000000e+00 : f32
    %737 = vector.broadcast %cst_262 : f32 to vector<8x128xf32>
    %738 = arith.addf %737, %736 : vector<8x128xf32>
    %739 = arith.divf %737, %738 : vector<8x128xf32>
    %740 = vector.extract_strided_slice %724 {offsets = [0, 128], sizes = [8, 128], strides = [1, 1]} : vector<8x384xf32> to vector<8x128xf32>
    %741 = vector.extract_strided_slice %731 {offsets = [0, 128], sizes = [8, 128], strides = [1, 1]} : vector<8x384xf32> to vector<8x128xf32>
    %742 = arith.addf %740, %741 : vector<8x128xf32>
    %743 = arith.negf %742 : vector<8x128xf32>
    %744 = math.exp %743 : vector<8x128xf32>
    %cst_263 = arith.constant 1.000000e+00 : f32
    %745 = vector.broadcast %cst_263 : f32 to vector<8x128xf32>
    %746 = arith.addf %745, %744 : vector<8x128xf32>
    %747 = arith.divf %745, %746 : vector<8x128xf32>
    %748 = vector.extract_strided_slice %724 {offsets = [0, 256], sizes = [8, 128], strides = [1, 1]} : vector<8x384xf32> to vector<8x128xf32>
    %749 = vector.extract_strided_slice %731 {offsets = [0, 256], sizes = [8, 128], strides = [1, 1]} : vector<8x384xf32> to vector<8x128xf32>
    %750 = arith.mulf %739, %749 : vector<8x128xf32>
    %751 = arith.addf %748, %750 : vector<8x128xf32>
    %752 = math.tanh %751 : vector<8x128xf32>
    %cst_264 = arith.constant 1.000000e+00 : f32
    %753 = vector.broadcast %cst_264 : f32 to vector<8x128xf32>
    %754 = arith.subf %753, %747 : vector<8x128xf32>
    %755 = arith.mulf %754, %752 : vector<8x128xf32>
    %756 = arith.mulf %747, %717 : vector<8x128xf32>
    %757 = arith.addf %755, %756 : vector<8x128xf32>
    %758 = arith.addi %0, %c7_i32_252 : i32
    %759 = vector.broadcast %758 : i32 to vector<8x1xi32>
    %760 = arith.cmpi slt, %759, %4 : vector<8x1xi32>
    %761 = vector.shape_cast %760 : vector<8x1xi1> to vector<8x1xi1>
    %762 = vector.broadcast %761 : vector<8x1xi1> to vector<8x128xi1>
    %763 = arith.select %762, %757, %717 : vector<8x128xi1>, vector<8x128xf32>
    %764 = arith.index_cast %c7_i32_252 : i32 to index
    %c0_265 = arith.constant 0 : index
    %c0_266 = arith.constant 0 : index
    %765 = vector.load %arg10[%764, %c0_265, %c0_266] : memref<8x8x128xf32, #tpu.memory_space<vmem>>, vector<1x8x128xf32>
    %766 = vector.shape_cast %765 : vector<1x8x128xf32> to vector<8x128xf32>
    %767 = vector.shape_cast %763 : vector<8x128xf32> to vector<1x8x128xf32>
    tpu.vector_store %arg10[%764, %c0_265, %c0_266], %767 {strides = array<i32>} : memref<8x8x128xf32, #tpu.memory_space<vmem>>, vector<1x8x128xf32>,
    %c8_i32_267 = arith.constant 8 : i32
    %c1_268 = arith.constant 1 : index
    %c0_269 = arith.constant 0 : index
    %c0_270 = arith.constant 0 : index
    %768 = vector.load %arg9[%c1_268, %c0_269, %c0_270] : memref<2x8x128xf32, #tpu.memory_space<vmem>>, vector<1x8x128xf32>
    %769 = vector.shape_cast %768 : vector<1x8x128xf32> to vector<8x128xf32>
    %770 = vector.shape_cast %763 : vector<8x128xf32> to vector<1x8x128xf32>
    tpu.vector_store %arg9[%c1_268, %c0_269, %c0_270], %770 {strides = array<i32>} : memref<2x8x128xf32, #tpu.memory_space<vmem>>, vector<1x8x128xf32>,
    return
  }
  func.func @transform_0(%arg0: i32) -> (i32, i32) {
    %c0_i32 = arith.constant 0 : i32
    %c0_i32_0 = arith.constant 0 : i32
    %c0_i32_1 = arith.constant 0 : i32
    return %c0_i32, %c0_i32_0 : i32, i32
  }
  func.func @transform_1(%arg0: i32) -> (i32, i32, i32) {
    %c0_i32 = arith.constant 0 : i32
    %c0_i32_0 = arith.constant 0 : i32
    %c0_i32_1 = arith.constant 0 : i32
    return %arg0, %c0_i32, %c0_i32_0 : i32, i32, i32
  }
  func.func @transform_2(%arg0: i32) -> (i32, i32) {
    %c0_i32 = arith.constant 0 : i32
    %c0_i32_0 = arith.constant 0 : i32
    %c0_i32_1 = arith.constant 0 : i32
    return %c0_i32, %c0_i32_0 : i32, i32
  }
  func.func @transform_3(%arg0: i32) -> (i32, i32) {
    %c0_i32 = arith.constant 0 : i32
    %c0_i32_0 = arith.constant 0 : i32
    %c0_i32_1 = arith.constant 0 : i32
    return %c0_i32, %c0_i32_0 : i32, i32
  }
  func.func @transform_4(%arg0: i32) -> (i32, i32, i32) {
    %c0_i32 = arith.constant 0 : i32
    %c0_i32_0 = arith.constant 0 : i32
    %c0_i32_1 = arith.constant 0 : i32
    %c0_i32_2 = arith.constant 0 : i32
    return %c0_i32, %c0_i32_0, %c0_i32_1 : i32, i32, i32
  }
  func.func @transform_5(%arg0: i32) -> (i32, i32, i32) {
    %c0_i32 = arith.constant 0 : i32
    %c0_i32_0 = arith.constant 0 : i32
    %c0_i32_1 = arith.constant 0 : i32
    %c0_i32_2 = arith.constant 0 : i32
    return %c0_i32, %c0_i32_0, %c0_i32_1 : i32, i32, i32
  }
  func.func @transform_6(%arg0: i32) -> (i32, i32, i32) {
    %c0_i32 = arith.constant 0 : i32
    %c0_i32_0 = arith.constant 0 : i32
    %c0_i32_1 = arith.constant 0 : i32
    %c0_i32_2 = arith.constant 0 : i32
    return %c0_i32, %c0_i32_0, %c0_i32_1 : i32, i32, i32
  }
  func.func @transform_7(%arg0: i32) -> (i32, i32, i32) {
    %c0_i32 = arith.constant 0 : i32
    %c0_i32_0 = arith.constant 0 : i32
    %c0_i32_1 = arith.constant 0 : i32
    %c0_i32_2 = arith.constant 0 : i32
    return %c0_i32, %c0_i32_0, %c0_i32_1 : i32, i32, i32
  }
  func.func @transform_8(%arg0: i32) -> (i32, i32, i32) {
    %c0_i32 = arith.constant 0 : i32
    %c0_i32_0 = arith.constant 0 : i32
    %c0_i32_1 = arith.constant 0 : i32
    %c0_i32_2 = arith.constant 0 : i32
    return %c0_i32, %c0_i32_0, %c0_i32_1 : i32, i32, i32
  }
}

</mosaic_0001>

<llo_original>
// kernel: tpu_custom_call.1
$region0: #{tpu_custom_call.1}
  #allocation0 [shape = 'u32[]', space=smem, size = 0x4, offset = 0x4, fixed_abs, tag = 'smem constant byte address 0x4 - core index']
  #allocation1 [shape = 'u32[144,128]{1,0:T(1,128)}', space=vmem, size = 0x12000, scoped, tag = 'internal scratch']
  #allocation2 [shape = 'f32[8,8,128]{2,1,0:T(8,128)}', space=vmem, size = 0x8000, scoped, tag = 'scratch operand']
  #allocation3 [shape = 'f32[8,8,384]{2,1,0:T(8,128)}', space=vmem, size = 0x18000, scoped, tag = 'scratch operand']
  %s0 = inlined_call_operand.vmem [shape: s32[8,1], index: 0, kind: input, shape index: {}]
  %s1 = inlined_call_operand.hbm [shape: f32[24,8,128], index: 1, kind: input, shape index: {}]
  %s2 = inlined_call_operand.hbm [shape: f32[128,384], index: 2, kind: input, shape index: {}]
  %s3 = inlined_call_operand.vmem [shape: f32[1,384], index: 3, kind: input, shape index: {}]
  %s4 = inlined_call_operand.hbm [shape: f32[1,128,384], index: 4, kind: input, shape index: {}]
  %s5 = inlined_call_operand.vmem [shape: f32[1,1,384], index: 5, kind: input, shape index: {}]
  %s6 = inlined_call_operand.hbm [shape: f32[2,128,384], index: 6, kind: input, shape index: {}]
  %s7 = inlined_call_operand.vmem [shape: f32[2,1,384], index: 7, kind: input, shape index: {}]
  %s8 = inlined_call_operand.hbm [shape: f32[2,8,128], index: 8, kind: output, shape index: {}]
  %s9 = sld [smem:[#allocation0]]
  $region85: #{tpu_custom_call.1} parent=0
    _
  %s11 = ssub.s32 1, %s9
  %s12 = scalar_select 0, %s11, %s9
  $region1: #{tpu_custom_call.1} parent=0
    #allocation4 [shape = 'u8[65536]{0}', space=vmem, size = 0x10000, scoped, tag = 'input window, operand 1']
    #allocation5 [shape = 's32[2]{0}', space=sflag, size = 0x8, scoped, tag = 'scoped memory for tpu_custom_call.1']
    #allocation6 [shape = 's32[2]{0}', space=sflag, size = 0x8, scoped, tag = 'scoped memory for tpu_custom_call.1']
    #allocation7 [shape = 'u8[196608]{0}', space=vmem, size = 0x30000, scoped, tag = 'input window, operand 2, single buffered']
    #allocation8 [shape = 's32[1]{0}', space=sflag, size = 0x4, scoped, tag = 'scoped memory for tpu_custom_call.1']
    #allocation9 [shape = 'u8[196608]{0}', space=vmem, size = 0x30000, scoped, tag = 'input window, operand 4, single buffered']
    #allocation10 [shape = 'u8[393216]{0}', space=vmem, size = 0x60000, scoped, tag = 'input window, operand 6, single buffered']
    #allocation11 [shape = 's32[1]{0}', space=sflag, size = 0x4, scoped, tag = 'scoped memory for tpu_custom_call.1']
    #allocation12 [shape = 'u8[8192]{0}', space=vmem, size = 0x2000, scoped, tag = 'output window, operand 0, single buffered']
    %13 = vsyncpa [#allocation5], 0
    %s14 = scalar_lea.sflag [#allocation5], 1
    %15 = vsyncpa %s14, 0
    %16 = vsyncpa [#allocation8], 0
    %17 = vsyncpa [#allocation11], 0
    %18 = vsyncpa [#allocation6], 0
    loop: start=0, step=1, limit=5
    $region2: #{tpu_custom_call.1} parent=1 // loop_pre_header
      _
    $region3: #{tpu_custom_call.1} parent=1 // loop_header
      %s20 = sphi 0, %s24
      %p21 = scmp.ge.s32.totalorder %s20, 5
      %s28 = sphi 0, %s28
      %s30 = sphi 0, %s28
      %s31 = sphi 0, %s30
      %s45 = sphi 0, %s31
      %s51 = sphi 0, %s53
      %s54 = sphi 0, %s51
      %s55 = sphi 0, %s54
      %s71 = sphi 0, %s55
      %s75 = sphi 0, %s75
      %s77 = sphi 0, %s75
      %s78 = sphi 0, %s77
      %s92 = sphi 0, %s78
      %s96 = sphi 0, %s96
      %s98 = sphi 0, %s96
      %s99 = sphi 0, %s98
      %s113 = sphi 0, %s99
      %s117 = sphi 0, %s117
      %s119 = sphi 0, %s117
      %s120 = sphi 0, %s119
      %s134 = sphi 0, %s120
      %s138 = sphi 0, %s138
      %s140 = sphi 0, %s138
      %s141 = sphi 0, %s140
      %s155 = sphi 0, %s141
      %s159 = sphi 0, %s159
      %s161 = sphi 0, %s159
      %s162 = sphi 0, %s161
      %s176 = sphi 0, %s162
      %s180 = sphi 0, %s180
      %s182 = sphi 0, %s180
      %s183 = sphi 0, %s182
      %s197 = sphi 0, %s183
      %s201 = sphi 0, %s201
      %s203 = sphi 0, %s201
      %s204 = sphi 0, %s203
      %s218 = sphi 0, %s204
    $region4: #{tpu_custom_call.1} parent=1 // loop_header_branch
      %23 = sbr.rel (%p21) target = $region8
    $region5: #{tpu_custom_call.1} parent=1 // loop_body
      %s25 = ssub.s32 %s20, 1
      %s26 = ssub.s32 %s20, 2
      %s27 = sadd.s32 %s20, 1
      %s29 = sadd.s32 %s28, 1
      %p32 = scmp.eq.s32.totalorder %s20, 2
      %p33 = scmp.ne.s32.totalorder %s28, %s30
      %p34 = scmp.eq.s32.totalorder %s20, 0
      %p35 = por %p33, %p34
      %p36 = scmp.ne.s32.totalorder %s28, %s30
      %p37 = scmp.eq.s32.totalorder %s25, 2
      %p38 = por %p36, %p37
      %p39 = scmp.ne.s32.totalorder %s30, %s31
      %p40 = scmp.eq.s32.totalorder %s25, 0
      %p41 = por %p39, %p40
      %p42 = scmp.ne.s32.totalorder %s30, %s31
      %p43 = scmp.eq.s32.totalorder %s26, 2
      %p44 = por %p42, %p43
      %p46 = scmp.ne.s32.totalorder %s31, %s45
      %p47 = scmp.eq.s32.totalorder %s26, 0
      %p48 = por %p46, %p47
      %s49 = ssub.s32 %s20, %s27
      %p50 = scmp.eq.s32.totalorder %s49, 0
      %s52 = sadd.s32 %s51, 1
      %s53 = scalar_select %p50, %s51, %s52
      %p56 = pneg %p50
      %p57 = scmp.eq.s32.totalorder %s20, 2
      %p58 = por %p56, %p57
      %p59 = scmp.ne.s32.totalorder %s51, %s54
      %p60 = scmp.eq.s32.totalorder %s20, 0
      %p61 = por %p59, %p60
      %p62 = scmp.ne.s32.totalorder %s51, %s54
      %p63 = scmp.eq.s32.totalorder %s25, 2
      %p64 = por %p62, %p63
      %p65 = scmp.ne.s32.totalorder %s54, %s55
      %p66 = scmp.eq.s32.totalorder %s25, 0
      %p67 = por %p65, %p66
      %p68 = scmp.ne.s32.totalorder %s54, %s55
      %p69 = scmp.eq.s32.totalorder %s26, 2
      %p70 = por %p68, %p69
      %p72 = scmp.ne.s32.totalorder %s55, %s71
      %p73 = scmp.eq.s32.totalorder %s26, 0
      %p74 = por %p72, %p73
      %s76 = sadd.s32 %s75, 1
      %p79 = scmp.eq.s32.totalorder %s20, 2
      %p80 = scmp.ne.s32.totalorder %s75, %s77
      %p81 = scmp.eq.s32.totalorder %s20, 0
      %p82 = por %p80, %p81
      %p83 = scmp.ne.s32.totalorder %s75, %s77
      %p84 = scmp.eq.s32.totalorder %s25, 2
      %p85 = por %p83, %p84
      %p86 = scmp.ne.s32.totalorder %s77, %s78
      %p87 = scmp.eq.s32.totalorder %s25, 0
      %p88 = por %p86, %p87
      %p89 = scmp.ne.s32.totalorder %s77, %s78
      %p90 = scmp.eq.s32.totalorder %s26, 2
      %p91 = por %p89, %p90
      %p93 = scmp.ne.s32.totalorder %s78, %s92
      %p94 = scmp.eq.s32.totalorder %s26, 0
      %p95 = por %p93, %p94
      %s97 = sadd.s32 %s96, 1
      %p100 = scmp.eq.s32.totalorder %s20, 2
      %p101 = scmp.ne.s32.totalorder %s96, %s98
      %p102 = scmp.eq.s32.totalorder %s20, 0
      %p103 = por %p101, %p102
      %p104 = scmp.ne.s32.totalorder %s96, %s98
      %p105 = scmp.eq.s32.totalorder %s25, 2
      %p106 = por %p104, %p105
      %p107 = scmp.ne.s32.totalorder %s98, %s99
      %p108 = scmp.eq.s32.totalorder %s25, 0
      %p109 = por %p107, %p108
      %p110 = scmp.ne.s32.totalorder %s98, %s99
      %p111 = scmp.eq.s32.totalorder %s26, 2
      %p112 = por %p110, %p111
      %p114 = scmp.ne.s32.totalorder %s99, %s113
      %p115 = scmp.eq.s32.totalorder %s26, 0
      %p116 = por %p114, %p115
      %s118 = sadd.s32 %s117, 1
      %p121 = scmp.eq.s32.totalorder %s20, 2
      %p122 = scmp.ne.s32.totalorder %s117, %s119
      %p123 = scmp.eq.s32.totalorder %s20, 0
      %p124 = por %p122, %p123
      %p125 = scmp.ne.s32.totalorder %s117, %s119
      %p126 = scmp.eq.s32.totalorder %s25, 2
      %p127 = por %p125, %p126
      %p128 = scmp.ne.s32.totalorder %s119, %s120
      %p129 = scmp.eq.s32.totalorder %s25, 0
      %p130 = por %p128, %p129
      %p131 = scmp.ne.s32.totalorder %s119, %s120
      %p132 = scmp.eq.s32.totalorder %s26, 2
      %p133 = por %p131, %p132
      %p135 = scmp.ne.s32.totalorder %s120, %s134
      %p136 = scmp.eq.s32.totalorder %s26, 0
      %p137 = por %p135, %p136
      %s139 = sadd.s32 %s138, 1
      %p142 = scmp.eq.s32.totalorder %s20, 2
      %p143 = scmp.ne.s32.totalorder %s138, %s140
      %p144 = scmp.eq.s32.totalorder %s20, 0
      %p145 = por %p143, %p144
      %p146 = scmp.ne.s32.totalorder %s138, %s140
      %p147 = scmp.eq.s32.totalorder %s25, 2
      %p148 = por %p146, %p147
      %p149 = scmp.ne.s32.totalorder %s140, %s141
      %p150 = scmp.eq.s32.totalorder %s25, 0
      %p151 = por %p149, %p150
      %p152 = scmp.ne.s32.totalorder %s140, %s141
      %p153 = scmp.eq.s32.totalorder %s26, 2
      %p154 = por %p152, %p153
      %p156 = scmp.ne.s32.totalorder %s141, %s155
      %p157 = scmp.eq.s32.totalorder %s26, 0
      %p158 = por %p156, %p157
      %s160 = sadd.s32 %s159, 1
      %p163 = scmp.eq.s32.totalorder %s20, 2
      %p164 = scmp.ne.s32.totalorder %s159, %s161
      %p165 = scmp.eq.s32.totalorder %s20, 0
      %p166 = por %p164, %p165
      %p167 = scmp.ne.s32.totalorder %s159, %s161
      %p168 = scmp.eq.s32.totalorder %s25, 2
      %p169 = por %p167, %p168
      %p170 = scmp.ne.s32.totalorder %s161, %s162
      %p171 = scmp.eq.s32.totalorder %s25, 0
      %p172 = por %p170, %p171
      %p173 = scmp.ne.s32.totalorder %s161, %s162
      %p174 = scmp.eq.s32.totalorder %s26, 2
      %p175 = por %p173, %p174
      %p177 = scmp.ne.s32.totalorder %s162, %s176
      %p178 = scmp.eq.s32.totalorder %s26, 0
      %p179 = por %p177, %p178
      %s181 = sadd.s32 %s180, 1
      %p184 = scmp.eq.s32.totalorder %s20, 2
      %p185 = scmp.ne.s32.totalorder %s180, %s182
      %p186 = scmp.eq.s32.totalorder %s20, 0
      %p187 = por %p185, %p186
      %p188 = scmp.ne.s32.totalorder %s180, %s182
      %p189 = scmp.eq.s32.totalorder %s25, 2
      %p190 = por %p188, %p189
      %p191 = scmp.ne.s32.totalorder %s182, %s183
      %p192 = scmp.eq.s32.totalorder %s25, 0
      %p193 = por %p191, %p192
      %p194 = scmp.ne.s32.totalorder %s182, %s183
      %p195 = scmp.eq.s32.totalorder %s26, 2
      %p196 = por %p194, %p195
      %p198 = scmp.ne.s32.totalorder %s183, %s197
      %p199 = scmp.eq.s32.totalorder %s26, 0
      %p200 = por %p198, %p199
      %s202 = sadd.s32 %s201, 1
      %p205 = scmp.eq.s32.totalorder %s20, 2
      %p206 = scmp.ne.s32.totalorder %s201, %s203
      %p207 = scmp.eq.s32.totalorder %s20, 0
      %p208 = por %p206, %p207
      %p209 = scmp.ne.s32.totalorder %s201, %s203
      %p210 = scmp.eq.s32.totalorder %s25, 2
      %p211 = por %p209, %p210
      %p212 = scmp.ne.s32.totalorder %s203, %s204
      %p213 = scmp.eq.s32.totalorder %s25, 0
      %p214 = por %p212, %p213
      %p215 = scmp.ne.s32.totalorder %s203, %s204
      %p216 = scmp.eq.s32.totalorder %s26, 2
      %p217 = por %p215, %p216
      %p219 = scmp.ne.s32.totalorder %s204, %s218
      %p220 = scmp.eq.s32.totalorder %s26, 0
      %p221 = por %p219, %p220
      %p222 = scmp.le.s32.totalorder 1, %s20
      %p223 = scmp.lt.s32.totalorder %s20, 4
      %p224 = pnand %p222, %p223
      %p225 = pneg %p224
      // Predicated region
      $region9: #{tpu_custom_call.1} parent=5 // pred_check
        _
      $region10: #{tpu_custom_call.1} parent=5 // pred_check_branch
        %227 = sbr.rel (%p224) target = $region12
      $region11: #{tpu_custom_call.1} parent=5 // pred_region
        %s228 = ssub.s32 %s20, 1
        // Predicated region
        $region13: #{tpu_custom_call.1} parent=11 // pred_check
          %p229 = pneg %p41
        $region14: #{tpu_custom_call.1} parent=11 // pred_check_branch
          %231 = sbr.rel (%p229) target = $region16
        $region15: #{tpu_custom_call.1} parent=11 // pred_region
          _
        $region16: #{tpu_custom_call.1} parent=11 // pred_fallthru
          _
        // Predicated region
        $region17: #{tpu_custom_call.1} parent=11 // pred_check
          %p232 = pneg %p88
        $region18: #{tpu_custom_call.1} parent=11 // pred_check_branch
          %234 = sbr.rel (%p232) target = $region20
        $region19: #{tpu_custom_call.1} parent=11 // pred_region
          %s236 = ssub.s32 6144, 6144
          %237 = vsyncadd [#allocation8], %s236
          %s238 = sshll.u32 [#allocation7], 4
          %s239 = int_to_ptr.vmem [resolvable:$true] %s238
          %244 = dma.hbm_to_vmem [thread:$0]  %s2, 6144, %s239, [#allocation8], 384, 384, 24
        $region20: #{tpu_custom_call.1} parent=11 // pred_fallthru
          _
        // Predicated region
        $region21: #{tpu_custom_call.1} parent=11 // pred_check
          %p245 = pneg %p109
        $region22: #{tpu_custom_call.1} parent=11 // pred_check_branch
          %247 = sbr.rel (%p245) target = $region24
        $region23: #{tpu_custom_call.1} parent=11 // pred_region
          _
        $region24: #{tpu_custom_call.1} parent=11 // pred_fallthru
          _
        // Predicated region
        $region25: #{tpu_custom_call.1} parent=11 // pred_check
          %p248 = pneg %p130
        $region26: #{tpu_custom_call.1} parent=11 // pred_check_branch
          %250 = sbr.rel (%p248) target = $region28
        $region27: #{tpu_custom_call.1} parent=11 // pred_region
          %s252 = ssub.s32 6144, 6144
          %253 = vsyncadd [#allocation8], %s252
          %s254 = sshll.u32 [#allocation9], 4
          %s255 = int_to_ptr.vmem [resolvable:$true] %s254
          %260 = dma.hbm_to_vmem [thread:$0]  %s4, 6144, %s255, [#allocation8], 384, 384, 24
        $region28: #{tpu_custom_call.1} parent=11 // pred_fallthru
          _
        // Predicated region
        $region29: #{tpu_custom_call.1} parent=11 // pred_check
          %p261 = pneg %p151
        $region30: #{tpu_custom_call.1} parent=11 // pred_check_branch
          %263 = sbr.rel (%p261) target = $region32
        $region31: #{tpu_custom_call.1} parent=11 // pred_region
          _
        $region32: #{tpu_custom_call.1} parent=11 // pred_fallthru
          _
        // Predicated region
        $region33: #{tpu_custom_call.1} parent=11 // pred_check
          %p264 = pneg %p172
        $region34: #{tpu_custom_call.1} parent=11 // pred_check_branch
          %266 = sbr.rel (%p264) target = $region36
        $region35: #{tpu_custom_call.1} parent=11 // pred_region
          %s268 = ssub.s32 12288, 12288
          %269 = vsyncadd [#allocation11], %s268
          %s270 = sshll.u32 [#allocation10], 4
          %s271 = int_to_ptr.vmem [resolvable:$true] %s270
          %276 = dma.hbm_to_vmem [thread:$0]  %s6, 12288, %s271, [#allocation11], 384, 384, 24
        $region36: #{tpu_custom_call.1} parent=11 // pred_fallthru
          _
        // Predicated region
        $region37: #{tpu_custom_call.1} parent=11 // pred_check
          %p277 = pneg %p193
        $region38: #{tpu_custom_call.1} parent=11 // pred_check_branch
          %279 = sbr.rel (%p277) target = $region40
        $region39: #{tpu_custom_call.1} parent=11 // pred_region
          _
        $region40: #{tpu_custom_call.1} parent=11 // pred_fallthru
          _
      $region12: #{tpu_custom_call.1} parent=5 // pred_fallthru
        _
      %p280 = scmp.lt.s32.totalorder %s20, 3
      // Predicated region
      $region41: #{tpu_custom_call.1} parent=5 // pred_check
        %p281 = pneg %p280
      $region42: #{tpu_custom_call.1} parent=5 // pred_check_branch
        %283 = sbr.rel (%p281) target = $region44
      $region43: #{tpu_custom_call.1} parent=5 // pred_region
        // Predicated region
        $region45: #{tpu_custom_call.1} parent=43 // pred_check
          %p284 = pneg %p61
        $region46: #{tpu_custom_call.1} parent=43 // pred_check_branch
          %286 = sbr.rel (%p284) target = $region48
        $region47: #{tpu_custom_call.1} parent=43 // pred_region
          %s287 = sand.u32 %s51, 1
          %s288 = scalar_lea.sflag [#allocation5], %s287
          %s289 = sand.u32 %s51, 1
          %s290 = smul.addr %s289, 64
          %s291 = scalar_lea.vmem [#allocation4], %s290
          %s292 = smul.u32 8, %s20
          %s294 = ssub.s32 1024, 1024
          %295 = vsyncadd %s288, %s294
          %s296 = smul.addr %s292, 128
          %s297 = scalar_lea.hbm %s1, %s296
          %s298 = sshll.u32 %s291, 4
          %s299 = int_to_ptr.vmem [resolvable:$true] %s298
          %304 = dma.hbm_to_vmem [thread:$0]  %s297, 1024, %s299, %s288, 128, 128, 8
        $region48: #{tpu_custom_call.1} parent=43 // pred_fallthru
          _
      $region44: #{tpu_custom_call.1} parent=5 // pred_fallthru
        _
      %p305 = scmp.le.s32.totalorder 1, %s20
      %p306 = scmp.lt.s32.totalorder %s20, 4
      %p307 = pnand %p305, %p306
      %p308 = pneg %p307
      // Predicated region
      $region49: #{tpu_custom_call.1} parent=5 // pred_check
        _
      $region50: #{tpu_custom_call.1} parent=5 // pred_check_branch
        %310 = sbr.rel (%p307) target = $region52
      $region51: #{tpu_custom_call.1} parent=5 // pred_region
        %s311 = ssub.s32 %s20, 1
        %s312 = sand.u32 %s54, 1
        %s313 = scalar_lea.sflag [#allocation5], %s312
        %s314 = sand.u32 %s54, 1
        %s315 = smul.addr %s314, 64
        %s316 = scalar_lea.vmem [#allocation4], %s315
        // Predicated region
        $region53: #{tpu_custom_call.1} parent=51 // pred_check
          %p317 = pneg %p67
        $region54: #{tpu_custom_call.1} parent=51 // pred_check_branch
          %319 = sbr.rel (%p317) target = $region56
        $region55: #{tpu_custom_call.1} parent=51 // pred_region
          %320 = dma.done %s313, 1024
        $region56: #{tpu_custom_call.1} parent=51 // pred_fallthru
          _
        // Predicated region
        $region57: #{tpu_custom_call.1} parent=51 // pred_check
          %p321 = pneg %p88
        $region58: #{tpu_custom_call.1} parent=51 // pred_check_branch
          %323 = sbr.rel (%p321) target = $region60
        $region59: #{tpu_custom_call.1} parent=51 // pred_region
          %324 = dma.done [#allocation8], 6144
        $region60: #{tpu_custom_call.1} parent=51 // pred_fallthru
          _
        // Predicated region
        $region61: #{tpu_custom_call.1} parent=51 // pred_check
          %p325 = pneg %p130
        $region62: #{tpu_custom_call.1} parent=51 // pred_check_branch
          %327 = sbr.rel (%p325) target = $region64
        $region63: #{tpu_custom_call.1} parent=51 // pred_region
          %328 = dma.done [#allocation8], 6144
        $region64: #{tpu_custom_call.1} parent=51 // pred_fallthru
          _
        // Predicated region
        $region65: #{tpu_custom_call.1} parent=51 // pred_check
          %p329 = pneg %p172
        $region66: #{tpu_custom_call.1} parent=51 // pred_check_branch
          %331 = sbr.rel (%p329) target = $region68
        $region67: #{tpu_custom_call.1} parent=51 // pred_region
          %332 = dma.done [#allocation11], 12288
        $region68: #{tpu_custom_call.1} parent=51 // pred_fallthru
          _
        %p333 = pneg %p41
        %p334 = pneg %p38
        %s335 = sand.u32 %s54, 1
        %s336 = scalar_lea.sflag [#allocation5], %s335
        %s337 = sand.u32 %s54, 1
        %s338 = smul.addr %s337, 64
        %s339 = scalar_lea.vmem [#allocation4], %s338
        %p340 = pneg %p67
        %p341 = pneg %p64
        %p342 = pneg %p88
        %p343 = pneg %p85
        %p344 = pneg %p109
        %p345 = pneg %p106
        %p346 = pneg %p130
        %p347 = pneg %p127
        %p348 = pneg %p151
        %p349 = pneg %p148
        %p350 = pneg %p172
        %p351 = pneg %p169
        %p352 = pneg %p193
        %p353 = pneg %p190
        %p354 = pneg %p214
        %p355 = pneg %p211
        %s356 = smul.u32 8, %s25
        %s357 = smul.u32 %s25, 8
        %p358 = scmp.eq.s32.totalorder %s25, 0
        // Predicated region
        $region69: #{tpu_custom_call.1} parent=51 // pred_check
          %p359 = pneg %p358
        $region70: #{tpu_custom_call.1} parent=51 // pred_check_branch
          %361 = sbr.rel (%p359) target = $region72
        $region71: #{tpu_custom_call.1} parent=51 // pred_region
          %362 = vst [vmem:[#allocation12] sm:$0xff] 0.0
          %363 = vst [vmem:[#allocation12 + $0x8] sm:$0xff] 0.0
        $region72: #{tpu_custom_call.1} parent=51 // pred_fallthru
          _
        %v364 = vld [vmem:[%s0] sm:$0xff]
        %v365 = vld [vmem:[%s316] sm:$0xff]
        %v366 = vld [vmem:[%s316 + $0x8] sm:$0xff]
        %v367 = vld [vmem:[%s316 + $0x10] sm:$0xff]
        %v368 = vld [vmem:[%s316 + $0x18] sm:$0xff]
        %v369 = vld [vmem:[%s316 + $0x20] sm:$0xff]
        %v370 = vld [vmem:[%s316 + $0x28] sm:$0xff]
        %v371 = vld [vmem:[%s316 + $0x30] sm:$0xff]
        %v372 = vld [vmem:[%s316 + $0x38] sm:$0xff]
        %v373 = vld [vmem:[#allocation7] sm:$0xff]
        %v374 = vld [vmem:[#allocation7 + $0x8] sm:$0xff]
        %v375 = vld [vmem:[#allocation7 + $0x10] sm:$0xff]
        %v376 = vld [vmem:[#allocation7 + $0x18] sm:$0xff]
        %v377 = vld [vmem:[#allocation7 + $0x20] sm:$0xff]
        %v378 = vld [vmem:[#allocation7 + $0x28] sm:$0xff]
        %v379 = vld [vmem:[#allocation7 + $0x30] sm:$0xff]
        %v380 = vld [vmem:[#allocation7 + $0x38] sm:$0xff]
        %v381 = vld [vmem:[#allocation7 + $0x40] sm:$0xff]
        %v382 = vld [vmem:[#allocation7 + $0x48] sm:$0xff]
        %v383 = vld [vmem:[#allocation7 + $0x50] sm:$0xff]
        %v384 = vld [vmem:[#allocation7 + $0x58] sm:$0xff]
        %v385 = vld [vmem:[#allocation7 + $0x60] sm:$0xff]
        %v386 = vld [vmem:[#allocation7 + $0x68] sm:$0xff]
        %v387 = vld [vmem:[#allocation7 + $0x70] sm:$0xff]
        %v388 = vld [vmem:[#allocation7 + $0x78] sm:$0xff]
        %v389 = vld [vmem:[#allocation7 + $0x80] sm:$0xff]
        %v390 = vld [vmem:[#allocation7 + $0x88] sm:$0xff]
        %v391 = vld [vmem:[#allocation7 + $0x90] sm:$0xff]
        %v392 = vld [vmem:[#allocation7 + $0x98] sm:$0xff]
        %v393 = vld [vmem:[#allocation7 + $0xa0] sm:$0xff]
        %v394 = vld [vmem:[#allocation7 + $0xa8] sm:$0xff]
        %v395 = vld [vmem:[#allocation7 + $0xb0] sm:$0xff]
        %v396 = vld [vmem:[#allocation7 + $0xb8] sm:$0xff]
        %v397 = vld [vmem:[#allocation7 + $0xc0] sm:$0xff]
        %v398 = vld [vmem:[#allocation7 + $0xc8] sm:$0xff]
        %v399 = vld [vmem:[#allocation7 + $0xd0] sm:$0xff]
        %v400 = vld [vmem:[#allocation7 + $0xd8] sm:$0xff]
        %v401 = vld [vmem:[#allocation7 + $0xe0] sm:$0xff]
        %v402 = vld [vmem:[#allocation7 + $0xe8] sm:$0xff]
        %v403 = vld [vmem:[#allocation7 + $0xf0] sm:$0xff]
        %v404 = vld [vmem:[#allocation7 + $0xf8] sm:$0xff]
        %v405 = vld [vmem:[#allocation7 + $0x100] sm:$0xff]
        %v406 = vld [vmem:[#allocation7 + $0x108] sm:$0xff]
        %v407 = vld [vmem:[#allocation7 + $0x110] sm:$0xff]
        %v408 = vld [vmem:[#allocation7 + $0x118] sm:$0xff]
        %v409 = vld [vmem:[#allocation7 + $0x120] sm:$0xff]
        %v410 = vld [vmem:[#allocation7 + $0x128] sm:$0xff]
        %v411 = vld [vmem:[#allocation7 + $0x130] sm:$0xff]
        %v412 = vld [vmem:[#allocation7 + $0x138] sm:$0xff]
        %v413 = vld [vmem:[#allocation7 + $0x140] sm:$0xff]
        %v414 = vld [vmem:[#allocation7 + $0x148] sm:$0xff]
        %v415 = vld [vmem:[#allocation7 + $0x150] sm:$0xff]
        %v416 = vld [vmem:[#allocation7 + $0x158] sm:$0xff]
        %v417 = vld [vmem:[#allocation7 + $0x160] sm:$0xff]
        %v418 = vld [vmem:[#allocation7 + $0x168] sm:$0xff]
        %v419 = vld [vmem:[#allocation7 + $0x170] sm:$0xff]
        %v420 = vld [vmem:[#allocation7 + $0x178] sm:$0xff]
        %v421 = vld [vmem:[%s3] sm:$0x7]
        %v423 = vlaneseq
        %v424 = vshrl.u32 %v423, 7
        %v425 = vsub.s32 0, %v424
        %v426 = vrot.slane %v421, %v425
        %v427 = vlaneseq
        %v428 = vshrl.u32 %v427, 7
        %v429 = vsub.s32 1, %v428
        %v430 = vrot.slane %v421, %v429
        %v431 = vlaneseq
        %v432 = vshrl.u32 %v431, 7
        %v433 = vsub.s32 2, %v432
        %v434 = vrot.slane %v421, %v433
        %438 = vmatprep.subr.mxu0 %v374
        %439 = vmatpush1.msra.mxu0 %v373
        %440 = vmatprep.subr.mxu0 %v377
        %441 = vmatpush1.msra.mxu0 %v376
        %442 = vmatprep.subr.mxu0 %v380
        %443 = vmatpush1.msra.mxu0 %v379
        %444 = vmatprep.subr.mxu0 %v383
        %445 = vmatpush1.msra.mxu0 %v382
        %446 = vmatprep.subr.mxu0 %v386
        %447 = vmatpush1.msra.mxu0 %v385
        %448 = vmatprep.subr.mxu0 %v389
        %449 = vmatpush1.msra.mxu0 %v388
        %450 = vmatprep.subr.mxu0 %v392
        %451 = vmatpush1.msra.mxu0 %v391
        %452 = vmatprep.subr.mxu0 %v395
        %453 = vmatpush1.msra.mxu0 %v394
        %454 = vmatprep.subr.mxu0 %v398
        %455 = vmatpush1.msra.mxu0 %v397
        %456 = vmatprep.subr.mxu0 %v401
        %457 = vmatpush1.msra.mxu0 %v400
        %458 = vmatprep.subr.mxu0 %v404
        %459 = vmatpush1.msra.mxu0 %v403
        %460 = vmatprep.subr.mxu0 %v407
        %461 = vmatpush1.msra.mxu0 %v406
        %462 = vmatprep.subr.mxu0 %v410
        %463 = vmatpush1.msra.mxu0 %v409
        %464 = vmatprep.subr.mxu0 %v413
        %465 = vmatpush1.msra.mxu0 %v412
        %466 = vmatprep.subr.mxu0 %v416
        %467 = vmatpush1.msra.mxu0 %v415
        %468 = vmatprep.subr.mxu0 %v419
        %469 = vmatpush1.msra.mxu0 %v418
        %470 = vmatprep.subr.mxu0 0.0
        %471 = vmatpush1.msra.mxu0 0.0
        %472 = vmatprep.subr.mxu0 0.0
        %473 = vmatpush1.msra.mxu0 0.0
        %474 = vmatprep.subr.mxu0 0.0
        %475 = vmatpush1.msra.mxu0 0.0
        %476 = vmatprep.subr.mxu0 0.0
        %477 = vmatpush1.msra.mxu0 0.0
        %478 = vmatprep.subr.mxu0 0.0
        %479 = vmatpush1.msra.mxu0 0.0
        %480 = vmatprep.subr.mxu0 0.0
        %481 = vmatpush1.msra.mxu0 0.0
        %482 = vmatprep.subr.mxu0 0.0
        %483 = vmatpush1.msra.mxu0 0.0
        %484 = vmatprep.subr.mxu0 0.0
        %485 = vmatpush1.msra.mxu0 0.0
        %486 = vmatprep.subr.mxu0 0.0
        %487 = vmatpush1.msra.mxu0 0.0
        %488 = vmatprep.subr.mxu0 0.0
        %489 = vmatpush1.msra.mxu0 0.0
        %490 = vmatprep.subr.mxu0 0.0
        %491 = vmatpush1.msra.mxu0 0.0
        %492 = vmatprep.subr.mxu0 0.0
        %493 = vmatpush1.msra.mxu0 0.0
        %494 = vmatprep.subr.mxu0 0.0
        %495 = vmatpush1.msra.mxu0 0.0
        %496 = vmatprep.subr.mxu0 0.0
        %497 = vmatpush1.msra.mxu0 0.0
        %498 = vmatprep.subr.mxu0 0.0
        %499 = vmatpush1.msra.mxu0 0.0
        %500 = vmatprep.subr.mxu0 0.0
        %501 = vmatpush1.msra.mxu0 0.0
        %502 = vmatprep.mubr.f32.mxu0 0.0
        %503 = vmatmul.mubr.f32.gmra.mrb[0].mxu0 %v365
        %v504 = vpop.f32.mrb[0].mxu0
        %v505 = vadd.f32 %v426, %v504
        %v506 = vpop.f32.mrb[0].mxu0
        %v507 = vadd.f32 %v430, %v506
        %508 = vmatprep.mubr.f32.mxu0 0.0
        %509 = vmatmul.mubr.f32.gmra.mrb[0].mxu0 %v366
        %v510 = vpop.f32.mrb[0].mxu0
        %v511 = vadd.f32 %v426, %v510
        %v512 = vpop.f32.mrb[0].mxu0
        %v513 = vadd.f32 %v430, %v512
        %514 = vmatprep.mubr.f32.mxu0 0.0
        %515 = vmatmul.mubr.f32.gmra.mrb[0].mxu0 %v367
        %v516 = vpop.f32.mrb[0].mxu0
        %v517 = vadd.f32 %v426, %v516
        %v518 = vpop.f32.mrb[0].mxu0
        %v519 = vadd.f32 %v430, %v518
        %520 = vmatprep.mubr.f32.mxu0 0.0
        %521 = vmatmul.mubr.f32.gmra.mrb[0].mxu0 %v368
        %v522 = vpop.f32.mrb[0].mxu0
        %v523 = vadd.f32 %v426, %v522
        %v524 = vpop.f32.mrb[0].mxu0
        %v525 = vadd.f32 %v430, %v524
        %526 = vmatprep.mubr.f32.mxu0 0.0
        %527 = vmatmul.mubr.f32.gmra.mrb[0].mxu0 %v369
        %v528 = vpop.f32.mrb[0].mxu0
        %v529 = vadd.f32 %v426, %v528
        %v530 = vpop.f32.mrb[0].mxu0
        %v531 = vadd.f32 %v430, %v530
        %532 = vmatprep.mubr.f32.mxu0 0.0
        %533 = vmatmul.mubr.f32.gmra.mrb[0].mxu0 %v370
        %v534 = vpop.f32.mrb[0].mxu0
        %v535 = vadd.f32 %v426, %v534
        %v536 = vpop.f32.mrb[0].mxu0
        %v537 = vadd.f32 %v430, %v536
        %538 = vmatprep.mubr.f32.mxu0 0.0
        %539 = vmatmul.mubr.f32.gmra.mrb[0].mxu0 %v371
        %v540 = vpop.f32.mrb[0].mxu0
        %v541 = vadd.f32 %v426, %v540
        %v542 = vpop.f32.mrb[0].mxu0
        %v543 = vadd.f32 %v430, %v542
        %544 = vmatprep.mubr.f32.mxu0 0.0
        %545 = vmatmul.mubr.f32.gmra.mrb[0].mxu0 %v372
        %v546 = vpop.f32.mrb[0].mxu0
        %v547 = vadd.f32 %v426, %v546
        %v548 = vpop.f32.mrb[0].mxu0
        %v549 = vadd.f32 %v430, %v548
        %550 = vdwg.mxu0
        %551 = vmatprep.subr.mxu0 0.0
        %552 = vmatpush1.msra.mxu0 %v375
        %553 = vmatprep.subr.mxu0 0.0
        %554 = vmatpush1.msra.mxu0 %v378
        %555 = vmatprep.subr.mxu0 0.0
        %556 = vmatpush1.msra.mxu0 %v381
        %557 = vmatprep.subr.mxu0 0.0
        %558 = vmatpush1.msra.mxu0 %v384
        %559 = vmatprep.subr.mxu0 0.0
        %560 = vmatpush1.msra.mxu0 %v387
        %561 = vmatprep.subr.mxu0 0.0
        %562 = vmatpush1.msra.mxu0 %v390
        %563 = vmatprep.subr.mxu0 0.0
        %564 = vmatpush1.msra.mxu0 %v393
        %565 = vmatprep.subr.mxu0 0.0
        %566 = vmatpush1.msra.mxu0 %v396
        %567 = vmatprep.subr.mxu0 0.0
        %568 = vmatpush1.msra.mxu0 %v399
        %569 = vmatprep.subr.mxu0 0.0
        %570 = vmatpush1.msra.mxu0 %v402
        %571 = vmatprep.subr.mxu0 0.0
        %572 = vmatpush1.msra.mxu0 %v405
        %573 = vmatprep.subr.mxu0 0.0
        %574 = vmatpush1.msra.mxu0 %v408
        %575 = vmatprep.subr.mxu0 0.0
        %576 = vmatpush1.msra.mxu0 %v411
        %577 = vmatprep.subr.mxu0 0.0
        %578 = vmatpush1.msra.mxu0 %v414
        %579 = vmatprep.subr.mxu0 0.0
        %580 = vmatpush1.msra.mxu0 %v417
        %581 = vmatprep.subr.mxu0 0.0
        %582 = vmatpush1.msra.mxu0 %v420
        %583 = vmatprep.subr.mxu0 0.0
        %584 = vmatpush1.msra.mxu0 0.0
        %585 = vmatprep.subr.mxu0 0.0
        %586 = vmatpush1.msra.mxu0 0.0
        %587 = vmatprep.subr.mxu0 0.0
        %588 = vmatpush1.msra.mxu0 0.0
        %589 = vmatprep.subr.mxu0 0.0
        %590 = vmatpush1.msra.mxu0 0.0
        %591 = vmatprep.subr.mxu0 0.0
        %592 = vmatpush1.msra.mxu0 0.0
        %593 = vmatprep.subr.mxu0 0.0
        %594 = vmatpush1.msra.mxu0 0.0
        %595 = vmatprep.subr.mxu0 0.0
        %596 = vmatpush1.msra.mxu0 0.0
        %597 = vmatprep.subr.mxu0 0.0
        %598 = vmatpush1.msra.mxu0 0.0
        %599 = vmatprep.subr.mxu0 0.0
        %600 = vmatpush1.msra.mxu0 0.0
        %601 = vmatprep.subr.mxu0 0.0
        %602 = vmatpush1.msra.mxu0 0.0
        %603 = vmatprep.subr.mxu0 0.0
        %604 = vmatpush1.msra.mxu0 0.0
        %605 = vmatprep.subr.mxu0 0.0
        %606 = vmatpush1.msra.mxu0 0.0
        %607 = vmatprep.subr.mxu0 0.0
        %608 = vmatpush1.msra.mxu0 0.0
        %609 = vmatprep.subr.mxu0 0.0
        %610 = vmatpush1.msra.mxu0 0.0
        %611 = vmatprep.subr.mxu0 0.0
        %612 = vmatpush1.msra.mxu0 0.0
        %613 = vmatprep.subr.mxu0 0.0
        %614 = vmatpush1.msra.mxu0 0.0
        %615 = vmatprep.mubr.f32.mxu0 0.0
        %616 = vmatmul.mubr.f32.gmra.mrb[0].mxu0 %v365
        %v617 = vpop.f32.mrb[0].mxu0
        %v618 = vadd.f32 %v434, %v617
        %v619 = vpop.f32.mrb[0].mxu0
        %620 = vmatprep.mubr.f32.mxu0 0.0
        %621 = vmatmul.mubr.f32.gmra.mrb[0].mxu0 %v366
        %v622 = vpop.f32.mrb[0].mxu0
        %v623 = vadd.f32 %v434, %v622
        %v624 = vpop.f32.mrb[0].mxu0
        %625 = vmatprep.mubr.f32.mxu0 0.0
        %626 = vmatmul.mubr.f32.gmra.mrb[0].mxu0 %v367
        %v627 = vpop.f32.mrb[0].mxu0
        %v628 = vadd.f32 %v434, %v627
        %v629 = vpop.f32.mrb[0].mxu0
        %630 = vmatprep.mubr.f32.mxu0 0.0
        %631 = vmatmul.mubr.f32.gmra.mrb[0].mxu0 %v368
        %v632 = vpop.f32.mrb[0].mxu0
        %v633 = vadd.f32 %v434, %v632
        %v634 = vpop.f32.mrb[0].mxu0
        %635 = vmatprep.mubr.f32.mxu0 0.0
        %636 = vmatmul.mubr.f32.gmra.mrb[0].mxu0 %v369
        %v637 = vpop.f32.mrb[0].mxu0
        %v638 = vadd.f32 %v434, %v637
        %v639 = vpop.f32.mrb[0].mxu0
        %640 = vmatprep.mubr.f32.mxu0 0.0
        %641 = vmatmul.mubr.f32.gmra.mrb[0].mxu0 %v370
        %v642 = vpop.f32.mrb[0].mxu0
        %v643 = vadd.f32 %v434, %v642
        %v644 = vpop.f32.mrb[0].mxu0
        %645 = vmatprep.mubr.f32.mxu0 0.0
        %646 = vmatmul.mubr.f32.gmra.mrb[0].mxu0 %v371
        %v647 = vpop.f32.mrb[0].mxu0
        %v648 = vadd.f32 %v434, %v647
        %v649 = vpop.f32.mrb[0].mxu0
        %650 = vmatprep.mubr.f32.mxu0 0.0
        %651 = vmatmul.mubr.f32.gmra.mrb[0].mxu0 %v372
        %v652 = vpop.f32.mrb[0].mxu0
        %v653 = vadd.f32 %v434, %v652
        %v654 = vpop.f32.mrb[0].mxu0
        %655 = vdwg.mxu0
        %656 = vst [vmem:[#allocation3] sm:$0xff] %v505
        %657 = vst [vmem:[#allocation3 + $0x8] sm:$0xff] %v507
        %658 = vst [vmem:[#allocation3 + $0x10] sm:$0xff] %v618
        %659 = vst [vmem:[#allocation3 + $0x18] sm:$0xff] %v511
        %660 = vst [vmem:[#allocation3 + $0x20] sm:$0xff] %v513
        %661 = vst [vmem:[#allocation3 + $0x28] sm:$0xff] %v623
        %662 = vst [vmem:[#allocation3 + $0x30] sm:$0xff] %v517
        %663 = vst [vmem:[#allocation3 + $0x38] sm:$0xff] %v519
        %664 = vst [vmem:[#allocation3 + $0x40] sm:$0xff] %v628
        %665 = vst [vmem:[#allocation3 + $0x48] sm:$0xff] %v523
        %666 = vst [vmem:[#allocation3 + $0x50] sm:$0xff] %v525
        %667 = vst [vmem:[#allocation3 + $0x58] sm:$0xff] %v633
        %668 = vst [vmem:[#allocation3 + $0x60] sm:$0xff] %v529
        %669 = vst [vmem:[#allocation3 + $0x68] sm:$0xff] %v531
        %670 = vst [vmem:[#allocation3 + $0x70] sm:$0xff] %v638
        %671 = vst [vmem:[#allocation3 + $0x78] sm:$0xff] %v535
        %672 = vst [vmem:[#allocation3 + $0x80] sm:$0xff] %v537
        %673 = vst [vmem:[#allocation3 + $0x88] sm:$0xff] %v643
        %674 = vst [vmem:[#allocation3 + $0x90] sm:$0xff] %v541
        %675 = vst [vmem:[#allocation3 + $0x98] sm:$0xff] %v543
        %676 = vst [vmem:[#allocation3 + $0xa0] sm:$0xff] %v648
        %677 = vst [vmem:[#allocation3 + $0xa8] sm:$0xff] %v547
        %678 = vst [vmem:[#allocation3 + $0xb0] sm:$0xff] %v549
        %679 = vst [vmem:[#allocation3 + $0xb8] sm:$0xff] %v653
        %v680 = vld [vmem:[#allocation12] sm:$0xff]
        %v681 = vld [vmem:[#allocation3] sm:$0xff]
        %v682 = vld [vmem:[#allocation3 + $0x8] sm:$0xff]
        %v683 = vld [vmem:[#allocation3 + $0x10] sm:$0xff]
        %v684 = vld [vmem:[#allocation10] sm:$0xff]
        %v685 = vld [vmem:[#allocation10 + $0x8] sm:$0xff]
        %v686 = vld [vmem:[#allocation10 + $0x10] sm:$0xff]
        %v687 = vld [vmem:[#allocation10 + $0x18] sm:$0xff]
        %v688 = vld [vmem:[#allocation10 + $0x20] sm:$0xff]
        %v689 = vld [vmem:[#allocation10 + $0x28] sm:$0xff]
        %v690 = vld [vmem:[#allocation10 + $0x30] sm:$0xff]
        %v691 = vld [vmem:[#allocation10 + $0x38] sm:$0xff]
        %v692 = vld [vmem:[#allocation10 + $0x40] sm:$0xff]
        %v693 = vld [vmem:[#allocation10 + $0x48] sm:$0xff]
        %v694 = vld [vmem:[#allocation10 + $0x50] sm:$0xff]
        %v695 = vld [vmem:[#allocation10 + $0x58] sm:$0xff]
        %v696 = vld [vmem:[#allocation10 + $0x60] sm:$0xff]
        %v697 = vld [vmem:[#allocation10 + $0x68] sm:$0xff]
        %v698 = vld [vmem:[#allocation10 + $0x70] sm:$0xff]
        %v699 = vld [vmem:[#allocation10 + $0x78] sm:$0xff]
        %v700 = vld [vmem:[#allocation10 + $0x80] sm:$0xff]
        %v701 = vld [vmem:[#allocation10 + $0x88] sm:$0xff]
        %v702 = vld [vmem:[#allocation10 + $0x90] sm:$0xff]
        %v703 = vld [vmem:[#allocation10 + $0x98] sm:$0xff]
        %v704 = vld [vmem:[#allocation10 + $0xa0] sm:$0xff]
        %v705 = vld [vmem:[#allocation10 + $0xa8] sm:$0xff]
        %v706 = vld [vmem:[#allocation10 + $0xb0] sm:$0xff]
        %v707 = vld [vmem:[#allocation10 + $0xb8] sm:$0xff]
        %v708 = vld [vmem:[#allocation10 + $0xc0] sm:$0xff]
        %v709 = vld [vmem:[#allocation10 + $0xc8] sm:$0xff]
        %v710 = vld [vmem:[#allocation10 + $0xd0] sm:$0xff]
        %v711 = vld [vmem:[#allocation10 + $0xd8] sm:$0xff]
        %v712 = vld [vmem:[#allocation10 + $0xe0] sm:$0xff]
        %v713 = vld [vmem:[#allocation10 + $0xe8] sm:$0xff]
        %v714 = vld [vmem:[#allocation10 + $0xf0] sm:$0xff]
        %v715 = vld [vmem:[#allocation10 + $0xf8] sm:$0xff]
        %v716 = vld [vmem:[#allocation10 + $0x100] sm:$0xff]
        %v717 = vld [vmem:[#allocation10 + $0x108] sm:$0xff]
        %v718 = vld [vmem:[#allocation10 + $0x110] sm:$0xff]
        %v719 = vld [vmem:[#allocation10 + $0x118] sm:$0xff]
        %v720 = vld [vmem:[#allocation10 + $0x120] sm:$0xff]
        %v721 = vld [vmem:[#allocation10 + $0x128] sm:$0xff]
        %v722 = vld [vmem:[#allocation10 + $0x130] sm:$0xff]
        %v723 = vld [vmem:[#allocation10 + $0x138] sm:$0xff]
        %v724 = vld [vmem:[#allocation10 + $0x140] sm:$0xff]
        %v725 = vld [vmem:[#allocation10 + $0x148] sm:$0xff]
        %v726 = vld [vmem:[#allocation10 + $0x150] sm:$0xff]
        %v727 = vld [vmem:[#allocation10 + $0x158] sm:$0xff]
        %v728 = vld [vmem:[#allocation10 + $0x160] sm:$0xff]
        %v729 = vld [vmem:[#allocation10 + $0x168] sm:$0xff]
        %v730 = vld [vmem:[#allocation10 + $0x170] sm:$0xff]
        %v731 = vld [vmem:[#allocation10 + $0x178] sm:$0xff]
        %v732 = vld [vmem:[%s7] sm:$0x7]
        %v734 = vlaneseq
        %v735 = vshrl.u32 %v734, 7
        %v736 = vsub.s32 0, %v735
        %v737 = vrot.slane %v732, %v736
        %v738 = vlaneseq
        %v739 = vshrl.u32 %v738, 7
        %v740 = vsub.s32 1, %v739
        %v741 = vrot.slane %v732, %v740
        %v742 = vlaneseq
        %v743 = vshrl.u32 %v742, 7
        %v744 = vsub.s32 2, %v743
        %v745 = vrot.slane %v732, %v744
        %749 = vmatprep.subr.mxu0 %v685
        %750 = vmatpush1.msra.mxu0 %v684
        %751 = vmatprep.subr.mxu0 %v688
        %752 = vmatpush1.msra.mxu0 %v687
        %753 = vmatprep.subr.mxu0 %v691
        %754 = vmatpush1.msra.mxu0 %v690
        %755 = vmatprep.subr.mxu0 %v694
        %756 = vmatpush1.msra.mxu0 %v693
        %757 = vmatprep.subr.mxu0 %v697
        %758 = vmatpush1.msra.mxu0 %v696
        %759 = vmatprep.subr.mxu0 %v700
        %760 = vmatpush1.msra.mxu0 %v699
        %761 = vmatprep.subr.mxu0 %v703
        %762 = vmatpush1.msra.mxu0 %v702
        %763 = vmatprep.subr.mxu0 %v706
        %764 = vmatpush1.msra.mxu0 %v705
        %765 = vmatprep.subr.mxu0 %v709
        %766 = vmatpush1.msra.mxu0 %v708
        %767 = vmatprep.subr.mxu0 %v712
        %768 = vmatpush1.msra.mxu0 %v711
        %769 = vmatprep.subr.mxu0 %v715
        %770 = vmatpush1.msra.mxu0 %v714
        %771 = vmatprep.subr.mxu0 %v718
        %772 = vmatpush1.msra.mxu0 %v717
        %773 = vmatprep.subr.mxu0 %v721
        %774 = vmatpush1.msra.mxu0 %v720
        %775 = vmatprep.subr.mxu0 %v724
        %776 = vmatpush1.msra.mxu0 %v723
        %777 = vmatprep.subr.mxu0 %v727
        %778 = vmatpush1.msra.mxu0 %v726
        %779 = vmatprep.subr.mxu0 %v730
        %780 = vmatpush1.msra.mxu0 %v729
        %781 = vmatprep.subr.mxu0 0.0
        %782 = vmatpush1.msra.mxu0 0.0
        %783 = vmatprep.subr.mxu0 0.0
        %784 = vmatpush1.msra.mxu0 0.0
        %785 = vmatprep.subr.mxu0 0.0
        %786 = vmatpush1.msra.mxu0 0.0
        %787 = vmatprep.subr.mxu0 0.0
        %788 = vmatpush1.msra.mxu0 0.0
        %789 = vmatprep.subr.mxu0 0.0
        %790 = vmatpush1.msra.mxu0 0.0
        %791 = vmatprep.subr.mxu0 0.0
        %792 = vmatpush1.msra.mxu0 0.0
        %793 = vmatprep.subr.mxu0 0.0
        %794 = vmatpush1.msra.mxu0 0.0
        %795 = vmatprep.subr.mxu0 0.0
        %796 = vmatpush1.msra.mxu0 0.0
        %797 = vmatprep.subr.mxu0 0.0
        %798 = vmatpush1.msra.mxu0 0.0
        %799 = vmatprep.subr.mxu0 0.0
        %800 = vmatpush1.msra.mxu0 0.0
        %801 = vmatprep.subr.mxu0 0.0
        %802 = vmatpush1.msra.mxu0 0.0
        %803 = vmatprep.subr.mxu0 0.0
        %804 = vmatpush1.msra.mxu0 0.0
        %805 = vmatprep.subr.mxu0 0.0
        %806 = vmatpush1.msra.mxu0 0.0
        %807 = vmatprep.subr.mxu0 0.0
        %808 = vmatpush1.msra.mxu0 0.0
        %809 = vmatprep.subr.mxu0 0.0
        %810 = vmatpush1.msra.mxu0 0.0
        %811 = vmatprep.subr.mxu0 0.0
        %812 = vmatpush1.msra.mxu0 0.0
        %813 = vmatprep.mubr.f32.mxu0 0.0
        %814 = vmatmul.mubr.f32.gmra.mrb[0].mxu0 %v680
        %v815 = vpop.f32.mrb[0].mxu0
        %v816 = vadd.f32 %v737, %v815
        %v817 = vpop.f32.mrb[0].mxu0
        %v818 = vadd.f32 %v741, %v817
        %819 = vdwg.mxu0
        %820 = vmatprep.subr.mxu0 0.0
        %821 = vmatpush1.msra.mxu0 %v686
        %822 = vmatprep.subr.mxu0 0.0
        %823 = vmatpush1.msra.mxu0 %v689
        %824 = vmatprep.subr.mxu0 0.0
        %825 = vmatpush1.msra.mxu0 %v692
        %826 = vmatprep.subr.mxu0 0.0
        %827 = vmatpush1.msra.mxu0 %v695
        %828 = vmatprep.subr.mxu0 0.0
        %829 = vmatpush1.msra.mxu0 %v698
        %830 = vmatprep.subr.mxu0 0.0
        %831 = vmatpush1.msra.mxu0 %v701
        %832 = vmatprep.subr.mxu0 0.0
        %833 = vmatpush1.msra.mxu0 %v704
        %834 = vmatprep.subr.mxu0 0.0
        %835 = vmatpush1.msra.mxu0 %v707
        %836 = vmatprep.subr.mxu0 0.0
        %837 = vmatpush1.msra.mxu0 %v710
        %838 = vmatprep.subr.mxu0 0.0
        %839 = vmatpush1.msra.mxu0 %v713
        %840 = vmatprep.subr.mxu0 0.0
        %841 = vmatpush1.msra.mxu0 %v716
        %842 = vmatprep.subr.mxu0 0.0
        %843 = vmatpush1.msra.mxu0 %v719
        %844 = vmatprep.subr.mxu0 0.0
        %845 = vmatpush1.msra.mxu0 %v722
        %846 = vmatprep.subr.mxu0 0.0
        %847 = vmatpush1.msra.mxu0 %v725
        %848 = vmatprep.subr.mxu0 0.0
        %849 = vmatpush1.msra.mxu0 %v728
        %850 = vmatprep.subr.mxu0 0.0
        %851 = vmatpush1.msra.mxu0 %v731
        %852 = vmatprep.subr.mxu0 0.0
        %853 = vmatpush1.msra.mxu0 0.0
        %854 = vmatprep.subr.mxu0 0.0
        %855 = vmatpush1.msra.mxu0 0.0
        %856 = vmatprep.subr.mxu0 0.0
        %857 = vmatpush1.msra.mxu0 0.0
        %858 = vmatprep.subr.mxu0 0.0
        %859 = vmatpush1.msra.mxu0 0.0
        %860 = vmatprep.subr.mxu0 0.0
        %861 = vmatpush1.msra.mxu0 0.0
        %862 = vmatprep.subr.mxu0 0.0
        %863 = vmatpush1.msra.mxu0 0.0
        %864 = vmatprep.subr.mxu0 0.0
        %865 = vmatpush1.msra.mxu0 0.0
        %866 = vmatprep.subr.mxu0 0.0
        %867 = vmatpush1.msra.mxu0 0.0
        %868 = vmatprep.subr.mxu0 0.0
        %869 = vmatpush1.msra.mxu0 0.0
        %870 = vmatprep.subr.mxu0 0.0
        %871 = vmatpush1.msra.mxu0 0.0
        %872 = vmatprep.subr.mxu0 0.0
        %873 = vmatpush1.msra.mxu0 0.0
        %874 = vmatprep.subr.mxu0 0.0
        %875 = vmatpush1.msra.mxu0 0.0
        %876 = vmatprep.subr.mxu0 0.0
        %877 = vmatpush1.msra.mxu0 0.0
        %878 = vmatprep.subr.mxu0 0.0
        %879 = vmatpush1.msra.mxu0 0.0
        %880 = vmatprep.subr.mxu0 0.0
        %881 = vmatpush1.msra.mxu0 0.0
        %882 = vmatprep.subr.mxu0 0.0
        %883 = vmatpush1.msra.mxu0 0.0
        %884 = vmatprep.mubr.f32.mxu0 0.0
        %885 = vmatmul.mubr.f32.gmra.mrb[0].mxu0 %v680
        %v886 = vpop.f32.mrb[0].mxu0
        %v887 = vadd.f32 %v745, %v886
        %v888 = vpop.f32.mrb[0].mxu0
        %889 = vdwg.mxu0
        %v890 = vadd.f32 %v681, %v816
        %v891 = vxor.u32 %v890, 2147483648
        %v892 = vmul.f32 %v891, 1.442695
        %v893 = vpow.pop %v892
        %v894 = vadd.f32 %v893, 1.0
        %v895 = vrcp.pop %v894
        %v896 = vmul.f32 1.0, %v895
        %v897 = vadd.f32 %v682, %v818
        %v898 = vxor.u32 %v897, 2147483648
        %v899 = vmul.f32 %v898, 1.442695
        %v900 = vpow.pop %v899
        %v901 = vadd.f32 %v900, 1.0
        %v902 = vrcp.pop %v901
        %v903 = vmul.f32 1.0, %v902
        %v904 = vmul.f32 %v896, %v887
        %v905 = vadd.f32 %v683, %v904
        %v906 = vtanh.pop %v905
        %v907 = vsub.f32 1.0, %v903
        %v908 = vmul.f32 %v907, %v906
        %v909 = vmul.f32 %v903, %v680
        %v910 = vadd.f32 %v908, %v909
        %v911 = vstv %s357
        %vm912 = vcmp.lt.s32.totalorder %v911, %v364
        %v913 = vsel %vm912, 1, 0
        %914 = vset.pattern.permute.xlu0 0
        %915 = vperm.xlu0 %914, %v913
        %v916 = vpop.permute.xlu0 %915
        %vm917 = vcmp.eq.s32.totalorder %v916, 1
        %v918 = vsel %vm917, %v910, %v680
        %919 = vst [vmem:[#allocation2] sm:$0xff] %v918
        %s920 = scalar_lea.vmem [#allocation3], 24
        %v921 = vld [vmem:[%s920] sm:$0xff]
        %v922 = vld [vmem:[%s920 + $0x8] sm:$0xff]
        %v923 = vld [vmem:[%s920 + $0x10] sm:$0xff]
        %v924 = vld [vmem:[#allocation10] sm:$0xff]
        %v925 = vld [vmem:[#allocation10 + $0x8] sm:$0xff]
        %v926 = vld [vmem:[#allocation10 + $0x10] sm:$0xff]
        %v927 = vld [vmem:[#allocation10 + $0x18] sm:$0xff]
        %v928 = vld [vmem:[#allocation10 + $0x20] sm:$0xff]
        %v929 = vld [vmem:[#allocation10 + $0x28] sm:$0xff]
        %v930 = vld [vmem:[#allocation10 + $0x30] sm:$0xff]
        %v931 = vld [vmem:[#allocation10 + $0x38] sm:$0xff]
        %v932 = vld [vmem:[#allocation10 + $0x40] sm:$0xff]
        %v933 = vld [vmem:[#allocation10 + $0x48] sm:$0xff]
        %v934 = vld [vmem:[#allocation10 + $0x50] sm:$0xff]
        %v935 = vld [vmem:[#allocation10 + $0x58] sm:$0xff]
        %v936 = vld [vmem:[#allocation10 + $0x60] sm:$0xff]
        %v937 = vld [vmem:[#allocation10 + $0x68] sm:$0xff]
        %v938 = vld [vmem:[#allocation10 + $0x70] sm:$0xff]
        %v939 = vld [vmem:[#allocation10 + $0x78] sm:$0xff]
        %v940 = vld [vmem:[#allocation10 + $0x80] sm:$0xff]
        %v941 = vld [vmem:[#allocation10 + $0x88] sm:$0xff]
        %v942 = vld [vmem:[#allocation10 + $0x90] sm:$0xff]
        %v943 = vld [vmem:[#allocation10 + $0x98] sm:$0xff]
        %v944 = vld [vmem:[#allocation10 + $0xa0] sm:$0xff]
        %v945 = vld [vmem:[#allocation10 + $0xa8] sm:$0xff]
        %v946 = vld [vmem:[#allocation10 + $0xb0] sm:$0xff]
        %v947 = vld [vmem:[#allocation10 + $0xb8] sm:$0xff]
        %v948 = vld [vmem:[#allocation10 + $0xc0] sm:$0xff]
        %v949 = vld [vmem:[#allocation10 + $0xc8] sm:$0xff]
        %v950 = vld [vmem:[#allocation10 + $0xd0] sm:$0xff]
        %v951 = vld [vmem:[#allocation10 + $0xd8] sm:$0xff]
        %v952 = vld [vmem:[#allocation10 + $0xe0] sm:$0xff]
        %v953 = vld [vmem:[#allocation10 + $0xe8] sm:$0xff]
        %v954 = vld [vmem:[#allocation10 + $0xf0] sm:$0xff]
        %v955 = vld [vmem:[#allocation10 + $0xf8] sm:$0xff]
        %v956 = vld [vmem:[#allocation10 + $0x100] sm:$0xff]
        %v957 = vld [vmem:[#allocation10 + $0x108] sm:$0xff]
        %v958 = vld [vmem:[#allocation10 + $0x110] sm:$0xff]
        %v959 = vld [vmem:[#allocation10 + $0x118] sm:$0xff]
        %v960 = vld [vmem:[#allocation10 + $0x120] sm:$0xff]
        %v961 = vld [vmem:[#allocation10 + $0x128] sm:$0xff]
        %v962 = vld [vmem:[#allocation10 + $0x130] sm:$0xff]
        %v963 = vld [vmem:[#allocation10 + $0x138] sm:$0xff]
        %v964 = vld [vmem:[#allocation10 + $0x140] sm:$0xff]
        %v965 = vld [vmem:[#allocation10 + $0x148] sm:$0xff]
        %v966 = vld [vmem:[#allocation10 + $0x150] sm:$0xff]
        %v967 = vld [vmem:[#allocation10 + $0x158] sm:$0xff]
        %v968 = vld [vmem:[#allocation10 + $0x160] sm:$0xff]
        %v969 = vld [vmem:[#allocation10 + $0x168] sm:$0xff]
        %v970 = vld [vmem:[#allocation10 + $0x170] sm:$0xff]
        %v971 = vld [vmem:[#allocation10 + $0x178] sm:$0xff]
        %v972 = vld [vmem:[%s7] sm:$0x7]
        %v974 = vlaneseq
        %v975 = vshrl.u32 %v974, 7
        %v976 = vsub.s32 0, %v975
        %v977 = vrot.slane %v972, %v976
        %v978 = vlaneseq
        %v979 = vshrl.u32 %v978, 7
        %v980 = vsub.s32 1, %v979
        %v981 = vrot.slane %v972, %v980
        %v982 = vlaneseq
        %v983 = vshrl.u32 %v982, 7
        %v984 = vsub.s32 2, %v983
        %v985 = vrot.slane %v972, %v984
        %989 = vmatprep.subr.mxu0 %v925
        %990 = vmatpush1.msra.mxu0 %v924
        %991 = vmatprep.subr.mxu0 %v928
        %992 = vmatpush1.msra.mxu0 %v927
        %993 = vmatprep.subr.mxu0 %v931
        %994 = vmatpush1.msra.mxu0 %v930
        %995 = vmatprep.subr.mxu0 %v934
        %996 = vmatpush1.msra.mxu0 %v933
        %997 = vmatprep.subr.mxu0 %v937
        %998 = vmatpush1.msra.mxu0 %v936
        %999 = vmatprep.subr.mxu0 %v940
        %1000 = vmatpush1.msra.mxu0 %v939
        %1001 = vmatprep.subr.mxu0 %v943
        %1002 = vmatpush1.msra.mxu0 %v942
        %1003 = vmatprep.subr.mxu0 %v946
        %1004 = vmatpush1.msra.mxu0 %v945
        %1005 = vmatprep.subr.mxu0 %v949
        %1006 = vmatpush1.msra.mxu0 %v948
        %1007 = vmatprep.subr.mxu0 %v952
        %1008 = vmatpush1.msra.mxu0 %v951
        %1009 = vmatprep.subr.mxu0 %v955
        %1010 = vmatpush1.msra.mxu0 %v954
        %1011 = vmatprep.subr.mxu0 %v958
        %1012 = vmatpush1.msra.mxu0 %v957
        %1013 = vmatprep.subr.mxu0 %v961
        %1014 = vmatpush1.msra.mxu0 %v960
        %1015 = vmatprep.subr.mxu0 %v964
        %1016 = vmatpush1.msra.mxu0 %v963
        %1017 = vmatprep.subr.mxu0 %v967
        %1018 = vmatpush1.msra.mxu0 %v966
        %1019 = vmatprep.subr.mxu0 %v970
        %1020 = vmatpush1.msra.mxu0 %v969
        %1021 = vmatprep.subr.mxu0 0.0
        %1022 = vmatpush1.msra.mxu0 0.0
        %1023 = vmatprep.subr.mxu0 0.0
        %1024 = vmatpush1.msra.mxu0 0.0
        %1025 = vmatprep.subr.mxu0 0.0
        %1026 = vmatpush1.msra.mxu0 0.0
        %1027 = vmatprep.subr.mxu0 0.0
        %1028 = vmatpush1.msra.mxu0 0.0
        %1029 = vmatprep.subr.mxu0 0.0
        %1030 = vmatpush1.msra.mxu0 0.0
        %1031 = vmatprep.subr.mxu0 0.0
        %1032 = vmatpush1.msra.mxu0 0.0
        %1033 = vmatprep.subr.mxu0 0.0
        %1034 = vmatpush1.msra.mxu0 0.0
        %1035 = vmatprep.subr.mxu0 0.0
        %1036 = vmatpush1.msra.mxu0 0.0
        %1037 = vmatprep.subr.mxu0 0.0
        %1038 = vmatpush1.msra.mxu0 0.0
        %1039 = vmatprep.subr.mxu0 0.0
        %1040 = vmatpush1.msra.mxu0 0.0
        %1041 = vmatprep.subr.mxu0 0.0
        %1042 = vmatpush1.msra.mxu0 0.0
        %1043 = vmatprep.subr.mxu0 0.0
        %1044 = vmatpush1.msra.mxu0 0.0
        %1045 = vmatprep.subr.mxu0 0.0
        %1046 = vmatpush1.msra.mxu0 0.0
        %1047 = vmatprep.subr.mxu0 0.0
        %1048 = vmatpush1.msra.mxu0 0.0
        %1049 = vmatprep.subr.mxu0 0.0
        %1050 = vmatpush1.msra.mxu0 0.0
        %1051 = vmatprep.subr.mxu0 0.0
        %1052 = vmatpush1.msra.mxu0 0.0
        %1053 = vmatprep.mubr.f32.mxu0 0.0
        %1054 = vmatmul.mubr.f32.gmra.mrb[0].mxu0 %v918
        %v1055 = vpop.f32.mrb[0].mxu0
        %v1056 = vadd.f32 %v977, %v1055
        %v1057 = vpop.f32.mrb[0].mxu0
        %v1058 = vadd.f32 %v981, %v1057
        %1059 = vdwg.mxu0
        %1060 = vmatprep.subr.mxu0 0.0
        %1061 = vmatpush1.msra.mxu0 %v926
        %1062 = vmatprep.subr.mxu0 0.0
        %1063 = vmatpush1.msra.mxu0 %v929
        %1064 = vmatprep.subr.mxu0 0.0
        %1065 = vmatpush1.msra.mxu0 %v932
        %1066 = vmatprep.subr.mxu0 0.0
        %1067 = vmatpush1.msra.mxu0 %v935
        %1068 = vmatprep.subr.mxu0 0.0
        %1069 = vmatpush1.msra.mxu0 %v938
        %1070 = vmatprep.subr.mxu0 0.0
        %1071 = vmatpush1.msra.mxu0 %v941
        %1072 = vmatprep.subr.mxu0 0.0
        %1073 = vmatpush1.msra.mxu0 %v944
        %1074 = vmatprep.subr.mxu0 0.0
        %1075 = vmatpush1.msra.mxu0 %v947
        %1076 = vmatprep.subr.mxu0 0.0
        %1077 = vmatpush1.msra.mxu0 %v950
        %1078 = vmatprep.subr.mxu0 0.0
        %1079 = vmatpush1.msra.mxu0 %v953
        %1080 = vmatprep.subr.mxu0 0.0
        %1081 = vmatpush1.msra.mxu0 %v956
        %1082 = vmatprep.subr.mxu0 0.0
        %1083 = vmatpush1.msra.mxu0 %v959
        %1084 = vmatprep.subr.mxu0 0.0
        %1085 = vmatpush1.msra.mxu0 %v962
        %1086 = vmatprep.subr.mxu0 0.0
        %1087 = vmatpush1.msra.mxu0 %v965
        %1088 = vmatprep.subr.mxu0 0.0
        %1089 = vmatpush1.msra.mxu0 %v968
        %1090 = vmatprep.subr.mxu0 0.0
        %1091 = vmatpush1.msra.mxu0 %v971
        %1092 = vmatprep.subr.mxu0 0.0
        %1093 = vmatpush1.msra.mxu0 0.0
        %1094 = vmatprep.subr.mxu0 0.0
        %1095 = vmatpush1.msra.mxu0 0.0
        %1096 = vmatprep.subr.mxu0 0.0
        %1097 = vmatpush1.msra.mxu0 0.0
        %1098 = vmatprep.subr.mxu0 0.0
        %1099 = vmatpush1.msra.mxu0 0.0
        %1100 = vmatprep.subr.mxu0 0.0
        %1101 = vmatpush1.msra.mxu0 0.0
        %1102 = vmatprep.subr.mxu0 0.0
        %1103 = vmatpush1.msra.mxu0 0.0
        %1104 = vmatprep.subr.mxu0 0.0
        %1105 = vmatpush1.msra.mxu0 0.0
        %1106 = vmatprep.subr.mxu0 0.0
        %1107 = vmatpush1.msra.mxu0 0.0
        %1108 = vmatprep.subr.mxu0 0.0
        %1109 = vmatpush1.msra.mxu0 0.0
        %1110 = vmatprep.subr.mxu0 0.0
        %1111 = vmatpush1.msra.mxu0 0.0
        %1112 = vmatprep.subr.mxu0 0.0
        %1113 = vmatpush1.msra.mxu0 0.0
        %1114 = vmatprep.subr.mxu0 0.0
        %1115 = vmatpush1.msra.mxu0 0.0
        %1116 = vmatprep.subr.mxu0 0.0
        %1117 = vmatpush1.msra.mxu0 0.0
        %1118 = vmatprep.subr.mxu0 0.0
        %1119 = vmatpush1.msra.mxu0 0.0
        %1120 = vmatprep.subr.mxu0 0.0
        %1121 = vmatpush1.msra.mxu0 0.0
        %1122 = vmatprep.subr.mxu0 0.0
        %1123 = vmatpush1.msra.mxu0 0.0
        %1124 = vmatprep.mubr.f32.mxu0 0.0
        %1125 = vmatmul.mubr.f32.gmra.mrb[0].mxu0 %v918
        %v1126 = vpop.f32.mrb[0].mxu0
        %v1127 = vadd.f32 %v985, %v1126
        %v1128 = vpop.f32.mrb[0].mxu0
        %1129 = vdwg.mxu0
        %v1130 = vadd.f32 %v921, %v1056
        %v1131 = vxor.u32 %v1130, 2147483648
        %v1132 = vmul.f32 %v1131, 1.442695
        %v1133 = vpow.pop %v1132
        %v1134 = vadd.f32 %v1133, 1.0
        %v1135 = vrcp.pop %v1134
        %v1136 = vmul.f32 1.0, %v1135
        %v1137 = vadd.f32 %v922, %v1058
        %v1138 = vxor.u32 %v1137, 2147483648
        %v1139 = vmul.f32 %v1138, 1.442695
        %v1140 = vpow.pop %v1139
        %v1141 = vadd.f32 %v1140, 1.0
        %v1142 = vrcp.pop %v1141
        %v1143 = vmul.f32 1.0, %v1142
        %v1144 = vmul.f32 %v1136, %v1127
        %v1145 = vadd.f32 %v923, %v1144
        %v1146 = vtanh.pop %v1145
        %v1147 = vsub.f32 1.0, %v1143
        %v1148 = vmul.f32 %v1147, %v1146
        %v1149 = vmul.f32 %v1143, %v918
        %v1150 = vadd.f32 %v1148, %v1149
        %s1151 = sadd.s32 %s357, 1
        %v1152 = vstv %s1151
        %vm1153 = vcmp.lt.s32.totalorder %v1152, %v364
        %v1154 = vsel %vm1153, 1, 0
        %1155 = vset.pattern.permute.xlu0 0
        %1156 = vperm.xlu0 %1155, %v1154
        %v1157 = vpop.permute.xlu0 %1156
        %vm1158 = vcmp.eq.s32.totalorder %v1157, 1
        %v1159 = vsel %vm1158, %v1150, %v918
        %s1160 = scalar_lea.vmem [#allocation2], 8
        %1161 = vst [vmem:[%s1160] sm:$0xff] %v1159
        %s1162 = scalar_lea.vmem [#allocation3], 48
        %v1163 = vld [vmem:[%s1162] sm:$0xff]
        %v1164 = vld [vmem:[%s1162 + $0x8] sm:$0xff]
        %v1165 = vld [vmem:[%s1162 + $0x10] sm:$0xff]
        %v1166 = vld [vmem:[#allocation10] sm:$0xff]
        %v1167 = vld [vmem:[#allocation10 + $0x8] sm:$0xff]
        %v1168 = vld [vmem:[#allocation10 + $0x10] sm:$0xff]
        %v1169 = vld [vmem:[#allocation10 + $0x18] sm:$0xff]
        %v1170 = vld [vmem:[#allocation10 + $0x20] sm:$0xff]
        %v1171 = vld [vmem:[#allocation10 + $0x28] sm:$0xff]
        %v1172 = vld [vmem:[#allocation10 + $0x30] sm:$0xff]
        %v1173 = vld [vmem:[#allocation10 + $0x38] sm:$0xff]
        %v1174 = vld [vmem:[#allocation10 + $0x40] sm:$0xff]
        %v1175 = vld [vmem:[#allocation10 + $0x48] sm:$0xff]
        %v1176 = vld [vmem:[#allocation10 + $0x50] sm:$0xff]
        %v1177 = vld [vmem:[#allocation10 + $0x58] sm:$0xff]
        %v1178 = vld [vmem:[#allocation10 + $0x60] sm:$0xff]
        %v1179 = vld [vmem:[#allocation10 + $0x68] sm:$0xff]
        %v1180 = vld [vmem:[#allocation10 + $0x70] sm:$0xff]
        %v1181 = vld [vmem:[#allocation10 + $0x78] sm:$0xff]
        %v1182 = vld [vmem:[#allocation10 + $0x80] sm:$0xff]
        %v1183 = vld [vmem:[#allocation10 + $0x88] sm:$0xff]
        %v1184 = vld [vmem:[#allocation10 + $0x90] sm:$0xff]
        %v1185 = vld [vmem:[#allocation10 + $0x98] sm:$0xff]
        %v1186 = vld [vmem:[#allocation10 + $0xa0] sm:$0xff]
        %v1187 = vld [vmem:[#allocation10 + $0xa8] sm:$0xff]
        %v1188 = vld [vmem:[#allocation10 + $0xb0] sm:$0xff]
        %v1189 = vld [vmem:[#allocation10 + $0xb8] sm:$0xff]
        %v1190 = vld [vmem:[#allocation10 + $0xc0] sm:$0xff]
        %v1191 = vld [vmem:[#allocation10 + $0xc8] sm:$0xff]
        %v1192 = vld [vmem:[#allocation10 + $0xd0] sm:$0xff]
        %v1193 = vld [vmem:[#allocation10 + $0xd8] sm:$0xff]
        %v1194 = vld [vmem:[#allocation10 + $0xe0] sm:$0xff]
        %v1195 = vld [vmem:[#allocation10 + $0xe8] sm:$0xff]
        %v1196 = vld [vmem:[#allocation10 + $0xf0] sm:$0xff]
        %v1197 = vld [vmem:[#allocation10 + $0xf8] sm:$0xff]
        %v1198 = vld [vmem:[#allocation10 + $0x100] sm:$0xff]
        %v1199 = vld [vmem:[#allocation10 + $0x108] sm:$0xff]
        %v1200 = vld [vmem:[#allocation10 + $0x110] sm:$0xff]
        %v1201 = vld [vmem:[#allocation10 + $0x118] sm:$0xff]
        %v1202 = vld [vmem:[#allocation10 + $0x120] sm:$0xff]
        %v1203 = vld [vmem:[#allocation10 + $0x128] sm:$0xff]
        %v1204 = vld [vmem:[#allocation10 + $0x130] sm:$0xff]
        %v1205 = vld [vmem:[#allocation10 + $0x138] sm:$0xff]
        %v1206 = vld [vmem:[#allocation10 + $0x140] sm:$0xff]
        %v1207 = vld [vmem:[#allocation10 + $0x148] sm:$0xff]
        %v1208 = vld [vmem:[#allocation10 + $0x150] sm:$0xff]
        %v1209 = vld [vmem:[#allocation10 + $0x158] sm:$0xff]
        %v1210 = vld [vmem:[#allocation10 + $0x160] sm:$0xff]
        %v1211 = vld [vmem:[#allocation10 + $0x168] sm:$0xff]
        %v1212 = vld [vmem:[#allocation10 + $0x170] sm:$0xff]
        %v1213 = vld [vmem:[#allocation10 + $0x178] sm:$0xff]
        %v1214 = vld [vmem:[%s7] sm:$0x7]
        %v1216 = vlaneseq
        %v1217 = vshrl.u32 %v1216, 7
        %v1218 = vsub.s32 0, %v1217
        %v1219 = vrot.slane %v1214, %v1218
        %v1220 = vlaneseq
        %v1221 = vshrl.u32 %v1220, 7
        %v1222 = vsub.s32 1, %v1221
        %v1223 = vrot.slane %v1214, %v1222
        %v1224 = vlaneseq
        %v1225 = vshrl.u32 %v1224, 7
        %v1226 = vsub.s32 2, %v1225
        %v1227 = vrot.slane %v1214, %v1226
        %1231 = vmatprep.subr.mxu0 %v1167
        %1232 = vmatpush1.msra.mxu0 %v1166
        %1233 = vmatprep.subr.mxu0 %v1170
        %1234 = vmatpush1.msra.mxu0 %v1169
        %1235 = vmatprep.subr.mxu0 %v1173
        %1236 = vmatpush1.msra.mxu0 %v1172
        %1237 = vmatprep.subr.mxu0 %v1176
        %1238 = vmatpush1.msra.mxu0 %v1175
        %1239 = vmatprep.subr.mxu0 %v1179
        %1240 = vmatpush1.msra.mxu0 %v1178
        %1241 = vmatprep.subr.mxu0 %v1182
        %1242 = vmatpush1.msra.mxu0 %v1181
        %1243 = vmatprep.subr.mxu0 %v1185
        %1244 = vmatpush1.msra.mxu0 %v1184
        %1245 = vmatprep.subr.mxu0 %v1188
        %1246 = vmatpush1.msra.mxu0 %v1187
        %1247 = vmatprep.subr.mxu0 %v1191
        %1248 = vmatpush1.msra.mxu0 %v1190
        %1249 = vmatprep.subr.mxu0 %v1194
        %1250 = vmatpush1.msra.mxu0 %v1193
        %1251 = vmatprep.subr.mxu0 %v1197
        %1252 = vmatpush1.msra.mxu0 %v1196
        %1253 = vmatprep.subr.mxu0 %v1200
        %1254 = vmatpush1.msra.mxu0 %v1199
        %1255 = vmatprep.subr.mxu0 %v1203
        %1256 = vmatpush1.msra.mxu0 %v1202
        %1257 = vmatprep.subr.mxu0 %v1206
        %1258 = vmatpush1.msra.mxu0 %v1205
        %1259 = vmatprep.subr.mxu0 %v1209
        %1260 = vmatpush1.msra.mxu0 %v1208
        %1261 = vmatprep.subr.mxu0 %v1212
        %1262 = vmatpush1.msra.mxu0 %v1211
        %1263 = vmatprep.subr.mxu0 0.0
        %1264 = vmatpush1.msra.mxu0 0.0
        %1265 = vmatprep.subr.mxu0 0.0
        %1266 = vmatpush1.msra.mxu0 0.0
        %1267 = vmatprep.subr.mxu0 0.0
        %1268 = vmatpush1.msra.mxu0 0.0
        %1269 = vmatprep.subr.mxu0 0.0
        %1270 = vmatpush1.msra.mxu0 0.0
        %1271 = vmatprep.subr.mxu0 0.0
        %1272 = vmatpush1.msra.mxu0 0.0
        %1273 = vmatprep.subr.mxu0 0.0
        %1274 = vmatpush1.msra.mxu0 0.0
        %1275 = vmatprep.subr.mxu0 0.0
        %1276 = vmatpush1.msra.mxu0 0.0
        %1277 = vmatprep.subr.mxu0 0.0
        %1278 = vmatpush1.msra.mxu0 0.0
        %1279 = vmatprep.subr.mxu0 0.0
        %1280 = vmatpush1.msra.mxu0 0.0
        %1281 = vmatprep.subr.mxu0 0.0
        %1282 = vmatpush1.msra.mxu0 0.0
        %1283 = vmatprep.subr.mxu0 0.0
        %1284 = vmatpush1.msra.mxu0 0.0
        %1285 = vmatprep.subr.mxu0 0.0
        %1286 = vmatpush1.msra.mxu0 0.0
        %1287 = vmatprep.subr.mxu0 0.0
        %1288 = vmatpush1.msra.mxu0 0.0
        %1289 = vmatprep.subr.mxu0 0.0
        %1290 = vmatpush1.msra.mxu0 0.0
        %1291 = vmatprep.subr.mxu0 0.0
        %1292 = vmatpush1.msra.mxu0 0.0
        %1293 = vmatprep.subr.mxu0 0.0
        %1294 = vmatpush1.msra.mxu0 0.0
        %1295 = vmatprep.mubr.f32.mxu0 0.0
        %1296 = vmatmul.mubr.f32.gmra.mrb[0].mxu0 %v1159
        %v1297 = vpop.f32.mrb[0].mxu0
        %v1298 = vadd.f32 %v1219, %v1297
        %v1299 = vpop.f32.mrb[0].mxu0
        %v1300 = vadd.f32 %v1223, %v1299
        %1301 = vdwg.mxu0
        %1302 = vmatprep.subr.mxu0 0.0
        %1303 = vmatpush1.msra.mxu0 %v1168
        %1304 = vmatprep.subr.mxu0 0.0
        %1305 = vmatpush1.msra.mxu0 %v1171
        %1306 = vmatprep.subr.mxu0 0.0
        %1307 = vmatpush1.msra.mxu0 %v1174
        %1308 = vmatprep.subr.mxu0 0.0
        %1309 = vmatpush1.msra.mxu0 %v1177
        %1310 = vmatprep.subr.mxu0 0.0
        %1311 = vmatpush1.msra.mxu0 %v1180
        %1312 = vmatprep.subr.mxu0 0.0
        %1313 = vmatpush1.msra.mxu0 %v1183
        %1314 = vmatprep.subr.mxu0 0.0
        %1315 = vmatpush1.msra.mxu0 %v1186
        %1316 = vmatprep.subr.mxu0 0.0
        %1317 = vmatpush1.msra.mxu0 %v1189
        %1318 = vmatprep.subr.mxu0 0.0
        %1319 = vmatpush1.msra.mxu0 %v1192
        %1320 = vmatprep.subr.mxu0 0.0
        %1321 = vmatpush1.msra.mxu0 %v1195
        %1322 = vmatprep.subr.mxu0 0.0
        %1323 = vmatpush1.msra.mxu0 %v1198
        %1324 = vmatprep.subr.mxu0 0.0
        %1325 = vmatpush1.msra.mxu0 %v1201
        %1326 = vmatprep.subr.mxu0 0.0
        %1327 = vmatpush1.msra.mxu0 %v1204
        %1328 = vmatprep.subr.mxu0 0.0
        %1329 = vmatpush1.msra.mxu0 %v1207
        %1330 = vmatprep.subr.mxu0 0.0
        %1331 = vmatpush1.msra.mxu0 %v1210
        %1332 = vmatprep.subr.mxu0 0.0
        %1333 = vmatpush1.msra.mxu0 %v1213
        %1334 = vmatprep.subr.mxu0 0.0
        %1335 = vmatpush1.msra.mxu0 0.0
        %1336 = vmatprep.subr.mxu0 0.0
        %1337 = vmatpush1.msra.mxu0 0.0
        %1338 = vmatprep.subr.mxu0 0.0
        %1339 = vmatpush1.msra.mxu0 0.0
        %1340 = vmatprep.subr.mxu0 0.0
        %1341 = vmatpush1.msra.mxu0 0.0
        %1342 = vmatprep.subr.mxu0 0.0
        %1343 = vmatpush1.msra.mxu0 0.0
        %1344 = vmatprep.subr.mxu0 0.0
        %1345 = vmatpush1.msra.mxu0 0.0
        %1346 = vmatprep.subr.mxu0 0.0
        %1347 = vmatpush1.msra.mxu0 0.0
        %1348 = vmatprep.subr.mxu0 0.0
        %1349 = vmatpush1.msra.mxu0 0.0
        %1350 = vmatprep.subr.mxu0 0.0
        %1351 = vmatpush1.msra.mxu0 0.0
        %1352 = vmatprep.subr.mxu0 0.0
        %1353 = vmatpush1.msra.mxu0 0.0
        %1354 = vmatprep.subr.mxu0 0.0
        %1355 = vmatpush1.msra.mxu0 0.0
        %1356 = vmatprep.subr.mxu0 0.0
        %1357 = vmatpush1.msra.mxu0 0.0
        %1358 = vmatprep.subr.mxu0 0.0
        %1359 = vmatpush1.msra.mxu0 0.0
        %1360 = vmatprep.subr.mxu0 0.0
        %1361 = vmatpush1.msra.mxu0 0.0
        %1362 = vmatprep.subr.mxu0 0.0
        %1363 = vmatpush1.msra.mxu0 0.0
        %1364 = vmatprep.subr.mxu0 0.0
        %1365 = vmatpush1.msra.mxu0 0.0
        %1366 = vmatprep.mubr.f32.mxu0 0.0
        %1367 = vmatmul.mubr.f32.gmra.mrb[0].mxu0 %v1159
        %v1368 = vpop.f32.mrb[0].mxu0
        %v1369 = vadd.f32 %v1227, %v1368
        %v1370 = vpop.f32.mrb[0].mxu0
        %1371 = vdwg.mxu0
        %v1372 = vadd.f32 %v1163, %v1298
        %v1373 = vxor.u32 %v1372, 2147483648
        %v1374 = vmul.f32 %v1373, 1.442695
        %v1375 = vpow.pop %v1374
        %v1376 = vadd.f32 %v1375, 1.0
        %v1377 = vrcp.pop %v1376
        %v1378 = vmul.f32 1.0, %v1377
        %v1379 = vadd.f32 %v1164, %v1300
        %v1380 = vxor.u32 %v1379, 2147483648
        %v1381 = vmul.f32 %v1380, 1.442695
        %v1382 = vpow.pop %v1381
        %v1383 = vadd.f32 %v1382, 1.0
        %v1384 = vrcp.pop %v1383
        %v1385 = vmul.f32 1.0, %v1384
        %v1386 = vmul.f32 %v1378, %v1369
        %v1387 = vadd.f32 %v1165, %v1386
        %v1388 = vtanh.pop %v1387
        %v1389 = vsub.f32 1.0, %v1385
        %v1390 = vmul.f32 %v1389, %v1388
        %v1391 = vmul.f32 %v1385, %v1159
        %v1392 = vadd.f32 %v1390, %v1391
        %s1393 = sadd.s32 %s357, 2
        %v1394 = vstv %s1393
        %vm1395 = vcmp.lt.s32.totalorder %v1394, %v364
        %v1396 = vsel %vm1395, 1, 0
        %1397 = vset.pattern.permute.xlu0 0
        %1398 = vperm.xlu0 %1397, %v1396
        %v1399 = vpop.permute.xlu0 %1398
        %vm1400 = vcmp.eq.s32.totalorder %v1399, 1
        %v1401 = vsel %vm1400, %v1392, %v1159
        %s1402 = scalar_lea.vmem [#allocation2], 16
        %1403 = vst [vmem:[%s1402] sm:$0xff] %v1401
        %s1404 = scalar_lea.vmem [#allocation3], 72
        %v1405 = vld [vmem:[%s1404] sm:$0xff]
        %v1406 = vld [vmem:[%s1404 + $0x8] sm:$0xff]
        %v1407 = vld [vmem:[%s1404 + $0x10] sm:$0xff]
        %v1408 = vld [vmem:[#allocation10] sm:$0xff]
        %v1409 = vld [vmem:[#allocation10 + $0x8] sm:$0xff]
        %v1410 = vld [vmem:[#allocation10 + $0x10] sm:$0xff]
        %v1411 = vld [vmem:[#allocation10 + $0x18] sm:$0xff]
        %v1412 = vld [vmem:[#allocation10 + $0x20] sm:$0xff]
        %v1413 = vld [vmem:[#allocation10 + $0x28] sm:$0xff]
        %v1414 = vld [vmem:[#allocation10 + $0x30] sm:$0xff]
        %v1415 = vld [vmem:[#allocation10 + $0x38] sm:$0xff]
        %v1416 = vld [vmem:[#allocation10 + $0x40] sm:$0xff]
        %v1417 = vld [vmem:[#allocation10 + $0x48] sm:$0xff]
        %v1418 = vld [vmem:[#allocation10 + $0x50] sm:$0xff]
        %v1419 = vld [vmem:[#allocation10 + $0x58] sm:$0xff]
        %v1420 = vld [vmem:[#allocation10 + $0x60] sm:$0xff]
        %v1421 = vld [vmem:[#allocation10 + $0x68] sm:$0xff]
        %v1422 = vld [vmem:[#allocation10 + $0x70] sm:$0xff]
        %v1423 = vld [vmem:[#allocation10 + $0x78] sm:$0xff]
        %v1424 = vld [vmem:[#allocation10 + $0x80] sm:$0xff]
        %v1425 = vld [vmem:[#allocation10 + $0x88] sm:$0xff]
        %v1426 = vld [vmem:[#allocation10 + $0x90] sm:$0xff]
        %v1427 = vld [vmem:[#allocation10 + $0x98] sm:$0xff]
        %v1428 = vld [vmem:[#allocation10 + $0xa0] sm:$0xff]
        %v1429 = vld [vmem:[#allocation10 + $0xa8] sm:$0xff]
        %v1430 = vld [vmem:[#allocation10 + $0xb0] sm:$0xff]
        %v1431 = vld [vmem:[#allocation10 + $0xb8] sm:$0xff]
        %v1432 = vld [vmem:[#allocation10 + $0xc0] sm:$0xff]
        %v1433 = vld [vmem:[#allocation10 + $0xc8] sm:$0xff]
        %v1434 = vld [vmem:[#allocation10 + $0xd0] sm:$0xff]
        %v1435 = vld [vmem:[#allocation10 + $0xd8] sm:$0xff]
        %v1436 = vld [vmem:[#allocation10 + $0xe0] sm:$0xff]
        %v1437 = vld [vmem:[#allocation10 + $0xe8] sm:$0xff]
        %v1438 = vld [vmem:[#allocation10 + $0xf0] sm:$0xff]
        %v1439 = vld [vmem:[#allocation10 + $0xf8] sm:$0xff]
        %v1440 = vld [vmem:[#allocation10 + $0x100] sm:$0xff]
        %v1441 = vld [vmem:[#allocation10 + $0x108] sm:$0xff]
        %v1442 = vld [vmem:[#allocation10 + $0x110] sm:$0xff]
        %v1443 = vld [vmem:[#allocation10 + $0x118] sm:$0xff]
        %v1444 = vld [vmem:[#allocation10 + $0x120] sm:$0xff]
        %v1445 = vld [vmem:[#allocation10 + $0x128] sm:$0xff]
        %v1446 = vld [vmem:[#allocation10 + $0x130] sm:$0xff]
        %v1447 = vld [vmem:[#allocation10 + $0x138] sm:$0xff]
        %v1448 = vld [vmem:[#allocation10 + $0x140] sm:$0xff]
        %v1449 = vld [vmem:[#allocation10 + $0x148] sm:$0xff]
        %v1450 = vld [vmem:[#allocation10 + $0x150] sm:$0xff]
        %v1451 = vld [vmem:[#allocation10 + $0x158] sm:$0xff]
        %v1452 = vld [vmem:[#allocation10 + $0x160] sm:$0xff]
        %v1453 = vld [vmem:[#allocation10 + $0x168] sm:$0xff]
        %v1454 = vld [vmem:[#allocation10 + $0x170] sm:$0xff]
        %v1455 = vld [vmem:[#allocation10 + $0x178] sm:$0xff]
        %v1456 = vld [vmem:[%s7] sm:$0x7]
        %v1458 = vlaneseq
        %v1459 = vshrl.u32 %v1458, 7
        %v1460 = vsub.s32 0, %v1459
        %v1461 = vrot.slane %v1456, %v1460
        %v1462 = vlaneseq
        %v1463 = vshrl.u32 %v1462, 7
        %v1464 = vsub.s32 1, %v1463
        %v1465 = vrot.slane %v1456, %v1464
        %v1466 = vlaneseq
        %v1467 = vshrl.u32 %v1466, 7
        %v1468 = vsub.s32 2, %v1467
        %v1469 = vrot.slane %v1456, %v1468
        %1473 = vmatprep.subr.mxu0 %v1409
        %1474 = vmatpush1.msra.mxu0 %v1408
        %1475 = vmatprep.subr.mxu0 %v1412
        %1476 = vmatpush1.msra.mxu0 %v1411
        %1477 = vmatprep.subr.mxu0 %v1415
        %1478 = vmatpush1.msra.mxu0 %v1414
        %1479 = vmatprep.subr.mxu0 %v1418
        %1480 = vmatpush1.msra.mxu0 %v1417
        %1481 = vmatprep.subr.mxu0 %v1421
        %1482 = vmatpush1.msra.mxu0 %v1420
        %1483 = vmatprep.subr.mxu0 %v1424
        %1484 = vmatpush1.msra.mxu0 %v1423
        %1485 = vmatprep.subr.mxu0 %v1427
        %1486 = vmatpush1.msra.mxu0 %v1426
        %1487 = vmatprep.subr.mxu0 %v1430
        %1488 = vmatpush1.msra.mxu0 %v1429
        %1489 = vmatprep.subr.mxu0 %v1433
        %1490 = vmatpush1.msra.mxu0 %v1432
        %1491 = vmatprep.subr.mxu0 %v1436
        %1492 = vmatpush1.msra.mxu0 %v1435
        %1493 = vmatprep.subr.mxu0 %v1439
        %1494 = vmatpush1.msra.mxu0 %v1438
        %1495 = vmatprep.subr.mxu0 %v1442
        %1496 = vmatpush1.msra.mxu0 %v1441
        %1497 = vmatprep.subr.mxu0 %v1445
        %1498 = vmatpush1.msra.mxu0 %v1444
        %1499 = vmatprep.subr.mxu0 %v1448
        %1500 = vmatpush1.msra.mxu0 %v1447
        %1501 = vmatprep.subr.mxu0 %v1451
        %1502 = vmatpush1.msra.mxu0 %v1450
        %1503 = vmatprep.subr.mxu0 %v1454
        %1504 = vmatpush1.msra.mxu0 %v1453
        %1505 = vmatprep.subr.mxu0 0.0
        %1506 = vmatpush1.msra.mxu0 0.0
        %1507 = vmatprep.subr.mxu0 0.0
        %1508 = vmatpush1.msra.mxu0 0.0
        %1509 = vmatprep.subr.mxu0 0.0
        %1510 = vmatpush1.msra.mxu0 0.0
        %1511 = vmatprep.subr.mxu0 0.0
        %1512 = vmatpush1.msra.mxu0 0.0
        %1513 = vmatprep.subr.mxu0 0.0
        %1514 = vmatpush1.msra.mxu0 0.0
        %1515 = vmatprep.subr.mxu0 0.0
        %1516 = vmatpush1.msra.mxu0 0.0
        %1517 = vmatprep.subr.mxu0 0.0
        %1518 = vmatpush1.msra.mxu0 0.0
        %1519 = vmatprep.subr.mxu0 0.0
        %1520 = vmatpush1.msra.mxu0 0.0
        %1521 = vmatprep.subr.mxu0 0.0
        %1522 = vmatpush1.msra.mxu0 0.0
        %1523 = vmatprep.subr.mxu0 0.0
        %1524 = vmatpush1.msra.mxu0 0.0
        %1525 = vmatprep.subr.mxu0 0.0
        %1526 = vmatpush1.msra.mxu0 0.0
        %1527 = vmatprep.subr.mxu0 0.0
        %1528 = vmatpush1.msra.mxu0 0.0
        %1529 = vmatprep.subr.mxu0 0.0
        %1530 = vmatpush1.msra.mxu0 0.0
        %1531 = vmatprep.subr.mxu0 0.0
        %1532 = vmatpush1.msra.mxu0 0.0
        %1533 = vmatprep.subr.mxu0 0.0
        %1534 = vmatpush1.msra.mxu0 0.0
        %1535 = vmatprep.subr.mxu0 0.0
        %1536 = vmatpush1.msra.mxu0 0.0
        %1537 = vmatprep.mubr.f32.mxu0 0.0
        %1538 = vmatmul.mubr.f32.gmra.mrb[0].mxu0 %v1401
        %v1539 = vpop.f32.mrb[0].mxu0
        %v1540 = vadd.f32 %v1461, %v1539
        %v1541 = vpop.f32.mrb[0].mxu0
        %v1542 = vadd.f32 %v1465, %v1541
        %1543 = vdwg.mxu0
        %1544 = vmatprep.subr.mxu0 0.0
        %1545 = vmatpush1.msra.mxu0 %v1410
        %1546 = vmatprep.subr.mxu0 0.0
        %1547 = vmatpush1.msra.mxu0 %v1413
        %1548 = vmatprep.subr.mxu0 0.0
        %1549 = vmatpush1.msra.mxu0 %v1416
        %1550 = vmatprep.subr.mxu0 0.0
        %1551 = vmatpush1.msra.mxu0 %v1419
        %1552 = vmatprep.subr.mxu0 0.0
        %1553 = vmatpush1.msra.mxu0 %v1422
        %1554 = vmatprep.subr.mxu0 0.0
        %1555 = vmatpush1.msra.mxu0 %v1425
        %1556 = vmatprep.subr.mxu0 0.0
        %1557 = vmatpush1.msra.mxu0 %v1428
        %1558 = vmatprep.subr.mxu0 0.0
        %1559 = vmatpush1.msra.mxu0 %v1431
        %1560 = vmatprep.subr.mxu0 0.0
        %1561 = vmatpush1.msra.mxu0 %v1434
        %1562 = vmatprep.subr.mxu0 0.0
        %1563 = vmatpush1.msra.mxu0 %v1437
        %1564 = vmatprep.subr.mxu0 0.0
        %1565 = vmatpush1.msra.mxu0 %v1440
        %1566 = vmatprep.subr.mxu0 0.0
        %1567 = vmatpush1.msra.mxu0 %v1443
        %1568 = vmatprep.subr.mxu0 0.0
        %1569 = vmatpush1.msra.mxu0 %v1446
        %1570 = vmatprep.subr.mxu0 0.0
        %1571 = vmatpush1.msra.mxu0 %v1449
        %1572 = vmatprep.subr.mxu0 0.0
        %1573 = vmatpush1.msra.mxu0 %v1452
        %1574 = vmatprep.subr.mxu0 0.0
        %1575 = vmatpush1.msra.mxu0 %v1455
        %1576 = vmatprep.subr.mxu0 0.0
        %1577 = vmatpush1.msra.mxu0 0.0
        %1578 = vmatprep.subr.mxu0 0.0
        %1579 = vmatpush1.msra.mxu0 0.0
        %1580 = vmatprep.subr.mxu0 0.0
        %1581 = vmatpush1.msra.mxu0 0.0
        %1582 = vmatprep.subr.mxu0 0.0
        %1583 = vmatpush1.msra.mxu0 0.0
        %1584 = vmatprep.subr.mxu0 0.0
        %1585 = vmatpush1.msra.mxu0 0.0
        %1586 = vmatprep.subr.mxu0 0.0
        %1587 = vmatpush1.msra.mxu0 0.0
        %1588 = vmatprep.subr.mxu0 0.0
        %1589 = vmatpush1.msra.mxu0 0.0
        %1590 = vmatprep.subr.mxu0 0.0
        %1591 = vmatpush1.msra.mxu0 0.0
        %1592 = vmatprep.subr.mxu0 0.0
        %1593 = vmatpush1.msra.mxu0 0.0
        %1594 = vmatprep.subr.mxu0 0.0
        %1595 = vmatpush1.msra.mxu0 0.0
        %1596 = vmatprep.subr.mxu0 0.0
        %1597 = vmatpush1.msra.mxu0 0.0
        %1598 = vmatprep.subr.mxu0 0.0
        %1599 = vmatpush1.msra.mxu0 0.0
        %1600 = vmatprep.subr.mxu0 0.0
        %1601 = vmatpush1.msra.mxu0 0.0
        %1602 = vmatprep.subr.mxu0 0.0
        %1603 = vmatpush1.msra.mxu0 0.0
        %1604 = vmatprep.subr.mxu0 0.0
        %1605 = vmatpush1.msra.mxu0 0.0
        %1606 = vmatprep.subr.mxu0 0.0
        %1607 = vmatpush1.msra.mxu0 0.0
        %1608 = vmatprep.mubr.f32.mxu0 0.0
        %1609 = vmatmul.mubr.f32.gmra.mrb[0].mxu0 %v1401
        %v1610 = vpop.f32.mrb[0].mxu0
        %v1611 = vadd.f32 %v1469, %v1610
        %v1612 = vpop.f32.mrb[0].mxu0
        %1613 = vdwg.mxu0
        %v1614 = vadd.f32 %v1405, %v1540
        %v1615 = vxor.u32 %v1614, 2147483648
        %v1616 = vmul.f32 %v1615, 1.442695
        %v1617 = vpow.pop %v1616
        %v1618 = vadd.f32 %v1617, 1.0
        %v1619 = vrcp.pop %v1618
        %v1620 = vmul.f32 1.0, %v1619
        %v1621 = vadd.f32 %v1406, %v1542
        %v1622 = vxor.u32 %v1621, 2147483648
        %v1623 = vmul.f32 %v1622, 1.442695
        %v1624 = vpow.pop %v1623
        %v1625 = vadd.f32 %v1624, 1.0
        %v1626 = vrcp.pop %v1625
        %v1627 = vmul.f32 1.0, %v1626
        %v1628 = vmul.f32 %v1620, %v1611
        %v1629 = vadd.f32 %v1407, %v1628
        %v1630 = vtanh.pop %v1629
        %v1631 = vsub.f32 1.0, %v1627
        %v1632 = vmul.f32 %v1631, %v1630
        %v1633 = vmul.f32 %v1627, %v1401
        %v1634 = vadd.f32 %v1632, %v1633
        %s1635 = sadd.s32 %s357, 3
        %v1636 = vstv %s1635
        %vm1637 = vcmp.lt.s32.totalorder %v1636, %v364
        %v1638 = vsel %vm1637, 1, 0
        %1639 = vset.pattern.permute.xlu0 0
        %1640 = vperm.xlu0 %1639, %v1638
        %v1641 = vpop.permute.xlu0 %1640
        %vm1642 = vcmp.eq.s32.totalorder %v1641, 1
        %v1643 = vsel %vm1642, %v1634, %v1401
        %s1644 = scalar_lea.vmem [#allocation2], 24
        %1645 = vst [vmem:[%s1644] sm:$0xff] %v1643
        %s1646 = scalar_lea.vmem [#allocation3], 96
        %v1647 = vld [vmem:[%s1646] sm:$0xff]
        %v1648 = vld [vmem:[%s1646 + $0x8] sm:$0xff]
        %v1649 = vld [vmem:[%s1646 + $0x10] sm:$0xff]
        %v1650 = vld [vmem:[#allocation10] sm:$0xff]
        %v1651 = vld [vmem:[#allocation10 + $0x8] sm:$0xff]
        %v1652 = vld [vmem:[#allocation10 + $0x10] sm:$0xff]
        %v1653 = vld [vmem:[#allocation10 + $0x18] sm:$0xff]
        %v1654 = vld [vmem:[#allocation10 + $0x20] sm:$0xff]
        %v1655 = vld [vmem:[#allocation10 + $0x28] sm:$0xff]
        %v1656 = vld [vmem:[#allocation10 + $0x30] sm:$0xff]
        %v1657 = vld [vmem:[#allocation10 + $0x38] sm:$0xff]
        %v1658 = vld [vmem:[#allocation10 + $0x40] sm:$0xff]
        %v1659 = vld [vmem:[#allocation10 + $0x48] sm:$0xff]
        %v1660 = vld [vmem:[#allocation10 + $0x50] sm:$0xff]
        %v1661 = vld [vmem:[#allocation10 + $0x58] sm:$0xff]
        %v1662 = vld [vmem:[#allocation10 + $0x60] sm:$0xff]
        %v1663 = vld [vmem:[#allocation10 + $0x68] sm:$0xff]
        %v1664 = vld [vmem:[#allocation10 + $0x70] sm:$0xff]
        %v1665 = vld [vmem:[#allocation10 + $0x78] sm:$0xff]
        %v1666 = vld [vmem:[#allocation10 + $0x80] sm:$0xff]
        %v1667 = vld [vmem:[#allocation10 + $0x88] sm:$0xff]
        %v1668 = vld [vmem:[#allocation10 + $0x90] sm:$0xff]
        %v1669 = vld [vmem:[#allocation10 + $0x98] sm:$0xff]
        %v1670 = vld [vmem:[#allocation10 + $0xa0] sm:$0xff]
        %v1671 = vld [vmem:[#allocation10 + $0xa8] sm:$0xff]
        %v1672 = vld [vmem:[#allocation10 + $0xb0] sm:$0xff]
        %v1673 = vld [vmem:[#allocation10 + $0xb8] sm:$0xff]
        %v1674 = vld [vmem:[#allocation10 + $0xc0] sm:$0xff]
        %v1675 = vld [vmem:[#allocation10 + $0xc8] sm:$0xff]
        %v1676 = vld [vmem:[#allocation10 + $0xd0] sm:$0xff]
        %v1677 = vld [vmem:[#allocation10 + $0xd8] sm:$0xff]
        %v1678 = vld [vmem:[#allocation10 + $0xe0] sm:$0xff]
        %v1679 = vld [vmem:[#allocation10 + $0xe8] sm:$0xff]
        %v1680 = vld [vmem:[#allocation10 + $0xf0] sm:$0xff]
        %v1681 = vld [vmem:[#allocation10 + $0xf8] sm:$0xff]
        %v1682 = vld [vmem:[#allocation10 + $0x100] sm:$0xff]
        %v1683 = vld [vmem:[#allocation10 + $0x108] sm:$0xff]
        %v1684 = vld [vmem:[#allocation10 + $0x110] sm:$0xff]
        %v1685 = vld [vmem:[#allocation10 + $0x118] sm:$0xff]
        %v1686 = vld [vmem:[#allocation10 + $0x120] sm:$0xff]
        %v1687 = vld [vmem:[#allocation10 + $0x128] sm:$0xff]
        %v1688 = vld [vmem:[#allocation10 + $0x130] sm:$0xff]
        %v1689 = vld [vmem:[#allocation10 + $0x138] sm:$0xff]
        %v1690 = vld [vmem:[#allocation10 + $0x140] sm:$0xff]
        %v1691 = vld [vmem:[#allocation10 + $0x148] sm:$0xff]
        %v1692 = vld [vmem:[#allocation10 + $0x150] sm:$0xff]
        %v1693 = vld [vmem:[#allocation10 + $0x158] sm:$0xff]
        %v1694 = vld [vmem:[#allocation10 + $0x160] sm:$0xff]
        %v1695 = vld [vmem:[#allocation10 + $0x168] sm:$0xff]
        %v1696 = vld [vmem:[#allocation10 + $0x170] sm:$0xff]
        %v1697 = vld [vmem:[#allocation10 + $0x178] sm:$0xff]
        %v1698 = vld [vmem:[%s7] sm:$0x7]
        %v1700 = vlaneseq
        %v1701 = vshrl.u32 %v1700, 7
        %v1702 = vsub.s32 0, %v1701
        %v1703 = vrot.slane %v1698, %v1702
        %v1704 = vlaneseq
        %v1705 = vshrl.u32 %v1704, 7
        %v1706 = vsub.s32 1, %v1705
        %v1707 = vrot.slane %v1698, %v1706
        %v1708 = vlaneseq
        %v1709 = vshrl.u32 %v1708, 7
        %v1710 = vsub.s32 2, %v1709
        %v1711 = vrot.slane %v1698, %v1710
        %1715 = vmatprep.subr.mxu0 %v1651
        %1716 = vmatpush1.msra.mxu0 %v1650
        %1717 = vmatprep.subr.mxu0 %v1654
        %1718 = vmatpush1.msra.mxu0 %v1653
        %1719 = vmatprep.subr.mxu0 %v1657
        %1720 = vmatpush1.msra.mxu0 %v1656
        %1721 = vmatprep.subr.mxu0 %v1660
        %1722 = vmatpush1.msra.mxu0 %v1659
        %1723 = vmatprep.subr.mxu0 %v1663
        %1724 = vmatpush1.msra.mxu0 %v1662
        %1725 = vmatprep.subr.mxu0 %v1666
        %1726 = vmatpush1.msra.mxu0 %v1665
        %1727 = vmatprep.subr.mxu0 %v1669
        %1728 = vmatpush1.msra.mxu0 %v1668
        %1729 = vmatprep.subr.mxu0 %v1672
        %1730 = vmatpush1.msra.mxu0 %v1671
        %1731 = vmatprep.subr.mxu0 %v1675
        %1732 = vmatpush1.msra.mxu0 %v1674
        %1733 = vmatprep.subr.mxu0 %v1678
        %1734 = vmatpush1.msra.mxu0 %v1677
        %1735 = vmatprep.subr.mxu0 %v1681
        %1736 = vmatpush1.msra.mxu0 %v1680
        %1737 = vmatprep.subr.mxu0 %v1684
        %1738 = vmatpush1.msra.mxu0 %v1683
        %1739 = vmatprep.subr.mxu0 %v1687
        %1740 = vmatpush1.msra.mxu0 %v1686
        %1741 = vmatprep.subr.mxu0 %v1690
        %1742 = vmatpush1.msra.mxu0 %v1689
        %1743 = vmatprep.subr.mxu0 %v1693
        %1744 = vmatpush1.msra.mxu0 %v1692
        %1745 = vmatprep.subr.mxu0 %v1696
        %1746 = vmatpush1.msra.mxu0 %v1695
        %1747 = vmatprep.subr.mxu0 0.0
        %1748 = vmatpush1.msra.mxu0 0.0
        %1749 = vmatprep.subr.mxu0 0.0
        %1750 = vmatpush1.msra.mxu0 0.0
        %1751 = vmatprep.subr.mxu0 0.0
        %1752 = vmatpush1.msra.mxu0 0.0
        %1753 = vmatprep.subr.mxu0 0.0
        %1754 = vmatpush1.msra.mxu0 0.0
        %1755 = vmatprep.subr.mxu0 0.0
        %1756 = vmatpush1.msra.mxu0 0.0
        %1757 = vmatprep.subr.mxu0 0.0
        %1758 = vmatpush1.msra.mxu0 0.0
        %1759 = vmatprep.subr.mxu0 0.0
        %1760 = vmatpush1.msra.mxu0 0.0
        %1761 = vmatprep.subr.mxu0 0.0
        %1762 = vmatpush1.msra.mxu0 0.0
        %1763 = vmatprep.subr.mxu0 0.0
        %1764 = vmatpush1.msra.mxu0 0.0
        %1765 = vmatprep.subr.mxu0 0.0
        %1766 = vmatpush1.msra.mxu0 0.0
        %1767 = vmatprep.subr.mxu0 0.0
        %1768 = vmatpush1.msra.mxu0 0.0
        %1769 = vmatprep.subr.mxu0 0.0
        %1770 = vmatpush1.msra.mxu0 0.0
        %1771 = vmatprep.subr.mxu0 0.0
        %1772 = vmatpush1.msra.mxu0 0.0
        %1773 = vmatprep.subr.mxu0 0.0
        %1774 = vmatpush1.msra.mxu0 0.0
        %1775 = vmatprep.subr.mxu0 0.0
        %1776 = vmatpush1.msra.mxu0 0.0
        %1777 = vmatprep.subr.mxu0 0.0
        %1778 = vmatpush1.msra.mxu0 0.0
        %1779 = vmatprep.mubr.f32.mxu0 0.0
        %1780 = vmatmul.mubr.f32.gmra.mrb[0].mxu0 %v1643
        %v1781 = vpop.f32.mrb[0].mxu0
        %v1782 = vadd.f32 %v1703, %v1781
        %v1783 = vpop.f32.mrb[0].mxu0
        %v1784 = vadd.f32 %v1707, %v1783
        %1785 = vdwg.mxu0
        %1786 = vmatprep.subr.mxu0 0.0
        %1787 = vmatpush1.msra.mxu0 %v1652
        %1788 = vmatprep.subr.mxu0 0.0
        %1789 = vmatpush1.msra.mxu0 %v1655
        %1790 = vmatprep.subr.mxu0 0.0
        %1791 = vmatpush1.msra.mxu0 %v1658
        %1792 = vmatprep.subr.mxu0 0.0
        %1793 = vmatpush1.msra.mxu0 %v1661
        %1794 = vmatprep.subr.mxu0 0.0
        %1795 = vmatpush1.msra.mxu0 %v1664
        %1796 = vmatprep.subr.mxu0 0.0
        %1797 = vmatpush1.msra.mxu0 %v1667
        %1798 = vmatprep.subr.mxu0 0.0
        %1799 = vmatpush1.msra.mxu0 %v1670
        %1800 = vmatprep.subr.mxu0 0.0
        %1801 = vmatpush1.msra.mxu0 %v1673
        %1802 = vmatprep.subr.mxu0 0.0
        %1803 = vmatpush1.msra.mxu0 %v1676
        %1804 = vmatprep.subr.mxu0 0.0
        %1805 = vmatpush1.msra.mxu0 %v1679
        %1806 = vmatprep.subr.mxu0 0.0
        %1807 = vmatpush1.msra.mxu0 %v1682
        %1808 = vmatprep.subr.mxu0 0.0
        %1809 = vmatpush1.msra.mxu0 %v1685
        %1810 = vmatprep.subr.mxu0 0.0
        %1811 = vmatpush1.msra.mxu0 %v1688
        %1812 = vmatprep.subr.mxu0 0.0
        %1813 = vmatpush1.msra.mxu0 %v1691
        %1814 = vmatprep.subr.mxu0 0.0
        %1815 = vmatpush1.msra.mxu0 %v1694
        %1816 = vmatprep.subr.mxu0 0.0
        %1817 = vmatpush1.msra.mxu0 %v1697
        %1818 = vmatprep.subr.mxu0 0.0
        %1819 = vmatpush1.msra.mxu0 0.0
        %1820 = vmatprep.subr.mxu0 0.0
        %1821 = vmatpush1.msra.mxu0 0.0
        %1822 = vmatprep.subr.mxu0 0.0
        %1823 = vmatpush1.msra.mxu0 0.0
        %1824 = vmatprep.subr.mxu0 0.0
        %1825 = vmatpush1.msra.mxu0 0.0
        %1826 = vmatprep.subr.mxu0 0.0
        %1827 = vmatpush1.msra.mxu0 0.0
        %1828 = vmatprep.subr.mxu0 0.0
        %1829 = vmatpush1.msra.mxu0 0.0
        %1830 = vmatprep.subr.mxu0 0.0
        %1831 = vmatpush1.msra.mxu0 0.0
        %1832 = vmatprep.subr.mxu0 0.0
        %1833 = vmatpush1.msra.mxu0 0.0
        %1834 = vmatprep.subr.mxu0 0.0
        %1835 = vmatpush1.msra.mxu0 0.0
        %1836 = vmatprep.subr.mxu0 0.0
        %1837 = vmatpush1.msra.mxu0 0.0
        %1838 = vmatprep.subr.mxu0 0.0
        %1839 = vmatpush1.msra.mxu0 0.0
        %1840 = vmatprep.subr.mxu0 0.0
        %1841 = vmatpush1.msra.mxu0 0.0
        %1842 = vmatprep.subr.mxu0 0.0
        %1843 = vmatpush1.msra.mxu0 0.0
        %1844 = vmatprep.subr.mxu0 0.0
        %1845 = vmatpush1.msra.mxu0 0.0
        %1846 = vmatprep.subr.mxu0 0.0
        %1847 = vmatpush1.msra.mxu0 0.0
        %1848 = vmatprep.subr.mxu0 0.0
        %1849 = vmatpush1.msra.mxu0 0.0
        %1850 = vmatprep.mubr.f32.mxu0 0.0
        %1851 = vmatmul.mubr.f32.gmra.mrb[0].mxu0 %v1643
        %v1852 = vpop.f32.mrb[0].mxu0
        %v1853 = vadd.f32 %v1711, %v1852
        %v1854 = vpop.f32.mrb[0].mxu0
        %1855 = vdwg.mxu0
        %v1856 = vadd.f32 %v1647, %v1782
        %v1857 = vxor.u32 %v1856, 2147483648
        %v1858 = vmul.f32 %v1857, 1.442695
        %v1859 = vpow.pop %v1858
        %v1860 = vadd.f32 %v1859, 1.0
        %v1861 = vrcp.pop %v1860
        %v1862 = vmul.f32 1.0, %v1861
        %v1863 = vadd.f32 %v1648, %v1784
        %v1864 = vxor.u32 %v1863, 2147483648
        %v1865 = vmul.f32 %v1864, 1.442695
        %v1866 = vpow.pop %v1865
        %v1867 = vadd.f32 %v1866, 1.0
        %v1868 = vrcp.pop %v1867
        %v1869 = vmul.f32 1.0, %v1868
        %v1870 = vmul.f32 %v1862, %v1853
        %v1871 = vadd.f32 %v1649, %v1870
        %v1872 = vtanh.pop %v1871
        %v1873 = vsub.f32 1.0, %v1869
        %v1874 = vmul.f32 %v1873, %v1872
        %v1875 = vmul.f32 %v1869, %v1643
        %v1876 = vadd.f32 %v1874, %v1875
        %s1877 = sadd.s32 %s357, 4
        %v1878 = vstv %s1877
        %vm1879 = vcmp.lt.s32.totalorder %v1878, %v364
        %v1880 = vsel %vm1879, 1, 0
        %1881 = vset.pattern.permute.xlu0 0
        %1882 = vperm.xlu0 %1881, %v1880
        %v1883 = vpop.permute.xlu0 %1882
        %vm1884 = vcmp.eq.s32.totalorder %v1883, 1
        %v1885 = vsel %vm1884, %v1876, %v1643
        %s1886 = scalar_lea.vmem [#allocation2], 32
        %1887 = vst [vmem:[%s1886] sm:$0xff] %v1885
        %s1888 = scalar_lea.vmem [#allocation3], 120
        %v1889 = vld [vmem:[%s1888] sm:$0xff]
        %v1890 = vld [vmem:[%s1888 + $0x8] sm:$0xff]
        %v1891 = vld [vmem:[%s1888 + $0x10] sm:$0xff]
        %v1892 = vld [vmem:[#allocation10] sm:$0xff]
        %v1893 = vld [vmem:[#allocation10 + $0x8] sm:$0xff]
        %v1894 = vld [vmem:[#allocation10 + $0x10] sm:$0xff]
        %v1895 = vld [vmem:[#allocation10 + $0x18] sm:$0xff]
        %v1896 = vld [vmem:[#allocation10 + $0x20] sm:$0xff]
        %v1897 = vld [vmem:[#allocation10 + $0x28] sm:$0xff]
        %v1898 = vld [vmem:[#allocation10 + $0x30] sm:$0xff]
        %v1899 = vld [vmem:[#allocation10 + $0x38] sm:$0xff]
        %v1900 = vld [vmem:[#allocation10 + $0x40] sm:$0xff]
        %v1901 = vld [vmem:[#allocation10 + $0x48] sm:$0xff]
        %v1902 = vld [vmem:[#allocation10 + $0x50] sm:$0xff]
        %v1903 = vld [vmem:[#allocation10 + $0x58] sm:$0xff]
        %v1904 = vld [vmem:[#allocation10 + $0x60] sm:$0xff]
        %v1905 = vld [vmem:[#allocation10 + $0x68] sm:$0xff]
        %v1906 = vld [vmem:[#allocation10 + $0x70] sm:$0xff]
        %v1907 = vld [vmem:[#allocation10 + $0x78] sm:$0xff]
        %v1908 = vld [vmem:[#allocation10 + $0x80] sm:$0xff]
        %v1909 = vld [vmem:[#allocation10 + $0x88] sm:$0xff]
        %v1910 = vld [vmem:[#allocation10 + $0x90] sm:$0xff]
        %v1911 = vld [vmem:[#allocation10 + $0x98] sm:$0xff]
        %v1912 = vld [vmem:[#allocation10 + $0xa0] sm:$0xff]
        %v1913 = vld [vmem:[#allocation10 + $0xa8] sm:$0xff]
        %v1914 = vld [vmem:[#allocation10 + $0xb0] sm:$0xff]
        %v1915 = vld [vmem:[#allocation10 + $0xb8] sm:$0xff]
        %v1916 = vld [vmem:[#allocation10 + $0xc0] sm:$0xff]
        %v1917 = vld [vmem:[#allocation10 + $0xc8] sm:$0xff]
        %v1918 = vld [vmem:[#allocation10 + $0xd0] sm:$0xff]
        %v1919 = vld [vmem:[#allocation10 + $0xd8] sm:$0xff]
        %v1920 = vld [vmem:[#allocation10 + $0xe0] sm:$0xff]
        %v1921 = vld [vmem:[#allocation10 + $0xe8] sm:$0xff]
        %v1922 = vld [vmem:[#allocation10 + $0xf0] sm:$0xff]
        %v1923 = vld [vmem:[#allocation10 + $0xf8] sm:$0xff]
        %v1924 = vld [vmem:[#allocation10 + $0x100] sm:$0xff]
        %v1925 = vld [vmem:[#allocation10 + $0x108] sm:$0xff]
        %v1926 = vld [vmem:[#allocation10 + $0x110] sm:$0xff]
        %v1927 = vld [vmem:[#allocation10 + $0x118] sm:$0xff]
        %v1928 = vld [vmem:[#allocation10 + $0x120] sm:$0xff]
        %v1929 = vld [vmem:[#allocation10 + $0x128] sm:$0xff]
        %v1930 = vld [vmem:[#allocation10 + $0x130] sm:$0xff]
        %v1931 = vld [vmem:[#allocation10 + $0x138] sm:$0xff]
        %v1932 = vld [vmem:[#allocation10 + $0x140] sm:$0xff]
        %v1933 = vld [vmem:[#allocation10 + $0x148] sm:$0xff]
        %v1934 = vld [vmem:[#allocation10 + $0x150] sm:$0xff]
        %v1935 = vld [vmem:[#allocation10 + $0x158] sm:$0xff]
        %v1936 = vld [vmem:[#allocation10 + $0x160] sm:$0xff]
        %v1937 = vld [vmem:[#allocation10 + $0x168] sm:$0xff]
        %v1938 = vld [vmem:[#allocation10 + $0x170] sm:$0xff]
        %v1939 = vld [vmem:[#allocation10 + $0x178] sm:$0xff]
        %v1940 = vld [vmem:[%s7] sm:$0x7]
        %v1942 = vlaneseq
        %v1943 = vshrl.u32 %v1942, 7
        %v1944 = vsub.s32 0, %v1943
        %v1945 = vrot.slane %v1940, %v1944
        %v1946 = vlaneseq
        %v1947 = vshrl.u32 %v1946, 7
        %v1948 = vsub.s32 1, %v1947
        %v1949 = vrot.slane %v1940, %v1948
        %v1950 = vlaneseq
        %v1951 = vshrl.u32 %v1950, 7
        %v1952 = vsub.s32 2, %v1951
        %v1953 = vrot.slane %v1940, %v1952
        %1957 = vmatprep.subr.mxu0 %v1893
        %1958 = vmatpush1.msra.mxu0 %v1892
        %1959 = vmatprep.subr.mxu0 %v1896
        %1960 = vmatpush1.msra.mxu0 %v1895
        %1961 = vmatprep.subr.mxu0 %v1899
        %1962 = vmatpush1.msra.mxu0 %v1898
        %1963 = vmatprep.subr.mxu0 %v1902
        %1964 = vmatpush1.msra.mxu0 %v1901
        %1965 = vmatprep.subr.mxu0 %v1905
        %1966 = vmatpush1.msra.mxu0 %v1904
        %1967 = vmatprep.subr.mxu0 %v1908
        %1968 = vmatpush1.msra.mxu0 %v1907
        %1969 = vmatprep.subr.mxu0 %v1911
        %1970 = vmatpush1.msra.mxu0 %v1910
        %1971 = vmatprep.subr.mxu0 %v1914
        %1972 = vmatpush1.msra.mxu0 %v1913
        %1973 = vmatprep.subr.mxu0 %v1917
        %1974 = vmatpush1.msra.mxu0 %v1916
        %1975 = vmatprep.subr.mxu0 %v1920
        %1976 = vmatpush1.msra.mxu0 %v1919
        %1977 = vmatprep.subr.mxu0 %v1923
        %1978 = vmatpush1.msra.mxu0 %v1922
        %1979 = vmatprep.subr.mxu0 %v1926
        %1980 = vmatpush1.msra.mxu0 %v1925
        %1981 = vmatprep.subr.mxu0 %v1929
        %1982 = vmatpush1.msra.mxu0 %v1928
        %1983 = vmatprep.subr.mxu0 %v1932
        %1984 = vmatpush1.msra.mxu0 %v1931
        %1985 = vmatprep.subr.mxu0 %v1935
        %1986 = vmatpush1.msra.mxu0 %v1934
        %1987 = vmatprep.subr.mxu0 %v1938
        %1988 = vmatpush1.msra.mxu0 %v1937
        %1989 = vmatprep.subr.mxu0 0.0
        %1990 = vmatpush1.msra.mxu0 0.0
        %1991 = vmatprep.subr.mxu0 0.0
        %1992 = vmatpush1.msra.mxu0 0.0
        %1993 = vmatprep.subr.mxu0 0.0
        %1994 = vmatpush1.msra.mxu0 0.0
        %1995 = vmatprep.subr.mxu0 0.0
        %1996 = vmatpush1.msra.mxu0 0.0
        %1997 = vmatprep.subr.mxu0 0.0
        %1998 = vmatpush1.msra.mxu0 0.0
        %1999 = vmatprep.subr.mxu0 0.0
        %2000 = vmatpush1.msra.mxu0 0.0
        %2001 = vmatprep.subr.mxu0 0.0
        %2002 = vmatpush1.msra.mxu0 0.0
        %2003 = vmatprep.subr.mxu0 0.0
        %2004 = vmatpush1.msra.mxu0 0.0
        %2005 = vmatprep.subr.mxu0 0.0
        %2006 = vmatpush1.msra.mxu0 0.0
        %2007 = vmatprep.subr.mxu0 0.0
        %2008 = vmatpush1.msra.mxu0 0.0
        %2009 = vmatprep.subr.mxu0 0.0
        %2010 = vmatpush1.msra.mxu0 0.0
        %2011 = vmatprep.subr.mxu0 0.0
        %2012 = vmatpush1.msra.mxu0 0.0
        %2013 = vmatprep.subr.mxu0 0.0
        %2014 = vmatpush1.msra.mxu0 0.0
        %2015 = vmatprep.subr.mxu0 0.0
        %2016 = vmatpush1.msra.mxu0 0.0
        %2017 = vmatprep.subr.mxu0 0.0
        %2018 = vmatpush1.msra.mxu0 0.0
        %2019 = vmatprep.subr.mxu0 0.0
        %2020 = vmatpush1.msra.mxu0 0.0
        %2021 = vmatprep.mubr.f32.mxu0 0.0
        %2022 = vmatmul.mubr.f32.gmra.mrb[0].mxu0 %v1885
        %v2023 = vpop.f32.mrb[0].mxu0
        %v2024 = vadd.f32 %v1945, %v2023
        %v2025 = vpop.f32.mrb[0].mxu0
        %v2026 = vadd.f32 %v1949, %v2025
        %2027 = vdwg.mxu0
        %2028 = vmatprep.subr.mxu0 0.0
        %2029 = vmatpush1.msra.mxu0 %v1894
        %2030 = vmatprep.subr.mxu0 0.0
        %2031 = vmatpush1.msra.mxu0 %v1897
        %2032 = vmatprep.subr.mxu0 0.0
        %2033 = vmatpush1.msra.mxu0 %v1900
        %2034 = vmatprep.subr.mxu0 0.0
        %2035 = vmatpush1.msra.mxu0 %v1903
        %2036 = vmatprep.subr.mxu0 0.0
        %2037 = vmatpush1.msra.mxu0 %v1906
        %2038 = vmatprep.subr.mxu0 0.0
        %2039 = vmatpush1.msra.mxu0 %v1909
        %2040 = vmatprep.subr.mxu0 0.0
        %2041 = vmatpush1.msra.mxu0 %v1912
        %2042 = vmatprep.subr.mxu0 0.0
        %2043 = vmatpush1.msra.mxu0 %v1915
        %2044 = vmatprep.subr.mxu0 0.0
        %2045 = vmatpush1.msra.mxu0 %v1918
        %2046 = vmatprep.subr.mxu0 0.0
        %2047 = vmatpush1.msra.mxu0 %v1921
        %2048 = vmatprep.subr.mxu0 0.0
        %2049 = vmatpush1.msra.mxu0 %v1924
        %2050 = vmatprep.subr.mxu0 0.0
        %2051 = vmatpush1.msra.mxu0 %v1927
        %2052 = vmatprep.subr.mxu0 0.0
        %2053 = vmatpush1.msra.mxu0 %v1930
        %2054 = vmatprep.subr.mxu0 0.0
        %2055 = vmatpush1.msra.mxu0 %v1933
        %2056 = vmatprep.subr.mxu0 0.0
        %2057 = vmatpush1.msra.mxu0 %v1936
        %2058 = vmatprep.subr.mxu0 0.0
        %2059 = vmatpush1.msra.mxu0 %v1939
        %2060 = vmatprep.subr.mxu0 0.0
        %2061 = vmatpush1.msra.mxu0 0.0
        %2062 = vmatprep.subr.mxu0 0.0
        %2063 = vmatpush1.msra.mxu0 0.0
        %2064 = vmatprep.subr.mxu0 0.0
        %2065 = vmatpush1.msra.mxu0 0.0
        %2066 = vmatprep.subr.mxu0 0.0
        %2067 = vmatpush1.msra.mxu0 0.0
        %2068 = vmatprep.subr.mxu0 0.0
        %2069 = vmatpush1.msra.mxu0 0.0
        %2070 = vmatprep.subr.mxu0 0.0
        %2071 = vmatpush1.msra.mxu0 0.0
        %2072 = vmatprep.subr.mxu0 0.0
        %2073 = vmatpush1.msra.mxu0 0.0
        %2074 = vmatprep.subr.mxu0 0.0
        %2075 = vmatpush1.msra.mxu0 0.0
        %2076 = vmatprep.subr.mxu0 0.0
        %2077 = vmatpush1.msra.mxu0 0.0
        %2078 = vmatprep.subr.mxu0 0.0
        %2079 = vmatpush1.msra.mxu0 0.0
        %2080 = vmatprep.subr.mxu0 0.0
        %2081 = vmatpush1.msra.mxu0 0.0
        %2082 = vmatprep.subr.mxu0 0.0
        %2083 = vmatpush1.msra.mxu0 0.0
        %2084 = vmatprep.subr.mxu0 0.0
        %2085 = vmatpush1.msra.mxu0 0.0
        %2086 = vmatprep.subr.mxu0 0.0
        %2087 = vmatpush1.msra.mxu0 0.0
        %2088 = vmatprep.subr.mxu0 0.0
        %2089 = vmatpush1.msra.mxu0 0.0
        %2090 = vmatprep.subr.mxu0 0.0
        %2091 = vmatpush1.msra.mxu0 0.0
        %2092 = vmatprep.mubr.f32.mxu0 0.0
        %2093 = vmatmul.mubr.f32.gmra.mrb[0].mxu0 %v1885
        %v2094 = vpop.f32.mrb[0].mxu0
        %v2095 = vadd.f32 %v1953, %v2094
        %v2096 = vpop.f32.mrb[0].mxu0
        %2097 = vdwg.mxu0
        %v2098 = vadd.f32 %v1889, %v2024
        %v2099 = vxor.u32 %v2098, 2147483648
        %v2100 = vmul.f32 %v2099, 1.442695
        %v2101 = vpow.pop %v2100
        %v2102 = vadd.f32 %v2101, 1.0
        %v2103 = vrcp.pop %v2102
        %v2104 = vmul.f32 1.0, %v2103
        %v2105 = vadd.f32 %v1890, %v2026
        %v2106 = vxor.u32 %v2105, 2147483648
        %v2107 = vmul.f32 %v2106, 1.442695
        %v2108 = vpow.pop %v2107
        %v2109 = vadd.f32 %v2108, 1.0
        %v2110 = vrcp.pop %v2109
        %v2111 = vmul.f32 1.0, %v2110
        %v2112 = vmul.f32 %v2104, %v2095
        %v2113 = vadd.f32 %v1891, %v2112
        %v2114 = vtanh.pop %v2113
        %v2115 = vsub.f32 1.0, %v2111
        %v2116 = vmul.f32 %v2115, %v2114
        %v2117 = vmul.f32 %v2111, %v1885
        %v2118 = vadd.f32 %v2116, %v2117
        %s2119 = sadd.s32 %s357, 5
        %v2120 = vstv %s2119
        %vm2121 = vcmp.lt.s32.totalorder %v2120, %v364
        %v2122 = vsel %vm2121, 1, 0
        %2123 = vset.pattern.permute.xlu0 0
        %2124 = vperm.xlu0 %2123, %v2122
        %v2125 = vpop.permute.xlu0 %2124
        %vm2126 = vcmp.eq.s32.totalorder %v2125, 1
        %v2127 = vsel %vm2126, %v2118, %v1885
        %s2128 = scalar_lea.vmem [#allocation2], 40
        %2129 = vst [vmem:[%s2128] sm:$0xff] %v2127
        %s2130 = scalar_lea.vmem [#allocation3], 144
        %v2131 = vld [vmem:[%s2130] sm:$0xff]
        %v2132 = vld [vmem:[%s2130 + $0x8] sm:$0xff]
        %v2133 = vld [vmem:[%s2130 + $0x10] sm:$0xff]
        %v2134 = vld [vmem:[#allocation10] sm:$0xff]
        %v2135 = vld [vmem:[#allocation10 + $0x8] sm:$0xff]
        %v2136 = vld [vmem:[#allocation10 + $0x10] sm:$0xff]
        %v2137 = vld [vmem:[#allocation10 + $0x18] sm:$0xff]
        %v2138 = vld [vmem:[#allocation10 + $0x20] sm:$0xff]
        %v2139 = vld [vmem:[#allocation10 + $0x28] sm:$0xff]
        %v2140 = vld [vmem:[#allocation10 + $0x30] sm:$0xff]
        %v2141 = vld [vmem:[#allocation10 + $0x38] sm:$0xff]
        %v2142 = vld [vmem:[#allocation10 + $0x40] sm:$0xff]
        %v2143 = vld [vmem:[#allocation10 + $0x48] sm:$0xff]
        %v2144 = vld [vmem:[#allocation10 + $0x50] sm:$0xff]
        %v2145 = vld [vmem:[#allocation10 + $0x58] sm:$0xff]
        %v2146 = vld [vmem:[#allocation10 + $0x60] sm:$0xff]
        %v2147 = vld [vmem:[#allocation10 + $0x68] sm:$0xff]
        %v2148 = vld [vmem:[#allocation10 + $0x70] sm:$0xff]
        %v2149 = vld [vmem:[#allocation10 + $0x78] sm:$0xff]
        %v2150 = vld [vmem:[#allocation10 + $0x80] sm:$0xff]
        %v2151 = vld [vmem:[#allocation10 + $0x88] sm:$0xff]
        %v2152 = vld [vmem:[#allocation10 + $0x90] sm:$0xff]
        %v2153 = vld [vmem:[#allocation10 + $0x98] sm:$0xff]
        %v2154 = vld [vmem:[#allocation10 + $0xa0] sm:$0xff]
        %v2155 = vld [vmem:[#allocation10 + $0xa8] sm:$0xff]
        %v2156 = vld [vmem:[#allocation10 + $0xb0] sm:$0xff]
        %v2157 = vld [vmem:[#allocation10 + $0xb8] sm:$0xff]
        %v2158 = vld [vmem:[#allocation10 + $0xc0] sm:$0xff]
        %v2159 = vld [vmem:[#allocation10 + $0xc8] sm:$0xff]
        %v2160 = vld [vmem:[#allocation10 + $0xd0] sm:$0xff]
        %v2161 = vld [vmem:[#allocation10 + $0xd8] sm:$0xff]
        %v2162 = vld [vmem:[#allocation10 + $0xe0] sm:$0xff]
        %v2163 = vld [vmem:[#allocation10 + $0xe8] sm:$0xff]
        %v2164 = vld [vmem:[#allocation10 + $0xf0] sm:$0xff]
        %v2165 = vld [vmem:[#allocation10 + $0xf8] sm:$0xff]
        %v2166 = vld [vmem:[#allocation10 + $0x100] sm:$0xff]
        %v2167 = vld [vmem:[#allocation10 + $0x108] sm:$0xff]
        %v2168 = vld [vmem:[#allocation10 + $0x110] sm:$0xff]
        %v2169 = vld [vmem:[#allocation10 + $0x118] sm:$0xff]
        %v2170 = vld [vmem:[#allocation10 + $0x120] sm:$0xff]
        %v2171 = vld [vmem:[#allocation10 + $0x128] sm:$0xff]
        %v2172 = vld [vmem:[#allocation10 + $0x130] sm:$0xff]
        %v2173 = vld [vmem:[#allocation10 + $0x138] sm:$0xff]
        %v2174 = vld [vmem:[#allocation10 + $0x140] sm:$0xff]
        %v2175 = vld [vmem:[#allocation10 + $0x148] sm:$0xff]
        %v2176 = vld [vmem:[#allocation10 + $0x150] sm:$0xff]
        %v2177 = vld [vmem:[#allocation10 + $0x158] sm:$0xff]
        %v2178 = vld [vmem:[#allocation10 + $0x160] sm:$0xff]
        %v2179 = vld [vmem:[#allocation10 + $0x168] sm:$0xff]
        %v2180 = vld [vmem:[#allocation10 + $0x170] sm:$0xff]
        %v2181 = vld [vmem:[#allocation10 + $0x178] sm:$0xff]
        %v2182 = vld [vmem:[%s7] sm:$0x7]
        %v2184 = vlaneseq
        %v2185 = vshrl.u32 %v2184, 7
        %v2186 = vsub.s32 0, %v2185
        %v2187 = vrot.slane %v2182, %v2186
        %v2188 = vlaneseq
        %v2189 = vshrl.u32 %v2188, 7
        %v2190 = vsub.s32 1, %v2189
        %v2191 = vrot.slane %v2182, %v2190
        %v2192 = vlaneseq
        %v2193 = vshrl.u32 %v2192, 7
        %v2194 = vsub.s32 2, %v2193
        %v2195 = vrot.slane %v2182, %v2194
        %2199 = vmatprep.subr.mxu0 %v2135
        %2200 = vmatpush1.msra.mxu0 %v2134
        %2201 = vmatprep.subr.mxu0 %v2138
        %2202 = vmatpush1.msra.mxu0 %v2137
        %2203 = vmatprep.subr.mxu0 %v2141
        %2204 = vmatpush1.msra.mxu0 %v2140
        %2205 = vmatprep.subr.mxu0 %v2144
        %2206 = vmatpush1.msra.mxu0 %v2143
        %2207 = vmatprep.subr.mxu0 %v2147
        %2208 = vmatpush1.msra.mxu0 %v2146
        %2209 = vmatprep.subr.mxu0 %v2150
        %2210 = vmatpush1.msra.mxu0 %v2149
        %2211 = vmatprep.subr.mxu0 %v2153
        %2212 = vmatpush1.msra.mxu0 %v2152
        %2213 = vmatprep.subr.mxu0 %v2156
        %2214 = vmatpush1.msra.mxu0 %v2155
        %2215 = vmatprep.subr.mxu0 %v2159
        %2216 = vmatpush1.msra.mxu0 %v2158
        %2217 = vmatprep.subr.mxu0 %v2162
        %2218 = vmatpush1.msra.mxu0 %v2161
        %2219 = vmatprep.subr.mxu0 %v2165
        %2220 = vmatpush1.msra.mxu0 %v2164
        %2221 = vmatprep.subr.mxu0 %v2168
        %2222 = vmatpush1.msra.mxu0 %v2167
        %2223 = vmatprep.subr.mxu0 %v2171
        %2224 = vmatpush1.msra.mxu0 %v2170
        %2225 = vmatprep.subr.mxu0 %v2174
        %2226 = vmatpush1.msra.mxu0 %v2173
        %2227 = vmatprep.subr.mxu0 %v2177
        %2228 = vmatpush1.msra.mxu0 %v2176
        %2229 = vmatprep.subr.mxu0 %v2180
        %2230 = vmatpush1.msra.mxu0 %v2179
        %2231 = vmatprep.subr.mxu0 0.0
        %2232 = vmatpush1.msra.mxu0 0.0
        %2233 = vmatprep.subr.mxu0 0.0
        %2234 = vmatpush1.msra.mxu0 0.0
        %2235 = vmatprep.subr.mxu0 0.0
        %2236 = vmatpush1.msra.mxu0 0.0
        %2237 = vmatprep.subr.mxu0 0.0
        %2238 = vmatpush1.msra.mxu0 0.0
        %2239 = vmatprep.subr.mxu0 0.0
        %2240 = vmatpush1.msra.mxu0 0.0
        %2241 = vmatprep.subr.mxu0 0.0
        %2242 = vmatpush1.msra.mxu0 0.0
        %2243 = vmatprep.subr.mxu0 0.0
        %2244 = vmatpush1.msra.mxu0 0.0
        %2245 = vmatprep.subr.mxu0 0.0
        %2246 = vmatpush1.msra.mxu0 0.0
        %2247 = vmatprep.subr.mxu0 0.0
        %2248 = vmatpush1.msra.mxu0 0.0
        %2249 = vmatprep.subr.mxu0 0.0
        %2250 = vmatpush1.msra.mxu0 0.0
        %2251 = vmatprep.subr.mxu0 0.0
        %2252 = vmatpush1.msra.mxu0 0.0
        %2253 = vmatprep.subr.mxu0 0.0
        %2254 = vmatpush1.msra.mxu0 0.0
        %2255 = vmatprep.subr.mxu0 0.0
        %2256 = vmatpush1.msra.mxu0 0.0
        %2257 = vmatprep.subr.mxu0 0.0
        %2258 = vmatpush1.msra.mxu0 0.0
        %2259 = vmatprep.subr.mxu0 0.0
        %2260 = vmatpush1.msra.mxu0 0.0
        %2261 = vmatprep.subr.mxu0 0.0
        %2262 = vmatpush1.msra.mxu0 0.0
        %2263 = vmatprep.mubr.f32.mxu0 0.0
        %2264 = vmatmul.mubr.f32.gmra.mrb[0].mxu0 %v2127
        %v2265 = vpop.f32.mrb[0].mxu0
        %v2266 = vadd.f32 %v2187, %v2265
        %v2267 = vpop.f32.mrb[0].mxu0
        %v2268 = vadd.f32 %v2191, %v2267
        %2269 = vdwg.mxu0
        %2270 = vmatprep.subr.mxu0 0.0
        %2271 = vmatpush1.msra.mxu0 %v2136
        %2272 = vmatprep.subr.mxu0 0.0
        %2273 = vmatpush1.msra.mxu0 %v2139
        %2274 = vmatprep.subr.mxu0 0.0
        %2275 = vmatpush1.msra.mxu0 %v2142
        %2276 = vmatprep.subr.mxu0 0.0
        %2277 = vmatpush1.msra.mxu0 %v2145
        %2278 = vmatprep.subr.mxu0 0.0
        %2279 = vmatpush1.msra.mxu0 %v2148
        %2280 = vmatprep.subr.mxu0 0.0
        %2281 = vmatpush1.msra.mxu0 %v2151
        %2282 = vmatprep.subr.mxu0 0.0
        %2283 = vmatpush1.msra.mxu0 %v2154
        %2284 = vmatprep.subr.mxu0 0.0
        %2285 = vmatpush1.msra.mxu0 %v2157
        %2286 = vmatprep.subr.mxu0 0.0
        %2287 = vmatpush1.msra.mxu0 %v2160
        %2288 = vmatprep.subr.mxu0 0.0
        %2289 = vmatpush1.msra.mxu0 %v2163
        %2290 = vmatprep.subr.mxu0 0.0
        %2291 = vmatpush1.msra.mxu0 %v2166
        %2292 = vmatprep.subr.mxu0 0.0
        %2293 = vmatpush1.msra.mxu0 %v2169
        %2294 = vmatprep.subr.mxu0 0.0
        %2295 = vmatpush1.msra.mxu0 %v2172
        %2296 = vmatprep.subr.mxu0 0.0
        %2297 = vmatpush1.msra.mxu0 %v2175
        %2298 = vmatprep.subr.mxu0 0.0
        %2299 = vmatpush1.msra.mxu0 %v2178
        %2300 = vmatprep.subr.mxu0 0.0
        %2301 = vmatpush1.msra.mxu0 %v2181
        %2302 = vmatprep.subr.mxu0 0.0
        %2303 = vmatpush1.msra.mxu0 0.0
        %2304 = vmatprep.subr.mxu0 0.0
        %2305 = vmatpush1.msra.mxu0 0.0
        %2306 = vmatprep.subr.mxu0 0.0
        %2307 = vmatpush1.msra.mxu0 0.0
        %2308 = vmatprep.subr.mxu0 0.0
        %2309 = vmatpush1.msra.mxu0 0.0
        %2310 = vmatprep.subr.mxu0 0.0
        %2311 = vmatpush1.msra.mxu0 0.0
        %2312 = vmatprep.subr.mxu0 0.0
        %2313 = vmatpush1.msra.mxu0 0.0
        %2314 = vmatprep.subr.mxu0 0.0
        %2315 = vmatpush1.msra.mxu0 0.0
        %2316 = vmatprep.subr.mxu0 0.0
        %2317 = vmatpush1.msra.mxu0 0.0
        %2318 = vmatprep.subr.mxu0 0.0
        %2319 = vmatpush1.msra.mxu0 0.0
        %2320 = vmatprep.subr.mxu0 0.0
        %2321 = vmatpush1.msra.mxu0 0.0
        %2322 = vmatprep.subr.mxu0 0.0
        %2323 = vmatpush1.msra.mxu0 0.0
        %2324 = vmatprep.subr.mxu0 0.0
        %2325 = vmatpush1.msra.mxu0 0.0
        %2326 = vmatprep.subr.mxu0 0.0
        %2327 = vmatpush1.msra.mxu0 0.0
        %2328 = vmatprep.subr.mxu0 0.0
        %2329 = vmatpush1.msra.mxu0 0.0
        %2330 = vmatprep.subr.mxu0 0.0
        %2331 = vmatpush1.msra.mxu0 0.0
        %2332 = vmatprep.subr.mxu0 0.0
        %2333 = vmatpush1.msra.mxu0 0.0
        %2334 = vmatprep.mubr.f32.mxu0 0.0
        %2335 = vmatmul.mubr.f32.gmra.mrb[0].mxu0 %v2127
        %v2336 = vpop.f32.mrb[0].mxu0
        %v2337 = vadd.f32 %v2195, %v2336
        %v2338 = vpop.f32.mrb[0].mxu0
        %2339 = vdwg.mxu0
        %v2340 = vadd.f32 %v2131, %v2266
        %v2341 = vxor.u32 %v2340, 2147483648
        %v2342 = vmul.f32 %v2341, 1.442695
        %v2343 = vpow.pop %v2342
        %v2344 = vadd.f32 %v2343, 1.0
        %v2345 = vrcp.pop %v2344
        %v2346 = vmul.f32 1.0, %v2345
        %v2347 = vadd.f32 %v2132, %v2268
        %v2348 = vxor.u32 %v2347, 2147483648
        %v2349 = vmul.f32 %v2348, 1.442695
        %v2350 = vpow.pop %v2349
        %v2351 = vadd.f32 %v2350, 1.0
        %v2352 = vrcp.pop %v2351
        %v2353 = vmul.f32 1.0, %v2352
        %v2354 = vmul.f32 %v2346, %v2337
        %v2355 = vadd.f32 %v2133, %v2354
        %v2356 = vtanh.pop %v2355
        %v2357 = vsub.f32 1.0, %v2353
        %v2358 = vmul.f32 %v2357, %v2356
        %v2359 = vmul.f32 %v2353, %v2127
        %v2360 = vadd.f32 %v2358, %v2359
        %s2361 = sadd.s32 %s357, 6
        %v2362 = vstv %s2361
        %vm2363 = vcmp.lt.s32.totalorder %v2362, %v364
        %v2364 = vsel %vm2363, 1, 0
        %2365 = vset.pattern.permute.xlu0 0
        %2366 = vperm.xlu0 %2365, %v2364
        %v2367 = vpop.permute.xlu0 %2366
        %vm2368 = vcmp.eq.s32.totalorder %v2367, 1
        %v2369 = vsel %vm2368, %v2360, %v2127
        %s2370 = scalar_lea.vmem [#allocation2], 48
        %2371 = vst [vmem:[%s2370] sm:$0xff] %v2369
        %s2372 = scalar_lea.vmem [#allocation3], 168
        %v2373 = vld [vmem:[%s2372] sm:$0xff]
        %v2374 = vld [vmem:[%s2372 + $0x8] sm:$0xff]
        %v2375 = vld [vmem:[%s2372 + $0x10] sm:$0xff]
        %v2376 = vld [vmem:[#allocation10] sm:$0xff]
        %v2377 = vld [vmem:[#allocation10 + $0x8] sm:$0xff]
        %v2378 = vld [vmem:[#allocation10 + $0x10] sm:$0xff]
        %v2379 = vld [vmem:[#allocation10 + $0x18] sm:$0xff]
        %v2380 = vld [vmem:[#allocation10 + $0x20] sm:$0xff]
        %v2381 = vld [vmem:[#allocation10 + $0x28] sm:$0xff]
        %v2382 = vld [vmem:[#allocation10 + $0x30] sm:$0xff]
        %v2383 = vld [vmem:[#allocation10 + $0x38] sm:$0xff]
        %v2384 = vld [vmem:[#allocation10 + $0x40] sm:$0xff]
        %v2385 = vld [vmem:[#allocation10 + $0x48] sm:$0xff]
        %v2386 = vld [vmem:[#allocation10 + $0x50] sm:$0xff]
        %v2387 = vld [vmem:[#allocation10 + $0x58] sm:$0xff]
        %v2388 = vld [vmem:[#allocation10 + $0x60] sm:$0xff]
        %v2389 = vld [vmem:[#allocation10 + $0x68] sm:$0xff]
        %v2390 = vld [vmem:[#allocation10 + $0x70] sm:$0xff]
        %v2391 = vld [vmem:[#allocation10 + $0x78] sm:$0xff]
        %v2392 = vld [vmem:[#allocation10 + $0x80] sm:$0xff]
        %v2393 = vld [vmem:[#allocation10 + $0x88] sm:$0xff]
        %v2394 = vld [vmem:[#allocation10 + $0x90] sm:$0xff]
        %v2395 = vld [vmem:[#allocation10 + $0x98] sm:$0xff]
        %v2396 = vld [vmem:[#allocation10 + $0xa0] sm:$0xff]
        %v2397 = vld [vmem:[#allocation10 + $0xa8] sm:$0xff]
        %v2398 = vld [vmem:[#allocation10 + $0xb0] sm:$0xff]
        %v2399 = vld [vmem:[#allocation10 + $0xb8] sm:$0xff]
        %v2400 = vld [vmem:[#allocation10 + $0xc0] sm:$0xff]
        %v2401 = vld [vmem:[#allocation10 + $0xc8] sm:$0xff]
        %v2402 = vld [vmem:[#allocation10 + $0xd0] sm:$0xff]
        %v2403 = vld [vmem:[#allocation10 + $0xd8] sm:$0xff]
        %v2404 = vld [vmem:[#allocation10 + $0xe0] sm:$0xff]
        %v2405 = vld [vmem:[#allocation10 + $0xe8] sm:$0xff]
        %v2406 = vld [vmem:[#allocation10 + $0xf0] sm:$0xff]
        %v2407 = vld [vmem:[#allocation10 + $0xf8] sm:$0xff]
        %v2408 = vld [vmem:[#allocation10 + $0x100] sm:$0xff]
        %v2409 = vld [vmem:[#allocation10 + $0x108] sm:$0xff]
        %v2410 = vld [vmem:[#allocation10 + $0x110] sm:$0xff]
        %v2411 = vld [vmem:[#allocation10 + $0x118] sm:$0xff]
        %v2412 = vld [vmem:[#allocation10 + $0x120] sm:$0xff]
        %v2413 = vld [vmem:[#allocation10 + $0x128] sm:$0xff]
        %v2414 = vld [vmem:[#allocation10 + $0x130] sm:$0xff]
        %v2415 = vld [vmem:[#allocation10 + $0x138] sm:$0xff]
        %v2416 = vld [vmem:[#allocation10 + $0x140] sm:$0xff]
        %v2417 = vld [vmem:[#allocation10 + $0x148] sm:$0xff]
        %v2418 = vld [vmem:[#allocation10 + $0x150] sm:$0xff]
        %v2419 = vld [vmem:[#allocation10 + $0x158] sm:$0xff]
        %v2420 = vld [vmem:[#allocation10 + $0x160] sm:$0xff]
        %v2421 = vld [vmem:[#allocation10 + $0x168] sm:$0xff]
        %v2422 = vld [vmem:[#allocation10 + $0x170] sm:$0xff]
        %v2423 = vld [vmem:[#allocation10 + $0x178] sm:$0xff]
        %v2424 = vld [vmem:[%s7] sm:$0x7]
        %v2426 = vlaneseq
        %v2427 = vshrl.u32 %v2426, 7
        %v2428 = vsub.s32 0, %v2427
        %v2429 = vrot.slane %v2424, %v2428
        %v2430 = vlaneseq
        %v2431 = vshrl.u32 %v2430, 7
        %v2432 = vsub.s32 1, %v2431
        %v2433 = vrot.slane %v2424, %v2432
        %v2434 = vlaneseq
        %v2435 = vshrl.u32 %v2434, 7
        %v2436 = vsub.s32 2, %v2435
        %v2437 = vrot.slane %v2424, %v2436
        %2441 = vmatprep.subr.mxu0 %v2377
        %2442 = vmatpush1.msra.mxu0 %v2376
        %2443 = vmatprep.subr.mxu0 %v2380
        %2444 = vmatpush1.msra.mxu0 %v2379
        %2445 = vmatprep.subr.mxu0 %v2383
        %2446 = vmatpush1.msra.mxu0 %v2382
        %2447 = vmatprep.subr.mxu0 %v2386
        %2448 = vmatpush1.msra.mxu0 %v2385
        %2449 = vmatprep.subr.mxu0 %v2389
        %2450 = vmatpush1.msra.mxu0 %v2388
        %2451 = vmatprep.subr.mxu0 %v2392
        %2452 = vmatpush1.msra.mxu0 %v2391
        %2453 = vmatprep.subr.mxu0 %v2395
        %2454 = vmatpush1.msra.mxu0 %v2394
        %2455 = vmatprep.subr.mxu0 %v2398
        %2456 = vmatpush1.msra.mxu0 %v2397
        %2457 = vmatprep.subr.mxu0 %v2401
        %2458 = vmatpush1.msra.mxu0 %v2400
        %2459 = vmatprep.subr.mxu0 %v2404
        %2460 = vmatpush1.msra.mxu0 %v2403
        %2461 = vmatprep.subr.mxu0 %v2407
        %2462 = vmatpush1.msra.mxu0 %v2406
        %2463 = vmatprep.subr.mxu0 %v2410
        %2464 = vmatpush1.msra.mxu0 %v2409
        %2465 = vmatprep.subr.mxu0 %v2413
        %2466 = vmatpush1.msra.mxu0 %v2412
        %2467 = vmatprep.subr.mxu0 %v2416
        %2468 = vmatpush1.msra.mxu0 %v2415
        %2469 = vmatprep.subr.mxu0 %v2419
        %2470 = vmatpush1.msra.mxu0 %v2418
        %2471 = vmatprep.subr.mxu0 %v2422
        %2472 = vmatpush1.msra.mxu0 %v2421
        %2473 = vmatprep.subr.mxu0 0.0
        %2474 = vmatpush1.msra.mxu0 0.0
        %2475 = vmatprep.subr.mxu0 0.0
        %2476 = vmatpush1.msra.mxu0 0.0
        %2477 = vmatprep.subr.mxu0 0.0
        %2478 = vmatpush1.msra.mxu0 0.0
        %2479 = vmatprep.subr.mxu0 0.0
        %2480 = vmatpush1.msra.mxu0 0.0
        %2481 = vmatprep.subr.mxu0 0.0
        %2482 = vmatpush1.msra.mxu0 0.0
        %2483 = vmatprep.subr.mxu0 0.0
        %2484 = vmatpush1.msra.mxu0 0.0
        %2485 = vmatprep.subr.mxu0 0.0
        %2486 = vmatpush1.msra.mxu0 0.0
        %2487 = vmatprep.subr.mxu0 0.0
        %2488 = vmatpush1.msra.mxu0 0.0
        %2489 = vmatprep.subr.mxu0 0.0
        %2490 = vmatpush1.msra.mxu0 0.0
        %2491 = vmatprep.subr.mxu0 0.0
        %2492 = vmatpush1.msra.mxu0 0.0
        %2493 = vmatprep.subr.mxu0 0.0
        %2494 = vmatpush1.msra.mxu0 0.0
        %2495 = vmatprep.subr.mxu0 0.0
        %2496 = vmatpush1.msra.mxu0 0.0
        %2497 = vmatprep.subr.mxu0 0.0
        %2498 = vmatpush1.msra.mxu0 0.0
        %2499 = vmatprep.subr.mxu0 0.0
        %2500 = vmatpush1.msra.mxu0 0.0
        %2501 = vmatprep.subr.mxu0 0.0
        %2502 = vmatpush1.msra.mxu0 0.0
        %2503 = vmatprep.subr.mxu0 0.0
        %2504 = vmatpush1.msra.mxu0 0.0
        %2505 = vmatprep.mubr.f32.mxu0 0.0
        %2506 = vmatmul.mubr.f32.gmra.mrb[0].mxu0 %v2369
        %v2507 = vpop.f32.mrb[0].mxu0
        %v2508 = vadd.f32 %v2429, %v2507
        %v2509 = vpop.f32.mrb[0].mxu0
        %v2510 = vadd.f32 %v2433, %v2509
        %2511 = vdwg.mxu0
        %2512 = vmatprep.subr.mxu0 0.0
        %2513 = vmatpush1.msra.mxu0 %v2378
        %2514 = vmatprep.subr.mxu0 0.0
        %2515 = vmatpush1.msra.mxu0 %v2381
        %2516 = vmatprep.subr.mxu0 0.0
        %2517 = vmatpush1.msra.mxu0 %v2384
        %2518 = vmatprep.subr.mxu0 0.0
        %2519 = vmatpush1.msra.mxu0 %v2387
        %2520 = vmatprep.subr.mxu0 0.0
        %2521 = vmatpush1.msra.mxu0 %v2390
        %2522 = vmatprep.subr.mxu0 0.0
        %2523 = vmatpush1.msra.mxu0 %v2393
        %2524 = vmatprep.subr.mxu0 0.0
        %2525 = vmatpush1.msra.mxu0 %v2396
        %2526 = vmatprep.subr.mxu0 0.0
        %2527 = vmatpush1.msra.mxu0 %v2399
        %2528 = vmatprep.subr.mxu0 0.0
        %2529 = vmatpush1.msra.mxu0 %v2402
        %2530 = vmatprep.subr.mxu0 0.0
        %2531 = vmatpush1.msra.mxu0 %v2405
        %2532 = vmatprep.subr.mxu0 0.0
        %2533 = vmatpush1.msra.mxu0 %v2408
        %2534 = vmatprep.subr.mxu0 0.0
        %2535 = vmatpush1.msra.mxu0 %v2411
        %2536 = vmatprep.subr.mxu0 0.0
        %2537 = vmatpush1.msra.mxu0 %v2414
        %2538 = vmatprep.subr.mxu0 0.0
        %2539 = vmatpush1.msra.mxu0 %v2417
        %2540 = vmatprep.subr.mxu0 0.0
        %2541 = vmatpush1.msra.mxu0 %v2420
        %2542 = vmatprep.subr.mxu0 0.0
        %2543 = vmatpush1.msra.mxu0 %v2423
        %2544 = vmatprep.subr.mxu0 0.0
        %2545 = vmatpush1.msra.mxu0 0.0
        %2546 = vmatprep.subr.mxu0 0.0
        %2547 = vmatpush1.msra.mxu0 0.0
        %2548 = vmatprep.subr.mxu0 0.0
        %2549 = vmatpush1.msra.mxu0 0.0
        %2550 = vmatprep.subr.mxu0 0.0
        %2551 = vmatpush1.msra.mxu0 0.0
        %2552 = vmatprep.subr.mxu0 0.0
        %2553 = vmatpush1.msra.mxu0 0.0
        %2554 = vmatprep.subr.mxu0 0.0
        %2555 = vmatpush1.msra.mxu0 0.0
        %2556 = vmatprep.subr.mxu0 0.0
        %2557 = vmatpush1.msra.mxu0 0.0
        %2558 = vmatprep.subr.mxu0 0.0
        %2559 = vmatpush1.msra.mxu0 0.0
        %2560 = vmatprep.subr.mxu0 0.0
        %2561 = vmatpush1.msra.mxu0 0.0
        %2562 = vmatprep.subr.mxu0 0.0
        %2563 = vmatpush1.msra.mxu0 0.0
        %2564 = vmatprep.subr.mxu0 0.0
        %2565 = vmatpush1.msra.mxu0 0.0
        %2566 = vmatprep.subr.mxu0 0.0
        %2567 = vmatpush1.msra.mxu0 0.0
        %2568 = vmatprep.subr.mxu0 0.0
        %2569 = vmatpush1.msra.mxu0 0.0
        %2570 = vmatprep.subr.mxu0 0.0
        %2571 = vmatpush1.msra.mxu0 0.0
        %2572 = vmatprep.subr.mxu0 0.0
        %2573 = vmatpush1.msra.mxu0 0.0
        %2574 = vmatprep.subr.mxu0 0.0
        %2575 = vmatpush1.msra.mxu0 0.0
        %2576 = vmatprep.mubr.f32.mxu0 0.0
        %2577 = vmatmul.mubr.f32.gmra.mrb[0].mxu0 %v2369
        %v2578 = vpop.f32.mrb[0].mxu0
        %v2579 = vadd.f32 %v2437, %v2578
        %v2580 = vpop.f32.mrb[0].mxu0
        %2581 = vdwg.mxu0
        %v2582 = vadd.f32 %v2373, %v2508
        %v2583 = vxor.u32 %v2582, 2147483648
        %v2584 = vmul.f32 %v2583, 1.442695
        %v2585 = vpow.pop %v2584
        %v2586 = vadd.f32 %v2585, 1.0
        %v2587 = vrcp.pop %v2586
        %v2588 = vmul.f32 1.0, %v2587
        %v2589 = vadd.f32 %v2374, %v2510
        %v2590 = vxor.u32 %v2589, 2147483648
        %v2591 = vmul.f32 %v2590, 1.442695
        %v2592 = vpow.pop %v2591
        %v2593 = vadd.f32 %v2592, 1.0
        %v2594 = vrcp.pop %v2593
        %v2595 = vmul.f32 1.0, %v2594
        %v2596 = vmul.f32 %v2588, %v2579
        %v2597 = vadd.f32 %v2375, %v2596
        %v2598 = vtanh.pop %v2597
        %v2599 = vsub.f32 1.0, %v2595
        %v2600 = vmul.f32 %v2599, %v2598
        %v2601 = vmul.f32 %v2595, %v2369
        %v2602 = vadd.f32 %v2600, %v2601
        %s2603 = sadd.s32 %s357, 7
        %v2604 = vstv %s2603
        %vm2605 = vcmp.lt.s32.totalorder %v2604, %v364
        %v2606 = vsel %vm2605, 1, 0
        %2607 = vset.pattern.permute.xlu0 0
        %2608 = vperm.xlu0 %2607, %v2606
        %v2609 = vpop.permute.xlu0 %2608
        %vm2610 = vcmp.eq.s32.totalorder %v2609, 1
        %v2611 = vsel %vm2610, %v2602, %v2369
        %s2612 = scalar_lea.vmem [#allocation2], 56
        %2613 = vst [vmem:[%s2612] sm:$0xff] %v2611
        %2614 = vst [vmem:[#allocation12] sm:$0xff] %v2611
        %v2615 = vld [vmem:[#allocation2] sm:$0xff]
        %v2616 = vld [vmem:[#allocation2 + $0x8] sm:$0xff]
        %v2617 = vld [vmem:[#allocation2 + $0x10] sm:$0xff]
        %v2618 = vld [vmem:[#allocation2 + $0x18] sm:$0xff]
        %v2619 = vld [vmem:[#allocation2 + $0x20] sm:$0xff]
        %v2620 = vld [vmem:[#allocation2 + $0x28] sm:$0xff]
        %v2621 = vld [vmem:[#allocation2 + $0x30] sm:$0xff]
        %v2622 = vld [vmem:[#allocation2 + $0x38] sm:$0xff]
        %v2623 = vld [vmem:[#allocation9] sm:$0xff]
        %v2624 = vld [vmem:[#allocation9 + $0x8] sm:$0xff]
        %v2625 = vld [vmem:[#allocation9 + $0x10] sm:$0xff]
        %v2626 = vld [vmem:[#allocation9 + $0x18] sm:$0xff]
        %v2627 = vld [vmem:[#allocation9 + $0x20] sm:$0xff]
        %v2628 = vld [vmem:[#allocation9 + $0x28] sm:$0xff]
        %v2629 = vld [vmem:[#allocation9 + $0x30] sm:$0xff]
        %v2630 = vld [vmem:[#allocation9 + $0x38] sm:$0xff]
        %v2631 = vld [vmem:[#allocation9 + $0x40] sm:$0xff]
        %v2632 = vld [vmem:[#allocation9 + $0x48] sm:$0xff]
        %v2633 = vld [vmem:[#allocation9 + $0x50] sm:$0xff]
        %v2634 = vld [vmem:[#allocation9 + $0x58] sm:$0xff]
        %v2635 = vld [vmem:[#allocation9 + $0x60] sm:$0xff]
        %v2636 = vld [vmem:[#allocation9 + $0x68] sm:$0xff]
        %v2637 = vld [vmem:[#allocation9 + $0x70] sm:$0xff]
        %v2638 = vld [vmem:[#allocation9 + $0x78] sm:$0xff]
        %v2639 = vld [vmem:[#allocation9 + $0x80] sm:$0xff]
        %v2640 = vld [vmem:[#allocation9 + $0x88] sm:$0xff]
        %v2641 = vld [vmem:[#allocation9 + $0x90] sm:$0xff]
        %v2642 = vld [vmem:[#allocation9 + $0x98] sm:$0xff]
        %v2643 = vld [vmem:[#allocation9 + $0xa0] sm:$0xff]
        %v2644 = vld [vmem:[#allocation9 + $0xa8] sm:$0xff]
        %v2645 = vld [vmem:[#allocation9 + $0xb0] sm:$0xff]
        %v2646 = vld [vmem:[#allocation9 + $0xb8] sm:$0xff]
        %v2647 = vld [vmem:[#allocation9 + $0xc0] sm:$0xff]
        %v2648 = vld [vmem:[#allocation9 + $0xc8] sm:$0xff]
        %v2649 = vld [vmem:[#allocation9 + $0xd0] sm:$0xff]
        %v2650 = vld [vmem:[#allocation9 + $0xd8] sm:$0xff]
        %v2651 = vld [vmem:[#allocation9 + $0xe0] sm:$0xff]
        %v2652 = vld [vmem:[#allocation9 + $0xe8] sm:$0xff]
        %v2653 = vld [vmem:[#allocation9 + $0xf0] sm:$0xff]
        %v2654 = vld [vmem:[#allocation9 + $0xf8] sm:$0xff]
        %v2655 = vld [vmem:[#allocation9 + $0x100] sm:$0xff]
        %v2656 = vld [vmem:[#allocation9 + $0x108] sm:$0xff]
        %v2657 = vld [vmem:[#allocation9 + $0x110] sm:$0xff]
        %v2658 = vld [vmem:[#allocation9 + $0x118] sm:$0xff]
        %v2659 = vld [vmem:[#allocation9 + $0x120] sm:$0xff]
        %v2660 = vld [vmem:[#allocation9 + $0x128] sm:$0xff]
        %v2661 = vld [vmem:[#allocation9 + $0x130] sm:$0xff]
        %v2662 = vld [vmem:[#allocation9 + $0x138] sm:$0xff]
        %v2663 = vld [vmem:[#allocation9 + $0x140] sm:$0xff]
        %v2664 = vld [vmem:[#allocation9 + $0x148] sm:$0xff]
        %v2665 = vld [vmem:[#allocation9 + $0x150] sm:$0xff]
        %v2666 = vld [vmem:[#allocation9 + $0x158] sm:$0xff]
        %v2667 = vld [vmem:[#allocation9 + $0x160] sm:$0xff]
        %v2668 = vld [vmem:[#allocation9 + $0x168] sm:$0xff]
        %v2669 = vld [vmem:[#allocation9 + $0x170] sm:$0xff]
        %v2670 = vld [vmem:[#allocation9 + $0x178] sm:$0xff]
        %v2671 = vld [vmem:[%s5] sm:$0x7]
        %v2673 = vlaneseq
        %v2674 = vshrl.u32 %v2673, 7
        %v2675 = vsub.s32 0, %v2674
        %v2676 = vrot.slane %v2671, %v2675
        %v2677 = vlaneseq
        %v2678 = vshrl.u32 %v2677, 7
        %v2679 = vsub.s32 1, %v2678
        %v2680 = vrot.slane %v2671, %v2679
        %v2681 = vlaneseq
        %v2682 = vshrl.u32 %v2681, 7
        %v2683 = vsub.s32 2, %v2682
        %v2684 = vrot.slane %v2671, %v2683
        %2688 = vmatprep.subr.mxu0 %v2624
        %2689 = vmatpush1.msra.mxu0 %v2623
        %2690 = vmatprep.subr.mxu0 %v2627
        %2691 = vmatpush1.msra.mxu0 %v2626
        %2692 = vmatprep.subr.mxu0 %v2630
        %2693 = vmatpush1.msra.mxu0 %v2629
        %2694 = vmatprep.subr.mxu0 %v2633
        %2695 = vmatpush1.msra.mxu0 %v2632
        %2696 = vmatprep.subr.mxu0 %v2636
        %2697 = vmatpush1.msra.mxu0 %v2635
        %2698 = vmatprep.subr.mxu0 %v2639
        %2699 = vmatpush1.msra.mxu0 %v2638
        %2700 = vmatprep.subr.mxu0 %v2642
        %2701 = vmatpush1.msra.mxu0 %v2641
        %2702 = vmatprep.subr.mxu0 %v2645
        %2703 = vmatpush1.msra.mxu0 %v2644
        %2704 = vmatprep.subr.mxu0 %v2648
        %2705 = vmatpush1.msra.mxu0 %v2647
        %2706 = vmatprep.subr.mxu0 %v2651
        %2707 = vmatpush1.msra.mxu0 %v2650
        %2708 = vmatprep.subr.mxu0 %v2654
        %2709 = vmatpush1.msra.mxu0 %v2653
        %2710 = vmatprep.subr.mxu0 %v2657
        %2711 = vmatpush1.msra.mxu0 %v2656
        %2712 = vmatprep.subr.mxu0 %v2660
        %2713 = vmatpush1.msra.mxu0 %v2659
        %2714 = vmatprep.subr.mxu0 %v2663
        %2715 = vmatpush1.msra.mxu0 %v2662
        %2716 = vmatprep.subr.mxu0 %v2666
        %2717 = vmatpush1.msra.mxu0 %v2665
        %2718 = vmatprep.subr.mxu0 %v2669
        %2719 = vmatpush1.msra.mxu0 %v2668
        %2720 = vmatprep.subr.mxu0 0.0
        %2721 = vmatpush1.msra.mxu0 0.0
        %2722 = vmatprep.subr.mxu0 0.0
        %2723 = vmatpush1.msra.mxu0 0.0
        %2724 = vmatprep.subr.mxu0 0.0
        %2725 = vmatpush1.msra.mxu0 0.0
        %2726 = vmatprep.subr.mxu0 0.0
        %2727 = vmatpush1.msra.mxu0 0.0
        %2728 = vmatprep.subr.mxu0 0.0
        %2729 = vmatpush1.msra.mxu0 0.0
        %2730 = vmatprep.subr.mxu0 0.0
        %2731 = vmatpush1.msra.mxu0 0.0
        %2732 = vmatprep.subr.mxu0 0.0
        %2733 = vmatpush1.msra.mxu0 0.0
        %2734 = vmatprep.subr.mxu0 0.0
        %2735 = vmatpush1.msra.mxu0 0.0
        %2736 = vmatprep.subr.mxu0 0.0
        %2737 = vmatpush1.msra.mxu0 0.0
        %2738 = vmatprep.subr.mxu0 0.0
        %2739 = vmatpush1.msra.mxu0 0.0
        %2740 = vmatprep.subr.mxu0 0.0
        %2741 = vmatpush1.msra.mxu0 0.0
        %2742 = vmatprep.subr.mxu0 0.0
        %2743 = vmatpush1.msra.mxu0 0.0
        %2744 = vmatprep.subr.mxu0 0.0
        %2745 = vmatpush1.msra.mxu0 0.0
        %2746 = vmatprep.subr.mxu0 0.0
        %2747 = vmatpush1.msra.mxu0 0.0
        %2748 = vmatprep.subr.mxu0 0.0
        %2749 = vmatpush1.msra.mxu0 0.0
        %2750 = vmatprep.subr.mxu0 0.0
        %2751 = vmatpush1.msra.mxu0 0.0
        %2752 = vmatprep.mubr.f32.mxu0 0.0
        %2753 = vmatmul.mubr.f32.gmra.mrb[0].mxu0 %v2615
        %v2754 = vpop.f32.mrb[0].mxu0
        %v2755 = vadd.f32 %v2676, %v2754
        %v2756 = vpop.f32.mrb[0].mxu0
        %v2757 = vadd.f32 %v2680, %v2756
        %2758 = vmatprep.mubr.f32.mxu0 0.0
        %2759 = vmatmul.mubr.f32.gmra.mrb[0].mxu0 %v2616
        %v2760 = vpop.f32.mrb[0].mxu0
        %v2761 = vadd.f32 %v2676, %v2760
        %v2762 = vpop.f32.mrb[0].mxu0
        %v2763 = vadd.f32 %v2680, %v2762
        %2764 = vmatprep.mubr.f32.mxu0 0.0
        %2765 = vmatmul.mubr.f32.gmra.mrb[0].mxu0 %v2617
        %v2766 = vpop.f32.mrb[0].mxu0
        %v2767 = vadd.f32 %v2676, %v2766
        %v2768 = vpop.f32.mrb[0].mxu0
        %v2769 = vadd.f32 %v2680, %v2768
        %2770 = vmatprep.mubr.f32.mxu0 0.0
        %2771 = vmatmul.mubr.f32.gmra.mrb[0].mxu0 %v2618
        %v2772 = vpop.f32.mrb[0].mxu0
        %v2773 = vadd.f32 %v2676, %v2772
        %v2774 = vpop.f32.mrb[0].mxu0
        %v2775 = vadd.f32 %v2680, %v2774
        %2776 = vmatprep.mubr.f32.mxu0 0.0
        %2777 = vmatmul.mubr.f32.gmra.mrb[0].mxu0 %v2619
        %v2778 = vpop.f32.mrb[0].mxu0
        %v2779 = vadd.f32 %v2676, %v2778
        %v2780 = vpop.f32.mrb[0].mxu0
        %v2781 = vadd.f32 %v2680, %v2780
        %2782 = vmatprep.mubr.f32.mxu0 0.0
        %2783 = vmatmul.mubr.f32.gmra.mrb[0].mxu0 %v2620
        %v2784 = vpop.f32.mrb[0].mxu0
        %v2785 = vadd.f32 %v2676, %v2784
        %v2786 = vpop.f32.mrb[0].mxu0
        %v2787 = vadd.f32 %v2680, %v2786
        %2788 = vmatprep.mubr.f32.mxu0 0.0
        %2789 = vmatmul.mubr.f32.gmra.mrb[0].mxu0 %v2621
        %v2790 = vpop.f32.mrb[0].mxu0
        %v2791 = vadd.f32 %v2676, %v2790
        %v2792 = vpop.f32.mrb[0].mxu0
        %v2793 = vadd.f32 %v2680, %v2792
        %2794 = vmatprep.mubr.f32.mxu0 0.0
        %2795 = vmatmul.mubr.f32.gmra.mrb[0].mxu0 %v2622
        %v2796 = vpop.f32.mrb[0].mxu0
        %v2797 = vadd.f32 %v2676, %v2796
        %v2798 = vpop.f32.mrb[0].mxu0
        %v2799 = vadd.f32 %v2680, %v2798
        %2800 = vdwg.mxu0
        %2801 = vmatprep.subr.mxu0 0.0
        %2802 = vmatpush1.msra.mxu0 %v2625
        %2803 = vmatprep.subr.mxu0 0.0
        %2804 = vmatpush1.msra.mxu0 %v2628
        %2805 = vmatprep.subr.mxu0 0.0
        %2806 = vmatpush1.msra.mxu0 %v2631
        %2807 = vmatprep.subr.mxu0 0.0
        %2808 = vmatpush1.msra.mxu0 %v2634
        %2809 = vmatprep.subr.mxu0 0.0
        %2810 = vmatpush1.msra.mxu0 %v2637
        %2811 = vmatprep.subr.mxu0 0.0
        %2812 = vmatpush1.msra.mxu0 %v2640
        %2813 = vmatprep.subr.mxu0 0.0
        %2814 = vmatpush1.msra.mxu0 %v2643
        %2815 = vmatprep.subr.mxu0 0.0
        %2816 = vmatpush1.msra.mxu0 %v2646
        %2817 = vmatprep.subr.mxu0 0.0
        %2818 = vmatpush1.msra.mxu0 %v2649
        %2819 = vmatprep.subr.mxu0 0.0
        %2820 = vmatpush1.msra.mxu0 %v2652
        %2821 = vmatprep.subr.mxu0 0.0
        %2822 = vmatpush1.msra.mxu0 %v2655
        %2823 = vmatprep.subr.mxu0 0.0
        %2824 = vmatpush1.msra.mxu0 %v2658
        %2825 = vmatprep.subr.mxu0 0.0
        %2826 = vmatpush1.msra.mxu0 %v2661
        %2827 = vmatprep.subr.mxu0 0.0
        %2828 = vmatpush1.msra.mxu0 %v2664
        %2829 = vmatprep.subr.mxu0 0.0
        %2830 = vmatpush1.msra.mxu0 %v2667
        %2831 = vmatprep.subr.mxu0 0.0
        %2832 = vmatpush1.msra.mxu0 %v2670
        %2833 = vmatprep.subr.mxu0 0.0
        %2834 = vmatpush1.msra.mxu0 0.0
        %2835 = vmatprep.subr.mxu0 0.0
        %2836 = vmatpush1.msra.mxu0 0.0
        %2837 = vmatprep.subr.mxu0 0.0
        %2838 = vmatpush1.msra.mxu0 0.0
        %2839 = vmatprep.subr.mxu0 0.0
        %2840 = vmatpush1.msra.mxu0 0.0
        %2841 = vmatprep.subr.mxu0 0.0
        %2842 = vmatpush1.msra.mxu0 0.0
        %2843 = vmatprep.subr.mxu0 0.0
        %2844 = vmatpush1.msra.mxu0 0.0
        %2845 = vmatprep.subr.mxu0 0.0
        %2846 = vmatpush1.msra.mxu0 0.0
        %2847 = vmatprep.subr.mxu0 0.0
        %2848 = vmatpush1.msra.mxu0 0.0
        %2849 = vmatprep.subr.mxu0 0.0
        %2850 = vmatpush1.msra.mxu0 0.0
        %2851 = vmatprep.subr.mxu0 0.0
        %2852 = vmatpush1.msra.mxu0 0.0
        %2853 = vmatprep.subr.mxu0 0.0
        %2854 = vmatpush1.msra.mxu0 0.0
        %2855 = vmatprep.subr.mxu0 0.0
        %2856 = vmatpush1.msra.mxu0 0.0
        %2857 = vmatprep.subr.mxu0 0.0
        %2858 = vmatpush1.msra.mxu0 0.0
        %2859 = vmatprep.subr.mxu0 0.0
        %2860 = vmatpush1.msra.mxu0 0.0
        %2861 = vmatprep.subr.mxu0 0.0
        %2862 = vmatpush1.msra.mxu0 0.0
        %2863 = vmatprep.subr.mxu0 0.0
        %2864 = vmatpush1.msra.mxu0 0.0
        %2865 = vmatprep.mubr.f32.mxu0 0.0
        %2866 = vmatmul.mubr.f32.gmra.mrb[0].mxu0 %v2615
        %v2867 = vpop.f32.mrb[0].mxu0
        %v2868 = vadd.f32 %v2684, %v2867
        %v2869 = vpop.f32.mrb[0].mxu0
        %2870 = vmatprep.mubr.f32.mxu0 0.0
        %2871 = vmatmul.mubr.f32.gmra.mrb[0].mxu0 %v2616
        %v2872 = vpop.f32.mrb[0].mxu0
        %v2873 = vadd.f32 %v2684, %v2872
        %v2874 = vpop.f32.mrb[0].mxu0
        %2875 = vmatprep.mubr.f32.mxu0 0.0
        %2876 = vmatmul.mubr.f32.gmra.mrb[0].mxu0 %v2617
        %v2877 = vpop.f32.mrb[0].mxu0
        %v2878 = vadd.f32 %v2684, %v2877
        %v2879 = vpop.f32.mrb[0].mxu0
        %2880 = vmatprep.mubr.f32.mxu0 0.0
        %2881 = vmatmul.mubr.f32.gmra.mrb[0].mxu0 %v2618
        %v2882 = vpop.f32.mrb[0].mxu0
        %v2883 = vadd.f32 %v2684, %v2882
        %v2884 = vpop.f32.mrb[0].mxu0
        %2885 = vmatprep.mubr.f32.mxu0 0.0
        %2886 = vmatmul.mubr.f32.gmra.mrb[0].mxu0 %v2619
        %v2887 = vpop.f32.mrb[0].mxu0
        %v2888 = vadd.f32 %v2684, %v2887
        %v2889 = vpop.f32.mrb[0].mxu0
        %2890 = vmatprep.mubr.f32.mxu0 0.0
        %2891 = vmatmul.mubr.f32.gmra.mrb[0].mxu0 %v2620
        %v2892 = vpop.f32.mrb[0].mxu0
        %v2893 = vadd.f32 %v2684, %v2892
        %v2894 = vpop.f32.mrb[0].mxu0
        %2895 = vmatprep.mubr.f32.mxu0 0.0
        %2896 = vmatmul.mubr.f32.gmra.mrb[0].mxu0 %v2621
        %v2897 = vpop.f32.mrb[0].mxu0
        %v2898 = vadd.f32 %v2684, %v2897
        %v2899 = vpop.f32.mrb[0].mxu0
        %2900 = vmatprep.mubr.f32.mxu0 0.0
        %2901 = vmatmul.mubr.f32.gmra.mrb[0].mxu0 %v2622
        %v2902 = vpop.f32.mrb[0].mxu0
        %v2903 = vadd.f32 %v2684, %v2902
        %v2904 = vpop.f32.mrb[0].mxu0
        %2905 = vdwg.mxu0
        %2906 = vst [vmem:[#allocation3] sm:$0xff] %v2755
        %2907 = vst [vmem:[#allocation3 + $0x8] sm:$0xff] %v2757
        %2908 = vst [vmem:[#allocation3 + $0x10] sm:$0xff] %v2868
        %2909 = vst [vmem:[#allocation3 + $0x18] sm:$0xff] %v2761
        %2910 = vst [vmem:[#allocation3 + $0x20] sm:$0xff] %v2763
        %2911 = vst [vmem:[#allocation3 + $0x28] sm:$0xff] %v2873
        %2912 = vst [vmem:[#allocation3 + $0x30] sm:$0xff] %v2767
        %2913 = vst [vmem:[#allocation3 + $0x38] sm:$0xff] %v2769
        %2914 = vst [vmem:[#allocation3 + $0x40] sm:$0xff] %v2878
        %2915 = vst [vmem:[#allocation3 + $0x48] sm:$0xff] %v2773
        %2916 = vst [vmem:[#allocation3 + $0x50] sm:$0xff] %v2775
        %2917 = vst [vmem:[#allocation3 + $0x58] sm:$0xff] %v2883
        %2918 = vst [vmem:[#allocation3 + $0x60] sm:$0xff] %v2779
        %2919 = vst [vmem:[#allocation3 + $0x68] sm:$0xff] %v2781
        %2920 = vst [vmem:[#allocation3 + $0x70] sm:$0xff] %v2888
        %2921 = vst [vmem:[#allocation3 + $0x78] sm:$0xff] %v2785
        %2922 = vst [vmem:[#allocation3 + $0x80] sm:$0xff] %v2787
        %2923 = vst [vmem:[#allocation3 + $0x88] sm:$0xff] %v2893
        %2924 = vst [vmem:[#allocation3 + $0x90] sm:$0xff] %v2791
        %2925 = vst [vmem:[#allocation3 + $0x98] sm:$0xff] %v2793
        %2926 = vst [vmem:[#allocation3 + $0xa0] sm:$0xff] %v2898
        %2927 = vst [vmem:[#allocation3 + $0xa8] sm:$0xff] %v2797
        %2928 = vst [vmem:[#allocation3 + $0xb0] sm:$0xff] %v2799
        %2929 = vst [vmem:[#allocation3 + $0xb8] sm:$0xff] %v2903
        %s2930 = scalar_lea.vmem [#allocation12], 8
        %v2931 = vld [vmem:[%s2930] sm:$0xff]
        %v2932 = vld [vmem:[#allocation3] sm:$0xff]
        %v2933 = vld [vmem:[#allocation3 + $0x8] sm:$0xff]
        %v2934 = vld [vmem:[#allocation3 + $0x10] sm:$0xff]
        %s2935 = scalar_lea.vmem [#allocation10], 384
        %v2936 = vld [vmem:[%s2935] sm:$0xff]
        %v2937 = vld [vmem:[%s2935 + $0x8] sm:$0xff]
        %v2938 = vld [vmem:[%s2935 + $0x10] sm:$0xff]
        %v2939 = vld [vmem:[%s2935 + $0x18] sm:$0xff]
        %v2940 = vld [vmem:[%s2935 + $0x20] sm:$0xff]
        %v2941 = vld [vmem:[%s2935 + $0x28] sm:$0xff]
        %v2942 = vld [vmem:[%s2935 + $0x30] sm:$0xff]
        %v2943 = vld [vmem:[%s2935 + $0x38] sm:$0xff]
        %v2944 = vld [vmem:[%s2935 + $0x40] sm:$0xff]
        %v2945 = vld [vmem:[%s2935 + $0x48] sm:$0xff]
        %v2946 = vld [vmem:[%s2935 + $0x50] sm:$0xff]
        %v2947 = vld [vmem:[%s2935 + $0x58] sm:$0xff]
        %v2948 = vld [vmem:[%s2935 + $0x60] sm:$0xff]
        %v2949 = vld [vmem:[%s2935 + $0x68] sm:$0xff]
        %v2950 = vld [vmem:[%s2935 + $0x70] sm:$0xff]
        %v2951 = vld [vmem:[%s2935 + $0x78] sm:$0xff]
        %v2952 = vld [vmem:[%s2935 + $0x80] sm:$0xff]
        %v2953 = vld [vmem:[%s2935 + $0x88] sm:$0xff]
        %v2954 = vld [vmem:[%s2935 + $0x90] sm:$0xff]
        %v2955 = vld [vmem:[%s2935 + $0x98] sm:$0xff]
        %v2956 = vld [vmem:[%s2935 + $0xa0] sm:$0xff]
        %v2957 = vld [vmem:[%s2935 + $0xa8] sm:$0xff]
        %v2958 = vld [vmem:[%s2935 + $0xb0] sm:$0xff]
        %v2959 = vld [vmem:[%s2935 + $0xb8] sm:$0xff]
        %v2960 = vld [vmem:[%s2935 + $0xc0] sm:$0xff]
        %v2961 = vld [vmem:[%s2935 + $0xc8] sm:$0xff]
        %v2962 = vld [vmem:[%s2935 + $0xd0] sm:$0xff]
        %v2963 = vld [vmem:[%s2935 + $0xd8] sm:$0xff]
        %v2964 = vld [vmem:[%s2935 + $0xe0] sm:$0xff]
        %v2965 = vld [vmem:[%s2935 + $0xe8] sm:$0xff]
        %v2966 = vld [vmem:[%s2935 + $0xf0] sm:$0xff]
        %v2967 = vld [vmem:[%s2935 + $0xf8] sm:$0xff]
        %v2968 = vld [vmem:[%s2935 + $0x100] sm:$0xff]
        %v2969 = vld [vmem:[%s2935 + $0x108] sm:$0xff]
        %v2970 = vld [vmem:[%s2935 + $0x110] sm:$0xff]
        %v2971 = vld [vmem:[%s2935 + $0x118] sm:$0xff]
        %v2972 = vld [vmem:[%s2935 + $0x120] sm:$0xff]
        %v2973 = vld [vmem:[%s2935 + $0x128] sm:$0xff]
        %v2974 = vld [vmem:[%s2935 + $0x130] sm:$0xff]
        %v2975 = vld [vmem:[%s2935 + $0x138] sm:$0xff]
        %v2976 = vld [vmem:[%s2935 + $0x140] sm:$0xff]
        %v2977 = vld [vmem:[%s2935 + $0x148] sm:$0xff]
        %v2978 = vld [vmem:[%s2935 + $0x150] sm:$0xff]
        %v2979 = vld [vmem:[%s2935 + $0x158] sm:$0xff]
        %v2980 = vld [vmem:[%s2935 + $0x160] sm:$0xff]
        %v2981 = vld [vmem:[%s2935 + $0x168] sm:$0xff]
        %v2982 = vld [vmem:[%s2935 + $0x170] sm:$0xff]
        %v2983 = vld [vmem:[%s2935 + $0x178] sm:$0xff]
        %s2984 = scalar_lea.vmem %s7, 3
        %v2985 = vld [vmem:[%s2984] sm:$0x7]
        %v2987 = vlaneseq
        %v2988 = vshrl.u32 %v2987, 7
        %v2989 = vsub.s32 0, %v2988
        %v2990 = vrot.slane %v2985, %v2989
        %v2991 = vlaneseq
        %v2992 = vshrl.u32 %v2991, 7
        %v2993 = vsub.s32 1, %v2992
        %v2994 = vrot.slane %v2985, %v2993
        %v2995 = vlaneseq
        %v2996 = vshrl.u32 %v2995, 7
        %v2997 = vsub.s32 2, %v2996
        %v2998 = vrot.slane %v2985, %v2997
        %3002 = vmatprep.subr.mxu0 %v2937
        %3003 = vmatpush1.msra.mxu0 %v2936
        %3004 = vmatprep.subr.mxu0 %v2940
        %3005 = vmatpush1.msra.mxu0 %v2939
        %3006 = vmatprep.subr.mxu0 %v2943
        %3007 = vmatpush1.msra.mxu0 %v2942
        %3008 = vmatprep.subr.mxu0 %v2946
        %3009 = vmatpush1.msra.mxu0 %v2945
        %3010 = vmatprep.subr.mxu0 %v2949
        %3011 = vmatpush1.msra.mxu0 %v2948
        %3012 = vmatprep.subr.mxu0 %v2952
        %3013 = vmatpush1.msra.mxu0 %v2951
        %3014 = vmatprep.subr.mxu0 %v2955
        %3015 = vmatpush1.msra.mxu0 %v2954
        %3016 = vmatprep.subr.mxu0 %v2958
        %3017 = vmatpush1.msra.mxu0 %v2957
        %3018 = vmatprep.subr.mxu0 %v2961
        %3019 = vmatpush1.msra.mxu0 %v2960
        %3020 = vmatprep.subr.mxu0 %v2964
        %3021 = vmatpush1.msra.mxu0 %v2963
        %3022 = vmatprep.subr.mxu0 %v2967
        %3023 = vmatpush1.msra.mxu0 %v2966
        %3024 = vmatprep.subr.mxu0 %v2970
        %3025 = vmatpush1.msra.mxu0 %v2969
        %3026 = vmatprep.subr.mxu0 %v2973
        %3027 = vmatpush1.msra.mxu0 %v2972
        %3028 = vmatprep.subr.mxu0 %v2976
        %3029 = vmatpush1.msra.mxu0 %v2975
        %3030 = vmatprep.subr.mxu0 %v2979
        %3031 = vmatpush1.msra.mxu0 %v2978
        %3032 = vmatprep.subr.mxu0 %v2982
        %3033 = vmatpush1.msra.mxu0 %v2981
        %3034 = vmatprep.subr.mxu0 0.0
        %3035 = vmatpush1.msra.mxu0 0.0
        %3036 = vmatprep.subr.mxu0 0.0
        %3037 = vmatpush1.msra.mxu0 0.0
        %3038 = vmatprep.subr.mxu0 0.0
        %3039 = vmatpush1.msra.mxu0 0.0
        %3040 = vmatprep.subr.mxu0 0.0
        %3041 = vmatpush1.msra.mxu0 0.0
        %3042 = vmatprep.subr.mxu0 0.0
        %3043 = vmatpush1.msra.mxu0 0.0
        %3044 = vmatprep.subr.mxu0 0.0
        %3045 = vmatpush1.msra.mxu0 0.0
        %3046 = vmatprep.subr.mxu0 0.0
        %3047 = vmatpush1.msra.mxu0 0.0
        %3048 = vmatprep.subr.mxu0 0.0
        %3049 = vmatpush1.msra.mxu0 0.0
        %3050 = vmatprep.subr.mxu0 0.0
        %3051 = vmatpush1.msra.mxu0 0.0
        %3052 = vmatprep.subr.mxu0 0.0
        %3053 = vmatpush1.msra.mxu0 0.0
        %3054 = vmatprep.subr.mxu0 0.0
        %3055 = vmatpush1.msra.mxu0 0.0
        %3056 = vmatprep.subr.mxu0 0.0
        %3057 = vmatpush1.msra.mxu0 0.0
        %3058 = vmatprep.subr.mxu0 0.0
        %3059 = vmatpush1.msra.mxu0 0.0
        %3060 = vmatprep.subr.mxu0 0.0
        %3061 = vmatpush1.msra.mxu0 0.0
        %3062 = vmatprep.subr.mxu0 0.0
        %3063 = vmatpush1.msra.mxu0 0.0
        %3064 = vmatprep.subr.mxu0 0.0
        %3065 = vmatpush1.msra.mxu0 0.0
        %3066 = vmatprep.mubr.f32.mxu0 0.0
        %3067 = vmatmul.mubr.f32.gmra.mrb[0].mxu0 %v2931
        %v3068 = vpop.f32.mrb[0].mxu0
        %v3069 = vadd.f32 %v2990, %v3068
        %v3070 = vpop.f32.mrb[0].mxu0
        %v3071 = vadd.f32 %v2994, %v3070
        %3072 = vdwg.mxu0
        %3073 = vmatprep.subr.mxu0 0.0
        %3074 = vmatpush1.msra.mxu0 %v2938
        %3075 = vmatprep.subr.mxu0 0.0
        %3076 = vmatpush1.msra.mxu0 %v2941
        %3077 = vmatprep.subr.mxu0 0.0
        %3078 = vmatpush1.msra.mxu0 %v2944
        %3079 = vmatprep.subr.mxu0 0.0
        %3080 = vmatpush1.msra.mxu0 %v2947
        %3081 = vmatprep.subr.mxu0 0.0
        %3082 = vmatpush1.msra.mxu0 %v2950
        %3083 = vmatprep.subr.mxu0 0.0
        %3084 = vmatpush1.msra.mxu0 %v2953
        %3085 = vmatprep.subr.mxu0 0.0
        %3086 = vmatpush1.msra.mxu0 %v2956
        %3087 = vmatprep.subr.mxu0 0.0
        %3088 = vmatpush1.msra.mxu0 %v2959
        %3089 = vmatprep.subr.mxu0 0.0
        %3090 = vmatpush1.msra.mxu0 %v2962
        %3091 = vmatprep.subr.mxu0 0.0
        %3092 = vmatpush1.msra.mxu0 %v2965
        %3093 = vmatprep.subr.mxu0 0.0
        %3094 = vmatpush1.msra.mxu0 %v2968
        %3095 = vmatprep.subr.mxu0 0.0
        %3096 = vmatpush1.msra.mxu0 %v2971
        %3097 = vmatprep.subr.mxu0 0.0
        %3098 = vmatpush1.msra.mxu0 %v2974
        %3099 = vmatprep.subr.mxu0 0.0
        %3100 = vmatpush1.msra.mxu0 %v2977
        %3101 = vmatprep.subr.mxu0 0.0
        %3102 = vmatpush1.msra.mxu0 %v2980
        %3103 = vmatprep.subr.mxu0 0.0
        %3104 = vmatpush1.msra.mxu0 %v2983
        %3105 = vmatprep.subr.mxu0 0.0
        %3106 = vmatpush1.msra.mxu0 0.0
        %3107 = vmatprep.subr.mxu0 0.0
        %3108 = vmatpush1.msra.mxu0 0.0
        %3109 = vmatprep.subr.mxu0 0.0
        %3110 = vmatpush1.msra.mxu0 0.0
        %3111 = vmatprep.subr.mxu0 0.0
        %3112 = vmatpush1.msra.mxu0 0.0
        %3113 = vmatprep.subr.mxu0 0.0
        %3114 = vmatpush1.msra.mxu0 0.0
        %3115 = vmatprep.subr.mxu0 0.0
        %3116 = vmatpush1.msra.mxu0 0.0
        %3117 = vmatprep.subr.mxu0 0.0
        %3118 = vmatpush1.msra.mxu0 0.0
        %3119 = vmatprep.subr.mxu0 0.0
        %3120 = vmatpush1.msra.mxu0 0.0
        %3121 = vmatprep.subr.mxu0 0.0
        %3122 = vmatpush1.msra.mxu0 0.0
        %3123 = vmatprep.subr.mxu0 0.0
        %3124 = vmatpush1.msra.mxu0 0.0
        %3125 = vmatprep.subr.mxu0 0.0
        %3126 = vmatpush1.msra.mxu0 0.0
        %3127 = vmatprep.subr.mxu0 0.0
        %3128 = vmatpush1.msra.mxu0 0.0
        %3129 = vmatprep.subr.mxu0 0.0
        %3130 = vmatpush1.msra.mxu0 0.0
        %3131 = vmatprep.subr.mxu0 0.0
        %3132 = vmatpush1.msra.mxu0 0.0
        %3133 = vmatprep.subr.mxu0 0.0
        %3134 = vmatpush1.msra.mxu0 0.0
        %3135 = vmatprep.subr.mxu0 0.0
        %3136 = vmatpush1.msra.mxu0 0.0
        %3137 = vmatprep.mubr.f32.mxu0 0.0
        %3138 = vmatmul.mubr.f32.gmra.mrb[0].mxu0 %v2931
        %v3139 = vpop.f32.mrb[0].mxu0
        %v3140 = vadd.f32 %v2998, %v3139
        %v3141 = vpop.f32.mrb[0].mxu0
        %3142 = vdwg.mxu0
        %v3143 = vadd.f32 %v2932, %v3069
        %v3144 = vxor.u32 %v3143, 2147483648
        %v3145 = vmul.f32 %v3144, 1.442695
        %v3146 = vpow.pop %v3145
        %v3147 = vadd.f32 %v3146, 1.0
        %v3148 = vrcp.pop %v3147
        %v3149 = vmul.f32 1.0, %v3148
        %v3150 = vadd.f32 %v2933, %v3071
        %v3151 = vxor.u32 %v3150, 2147483648
        %v3152 = vmul.f32 %v3151, 1.442695
        %v3153 = vpow.pop %v3152
        %v3154 = vadd.f32 %v3153, 1.0
        %v3155 = vrcp.pop %v3154
        %v3156 = vmul.f32 1.0, %v3155
        %v3157 = vmul.f32 %v3149, %v3140
        %v3158 = vadd.f32 %v2934, %v3157
        %v3159 = vtanh.pop %v3158
        %v3160 = vsub.f32 1.0, %v3156
        %v3161 = vmul.f32 %v3160, %v3159
        %v3162 = vmul.f32 %v3156, %v2931
        %v3163 = vadd.f32 %v3161, %v3162
        %v3164 = vsel %vm917, %v3163, %v2931
        %3165 = vst [vmem:[#allocation2] sm:$0xff] %v3164
        %v3166 = vld [vmem:[%s920] sm:$0xff]
        %v3167 = vld [vmem:[%s920 + $0x8] sm:$0xff]
        %v3168 = vld [vmem:[%s920 + $0x10] sm:$0xff]
        %v3169 = vld [vmem:[%s2935] sm:$0xff]
        %v3170 = vld [vmem:[%s2935 + $0x8] sm:$0xff]
        %v3171 = vld [vmem:[%s2935 + $0x10] sm:$0xff]
        %v3172 = vld [vmem:[%s2935 + $0x18] sm:$0xff]
        %v3173 = vld [vmem:[%s2935 + $0x20] sm:$0xff]
        %v3174 = vld [vmem:[%s2935 + $0x28] sm:$0xff]
        %v3175 = vld [vmem:[%s2935 + $0x30] sm:$0xff]
        %v3176 = vld [vmem:[%s2935 + $0x38] sm:$0xff]
        %v3177 = vld [vmem:[%s2935 + $0x40] sm:$0xff]
        %v3178 = vld [vmem:[%s2935 + $0x48] sm:$0xff]
        %v3179 = vld [vmem:[%s2935 + $0x50] sm:$0xff]
        %v3180 = vld [vmem:[%s2935 + $0x58] sm:$0xff]
        %v3181 = vld [vmem:[%s2935 + $0x60] sm:$0xff]
        %v3182 = vld [vmem:[%s2935 + $0x68] sm:$0xff]
        %v3183 = vld [vmem:[%s2935 + $0x70] sm:$0xff]
        %v3184 = vld [vmem:[%s2935 + $0x78] sm:$0xff]
        %v3185 = vld [vmem:[%s2935 + $0x80] sm:$0xff]
        %v3186 = vld [vmem:[%s2935 + $0x88] sm:$0xff]
        %v3187 = vld [vmem:[%s2935 + $0x90] sm:$0xff]
        %v3188 = vld [vmem:[%s2935 + $0x98] sm:$0xff]
        %v3189 = vld [vmem:[%s2935 + $0xa0] sm:$0xff]
        %v3190 = vld [vmem:[%s2935 + $0xa8] sm:$0xff]
        %v3191 = vld [vmem:[%s2935 + $0xb0] sm:$0xff]
        %v3192 = vld [vmem:[%s2935 + $0xb8] sm:$0xff]
        %v3193 = vld [vmem:[%s2935 + $0xc0] sm:$0xff]
        %v3194 = vld [vmem:[%s2935 + $0xc8] sm:$0xff]
        %v3195 = vld [vmem:[%s2935 + $0xd0] sm:$0xff]
        %v3196 = vld [vmem:[%s2935 + $0xd8] sm:$0xff]
        %v3197 = vld [vmem:[%s2935 + $0xe0] sm:$0xff]
        %v3198 = vld [vmem:[%s2935 + $0xe8] sm:$0xff]
        %v3199 = vld [vmem:[%s2935 + $0xf0] sm:$0xff]
        %v3200 = vld [vmem:[%s2935 + $0xf8] sm:$0xff]
        %v3201 = vld [vmem:[%s2935 + $0x100] sm:$0xff]
        %v3202 = vld [vmem:[%s2935 + $0x108] sm:$0xff]
        %v3203 = vld [vmem:[%s2935 + $0x110] sm:$0xff]
        %v3204 = vld [vmem:[%s2935 + $0x118] sm:$0xff]
        %v3205 = vld [vmem:[%s2935 + $0x120] sm:$0xff]
        %v3206 = vld [vmem:[%s2935 + $0x128] sm:$0xff]
        %v3207 = vld [vmem:[%s2935 + $0x130] sm:$0xff]
        %v3208 = vld [vmem:[%s2935 + $0x138] sm:$0xff]
        %v3209 = vld [vmem:[%s2935 + $0x140] sm:$0xff]
        %v3210 = vld [vmem:[%s2935 + $0x148] sm:$0xff]
        %v3211 = vld [vmem:[%s2935 + $0x150] sm:$0xff]
        %v3212 = vld [vmem:[%s2935 + $0x158] sm:$0xff]
        %v3213 = vld [vmem:[%s2935 + $0x160] sm:$0xff]
        %v3214 = vld [vmem:[%s2935 + $0x168] sm:$0xff]
        %v3215 = vld [vmem:[%s2935 + $0x170] sm:$0xff]
        %v3216 = vld [vmem:[%s2935 + $0x178] sm:$0xff]
        %v3217 = vld [vmem:[%s2984] sm:$0x7]
        %v3219 = vlaneseq
        %v3220 = vshrl.u32 %v3219, 7
        %v3221 = vsub.s32 0, %v3220
        %v3222 = vrot.slane %v3217, %v3221
        %v3223 = vlaneseq
        %v3224 = vshrl.u32 %v3223, 7
        %v3225 = vsub.s32 1, %v3224
        %v3226 = vrot.slane %v3217, %v3225
        %v3227 = vlaneseq
        %v3228 = vshrl.u32 %v3227, 7
        %v3229 = vsub.s32 2, %v3228
        %v3230 = vrot.slane %v3217, %v3229
        %3234 = vmatprep.subr.mxu0 %v3170
        %3235 = vmatpush1.msra.mxu0 %v3169
        %3236 = vmatprep.subr.mxu0 %v3173
        %3237 = vmatpush1.msra.mxu0 %v3172
        %3238 = vmatprep.subr.mxu0 %v3176
        %3239 = vmatpush1.msra.mxu0 %v3175
        %3240 = vmatprep.subr.mxu0 %v3179
        %3241 = vmatpush1.msra.mxu0 %v3178
        %3242 = vmatprep.subr.mxu0 %v3182
        %3243 = vmatpush1.msra.mxu0 %v3181
        %3244 = vmatprep.subr.mxu0 %v3185
        %3245 = vmatpush1.msra.mxu0 %v3184
        %3246 = vmatprep.subr.mxu0 %v3188
        %3247 = vmatpush1.msra.mxu0 %v3187
        %3248 = vmatprep.subr.mxu0 %v3191
        %3249 = vmatpush1.msra.mxu0 %v3190
        %3250 = vmatprep.subr.mxu0 %v3194
        %3251 = vmatpush1.msra.mxu0 %v3193
        %3252 = vmatprep.subr.mxu0 %v3197
        %3253 = vmatpush1.msra.mxu0 %v3196
        %3254 = vmatprep.subr.mxu0 %v3200
        %3255 = vmatpush1.msra.mxu0 %v3199
        %3256 = vmatprep.subr.mxu0 %v3203
        %3257 = vmatpush1.msra.mxu0 %v3202
        %3258 = vmatprep.subr.mxu0 %v3206
        %3259 = vmatpush1.msra.mxu0 %v3205
        %3260 = vmatprep.subr.mxu0 %v3209
        %3261 = vmatpush1.msra.mxu0 %v3208
        %3262 = vmatprep.subr.mxu0 %v3212
        %3263 = vmatpush1.msra.mxu0 %v3211
        %3264 = vmatprep.subr.mxu0 %v3215
        %3265 = vmatpush1.msra.mxu0 %v3214
        %3266 = vmatprep.subr.mxu0 0.0
        %3267 = vmatpush1.msra.mxu0 0.0
        %3268 = vmatprep.subr.mxu0 0.0
        %3269 = vmatpush1.msra.mxu0 0.0
        %3270 = vmatprep.subr.mxu0 0.0
        %3271 = vmatpush1.msra.mxu0 0.0
        %3272 = vmatprep.subr.mxu0 0.0
        %3273 = vmatpush1.msra.mxu0 0.0
        %3274 = vmatprep.subr.mxu0 0.0
        %3275 = vmatpush1.msra.mxu0 0.0
        %3276 = vmatprep.subr.mxu0 0.0
        %3277 = vmatpush1.msra.mxu0 0.0
        %3278 = vmatprep.subr.mxu0 0.0
        %3279 = vmatpush1.msra.mxu0 0.0
        %3280 = vmatprep.subr.mxu0 0.0
        %3281 = vmatpush1.msra.mxu0 0.0
        %3282 = vmatprep.subr.mxu0 0.0
        %3283 = vmatpush1.msra.mxu0 0.0
        %3284 = vmatprep.subr.mxu0 0.0
        %3285 = vmatpush1.msra.mxu0 0.0
        %3286 = vmatprep.subr.mxu0 0.0
        %3287 = vmatpush1.msra.mxu0 0.0
        %3288 = vmatprep.subr.mxu0 0.0
        %3289 = vmatpush1.msra.mxu0 0.0
        %3290 = vmatprep.subr.mxu0 0.0
        %3291 = vmatpush1.msra.mxu0 0.0
        %3292 = vmatprep.subr.mxu0 0.0
        %3293 = vmatpush1.msra.mxu0 0.0
        %3294 = vmatprep.subr.mxu0 0.0
        %3295 = vmatpush1.msra.mxu0 0.0
        %3296 = vmatprep.subr.mxu0 0.0
        %3297 = vmatpush1.msra.mxu0 0.0
        %3298 = vmatprep.mubr.f32.mxu0 0.0
        %3299 = vmatmul.mubr.f32.gmra.mrb[0].mxu0 %v3164
        %v3300 = vpop.f32.mrb[0].mxu0
        %v3301 = vadd.f32 %v3222, %v3300
        %v3302 = vpop.f32.mrb[0].mxu0
        %v3303 = vadd.f32 %v3226, %v3302
        %3304 = vdwg.mxu0
        %3305 = vmatprep.subr.mxu0 0.0
        %3306 = vmatpush1.msra.mxu0 %v3171
        %3307 = vmatprep.subr.mxu0 0.0
        %3308 = vmatpush1.msra.mxu0 %v3174
        %3309 = vmatprep.subr.mxu0 0.0
        %3310 = vmatpush1.msra.mxu0 %v3177
        %3311 = vmatprep.subr.mxu0 0.0
        %3312 = vmatpush1.msra.mxu0 %v3180
        %3313 = vmatprep.subr.mxu0 0.0
        %3314 = vmatpush1.msra.mxu0 %v3183
        %3315 = vmatprep.subr.mxu0 0.0
        %3316 = vmatpush1.msra.mxu0 %v3186
        %3317 = vmatprep.subr.mxu0 0.0
        %3318 = vmatpush1.msra.mxu0 %v3189
        %3319 = vmatprep.subr.mxu0 0.0
        %3320 = vmatpush1.msra.mxu0 %v3192
        %3321 = vmatprep.subr.mxu0 0.0
        %3322 = vmatpush1.msra.mxu0 %v3195
        %3323 = vmatprep.subr.mxu0 0.0
        %3324 = vmatpush1.msra.mxu0 %v3198
        %3325 = vmatprep.subr.mxu0 0.0
        %3326 = vmatpush1.msra.mxu0 %v3201
        %3327 = vmatprep.subr.mxu0 0.0
        %3328 = vmatpush1.msra.mxu0 %v3204
        %3329 = vmatprep.subr.mxu0 0.0
        %3330 = vmatpush1.msra.mxu0 %v3207
        %3331 = vmatprep.subr.mxu0 0.0
        %3332 = vmatpush1.msra.mxu0 %v3210
        %3333 = vmatprep.subr.mxu0 0.0
        %3334 = vmatpush1.msra.mxu0 %v3213
        %3335 = vmatprep.subr.mxu0 0.0
        %3336 = vmatpush1.msra.mxu0 %v3216
        %3337 = vmatprep.subr.mxu0 0.0
        %3338 = vmatpush1.msra.mxu0 0.0
        %3339 = vmatprep.subr.mxu0 0.0
        %3340 = vmatpush1.msra.mxu0 0.0
        %3341 = vmatprep.subr.mxu0 0.0
        %3342 = vmatpush1.msra.mxu0 0.0
        %3343 = vmatprep.subr.mxu0 0.0
        %3344 = vmatpush1.msra.mxu0 0.0
        %3345 = vmatprep.subr.mxu0 0.0
        %3346 = vmatpush1.msra.mxu0 0.0
        %3347 = vmatprep.subr.mxu0 0.0
        %3348 = vmatpush1.msra.mxu0 0.0
        %3349 = vmatprep.subr.mxu0 0.0
        %3350 = vmatpush1.msra.mxu0 0.0
        %3351 = vmatprep.subr.mxu0 0.0
        %3352 = vmatpush1.msra.mxu0 0.0
        %3353 = vmatprep.subr.mxu0 0.0
        %3354 = vmatpush1.msra.mxu0 0.0
        %3355 = vmatprep.subr.mxu0 0.0
        %3356 = vmatpush1.msra.mxu0 0.0
        %3357 = vmatprep.subr.mxu0 0.0
        %3358 = vmatpush1.msra.mxu0 0.0
        %3359 = vmatprep.subr.mxu0 0.0
        %3360 = vmatpush1.msra.mxu0 0.0
        %3361 = vmatprep.subr.mxu0 0.0
        %3362 = vmatpush1.msra.mxu0 0.0
        %3363 = vmatprep.subr.mxu0 0.0
        %3364 = vmatpush1.msra.mxu0 0.0
        %3365 = vmatprep.subr.mxu0 0.0
        %3366 = vmatpush1.msra.mxu0 0.0
        %3367 = vmatprep.subr.mxu0 0.0
        %3368 = vmatpush1.msra.mxu0 0.0
        %3369 = vmatprep.mubr.f32.mxu0 0.0
        %3370 = vmatmul.mubr.f32.gmra.mrb[0].mxu0 %v3164
        %v3371 = vpop.f32.mrb[0].mxu0
        %v3372 = vadd.f32 %v3230, %v3371
        %v3373 = vpop.f32.mrb[0].mxu0
        %3374 = vdwg.mxu0
        %v3375 = vadd.f32 %v3166, %v3301
        %v3376 = vxor.u32 %v3375, 2147483648
        %v3377 = vmul.f32 %v3376, 1.442695
        %v3378 = vpow.pop %v3377
        %v3379 = vadd.f32 %v3378, 1.0
        %v3380 = vrcp.pop %v3379
        %v3381 = vmul.f32 1.0, %v3380
        %v3382 = vadd.f32 %v3167, %v3303
        %v3383 = vxor.u32 %v3382, 2147483648
        %v3384 = vmul.f32 %v3383, 1.442695
        %v3385 = vpow.pop %v3384
        %v3386 = vadd.f32 %v3385, 1.0
        %v3387 = vrcp.pop %v3386
        %v3388 = vmul.f32 1.0, %v3387
        %v3389 = vmul.f32 %v3381, %v3372
        %v3390 = vadd.f32 %v3168, %v3389
        %v3391 = vtanh.pop %v3390
        %v3392 = vsub.f32 1.0, %v3388
        %v3393 = vmul.f32 %v3392, %v3391
        %v3394 = vmul.f32 %v3388, %v3164
        %v3395 = vadd.f32 %v3393, %v3394
        %v3396 = vsel %vm1158, %v3395, %v3164
        %3397 = vst [vmem:[%s1160] sm:$0xff] %v3396
        %v3398 = vld [vmem:[%s1162] sm:$0xff]
        %v3399 = vld [vmem:[%s1162 + $0x8] sm:$0xff]
        %v3400 = vld [vmem:[%s1162 + $0x10] sm:$0xff]
        %v3401 = vld [vmem:[%s2935] sm:$0xff]
        %v3402 = vld [vmem:[%s2935 + $0x8] sm:$0xff]
        %v3403 = vld [vmem:[%s2935 + $0x10] sm:$0xff]
        %v3404 = vld [vmem:[%s2935 + $0x18] sm:$0xff]
        %v3405 = vld [vmem:[%s2935 + $0x20] sm:$0xff]
        %v3406 = vld [vmem:[%s2935 + $0x28] sm:$0xff]
        %v3407 = vld [vmem:[%s2935 + $0x30] sm:$0xff]
        %v3408 = vld [vmem:[%s2935 + $0x38] sm:$0xff]
        %v3409 = vld [vmem:[%s2935 + $0x40] sm:$0xff]
        %v3410 = vld [vmem:[%s2935 + $0x48] sm:$0xff]
        %v3411 = vld [vmem:[%s2935 + $0x50] sm:$0xff]
        %v3412 = vld [vmem:[%s2935 + $0x58] sm:$0xff]
        %v3413 = vld [vmem:[%s2935 + $0x60] sm:$0xff]
        %v3414 = vld [vmem:[%s2935 + $0x68] sm:$0xff]
        %v3415 = vld [vmem:[%s2935 + $0x70] sm:$0xff]
        %v3416 = vld [vmem:[%s2935 + $0x78] sm:$0xff]
        %v3417 = vld [vmem:[%s2935 + $0x80] sm:$0xff]
        %v3418 = vld [vmem:[%s2935 + $0x88] sm:$0xff]
        %v3419 = vld [vmem:[%s2935 + $0x90] sm:$0xff]
        %v3420 = vld [vmem:[%s2935 + $0x98] sm:$0xff]
        %v3421 = vld [vmem:[%s2935 + $0xa0] sm:$0xff]
        %v3422 = vld [vmem:[%s2935 + $0xa8] sm:$0xff]
        %v3423 = vld [vmem:[%s2935 + $0xb0] sm:$0xff]
        %v3424 = vld [vmem:[%s2935 + $0xb8] sm:$0xff]
        %v3425 = vld [vmem:[%s2935 + $0xc0] sm:$0xff]
        %v3426 = vld [vmem:[%s2935 + $0xc8] sm:$0xff]
        %v3427 = vld [vmem:[%s2935 + $0xd0] sm:$0xff]
        %v3428 = vld [vmem:[%s2935 + $0xd8] sm:$0xff]
        %v3429 = vld [vmem:[%s2935 + $0xe0] sm:$0xff]
        %v3430 = vld [vmem:[%s2935 + $0xe8] sm:$0xff]
        %v3431 = vld [vmem:[%s2935 + $0xf0] sm:$0xff]
        %v3432 = vld [vmem:[%s2935 + $0xf8] sm:$0xff]
        %v3433 = vld [vmem:[%s2935 + $0x100] sm:$0xff]
        %v3434 = vld [vmem:[%s2935 + $0x108] sm:$0xff]
        %v3435 = vld [vmem:[%s2935 + $0x110] sm:$0xff]
        %v3436 = vld [vmem:[%s2935 + $0x118] sm:$0xff]
        %v3437 = vld [vmem:[%s2935 + $0x120] sm:$0xff]
        %v3438 = vld [vmem:[%s2935 + $0x128] sm:$0xff]
        %v3439 = vld [vmem:[%s2935 + $0x130] sm:$0xff]
        %v3440 = vld [vmem:[%s2935 + $0x138] sm:$0xff]
        %v3441 = vld [vmem:[%s2935 + $0x140] sm:$0xff]
        %v3442 = vld [vmem:[%s2935 + $0x148] sm:$0xff]
        %v3443 = vld [vmem:[%s2935 + $0x150] sm:$0xff]
        %v3444 = vld [vmem:[%s2935 + $0x158] sm:$0xff]
        %v3445 = vld [vmem:[%s2935 + $0x160] sm:$0xff]
        %v3446 = vld [vmem:[%s2935 + $0x168] sm:$0xff]
        %v3447 = vld [vmem:[%s2935 + $0x170] sm:$0xff]
        %v3448 = vld [vmem:[%s2935 + $0x178] sm:$0xff]
        %v3449 = vld [vmem:[%s2984] sm:$0x7]
        %v3451 = vlaneseq
        %v3452 = vshrl.u32 %v3451, 7
        %v3453 = vsub.s32 0, %v3452
        %v3454 = vrot.slane %v3449, %v3453
        %v3455 = vlaneseq
        %v3456 = vshrl.u32 %v3455, 7
        %v3457 = vsub.s32 1, %v3456
        %v3458 = vrot.slane %v3449, %v3457
        %v3459 = vlaneseq
        %v3460 = vshrl.u32 %v3459, 7
        %v3461 = vsub.s32 2, %v3460
        %v3462 = vrot.slane %v3449, %v3461
        %3466 = vmatprep.subr.mxu0 %v3402
        %3467 = vmatpush1.msra.mxu0 %v3401
        %3468 = vmatprep.subr.mxu0 %v3405
        %3469 = vmatpush1.msra.mxu0 %v3404
        %3470 = vmatprep.subr.mxu0 %v3408
        %3471 = vmatpush1.msra.mxu0 %v3407
        %3472 = vmatprep.subr.mxu0 %v3411
        %3473 = vmatpush1.msra.mxu0 %v3410
        %3474 = vmatprep.subr.mxu0 %v3414
        %3475 = vmatpush1.msra.mxu0 %v3413
        %3476 = vmatprep.subr.mxu0 %v3417
        %3477 = vmatpush1.msra.mxu0 %v3416
        %3478 = vmatprep.subr.mxu0 %v3420
        %3479 = vmatpush1.msra.mxu0 %v3419
        %3480 = vmatprep.subr.mxu0 %v3423
        %3481 = vmatpush1.msra.mxu0 %v3422
        %3482 = vmatprep.subr.mxu0 %v3426
        %3483 = vmatpush1.msra.mxu0 %v3425
        %3484 = vmatprep.subr.mxu0 %v3429
        %3485 = vmatpush1.msra.mxu0 %v3428
        %3486 = vmatprep.subr.mxu0 %v3432
        %3487 = vmatpush1.msra.mxu0 %v3431
        %3488 = vmatprep.subr.mxu0 %v3435
        %3489 = vmatpush1.msra.mxu0 %v3434
        %3490 = vmatprep.subr.mxu0 %v3438
        %3491 = vmatpush1.msra.mxu0 %v3437
        %3492 = vmatprep.subr.mxu0 %v3441
        %3493 = vmatpush1.msra.mxu0 %v3440
        %3494 = vmatprep.subr.mxu0 %v3444
        %3495 = vmatpush1.msra.mxu0 %v3443
        %3496 = vmatprep.subr.mxu0 %v3447
        %3497 = vmatpush1.msra.mxu0 %v3446
        %3498 = vmatprep.subr.mxu0 0.0
        %3499 = vmatpush1.msra.mxu0 0.0
        %3500 = vmatprep.subr.mxu0 0.0
        %3501 = vmatpush1.msra.mxu0 0.0
        %3502 = vmatprep.subr.mxu0 0.0
        %3503 = vmatpush1.msra.mxu0 0.0
        %3504 = vmatprep.subr.mxu0 0.0
        %3505 = vmatpush1.msra.mxu0 0.0
        %3506 = vmatprep.subr.mxu0 0.0
        %3507 = vmatpush1.msra.mxu0 0.0
        %3508 = vmatprep.subr.mxu0 0.0
        %3509 = vmatpush1.msra.mxu0 0.0
        %3510 = vmatprep.subr.mxu0 0.0
        %3511 = vmatpush1.msra.mxu0 0.0
        %3512 = vmatprep.subr.mxu0 0.0
        %3513 = vmatpush1.msra.mxu0 0.0
        %3514 = vmatprep.subr.mxu0 0.0
        %3515 = vmatpush1.msra.mxu0 0.0
        %3516 = vmatprep.subr.mxu0 0.0
        %3517 = vmatpush1.msra.mxu0 0.0
        %3518 = vmatprep.subr.mxu0 0.0
        %3519 = vmatpush1.msra.mxu0 0.0
        %3520 = vmatprep.subr.mxu0 0.0
        %3521 = vmatpush1.msra.mxu0 0.0
        %3522 = vmatprep.subr.mxu0 0.0
        %3523 = vmatpush1.msra.mxu0 0.0
        %3524 = vmatprep.subr.mxu0 0.0
        %3525 = vmatpush1.msra.mxu0 0.0
        %3526 = vmatprep.subr.mxu0 0.0
        %3527 = vmatpush1.msra.mxu0 0.0
        %3528 = vmatprep.subr.mxu0 0.0
        %3529 = vmatpush1.msra.mxu0 0.0
        %3530 = vmatprep.mubr.f32.mxu0 0.0
        %3531 = vmatmul.mubr.f32.gmra.mrb[0].mxu0 %v3396
        %v3532 = vpop.f32.mrb[0].mxu0
        %v3533 = vadd.f32 %v3454, %v3532
        %v3534 = vpop.f32.mrb[0].mxu0
        %v3535 = vadd.f32 %v3458, %v3534
        %3536 = vdwg.mxu0
        %3537 = vmatprep.subr.mxu0 0.0
        %3538 = vmatpush1.msra.mxu0 %v3403
        %3539 = vmatprep.subr.mxu0 0.0
        %3540 = vmatpush1.msra.mxu0 %v3406
        %3541 = vmatprep.subr.mxu0 0.0
        %3542 = vmatpush1.msra.mxu0 %v3409
        %3543 = vmatprep.subr.mxu0 0.0
        %3544 = vmatpush1.msra.mxu0 %v3412
        %3545 = vmatprep.subr.mxu0 0.0
        %3546 = vmatpush1.msra.mxu0 %v3415
        %3547 = vmatprep.subr.mxu0 0.0
        %3548 = vmatpush1.msra.mxu0 %v3418
        %3549 = vmatprep.subr.mxu0 0.0
        %3550 = vmatpush1.msra.mxu0 %v3421
        %3551 = vmatprep.subr.mxu0 0.0
        %3552 = vmatpush1.msra.mxu0 %v3424
        %3553 = vmatprep.subr.mxu0 0.0
        %3554 = vmatpush1.msra.mxu0 %v3427
        %3555 = vmatprep.subr.mxu0 0.0
        %3556 = vmatpush1.msra.mxu0 %v3430
        %3557 = vmatprep.subr.mxu0 0.0
        %3558 = vmatpush1.msra.mxu0 %v3433
        %3559 = vmatprep.subr.mxu0 0.0
        %3560 = vmatpush1.msra.mxu0 %v3436
        %3561 = vmatprep.subr.mxu0 0.0
        %3562 = vmatpush1.msra.mxu0 %v3439
        %3563 = vmatprep.subr.mxu0 0.0
        %3564 = vmatpush1.msra.mxu0 %v3442
        %3565 = vmatprep.subr.mxu0 0.0
        %3566 = vmatpush1.msra.mxu0 %v3445
        %3567 = vmatprep.subr.mxu0 0.0
        %3568 = vmatpush1.msra.mxu0 %v3448
        %3569 = vmatprep.subr.mxu0 0.0
        %3570 = vmatpush1.msra.mxu0 0.0
        %3571 = vmatprep.subr.mxu0 0.0
        %3572 = vmatpush1.msra.mxu0 0.0
        %3573 = vmatprep.subr.mxu0 0.0
        %3574 = vmatpush1.msra.mxu0 0.0
        %3575 = vmatprep.subr.mxu0 0.0
        %3576 = vmatpush1.msra.mxu0 0.0
        %3577 = vmatprep.subr.mxu0 0.0
        %3578 = vmatpush1.msra.mxu0 0.0
        %3579 = vmatprep.subr.mxu0 0.0
        %3580 = vmatpush1.msra.mxu0 0.0
        %3581 = vmatprep.subr.mxu0 0.0
        %3582 = vmatpush1.msra.mxu0 0.0
        %3583 = vmatprep.subr.mxu0 0.0
        %3584 = vmatpush1.msra.mxu0 0.0
        %3585 = vmatprep.subr.mxu0 0.0
        %3586 = vmatpush1.msra.mxu0 0.0
        %3587 = vmatprep.subr.mxu0 0.0
        %3588 = vmatpush1.msra.mxu0 0.0
        %3589 = vmatprep.subr.mxu0 0.0
        %3590 = vmatpush1.msra.mxu0 0.0
        %3591 = vmatprep.subr.mxu0 0.0
        %3592 = vmatpush1.msra.mxu0 0.0
        %3593 = vmatprep.subr.mxu0 0.0
        %3594 = vmatpush1.msra.mxu0 0.0
        %3595 = vmatprep.subr.mxu0 0.0
        %3596 = vmatpush1.msra.mxu0 0.0
        %3597 = vmatprep.subr.mxu0 0.0
        %3598 = vmatpush1.msra.mxu0 0.0
        %3599 = vmatprep.subr.mxu0 0.0
        %3600 = vmatpush1.msra.mxu0 0.0
        %3601 = vmatprep.mubr.f32.mxu0 0.0
        %3602 = vmatmul.mubr.f32.gmra.mrb[0].mxu0 %v3396
        %v3603 = vpop.f32.mrb[0].mxu0
        %v3604 = vadd.f32 %v3462, %v3603
        %v3605 = vpop.f32.mrb[0].mxu0
        %3606 = vdwg.mxu0
        %v3607 = vadd.f32 %v3398, %v3533
        %v3608 = vxor.u32 %v3607, 2147483648
        %v3609 = vmul.f32 %v3608, 1.442695
        %v3610 = vpow.pop %v3609
        %v3611 = vadd.f32 %v3610, 1.0
        %v3612 = vrcp.pop %v3611
        %v3613 = vmul.f32 1.0, %v3612
        %v3614 = vadd.f32 %v3399, %v3535
        %v3615 = vxor.u32 %v3614, 2147483648
        %v3616 = vmul.f32 %v3615, 1.442695
        %v3617 = vpow.pop %v3616
        %v3618 = vadd.f32 %v3617, 1.0
        %v3619 = vrcp.pop %v3618
        %v3620 = vmul.f32 1.0, %v3619
        %v3621 = vmul.f32 %v3613, %v3604
        %v3622 = vadd.f32 %v3400, %v3621
        %v3623 = vtanh.pop %v3622
        %v3624 = vsub.f32 1.0, %v3620
        %v3625 = vmul.f32 %v3624, %v3623
        %v3626 = vmul.f32 %v3620, %v3396
        %v3627 = vadd.f32 %v3625, %v3626
        %v3628 = vsel %vm1400, %v3627, %v3396
        %3629 = vst [vmem:[%s1402] sm:$0xff] %v3628
        %v3630 = vld [vmem:[%s1404] sm:$0xff]
        %v3631 = vld [vmem:[%s1404 + $0x8] sm:$0xff]
        %v3632 = vld [vmem:[%s1404 + $0x10] sm:$0xff]
        %v3633 = vld [vmem:[%s2935] sm:$0xff]
        %v3634 = vld [vmem:[%s2935 + $0x8] sm:$0xff]
        %v3635 = vld [vmem:[%s2935 + $0x10] sm:$0xff]
        %v3636 = vld [vmem:[%s2935 + $0x18] sm:$0xff]
        %v3637 = vld [vmem:[%s2935 + $0x20] sm:$0xff]
        %v3638 = vld [vmem:[%s2935 + $0x28] sm:$0xff]
        %v3639 = vld [vmem:[%s2935 + $0x30] sm:$0xff]
        %v3640 = vld [vmem:[%s2935 + $0x38] sm:$0xff]
        %v3641 = vld [vmem:[%s2935 + $0x40] sm:$0xff]
        %v3642 = vld [vmem:[%s2935 + $0x48] sm:$0xff]
        %v3643 = vld [vmem:[%s2935 + $0x50] sm:$0xff]
        %v3644 = vld [vmem:[%s2935 + $0x58] sm:$0xff]
        %v3645 = vld [vmem:[%s2935 + $0x60] sm:$0xff]
        %v3646 = vld [vmem:[%s2935 + $0x68] sm:$0xff]
        %v3647 = vld [vmem:[%s2935 + $0x70] sm:$0xff]
        %v3648 = vld [vmem:[%s2935 + $0x78] sm:$0xff]
        %v3649 = vld [vmem:[%s2935 + $0x80] sm:$0xff]
        %v3650 = vld [vmem:[%s2935 + $0x88] sm:$0xff]
        %v3651 = vld [vmem:[%s2935 + $0x90] sm:$0xff]
        %v3652 = vld [vmem:[%s2935 + $0x98] sm:$0xff]
        %v3653 = vld [vmem:[%s2935 + $0xa0] sm:$0xff]
        %v3654 = vld [vmem:[%s2935 + $0xa8] sm:$0xff]
        %v3655 = vld [vmem:[%s2935 + $0xb0] sm:$0xff]
        %v3656 = vld [vmem:[%s2935 + $0xb8] sm:$0xff]
        %v3657 = vld [vmem:[%s2935 + $0xc0] sm:$0xff]
        %v3658 = vld [vmem:[%s2935 + $0xc8] sm:$0xff]
        %v3659 = vld [vmem:[%s2935 + $0xd0] sm:$0xff]
        %v3660 = vld [vmem:[%s2935 + $0xd8] sm:$0xff]
        %v3661 = vld [vmem:[%s2935 + $0xe0] sm:$0xff]
        %v3662 = vld [vmem:[%s2935 + $0xe8] sm:$0xff]
        %v3663 = vld [vmem:[%s2935 + $0xf0] sm:$0xff]
        %v3664 = vld [vmem:[%s2935 + $0xf8] sm:$0xff]
        %v3665 = vld [vmem:[%s2935 + $0x100] sm:$0xff]
        %v3666 = vld [vmem:[%s2935 + $0x108] sm:$0xff]
        %v3667 = vld [vmem:[%s2935 + $0x110] sm:$0xff]
        %v3668 = vld [vmem:[%s2935 + $0x118] sm:$0xff]
        %v3669 = vld [vmem:[%s2935 + $0x120] sm:$0xff]
        %v3670 = vld [vmem:[%s2935 + $0x128] sm:$0xff]
        %v3671 = vld [vmem:[%s2935 + $0x130] sm:$0xff]
        %v3672 = vld [vmem:[%s2935 + $0x138] sm:$0xff]
        %v3673 = vld [vmem:[%s2935 + $0x140] sm:$0xff]
        %v3674 = vld [vmem:[%s2935 + $0x148] sm:$0xff]
        %v3675 = vld [vmem:[%s2935 + $0x150] sm:$0xff]
        %v3676 = vld [vmem:[%s2935 + $0x158] sm:$0xff]
        %v3677 = vld [vmem:[%s2935 + $0x160] sm:$0xff]
        %v3678 = vld [vmem:[%s2935 + $0x168] sm:$0xff]
        %v3679 = vld [vmem:[%s2935 + $0x170] sm:$0xff]
        %v3680 = vld [vmem:[%s2935 + $0x178] sm:$0xff]
        %v3681 = vld [vmem:[%s2984] sm:$0x7]
        %v3683 = vlaneseq
        %v3684 = vshrl.u32 %v3683, 7
        %v3685 = vsub.s32 0, %v3684
        %v3686 = vrot.slane %v3681, %v3685
        %v3687 = vlaneseq
        %v3688 = vshrl.u32 %v3687, 7
        %v3689 = vsub.s32 1, %v3688
        %v3690 = vrot.slane %v3681, %v3689
        %v3691 = vlaneseq
        %v3692 = vshrl.u32 %v3691, 7
        %v3693 = vsub.s32 2, %v3692
        %v3694 = vrot.slane %v3681, %v3693
        %3698 = vmatprep.subr.mxu0 %v3634
        %3699 = vmatpush1.msra.mxu0 %v3633
        %3700 = vmatprep.subr.mxu0 %v3637
        %3701 = vmatpush1.msra.mxu0 %v3636
        %3702 = vmatprep.subr.mxu0 %v3640
        %3703 = vmatpush1.msra.mxu0 %v3639
        %3704 = vmatprep.subr.mxu0 %v3643
        %3705 = vmatpush1.msra.mxu0 %v3642
        %3706 = vmatprep.subr.mxu0 %v3646
        %3707 = vmatpush1.msra.mxu0 %v3645
        %3708 = vmatprep.subr.mxu0 %v3649
        %3709 = vmatpush1.msra.mxu0 %v3648
        %3710 = vmatprep.subr.mxu0 %v3652
        %3711 = vmatpush1.msra.mxu0 %v3651
        %3712 = vmatprep.subr.mxu0 %v3655
        %3713 = vmatpush1.msra.mxu0 %v3654
        %3714 = vmatprep.subr.mxu0 %v3658
        %3715 = vmatpush1.msra.mxu0 %v3657
        %3716 = vmatprep.subr.mxu0 %v3661
        %3717 = vmatpush1.msra.mxu0 %v3660
        %3718 = vmatprep.subr.mxu0 %v3664
        %3719 = vmatpush1.msra.mxu0 %v3663
        %3720 = vmatprep.subr.mxu0 %v3667
        %3721 = vmatpush1.msra.mxu0 %v3666
        %3722 = vmatprep.subr.mxu0 %v3670
        %3723 = vmatpush1.msra.mxu0 %v3669
        %3724 = vmatprep.subr.mxu0 %v3673
        %3725 = vmatpush1.msra.mxu0 %v3672
        %3726 = vmatprep.subr.mxu0 %v3676
        %3727 = vmatpush1.msra.mxu0 %v3675
        %3728 = vmatprep.subr.mxu0 %v3679
        %3729 = vmatpush1.msra.mxu0 %v3678
        %3730 = vmatprep.subr.mxu0 0.0
        %3731 = vmatpush1.msra.mxu0 0.0
        %3732 = vmatprep.subr.mxu0 0.0
        %3733 = vmatpush1.msra.mxu0 0.0
        %3734 = vmatprep.subr.mxu0 0.0
        %3735 = vmatpush1.msra.mxu0 0.0
        %3736 = vmatprep.subr.mxu0 0.0
        %3737 = vmatpush1.msra.mxu0 0.0
        %3738 = vmatprep.subr.mxu0 0.0
        %3739 = vmatpush1.msra.mxu0 0.0
        %3740 = vmatprep.subr.mxu0 0.0
        %3741 = vmatpush1.msra.mxu0 0.0
        %3742 = vmatprep.subr.mxu0 0.0
        %3743 = vmatpush1.msra.mxu0 0.0
        %3744 = vmatprep.subr.mxu0 0.0
        %3745 = vmatpush1.msra.mxu0 0.0
        %3746 = vmatprep.subr.mxu0 0.0
        %3747 = vmatpush1.msra.mxu0 0.0
        %3748 = vmatprep.subr.mxu0 0.0
        %3749 = vmatpush1.msra.mxu0 0.0
        %3750 = vmatprep.subr.mxu0 0.0
        %3751 = vmatpush1.msra.mxu0 0.0
        %3752 = vmatprep.subr.mxu0 0.0
        %3753 = vmatpush1.msra.mxu0 0.0
        %3754 = vmatprep.subr.mxu0 0.0
        %3755 = vmatpush1.msra.mxu0 0.0
        %3756 = vmatprep.subr.mxu0 0.0
        %3757 = vmatpush1.msra.mxu0 0.0
        %3758 = vmatprep.subr.mxu0 0.0
        %3759 = vmatpush1.msra.mxu0 0.0
        %3760 = vmatprep.subr.mxu0 0.0
        %3761 = vmatpush1.msra.mxu0 0.0
        %3762 = vmatprep.mubr.f32.mxu0 0.0
        %3763 = vmatmul.mubr.f32.gmra.mrb[0].mxu0 %v3628
        %v3764 = vpop.f32.mrb[0].mxu0
        %v3765 = vadd.f32 %v3686, %v3764
        %v3766 = vpop.f32.mrb[0].mxu0
        %v3767 = vadd.f32 %v3690, %v3766
        %3768 = vdwg.mxu0
        %3769 = vmatprep.subr.mxu0 0.0
        %3770 = vmatpush1.msra.mxu0 %v3635
        %3771 = vmatprep.subr.mxu0 0.0
        %3772 = vmatpush1.msra.mxu0 %v3638
        %3773 = vmatprep.subr.mxu0 0.0
        %3774 = vmatpush1.msra.mxu0 %v3641
        %3775 = vmatprep.subr.mxu0 0.0
        %3776 = vmatpush1.msra.mxu0 %v3644
        %3777 = vmatprep.subr.mxu0 0.0
        %3778 = vmatpush1.msra.mxu0 %v3647
        %3779 = vmatprep.subr.mxu0 0.0
        %3780 = vmatpush1.msra.mxu0 %v3650
        %3781 = vmatprep.subr.mxu0 0.0
        %3782 = vmatpush1.msra.mxu0 %v3653
        %3783 = vmatprep.subr.mxu0 0.0
        %3784 = vmatpush1.msra.mxu0 %v3656
        %3785 = vmatprep.subr.mxu0 0.0
        %3786 = vmatpush1.msra.mxu0 %v3659
        %3787 = vmatprep.subr.mxu0 0.0
        %3788 = vmatpush1.msra.mxu0 %v3662
        %3789 = vmatprep.subr.mxu0 0.0
        %3790 = vmatpush1.msra.mxu0 %v3665
        %3791 = vmatprep.subr.mxu0 0.0
        %3792 = vmatpush1.msra.mxu0 %v3668
        %3793 = vmatprep.subr.mxu0 0.0
        %3794 = vmatpush1.msra.mxu0 %v3671
        %3795 = vmatprep.subr.mxu0 0.0
        %3796 = vmatpush1.msra.mxu0 %v3674
        %3797 = vmatprep.subr.mxu0 0.0
        %3798 = vmatpush1.msra.mxu0 %v3677
        %3799 = vmatprep.subr.mxu0 0.0
        %3800 = vmatpush1.msra.mxu0 %v3680
        %3801 = vmatprep.subr.mxu0 0.0
        %3802 = vmatpush1.msra.mxu0 0.0
        %3803 = vmatprep.subr.mxu0 0.0
        %3804 = vmatpush1.msra.mxu0 0.0
        %3805 = vmatprep.subr.mxu0 0.0
        %3806 = vmatpush1.msra.mxu0 0.0
        %3807 = vmatprep.subr.mxu0 0.0
        %3808 = vmatpush1.msra.mxu0 0.0
        %3809 = vmatprep.subr.mxu0 0.0
        %3810 = vmatpush1.msra.mxu0 0.0
        %3811 = vmatprep.subr.mxu0 0.0
        %3812 = vmatpush1.msra.mxu0 0.0
        %3813 = vmatprep.subr.mxu0 0.0
        %3814 = vmatpush1.msra.mxu0 0.0
        %3815 = vmatprep.subr.mxu0 0.0
        %3816 = vmatpush1.msra.mxu0 0.0
        %3817 = vmatprep.subr.mxu0 0.0
        %3818 = vmatpush1.msra.mxu0 0.0
        %3819 = vmatprep.subr.mxu0 0.0
        %3820 = vmatpush1.msra.mxu0 0.0
        %3821 = vmatprep.subr.mxu0 0.0
        %3822 = vmatpush1.msra.mxu0 0.0
        %3823 = vmatprep.subr.mxu0 0.0
        %3824 = vmatpush1.msra.mxu0 0.0
        %3825 = vmatprep.subr.mxu0 0.0
        %3826 = vmatpush1.msra.mxu0 0.0
        %3827 = vmatprep.subr.mxu0 0.0
        %3828 = vmatpush1.msra.mxu0 0.0
        %3829 = vmatprep.subr.mxu0 0.0
        %3830 = vmatpush1.msra.mxu0 0.0
        %3831 = vmatprep.subr.mxu0 0.0
        %3832 = vmatpush1.msra.mxu0 0.0
        %3833 = vmatprep.mubr.f32.mxu0 0.0
        %3834 = vmatmul.mubr.f32.gmra.mrb[0].mxu0 %v3628
        %v3835 = vpop.f32.mrb[0].mxu0
        %v3836 = vadd.f32 %v3694, %v3835
        %v3837 = vpop.f32.mrb[0].mxu0
        %3838 = vdwg.mxu0
        %v3839 = vadd.f32 %v3630, %v3765
        %v3840 = vxor.u32 %v3839, 2147483648
        %v3841 = vmul.f32 %v3840, 1.442695
        %v3842 = vpow.pop %v3841
        %v3843 = vadd.f32 %v3842, 1.0
        %v3844 = vrcp.pop %v3843
        %v3845 = vmul.f32 1.0, %v3844
        %v3846 = vadd.f32 %v3631, %v3767
        %v3847 = vxor.u32 %v3846, 2147483648
        %v3848 = vmul.f32 %v3847, 1.442695
        %v3849 = vpow.pop %v3848
        %v3850 = vadd.f32 %v3849, 1.0
        %v3851 = vrcp.pop %v3850
        %v3852 = vmul.f32 1.0, %v3851
        %v3853 = vmul.f32 %v3845, %v3836
        %v3854 = vadd.f32 %v3632, %v3853
        %v3855 = vtanh.pop %v3854
        %v3856 = vsub.f32 1.0, %v3852
        %v3857 = vmul.f32 %v3856, %v3855
        %v3858 = vmul.f32 %v3852, %v3628
        %v3859 = vadd.f32 %v3857, %v3858
        %v3860 = vsel %vm1642, %v3859, %v3628
        %3861 = vst [vmem:[%s1644] sm:$0xff] %v3860
        %v3862 = vld [vmem:[%s1646] sm:$0xff]
        %v3863 = vld [vmem:[%s1646 + $0x8] sm:$0xff]
        %v3864 = vld [vmem:[%s1646 + $0x10] sm:$0xff]
        %v3865 = vld [vmem:[%s2935] sm:$0xff]
        %v3866 = vld [vmem:[%s2935 + $0x8] sm:$0xff]
        %v3867 = vld [vmem:[%s2935 + $0x10] sm:$0xff]
        %v3868 = vld [vmem:[%s2935 + $0x18] sm:$0xff]
        %v3869 = vld [vmem:[%s2935 + $0x20] sm:$0xff]
        %v3870 = vld [vmem:[%s2935 + $0x28] sm:$0xff]
        %v3871 = vld [vmem:[%s2935 + $0x30] sm:$0xff]
        %v3872 = vld [vmem:[%s2935 + $0x38] sm:$0xff]
        %v3873 = vld [vmem:[%s2935 + $0x40] sm:$0xff]
        %v3874 = vld [vmem:[%s2935 + $0x48] sm:$0xff]
        %v3875 = vld [vmem:[%s2935 + $0x50] sm:$0xff]
        %v3876 = vld [vmem:[%s2935 + $0x58] sm:$0xff]
        %v3877 = vld [vmem:[%s2935 + $0x60] sm:$0xff]
        %v3878 = vld [vmem:[%s2935 + $0x68] sm:$0xff]
        %v3879 = vld [vmem:[%s2935 + $0x70] sm:$0xff]
        %v3880 = vld [vmem:[%s2935 + $0x78] sm:$0xff]
        %v3881 = vld [vmem:[%s2935 + $0x80] sm:$0xff]
        %v3882 = vld [vmem:[%s2935 + $0x88] sm:$0xff]
        %v3883 = vld [vmem:[%s2935 + $0x90] sm:$0xff]
        %v3884 = vld [vmem:[%s2935 + $0x98] sm:$0xff]
        %v3885 = vld [vmem:[%s2935 + $0xa0] sm:$0xff]
        %v3886 = vld [vmem:[%s2935 + $0xa8] sm:$0xff]
        %v3887 = vld [vmem:[%s2935 + $0xb0] sm:$0xff]
        %v3888 = vld [vmem:[%s2935 + $0xb8] sm:$0xff]
        %v3889 = vld [vmem:[%s2935 + $0xc0] sm:$0xff]
        %v3890 = vld [vmem:[%s2935 + $0xc8] sm:$0xff]
        %v3891 = vld [vmem:[%s2935 + $0xd0] sm:$0xff]
        %v3892 = vld [vmem:[%s2935 + $0xd8] sm:$0xff]
        %v3893 = vld [vmem:[%s2935 + $0xe0] sm:$0xff]
        %v3894 = vld [vmem:[%s2935 + $0xe8] sm:$0xff]
        %v3895 = vld [vmem:[%s2935 + $0xf0] sm:$0xff]
        %v3896 = vld [vmem:[%s2935 + $0xf8] sm:$0xff]
        %v3897 = vld [vmem:[%s2935 + $0x100] sm:$0xff]
        %v3898 = vld [vmem:[%s2935 + $0x108] sm:$0xff]
        %v3899 = vld [vmem:[%s2935 + $0x110] sm:$0xff]
        %v3900 = vld [vmem:[%s2935 + $0x118] sm:$0xff]
        %v3901 = vld [vmem:[%s2935 + $0x120] sm:$0xff]
        %v3902 = vld [vmem:[%s2935 + $0x128] sm:$0xff]
        %v3903 = vld [vmem:[%s2935 + $0x130] sm:$0xff]
        %v3904 = vld [vmem:[%s2935 + $0x138] sm:$0xff]
        %v3905 = vld [vmem:[%s2935 + $0x140] sm:$0xff]
        %v3906 = vld [vmem:[%s2935 + $0x148] sm:$0xff]
        %v3907 = vld [vmem:[%s2935 + $0x150] sm:$0xff]
        %v3908 = vld [vmem:[%s2935 + $0x158] sm:$0xff]
        %v3909 = vld [vmem:[%s2935 + $0x160] sm:$0xff]
        %v3910 = vld [vmem:[%s2935 + $0x168] sm:$0xff]
        %v3911 = vld [vmem:[%s2935 + $0x170] sm:$0xff]
        %v3912 = vld [vmem:[%s2935 + $0x178] sm:$0xff]
        %v3913 = vld [vmem:[%s2984] sm:$0x7]
        %v3915 = vlaneseq
        %v3916 = vshrl.u32 %v3915, 7
        %v3917 = vsub.s32 0, %v3916
        %v3918 = vrot.slane %v3913, %v3917
        %v3919 = vlaneseq
        %v3920 = vshrl.u32 %v3919, 7
        %v3921 = vsub.s32 1, %v3920
        %v3922 = vrot.slane %v3913, %v3921
        %v3923 = vlaneseq
        %v3924 = vshrl.u32 %v3923, 7
        %v3925 = vsub.s32 2, %v3924
        %v3926 = vrot.slane %v3913, %v3925
        %3930 = vmatprep.subr.mxu0 %v3866
        %3931 = vmatpush1.msra.mxu0 %v3865
        %3932 = vmatprep.subr.mxu0 %v3869
        %3933 = vmatpush1.msra.mxu0 %v3868
        %3934 = vmatprep.subr.mxu0 %v3872
        %3935 = vmatpush1.msra.mxu0 %v3871
        %3936 = vmatprep.subr.mxu0 %v3875
        %3937 = vmatpush1.msra.mxu0 %v3874
        %3938 = vmatprep.subr.mxu0 %v3878
        %3939 = vmatpush1.msra.mxu0 %v3877
        %3940 = vmatprep.subr.mxu0 %v3881
        %3941 = vmatpush1.msra.mxu0 %v3880
        %3942 = vmatprep.subr.mxu0 %v3884
        %3943 = vmatpush1.msra.mxu0 %v3883
        %3944 = vmatprep.subr.mxu0 %v3887
        %3945 = vmatpush1.msra.mxu0 %v3886
        %3946 = vmatprep.subr.mxu0 %v3890
        %3947 = vmatpush1.msra.mxu0 %v3889
        %3948 = vmatprep.subr.mxu0 %v3893
        %3949 = vmatpush1.msra.mxu0 %v3892
        %3950 = vmatprep.subr.mxu0 %v3896
        %3951 = vmatpush1.msra.mxu0 %v3895
        %3952 = vmatprep.subr.mxu0 %v3899
        %3953 = vmatpush1.msra.mxu0 %v3898
        %3954 = vmatprep.subr.mxu0 %v3902
        %3955 = vmatpush1.msra.mxu0 %v3901
        %3956 = vmatprep.subr.mxu0 %v3905
        %3957 = vmatpush1.msra.mxu0 %v3904
        %3958 = vmatprep.subr.mxu0 %v3908
        %3959 = vmatpush1.msra.mxu0 %v3907
        %3960 = vmatprep.subr.mxu0 %v3911
        %3961 = vmatpush1.msra.mxu0 %v3910
        %3962 = vmatprep.subr.mxu0 0.0
        %3963 = vmatpush1.msra.mxu0 0.0
        %3964 = vmatprep.subr.mxu0 0.0
        %3965 = vmatpush1.msra.mxu0 0.0
        %3966 = vmatprep.subr.mxu0 0.0
        %3967 = vmatpush1.msra.mxu0 0.0
        %3968 = vmatprep.subr.mxu0 0.0
        %3969 = vmatpush1.msra.mxu0 0.0
        %3970 = vmatprep.subr.mxu0 0.0
        %3971 = vmatpush1.msra.mxu0 0.0
        %3972 = vmatprep.subr.mxu0 0.0
        %3973 = vmatpush1.msra.mxu0 0.0
        %3974 = vmatprep.subr.mxu0 0.0
        %3975 = vmatpush1.msra.mxu0 0.0
        %3976 = vmatprep.subr.mxu0 0.0
        %3977 = vmatpush1.msra.mxu0 0.0
        %3978 = vmatprep.subr.mxu0 0.0
        %3979 = vmatpush1.msra.mxu0 0.0
        %3980 = vmatprep.subr.mxu0 0.0
        %3981 = vmatpush1.msra.mxu0 0.0
        %3982 = vmatprep.subr.mxu0 0.0
        %3983 = vmatpush1.msra.mxu0 0.0
        %3984 = vmatprep.subr.mxu0 0.0
        %3985 = vmatpush1.msra.mxu0 0.0
        %3986 = vmatprep.subr.mxu0 0.0
        %3987 = vmatpush1.msra.mxu0 0.0
        %3988 = vmatprep.subr.mxu0 0.0
        %3989 = vmatpush1.msra.mxu0 0.0
        %3990 = vmatprep.subr.mxu0 0.0
        %3991 = vmatpush1.msra.mxu0 0.0
        %3992 = vmatprep.subr.mxu0 0.0
        %3993 = vmatpush1.msra.mxu0 0.0
        %3994 = vmatprep.mubr.f32.mxu0 0.0
        %3995 = vmatmul.mubr.f32.gmra.mrb[0].mxu0 %v3860
        %v3996 = vpop.f32.mrb[0].mxu0
        %v3997 = vadd.f32 %v3918, %v3996
        %v3998 = vpop.f32.mrb[0].mxu0
        %v3999 = vadd.f32 %v3922, %v3998
        %4000 = vdwg.mxu0
        %4001 = vmatprep.subr.mxu0 0.0
        %4002 = vmatpush1.msra.mxu0 %v3867
        %4003 = vmatprep.subr.mxu0 0.0
        %4004 = vmatpush1.msra.mxu0 %v3870
        %4005 = vmatprep.subr.mxu0 0.0
        %4006 = vmatpush1.msra.mxu0 %v3873
        %4007 = vmatprep.subr.mxu0 0.0
        %4008 = vmatpush1.msra.mxu0 %v3876
        %4009 = vmatprep.subr.mxu0 0.0
        %4010 = vmatpush1.msra.mxu0 %v3879
        %4011 = vmatprep.subr.mxu0 0.0
        %4012 = vmatpush1.msra.mxu0 %v3882
        %4013 = vmatprep.subr.mxu0 0.0
        %4014 = vmatpush1.msra.mxu0 %v3885
        %4015 = vmatprep.subr.mxu0 0.0
        %4016 = vmatpush1.msra.mxu0 %v3888
        %4017 = vmatprep.subr.mxu0 0.0
        %4018 = vmatpush1.msra.mxu0 %v3891
        %4019 = vmatprep.subr.mxu0 0.0
        %4020 = vmatpush1.msra.mxu0 %v3894
        %4021 = vmatprep.subr.mxu0 0.0
        %4022 = vmatpush1.msra.mxu0 %v3897
        %4023 = vmatprep.subr.mxu0 0.0
        %4024 = vmatpush1.msra.mxu0 %v3900
        %4025 = vmatprep.subr.mxu0 0.0
        %4026 = vmatpush1.msra.mxu0 %v3903
        %4027 = vmatprep.subr.mxu0 0.0
        %4028 = vmatpush1.msra.mxu0 %v3906
        %4029 = vmatprep.subr.mxu0 0.0
        %4030 = vmatpush1.msra.mxu0 %v3909
        %4031 = vmatprep.subr.mxu0 0.0
        %4032 = vmatpush1.msra.mxu0 %v3912
        %4033 = vmatprep.subr.mxu0 0.0
        %4034 = vmatpush1.msra.mxu0 0.0
        %4035 = vmatprep.subr.mxu0 0.0
        %4036 = vmatpush1.msra.mxu0 0.0
        %4037 = vmatprep.subr.mxu0 0.0
        %4038 = vmatpush1.msra.mxu0 0.0
        %4039 = vmatprep.subr.mxu0 0.0
        %4040 = vmatpush1.msra.mxu0 0.0
        %4041 = vmatprep.subr.mxu0 0.0
        %4042 = vmatpush1.msra.mxu0 0.0
        %4043 = vmatprep.subr.mxu0 0.0
        %4044 = vmatpush1.msra.mxu0 0.0
        %4045 = vmatprep.subr.mxu0 0.0
        %4046 = vmatpush1.msra.mxu0 0.0
        %4047 = vmatprep.subr.mxu0 0.0
        %4048 = vmatpush1.msra.mxu0 0.0
        %4049 = vmatprep.subr.mxu0 0.0
        %4050 = vmatpush1.msra.mxu0 0.0
        %4051 = vmatprep.subr.mxu0 0.0
        %4052 = vmatpush1.msra.mxu0 0.0
        %4053 = vmatprep.subr.mxu0 0.0
        %4054 = vmatpush1.msra.mxu0 0.0
        %4055 = vmatprep.subr.mxu0 0.0
        %4056 = vmatpush1.msra.mxu0 0.0
        %4057 = vmatprep.subr.mxu0 0.0
        %4058 = vmatpush1.msra.mxu0 0.0
        %4059 = vmatprep.subr.mxu0 0.0
        %4060 = vmatpush1.msra.mxu0 0.0
        %4061 = vmatprep.subr.mxu0 0.0
        %4062 = vmatpush1.msra.mxu0 0.0
        %4063 = vmatprep.subr.mxu0 0.0
        %4064 = vmatpush1.msra.mxu0 0.0
        %4065 = vmatprep.mubr.f32.mxu0 0.0
        %4066 = vmatmul.mubr.f32.gmra.mrb[0].mxu0 %v3860
        %v4067 = vpop.f32.mrb[0].mxu0
        %v4068 = vadd.f32 %v3926, %v4067
        %v4069 = vpop.f32.mrb[0].mxu0
        %4070 = vdwg.mxu0
        %v4071 = vadd.f32 %v3862, %v3997
        %v4072 = vxor.u32 %v4071, 2147483648
        %v4073 = vmul.f32 %v4072, 1.442695
        %v4074 = vpow.pop %v4073
        %v4075 = vadd.f32 %v4074, 1.0
        %v4076 = vrcp.pop %v4075
        %v4077 = vmul.f32 1.0, %v4076
        %v4078 = vadd.f32 %v3863, %v3999
        %v4079 = vxor.u32 %v4078, 2147483648
        %v4080 = vmul.f32 %v4079, 1.442695
        %v4081 = vpow.pop %v4080
        %v4082 = vadd.f32 %v4081, 1.0
        %v4083 = vrcp.pop %v4082
        %v4084 = vmul.f32 1.0, %v4083
        %v4085 = vmul.f32 %v4077, %v4068
        %v4086 = vadd.f32 %v3864, %v4085
        %v4087 = vtanh.pop %v4086
        %v4088 = vsub.f32 1.0, %v4084
        %v4089 = vmul.f32 %v4088, %v4087
        %v4090 = vmul.f32 %v4084, %v3860
        %v4091 = vadd.f32 %v4089, %v4090
        %v4092 = vsel %vm1884, %v4091, %v3860
        %4093 = vst [vmem:[%s1886] sm:$0xff] %v4092
        %v4094 = vld [vmem:[%s1888] sm:$0xff]
        %v4095 = vld [vmem:[%s1888 + $0x8] sm:$0xff]
        %v4096 = vld [vmem:[%s1888 + $0x10] sm:$0xff]
        %v4097 = vld [vmem:[%s2935] sm:$0xff]
        %v4098 = vld [vmem:[%s2935 + $0x8] sm:$0xff]
        %v4099 = vld [vmem:[%s2935 + $0x10] sm:$0xff]
        %v4100 = vld [vmem:[%s2935 + $0x18] sm:$0xff]
        %v4101 = vld [vmem:[%s2935 + $0x20] sm:$0xff]
        %v4102 = vld [vmem:[%s2935 + $0x28] sm:$0xff]
        %v4103 = vld [vmem:[%s2935 + $0x30] sm:$0xff]
        %v4104 = vld [vmem:[%s2935 + $0x38] sm:$0xff]
        %v4105 = vld [vmem:[%s2935 + $0x40] sm:$0xff]
        %v4106 = vld [vmem:[%s2935 + $0x48] sm:$0xff]
        %v4107 = vld [vmem:[%s2935 + $0x50] sm:$0xff]
        %v4108 = vld [vmem:[%s2935 + $0x58] sm:$0xff]
        %v4109 = vld [vmem:[%s2935 + $0x60] sm:$0xff]
        %v4110 = vld [vmem:[%s2935 + $0x68] sm:$0xff]
        %v4111 = vld [vmem:[%s2935 + $0x70] sm:$0xff]
        %v4112 = vld [vmem:[%s2935 + $0x78] sm:$0xff]
        %v4113 = vld [vmem:[%s2935 + $0x80] sm:$0xff]
        %v4114 = vld [vmem:[%s2935 + $0x88] sm:$0xff]
        %v4115 = vld [vmem:[%s2935 + $0x90] sm:$0xff]
        %v4116 = vld [vmem:[%s2935 + $0x98] sm:$0xff]
        %v4117 = vld [vmem:[%s2935 + $0xa0] sm:$0xff]
        %v4118 = vld [vmem:[%s2935 + $0xa8] sm:$0xff]
        %v4119 = vld [vmem:[%s2935 + $0xb0] sm:$0xff]
        %v4120 = vld [vmem:[%s2935 + $0xb8] sm:$0xff]
        %v4121 = vld [vmem:[%s2935 + $0xc0] sm:$0xff]
        %v4122 = vld [vmem:[%s2935 + $0xc8] sm:$0xff]
        %v4123 = vld [vmem:[%s2935 + $0xd0] sm:$0xff]
        %v4124 = vld [vmem:[%s2935 + $0xd8] sm:$0xff]
        %v4125 = vld [vmem:[%s2935 + $0xe0] sm:$0xff]
        %v4126 = vld [vmem:[%s2935 + $0xe8] sm:$0xff]
        %v4127 = vld [vmem:[%s2935 + $0xf0] sm:$0xff]
        %v4128 = vld [vmem:[%s2935 + $0xf8] sm:$0xff]
        %v4129 = vld [vmem:[%s2935 + $0x100] sm:$0xff]
        %v4130 = vld [vmem:[%s2935 + $0x108] sm:$0xff]
        %v4131 = vld [vmem:[%s2935 + $0x110] sm:$0xff]
        %v4132 = vld [vmem:[%s2935 + $0x118] sm:$0xff]
        %v4133 = vld [vmem:[%s2935 + $0x120] sm:$0xff]
        %v4134 = vld [vmem:[%s2935 + $0x128] sm:$0xff]
        %v4135 = vld [vmem:[%s2935 + $0x130] sm:$0xff]
        %v4136 = vld [vmem:[%s2935 + $0x138] sm:$0xff]
        %v4137 = vld [vmem:[%s2935 + $0x140] sm:$0xff]
        %v4138 = vld [vmem:[%s2935 + $0x148] sm:$0xff]
        %v4139 = vld [vmem:[%s2935 + $0x150] sm:$0xff]
        %v4140 = vld [vmem:[%s2935 + $0x158] sm:$0xff]
        %v4141 = vld [vmem:[%s2935 + $0x160] sm:$0xff]
        %v4142 = vld [vmem:[%s2935 + $0x168] sm:$0xff]
        %v4143 = vld [vmem:[%s2935 + $0x170] sm:$0xff]
        %v4144 = vld [vmem:[%s2935 + $0x178] sm:$0xff]
        %v4145 = vld [vmem:[%s2984] sm:$0x7]
        %v4147 = vlaneseq
        %v4148 = vshrl.u32 %v4147, 7
        %v4149 = vsub.s32 0, %v4148
        %v4150 = vrot.slane %v4145, %v4149
        %v4151 = vlaneseq
        %v4152 = vshrl.u32 %v4151, 7
        %v4153 = vsub.s32 1, %v4152
        %v4154 = vrot.slane %v4145, %v4153
        %v4155 = vlaneseq
        %v4156 = vshrl.u32 %v4155, 7
        %v4157 = vsub.s32 2, %v4156
        %v4158 = vrot.slane %v4145, %v4157
        %4162 = vmatprep.subr.mxu0 %v4098
        %4163 = vmatpush1.msra.mxu0 %v4097
        %4164 = vmatprep.subr.mxu0 %v4101
        %4165 = vmatpush1.msra.mxu0 %v4100
        %4166 = vmatprep.subr.mxu0 %v4104
        %4167 = vmatpush1.msra.mxu0 %v4103
        %4168 = vmatprep.subr.mxu0 %v4107
        %4169 = vmatpush1.msra.mxu0 %v4106
        %4170 = vmatprep.subr.mxu0 %v4110
        %4171 = vmatpush1.msra.mxu0 %v4109
        %4172 = vmatprep.subr.mxu0 %v4113
        %4173 = vmatpush1.msra.mxu0 %v4112
        %4174 = vmatprep.subr.mxu0 %v4116
        %4175 = vmatpush1.msra.mxu0 %v4115
        %4176 = vmatprep.subr.mxu0 %v4119
        %4177 = vmatpush1.msra.mxu0 %v4118
        %4178 = vmatprep.subr.mxu0 %v4122
        %4179 = vmatpush1.msra.mxu0 %v4121
        %4180 = vmatprep.subr.mxu0 %v4125
        %4181 = vmatpush1.msra.mxu0 %v4124
        %4182 = vmatprep.subr.mxu0 %v4128
        %4183 = vmatpush1.msra.mxu0 %v4127
        %4184 = vmatprep.subr.mxu0 %v4131
        %4185 = vmatpush1.msra.mxu0 %v4130
        %4186 = vmatprep.subr.mxu0 %v4134
        %4187 = vmatpush1.msra.mxu0 %v4133
        %4188 = vmatprep.subr.mxu0 %v4137
        %4189 = vmatpush1.msra.mxu0 %v4136
        %4190 = vmatprep.subr.mxu0 %v4140
        %4191 = vmatpush1.msra.mxu0 %v4139
        %4192 = vmatprep.subr.mxu0 %v4143
        %4193 = vmatpush1.msra.mxu0 %v4142
        %4194 = vmatprep.subr.mxu0 0.0
        %4195 = vmatpush1.msra.mxu0 0.0
        %4196 = vmatprep.subr.mxu0 0.0
        %4197 = vmatpush1.msra.mxu0 0.0
        %4198 = vmatprep.subr.mxu0 0.0
        %4199 = vmatpush1.msra.mxu0 0.0
        %4200 = vmatprep.subr.mxu0 0.0
        %4201 = vmatpush1.msra.mxu0 0.0
        %4202 = vmatprep.subr.mxu0 0.0
        %4203 = vmatpush1.msra.mxu0 0.0
        %4204 = vmatprep.subr.mxu0 0.0
        %4205 = vmatpush1.msra.mxu0 0.0
        %4206 = vmatprep.subr.mxu0 0.0
        %4207 = vmatpush1.msra.mxu0 0.0
        %4208 = vmatprep.subr.mxu0 0.0
        %4209 = vmatpush1.msra.mxu0 0.0
        %4210 = vmatprep.subr.mxu0 0.0
        %4211 = vmatpush1.msra.mxu0 0.0
        %4212 = vmatprep.subr.mxu0 0.0
        %4213 = vmatpush1.msra.mxu0 0.0
        %4214 = vmatprep.subr.mxu0 0.0
        %4215 = vmatpush1.msra.mxu0 0.0
        %4216 = vmatprep.subr.mxu0 0.0
        %4217 = vmatpush1.msra.mxu0 0.0
        %4218 = vmatprep.subr.mxu0 0.0
        %4219 = vmatpush1.msra.mxu0 0.0
        %4220 = vmatprep.subr.mxu0 0.0
        %4221 = vmatpush1.msra.mxu0 0.0
        %4222 = vmatprep.subr.mxu0 0.0
        %4223 = vmatpush1.msra.mxu0 0.0
        %4224 = vmatprep.subr.mxu0 0.0
        %4225 = vmatpush1.msra.mxu0 0.0
        %4226 = vmatprep.mubr.f32.mxu0 0.0
        %4227 = vmatmul.mubr.f32.gmra.mrb[0].mxu0 %v4092
        %v4228 = vpop.f32.mrb[0].mxu0
        %v4229 = vadd.f32 %v4150, %v4228
        %v4230 = vpop.f32.mrb[0].mxu0
        %v4231 = vadd.f32 %v4154, %v4230
        %4232 = vdwg.mxu0
        %4233 = vmatprep.subr.mxu0 0.0
        %4234 = vmatpush1.msra.mxu0 %v4099
        %4235 = vmatprep.subr.mxu0 0.0
        %4236 = vmatpush1.msra.mxu0 %v4102
        %4237 = vmatprep.subr.mxu0 0.0
        %4238 = vmatpush1.msra.mxu0 %v4105
        %4239 = vmatprep.subr.mxu0 0.0
        %4240 = vmatpush1.msra.mxu0 %v4108
        %4241 = vmatprep.subr.mxu0 0.0
        %4242 = vmatpush1.msra.mxu0 %v4111
        %4243 = vmatprep.subr.mxu0 0.0
        %4244 = vmatpush1.msra.mxu0 %v4114
        %4245 = vmatprep.subr.mxu0 0.0
        %4246 = vmatpush1.msra.mxu0 %v4117
        %4247 = vmatprep.subr.mxu0 0.0
        %4248 = vmatpush1.msra.mxu0 %v4120
        %4249 = vmatprep.subr.mxu0 0.0
        %4250 = vmatpush1.msra.mxu0 %v4123
        %4251 = vmatprep.subr.mxu0 0.0
        %4252 = vmatpush1.msra.mxu0 %v4126
        %4253 = vmatprep.subr.mxu0 0.0
        %4254 = vmatpush1.msra.mxu0 %v4129
        %4255 = vmatprep.subr.mxu0 0.0
        %4256 = vmatpush1.msra.mxu0 %v4132
        %4257 = vmatprep.subr.mxu0 0.0
        %4258 = vmatpush1.msra.mxu0 %v4135
        %4259 = vmatprep.subr.mxu0 0.0
        %4260 = vmatpush1.msra.mxu0 %v4138
        %4261 = vmatprep.subr.mxu0 0.0
        %4262 = vmatpush1.msra.mxu0 %v4141
        %4263 = vmatprep.subr.mxu0 0.0
        %4264 = vmatpush1.msra.mxu0 %v4144
        %4265 = vmatprep.subr.mxu0 0.0
        %4266 = vmatpush1.msra.mxu0 0.0
        %4267 = vmatprep.subr.mxu0 0.0
        %4268 = vmatpush1.msra.mxu0 0.0
        %4269 = vmatprep.subr.mxu0 0.0
        %4270 = vmatpush1.msra.mxu0 0.0
        %4271 = vmatprep.subr.mxu0 0.0
        %4272 = vmatpush1.msra.mxu0 0.0
        %4273 = vmatprep.subr.mxu0 0.0
        %4274 = vmatpush1.msra.mxu0 0.0
        %4275 = vmatprep.subr.mxu0 0.0
        %4276 = vmatpush1.msra.mxu0 0.0
        %4277 = vmatprep.subr.mxu0 0.0
        %4278 = vmatpush1.msra.mxu0 0.0
        %4279 = vmatprep.subr.mxu0 0.0
        %4280 = vmatpush1.msra.mxu0 0.0
        %4281 = vmatprep.subr.mxu0 0.0
        %4282 = vmatpush1.msra.mxu0 0.0
        %4283 = vmatprep.subr.mxu0 0.0
        %4284 = vmatpush1.msra.mxu0 0.0
        %4285 = vmatprep.subr.mxu0 0.0
        %4286 = vmatpush1.msra.mxu0 0.0
        %4287 = vmatprep.subr.mxu0 0.0
        %4288 = vmatpush1.msra.mxu0 0.0
        %4289 = vmatprep.subr.mxu0 0.0
        %4290 = vmatpush1.msra.mxu0 0.0
        %4291 = vmatprep.subr.mxu0 0.0
        %4292 = vmatpush1.msra.mxu0 0.0
        %4293 = vmatprep.subr.mxu0 0.0
        %4294 = vmatpush1.msra.mxu0 0.0
        %4295 = vmatprep.subr.mxu0 0.0
        %4296 = vmatpush1.msra.mxu0 0.0
        %4297 = vmatprep.mubr.f32.mxu0 0.0
        %4298 = vmatmul.mubr.f32.gmra.mrb[0].mxu0 %v4092
        %v4299 = vpop.f32.mrb[0].mxu0
        %v4300 = vadd.f32 %v4158, %v4299
        %v4301 = vpop.f32.mrb[0].mxu0
        %4302 = vdwg.mxu0
        %v4303 = vadd.f32 %v4094, %v4229
        %v4304 = vxor.u32 %v4303, 2147483648
        %v4305 = vmul.f32 %v4304, 1.442695
        %v4306 = vpow.pop %v4305
        %v4307 = vadd.f32 %v4306, 1.0
        %v4308 = vrcp.pop %v4307
        %v4309 = vmul.f32 1.0, %v4308
        %v4310 = vadd.f32 %v4095, %v4231
        %v4311 = vxor.u32 %v4310, 2147483648
        %v4312 = vmul.f32 %v4311, 1.442695
        %v4313 = vpow.pop %v4312
        %v4314 = vadd.f32 %v4313, 1.0
        %v4315 = vrcp.pop %v4314
        %v4316 = vmul.f32 1.0, %v4315
        %v4317 = vmul.f32 %v4309, %v4300
        %v4318 = vadd.f32 %v4096, %v4317
        %v4319 = vtanh.pop %v4318
        %v4320 = vsub.f32 1.0, %v4316
        %v4321 = vmul.f32 %v4320, %v4319
        %v4322 = vmul.f32 %v4316, %v4092
        %v4323 = vadd.f32 %v4321, %v4322
        %v4324 = vsel %vm2126, %v4323, %v4092
        %4325 = vst [vmem:[%s2128] sm:$0xff] %v4324
        %v4326 = vld [vmem:[%s2130] sm:$0xff]
        %v4327 = vld [vmem:[%s2130 + $0x8] sm:$0xff]
        %v4328 = vld [vmem:[%s2130 + $0x10] sm:$0xff]
        %v4329 = vld [vmem:[%s2935] sm:$0xff]
        %v4330 = vld [vmem:[%s2935 + $0x8] sm:$0xff]
        %v4331 = vld [vmem:[%s2935 + $0x10] sm:$0xff]
        %v4332 = vld [vmem:[%s2935 + $0x18] sm:$0xff]
        %v4333 = vld [vmem:[%s2935 + $0x20] sm:$0xff]
        %v4334 = vld [vmem:[%s2935 + $0x28] sm:$0xff]
        %v4335 = vld [vmem:[%s2935 + $0x30] sm:$0xff]
        %v4336 = vld [vmem:[%s2935 + $0x38] sm:$0xff]
        %v4337 = vld [vmem:[%s2935 + $0x40] sm:$0xff]
        %v4338 = vld [vmem:[%s2935 + $0x48] sm:$0xff]
        %v4339 = vld [vmem:[%s2935 + $0x50] sm:$0xff]
        %v4340 = vld [vmem:[%s2935 + $0x58] sm:$0xff]
        %v4341 = vld [vmem:[%s2935 + $0x60] sm:$0xff]
        %v4342 = vld [vmem:[%s2935 + $0x68] sm:$0xff]
        %v4343 = vld [vmem:[%s2935 + $0x70] sm:$0xff]
        %v4344 = vld [vmem:[%s2935 + $0x78] sm:$0xff]
        %v4345 = vld [vmem:[%s2935 + $0x80] sm:$0xff]
        %v4346 = vld [vmem:[%s2935 + $0x88] sm:$0xff]
        %v4347 = vld [vmem:[%s2935 + $0x90] sm:$0xff]
        %v4348 = vld [vmem:[%s2935 + $0x98] sm:$0xff]
        %v4349 = vld [vmem:[%s2935 + $0xa0] sm:$0xff]
        %v4350 = vld [vmem:[%s2935 + $0xa8] sm:$0xff]
        %v4351 = vld [vmem:[%s2935 + $0xb0] sm:$0xff]
        %v4352 = vld [vmem:[%s2935 + $0xb8] sm:$0xff]
        %v4353 = vld [vmem:[%s2935 + $0xc0] sm:$0xff]
        %v4354 = vld [vmem:[%s2935 + $0xc8] sm:$0xff]
        %v4355 = vld [vmem:[%s2935 + $0xd0] sm:$0xff]
        %v4356 = vld [vmem:[%s2935 + $0xd8] sm:$0xff]
        %v4357 = vld [vmem:[%s2935 + $0xe0] sm:$0xff]
        %v4358 = vld [vmem:[%s2935 + $0xe8] sm:$0xff]
        %v4359 = vld [vmem:[%s2935 + $0xf0] sm:$0xff]
        %v4360 = vld [vmem:[%s2935 + $0xf8] sm:$0xff]
        %v4361 = vld [vmem:[%s2935 + $0x100] sm:$0xff]
        %v4362 = vld [vmem:[%s2935 + $0x108] sm:$0xff]
        %v4363 = vld [vmem:[%s2935 + $0x110] sm:$0xff]
        %v4364 = vld [vmem:[%s2935 + $0x118] sm:$0xff]
        %v4365 = vld [vmem:[%s2935 + $0x120] sm:$0xff]
        %v4366 = vld [vmem:[%s2935 + $0x128] sm:$0xff]
        %v4367 = vld [vmem:[%s2935 + $0x130] sm:$0xff]
        %v4368 = vld [vmem:[%s2935 + $0x138] sm:$0xff]
        %v4369 = vld [vmem:[%s2935 + $0x140] sm:$0xff]
        %v4370 = vld [vmem:[%s2935 + $0x148] sm:$0xff]
        %v4371 = vld [vmem:[%s2935 + $0x150] sm:$0xff]
        %v4372 = vld [vmem:[%s2935 + $0x158] sm:$0xff]
        %v4373 = vld [vmem:[%s2935 + $0x160] sm:$0xff]
        %v4374 = vld [vmem:[%s2935 + $0x168] sm:$0xff]
        %v4375 = vld [vmem:[%s2935 + $0x170] sm:$0xff]
        %v4376 = vld [vmem:[%s2935 + $0x178] sm:$0xff]
        %v4377 = vld [vmem:[%s2984] sm:$0x7]
        %v4379 = vlaneseq
        %v4380 = vshrl.u32 %v4379, 7
        %v4381 = vsub.s32 0, %v4380
        %v4382 = vrot.slane %v4377, %v4381
        %v4383 = vlaneseq
        %v4384 = vshrl.u32 %v4383, 7
        %v4385 = vsub.s32 1, %v4384
        %v4386 = vrot.slane %v4377, %v4385
        %v4387 = vlaneseq
        %v4388 = vshrl.u32 %v4387, 7
        %v4389 = vsub.s32 2, %v4388
        %v4390 = vrot.slane %v4377, %v4389
        %4394 = vmatprep.subr.mxu0 %v4330
        %4395 = vmatpush1.msra.mxu0 %v4329
        %4396 = vmatprep.subr.mxu0 %v4333
        %4397 = vmatpush1.msra.mxu0 %v4332
        %4398 = vmatprep.subr.mxu0 %v4336
        %4399 = vmatpush1.msra.mxu0 %v4335
        %4400 = vmatprep.subr.mxu0 %v4339
        %4401 = vmatpush1.msra.mxu0 %v4338
        %4402 = vmatprep.subr.mxu0 %v4342
        %4403 = vmatpush1.msra.mxu0 %v4341
        %4404 = vmatprep.subr.mxu0 %v4345
        %4405 = vmatpush1.msra.mxu0 %v4344
        %4406 = vmatprep.subr.mxu0 %v4348
        %4407 = vmatpush1.msra.mxu0 %v4347
        %4408 = vmatprep.subr.mxu0 %v4351
        %4409 = vmatpush1.msra.mxu0 %v4350
        %4410 = vmatprep.subr.mxu0 %v4354
        %4411 = vmatpush1.msra.mxu0 %v4353
        %4412 = vmatprep.subr.mxu0 %v4357
        %4413 = vmatpush1.msra.mxu0 %v4356
        %4414 = vmatprep.subr.mxu0 %v4360
        %4415 = vmatpush1.msra.mxu0 %v4359
        %4416 = vmatprep.subr.mxu0 %v4363
        %4417 = vmatpush1.msra.mxu0 %v4362
        %4418 = vmatprep.subr.mxu0 %v4366
        %4419 = vmatpush1.msra.mxu0 %v4365
        %4420 = vmatprep.subr.mxu0 %v4369
        %4421 = vmatpush1.msra.mxu0 %v4368
        %4422 = vmatprep.subr.mxu0 %v4372
        %4423 = vmatpush1.msra.mxu0 %v4371
        %4424 = vmatprep.subr.mxu0 %v4375
        %4425 = vmatpush1.msra.mxu0 %v4374
        %4426 = vmatprep.subr.mxu0 0.0
        %4427 = vmatpush1.msra.mxu0 0.0
        %4428 = vmatprep.subr.mxu0 0.0
        %4429 = vmatpush1.msra.mxu0 0.0
        %4430 = vmatprep.subr.mxu0 0.0
        %4431 = vmatpush1.msra.mxu0 0.0
        %4432 = vmatprep.subr.mxu0 0.0
        %4433 = vmatpush1.msra.mxu0 0.0
        %4434 = vmatprep.subr.mxu0 0.0
        %4435 = vmatpush1.msra.mxu0 0.0
        %4436 = vmatprep.subr.mxu0 0.0
        %4437 = vmatpush1.msra.mxu0 0.0
        %4438 = vmatprep.subr.mxu0 0.0
        %4439 = vmatpush1.msra.mxu0 0.0
        %4440 = vmatprep.subr.mxu0 0.0
        %4441 = vmatpush1.msra.mxu0 0.0
        %4442 = vmatprep.subr.mxu0 0.0
        %4443 = vmatpush1.msra.mxu0 0.0
        %4444 = vmatprep.subr.mxu0 0.0
        %4445 = vmatpush1.msra.mxu0 0.0
        %4446 = vmatprep.subr.mxu0 0.0
        %4447 = vmatpush1.msra.mxu0 0.0
        %4448 = vmatprep.subr.mxu0 0.0
        %4449 = vmatpush1.msra.mxu0 0.0
        %4450 = vmatprep.subr.mxu0 0.0
        %4451 = vmatpush1.msra.mxu0 0.0
        %4452 = vmatprep.subr.mxu0 0.0
        %4453 = vmatpush1.msra.mxu0 0.0
        %4454 = vmatprep.subr.mxu0 0.0
        %4455 = vmatpush1.msra.mxu0 0.0
        %4456 = vmatprep.subr.mxu0 0.0
        %4457 = vmatpush1.msra.mxu0 0.0
        %4458 = vmatprep.mubr.f32.mxu0 0.0
        %4459 = vmatmul.mubr.f32.gmra.mrb[0].mxu0 %v4324
        %v4460 = vpop.f32.mrb[0].mxu0
        %v4461 = vadd.f32 %v4382, %v4460
        %v4462 = vpop.f32.mrb[0].mxu0
        %v4463 = vadd.f32 %v4386, %v4462
        %4464 = vdwg.mxu0
        %4465 = vmatprep.subr.mxu0 0.0
        %4466 = vmatpush1.msra.mxu0 %v4331
        %4467 = vmatprep.subr.mxu0 0.0
        %4468 = vmatpush1.msra.mxu0 %v4334
        %4469 = vmatprep.subr.mxu0 0.0
        %4470 = vmatpush1.msra.mxu0 %v4337
        %4471 = vmatprep.subr.mxu0 0.0
        %4472 = vmatpush1.msra.mxu0 %v4340
        %4473 = vmatprep.subr.mxu0 0.0
        %4474 = vmatpush1.msra.mxu0 %v4343
        %4475 = vmatprep.subr.mxu0 0.0
        %4476 = vmatpush1.msra.mxu0 %v4346
        %4477 = vmatprep.subr.mxu0 0.0
        %4478 = vmatpush1.msra.mxu0 %v4349
        %4479 = vmatprep.subr.mxu0 0.0
        %4480 = vmatpush1.msra.mxu0 %v4352
        %4481 = vmatprep.subr.mxu0 0.0
        %4482 = vmatpush1.msra.mxu0 %v4355
        %4483 = vmatprep.subr.mxu0 0.0
        %4484 = vmatpush1.msra.mxu0 %v4358
        %4485 = vmatprep.subr.mxu0 0.0
        %4486 = vmatpush1.msra.mxu0 %v4361
        %4487 = vmatprep.subr.mxu0 0.0
        %4488 = vmatpush1.msra.mxu0 %v4364
        %4489 = vmatprep.subr.mxu0 0.0
        %4490 = vmatpush1.msra.mxu0 %v4367
        %4491 = vmatprep.subr.mxu0 0.0
        %4492 = vmatpush1.msra.mxu0 %v4370
        %4493 = vmatprep.subr.mxu0 0.0
        %4494 = vmatpush1.msra.mxu0 %v4373
        %4495 = vmatprep.subr.mxu0 0.0
        %4496 = vmatpush1.msra.mxu0 %v4376
        %4497 = vmatprep.subr.mxu0 0.0
        %4498 = vmatpush1.msra.mxu0 0.0
        %4499 = vmatprep.subr.mxu0 0.0
        %4500 = vmatpush1.msra.mxu0 0.0
        %4501 = vmatprep.subr.mxu0 0.0
        %4502 = vmatpush1.msra.mxu0 0.0
        %4503 = vmatprep.subr.mxu0 0.0
        %4504 = vmatpush1.msra.mxu0 0.0
        %4505 = vmatprep.subr.mxu0 0.0
        %4506 = vmatpush1.msra.mxu0 0.0
        %4507 = vmatprep.subr.mxu0 0.0
        %4508 = vmatpush1.msra.mxu0 0.0
        %4509 = vmatprep.subr.mxu0 0.0
        %4510 = vmatpush1.msra.mxu0 0.0
        %4511 = vmatprep.subr.mxu0 0.0
        %4512 = vmatpush1.msra.mxu0 0.0
        %4513 = vmatprep.subr.mxu0 0.0
        %4514 = vmatpush1.msra.mxu0 0.0
        %4515 = vmatprep.subr.mxu0 0.0
        %4516 = vmatpush1.msra.mxu0 0.0
        %4517 = vmatprep.subr.mxu0 0.0
        %4518 = vmatpush1.msra.mxu0 0.0
        %4519 = vmatprep.subr.mxu0 0.0
        %4520 = vmatpush1.msra.mxu0 0.0
        %4521 = vmatprep.subr.mxu0 0.0
        %4522 = vmatpush1.msra.mxu0 0.0
        %4523 = vmatprep.subr.mxu0 0.0
        %4524 = vmatpush1.msra.mxu0 0.0
        %4525 = vmatprep.subr.mxu0 0.0
        %4526 = vmatpush1.msra.mxu0 0.0
        %4527 = vmatprep.subr.mxu0 0.0
        %4528 = vmatpush1.msra.mxu0 0.0
        %4529 = vmatprep.mubr.f32.mxu0 0.0
        %4530 = vmatmul.mubr.f32.gmra.mrb[0].mxu0 %v4324
        %v4531 = vpop.f32.mrb[0].mxu0
        %v4532 = vadd.f32 %v4390, %v4531
        %v4533 = vpop.f32.mrb[0].mxu0
        %4534 = vdwg.mxu0
        %v4535 = vadd.f32 %v4326, %v4461
        %v4536 = vxor.u32 %v4535, 2147483648
        %v4537 = vmul.f32 %v4536, 1.442695
        %v4538 = vpow.pop %v4537
        %v4539 = vadd.f32 %v4538, 1.0
        %v4540 = vrcp.pop %v4539
        %v4541 = vmul.f32 1.0, %v4540
        %v4542 = vadd.f32 %v4327, %v4463
        %v4543 = vxor.u32 %v4542, 2147483648
        %v4544 = vmul.f32 %v4543, 1.442695
        %v4545 = vpow.pop %v4544
        %v4546 = vadd.f32 %v4545, 1.0
        %v4547 = vrcp.pop %v4546
        %v4548 = vmul.f32 1.0, %v4547
        %v4549 = vmul.f32 %v4541, %v4532
        %v4550 = vadd.f32 %v4328, %v4549
        %v4551 = vtanh.pop %v4550
        %v4552 = vsub.f32 1.0, %v4548
        %v4553 = vmul.f32 %v4552, %v4551
        %v4554 = vmul.f32 %v4548, %v4324
        %v4555 = vadd.f32 %v4553, %v4554
        %v4556 = vsel %vm2368, %v4555, %v4324
        %4557 = vst [vmem:[%s2370] sm:$0xff] %v4556
        %v4558 = vld [vmem:[%s2372] sm:$0xff]
        %v4559 = vld [vmem:[%s2372 + $0x8] sm:$0xff]
        %v4560 = vld [vmem:[%s2372 + $0x10] sm:$0xff]
        %v4561 = vld [vmem:[%s2935] sm:$0xff]
        %v4562 = vld [vmem:[%s2935 + $0x8] sm:$0xff]
        %v4563 = vld [vmem:[%s2935 + $0x10] sm:$0xff]
        %v4564 = vld [vmem:[%s2935 + $0x18] sm:$0xff]
        %v4565 = vld [vmem:[%s2935 + $0x20] sm:$0xff]
        %v4566 = vld [vmem:[%s2935 + $0x28] sm:$0xff]
        %v4567 = vld [vmem:[%s2935 + $0x30] sm:$0xff]
        %v4568 = vld [vmem:[%s2935 + $0x38] sm:$0xff]
        %v4569 = vld [vmem:[%s2935 + $0x40] sm:$0xff]
        %v4570 = vld [vmem:[%s2935 + $0x48] sm:$0xff]
        %v4571 = vld [vmem:[%s2935 + $0x50] sm:$0xff]
        %v4572 = vld [vmem:[%s2935 + $0x58] sm:$0xff]
        %v4573 = vld [vmem:[%s2935 + $0x60] sm:$0xff]
        %v4574 = vld [vmem:[%s2935 + $0x68] sm:$0xff]
        %v4575 = vld [vmem:[%s2935 + $0x70] sm:$0xff]
        %v4576 = vld [vmem:[%s2935 + $0x78] sm:$0xff]
        %v4577 = vld [vmem:[%s2935 + $0x80] sm:$0xff]
        %v4578 = vld [vmem:[%s2935 + $0x88] sm:$0xff]
        %v4579 = vld [vmem:[%s2935 + $0x90] sm:$0xff]
        %v4580 = vld [vmem:[%s2935 + $0x98] sm:$0xff]
        %v4581 = vld [vmem:[%s2935 + $0xa0] sm:$0xff]
        %v4582 = vld [vmem:[%s2935 + $0xa8] sm:$0xff]
        %v4583 = vld [vmem:[%s2935 + $0xb0] sm:$0xff]
        %v4584 = vld [vmem:[%s2935 + $0xb8] sm:$0xff]
        %v4585 = vld [vmem:[%s2935 + $0xc0] sm:$0xff]
        %v4586 = vld [vmem:[%s2935 + $0xc8] sm:$0xff]
        %v4587 = vld [vmem:[%s2935 + $0xd0] sm:$0xff]
        %v4588 = vld [vmem:[%s2935 + $0xd8] sm:$0xff]
        %v4589 = vld [vmem:[%s2935 + $0xe0] sm:$0xff]
        %v4590 = vld [vmem:[%s2935 + $0xe8] sm:$0xff]
        %v4591 = vld [vmem:[%s2935 + $0xf0] sm:$0xff]
        %v4592 = vld [vmem:[%s2935 + $0xf8] sm:$0xff]
        %v4593 = vld [vmem:[%s2935 + $0x100] sm:$0xff]
        %v4594 = vld [vmem:[%s2935 + $0x108] sm:$0xff]
        %v4595 = vld [vmem:[%s2935 + $0x110] sm:$0xff]
        %v4596 = vld [vmem:[%s2935 + $0x118] sm:$0xff]
        %v4597 = vld [vmem:[%s2935 + $0x120] sm:$0xff]
        %v4598 = vld [vmem:[%s2935 + $0x128] sm:$0xff]
        %v4599 = vld [vmem:[%s2935 + $0x130] sm:$0xff]
        %v4600 = vld [vmem:[%s2935 + $0x138] sm:$0xff]
        %v4601 = vld [vmem:[%s2935 + $0x140] sm:$0xff]
        %v4602 = vld [vmem:[%s2935 + $0x148] sm:$0xff]
        %v4603 = vld [vmem:[%s2935 + $0x150] sm:$0xff]
        %v4604 = vld [vmem:[%s2935 + $0x158] sm:$0xff]
        %v4605 = vld [vmem:[%s2935 + $0x160] sm:$0xff]
        %v4606 = vld [vmem:[%s2935 + $0x168] sm:$0xff]
        %v4607 = vld [vmem:[%s2935 + $0x170] sm:$0xff]
        %v4608 = vld [vmem:[%s2935 + $0x178] sm:$0xff]
        %v4609 = vld [vmem:[%s2984] sm:$0x7]
        %v4611 = vlaneseq
        %v4612 = vshrl.u32 %v4611, 7
        %v4613 = vsub.s32 0, %v4612
        %v4614 = vrot.slane %v4609, %v4613
        %v4615 = vlaneseq
        %v4616 = vshrl.u32 %v4615, 7
        %v4617 = vsub.s32 1, %v4616
        %v4618 = vrot.slane %v4609, %v4617
        %v4619 = vlaneseq
        %v4620 = vshrl.u32 %v4619, 7
        %v4621 = vsub.s32 2, %v4620
        %v4622 = vrot.slane %v4609, %v4621
        %4626 = vmatprep.subr.mxu0 %v4562
        %4627 = vmatpush1.msra.mxu0 %v4561
        %4628 = vmatprep.subr.mxu0 %v4565
        %4629 = vmatpush1.msra.mxu0 %v4564
        %4630 = vmatprep.subr.mxu0 %v4568
        %4631 = vmatpush1.msra.mxu0 %v4567
        %4632 = vmatprep.subr.mxu0 %v4571
        %4633 = vmatpush1.msra.mxu0 %v4570
        %4634 = vmatprep.subr.mxu0 %v4574
        %4635 = vmatpush1.msra.mxu0 %v4573
        %4636 = vmatprep.subr.mxu0 %v4577
        %4637 = vmatpush1.msra.mxu0 %v4576
        %4638 = vmatprep.subr.mxu0 %v4580
        %4639 = vmatpush1.msra.mxu0 %v4579
        %4640 = vmatprep.subr.mxu0 %v4583
        %4641 = vmatpush1.msra.mxu0 %v4582
        %4642 = vmatprep.subr.mxu0 %v4586
        %4643 = vmatpush1.msra.mxu0 %v4585
        %4644 = vmatprep.subr.mxu0 %v4589
        %4645 = vmatpush1.msra.mxu0 %v4588
        %4646 = vmatprep.subr.mxu0 %v4592
        %4647 = vmatpush1.msra.mxu0 %v4591
        %4648 = vmatprep.subr.mxu0 %v4595
        %4649 = vmatpush1.msra.mxu0 %v4594
        %4650 = vmatprep.subr.mxu0 %v4598
        %4651 = vmatpush1.msra.mxu0 %v4597
        %4652 = vmatprep.subr.mxu0 %v4601
        %4653 = vmatpush1.msra.mxu0 %v4600
        %4654 = vmatprep.subr.mxu0 %v4604
        %4655 = vmatpush1.msra.mxu0 %v4603
        %4656 = vmatprep.subr.mxu0 %v4607
        %4657 = vmatpush1.msra.mxu0 %v4606
        %4658 = vmatprep.subr.mxu0 0.0
        %4659 = vmatpush1.msra.mxu0 0.0
        %4660 = vmatprep.subr.mxu0 0.0
        %4661 = vmatpush1.msra.mxu0 0.0
        %4662 = vmatprep.subr.mxu0 0.0
        %4663 = vmatpush1.msra.mxu0 0.0
        %4664 = vmatprep.subr.mxu0 0.0
        %4665 = vmatpush1.msra.mxu0 0.0
        %4666 = vmatprep.subr.mxu0 0.0
        %4667 = vmatpush1.msra.mxu0 0.0
        %4668 = vmatprep.subr.mxu0 0.0
        %4669 = vmatpush1.msra.mxu0 0.0
        %4670 = vmatprep.subr.mxu0 0.0
        %4671 = vmatpush1.msra.mxu0 0.0
        %4672 = vmatprep.subr.mxu0 0.0
        %4673 = vmatpush1.msra.mxu0 0.0
        %4674 = vmatprep.subr.mxu0 0.0
        %4675 = vmatpush1.msra.mxu0 0.0
        %4676 = vmatprep.subr.mxu0 0.0
        %4677 = vmatpush1.msra.mxu0 0.0
        %4678 = vmatprep.subr.mxu0 0.0
        %4679 = vmatpush1.msra.mxu0 0.0
        %4680 = vmatprep.subr.mxu0 0.0
        %4681 = vmatpush1.msra.mxu0 0.0
        %4682 = vmatprep.subr.mxu0 0.0
        %4683 = vmatpush1.msra.mxu0 0.0
        %4684 = vmatprep.subr.mxu0 0.0
        %4685 = vmatpush1.msra.mxu0 0.0
        %4686 = vmatprep.subr.mxu0 0.0
        %4687 = vmatpush1.msra.mxu0 0.0
        %4688 = vmatprep.subr.mxu0 0.0
        %4689 = vmatpush1.msra.mxu0 0.0
        %4690 = vmatprep.mubr.f32.mxu0 0.0
        %4691 = vmatmul.mubr.f32.gmra.mrb[0].mxu0 %v4556
        %v4692 = vpop.f32.mrb[0].mxu0
        %v4693 = vadd.f32 %v4614, %v4692
        %v4694 = vpop.f32.mrb[0].mxu0
        %v4695 = vadd.f32 %v4618, %v4694
        %4696 = vdwg.mxu0
        %4697 = vmatprep.subr.mxu0 0.0
        %4698 = vmatpush1.msra.mxu0 %v4563
        %4699 = vmatprep.subr.mxu0 0.0
        %4700 = vmatpush1.msra.mxu0 %v4566
        %4701 = vmatprep.subr.mxu0 0.0
        %4702 = vmatpush1.msra.mxu0 %v4569
        %4703 = vmatprep.subr.mxu0 0.0
        %4704 = vmatpush1.msra.mxu0 %v4572
        %4705 = vmatprep.subr.mxu0 0.0
        %4706 = vmatpush1.msra.mxu0 %v4575
        %4707 = vmatprep.subr.mxu0 0.0
        %4708 = vmatpush1.msra.mxu0 %v4578
        %4709 = vmatprep.subr.mxu0 0.0
        %4710 = vmatpush1.msra.mxu0 %v4581
        %4711 = vmatprep.subr.mxu0 0.0
        %4712 = vmatpush1.msra.mxu0 %v4584
        %4713 = vmatprep.subr.mxu0 0.0
        %4714 = vmatpush1.msra.mxu0 %v4587
        %4715 = vmatprep.subr.mxu0 0.0
        %4716 = vmatpush1.msra.mxu0 %v4590
        %4717 = vmatprep.subr.mxu0 0.0
        %4718 = vmatpush1.msra.mxu0 %v4593
        %4719 = vmatprep.subr.mxu0 0.0
        %4720 = vmatpush1.msra.mxu0 %v4596
        %4721 = vmatprep.subr.mxu0 0.0
        %4722 = vmatpush1.msra.mxu0 %v4599
        %4723 = vmatprep.subr.mxu0 0.0
        %4724 = vmatpush1.msra.mxu0 %v4602
        %4725 = vmatprep.subr.mxu0 0.0
        %4726 = vmatpush1.msra.mxu0 %v4605
        %4727 = vmatprep.subr.mxu0 0.0
        %4728 = vmatpush1.msra.mxu0 %v4608
        %4729 = vmatprep.subr.mxu0 0.0
        %4730 = vmatpush1.msra.mxu0 0.0
        %4731 = vmatprep.subr.mxu0 0.0
        %4732 = vmatpush1.msra.mxu0 0.0
        %4733 = vmatprep.subr.mxu0 0.0
        %4734 = vmatpush1.msra.mxu0 0.0
        %4735 = vmatprep.subr.mxu0 0.0
        %4736 = vmatpush1.msra.mxu0 0.0
        %4737 = vmatprep.subr.mxu0 0.0
        %4738 = vmatpush1.msra.mxu0 0.0
        %4739 = vmatprep.subr.mxu0 0.0
        %4740 = vmatpush1.msra.mxu0 0.0
        %4741 = vmatprep.subr.mxu0 0.0
        %4742 = vmatpush1.msra.mxu0 0.0
        %4743 = vmatprep.subr.mxu0 0.0
        %4744 = vmatpush1.msra.mxu0 0.0
        %4745 = vmatprep.subr.mxu0 0.0
        %4746 = vmatpush1.msra.mxu0 0.0
        %4747 = vmatprep.subr.mxu0 0.0
        %4748 = vmatpush1.msra.mxu0 0.0
        %4749 = vmatprep.subr.mxu0 0.0
        %4750 = vmatpush1.msra.mxu0 0.0
        %4751 = vmatprep.subr.mxu0 0.0
        %4752 = vmatpush1.msra.mxu0 0.0
        %4753 = vmatprep.subr.mxu0 0.0
        %4754 = vmatpush1.msra.mxu0 0.0
        %4755 = vmatprep.subr.mxu0 0.0
        %4756 = vmatpush1.msra.mxu0 0.0
        %4757 = vmatprep.subr.mxu0 0.0
        %4758 = vmatpush1.msra.mxu0 0.0
        %4759 = vmatprep.subr.mxu0 0.0
        %4760 = vmatpush1.msra.mxu0 0.0
        %4761 = vmatprep.mubr.f32.mxu0 0.0
        %4762 = vmatmul.mubr.f32.gmra.mrb[0].mxu0 %v4556
        %v4763 = vpop.f32.mrb[0].mxu0
        %v4764 = vadd.f32 %v4622, %v4763
        %v4765 = vpop.f32.mrb[0].mxu0
        %4766 = vdwg.mxu0
        %v4767 = vadd.f32 %v4558, %v4693
        %v4768 = vxor.u32 %v4767, 2147483648
        %v4769 = vmul.f32 %v4768, 1.442695
        %v4770 = vpow.pop %v4769
        %v4771 = vadd.f32 %v4770, 1.0
        %v4772 = vrcp.pop %v4771
        %v4773 = vmul.f32 1.0, %v4772
        %v4774 = vadd.f32 %v4559, %v4695
        %v4775 = vxor.u32 %v4774, 2147483648
        %v4776 = vmul.f32 %v4775, 1.442695
        %v4777 = vpow.pop %v4776
        %v4778 = vadd.f32 %v4777, 1.0
        %v4779 = vrcp.pop %v4778
        %v4780 = vmul.f32 1.0, %v4779
        %v4781 = vmul.f32 %v4773, %v4764
        %v4782 = vadd.f32 %v4560, %v4781
        %v4783 = vtanh.pop %v4782
        %v4784 = vsub.f32 1.0, %v4780
        %v4785 = vmul.f32 %v4784, %v4783
        %v4786 = vmul.f32 %v4780, %v4556
        %v4787 = vadd.f32 %v4785, %v4786
        %v4788 = vsel %vm2610, %v4787, %v4556
        %4789 = vst [vmem:[%s2612] sm:$0xff] %v4788
        %4790 = vst [vmem:[%s2930] sm:$0xff] %v4788
        // Predicated region
        $region73: #{tpu_custom_call.1} parent=51 // pred_check
          %p4791 = pneg %p211
        $region74: #{tpu_custom_call.1} parent=51 // pred_check_branch
          %4793 = sbr.rel (%p4791) target = $region76
        $region75: #{tpu_custom_call.1} parent=51 // pred_region
          %s4795 = ssub.s32 256, 256
          %4796 = vsyncadd [#allocation6], %s4795
          %s4797 = sshll.u32 [#allocation12], 4
          %s4798 = int_to_ptr.vmem [resolvable:$true] %s4797
          %4803 = dma.vmem_to_hbm [thread:$0]  %s4798, 256, %s8, [#allocation6], 128, 128, 8
        $region76: #{tpu_custom_call.1} parent=51 // pred_fallthru
          _
        // Predicated region
        $region77: #{tpu_custom_call.1} parent=51 // pred_check
          %p4804 = pneg %p211
        $region78: #{tpu_custom_call.1} parent=51 // pred_check_branch
          %4806 = sbr.rel (%p4804) target = $region80
        $region79: #{tpu_custom_call.1} parent=51 // pred_region
          %4807 = dma.done [#allocation6], 256
        $region80: #{tpu_custom_call.1} parent=51 // pred_fallthru
          _
      $region52: #{tpu_custom_call.1} parent=5 // pred_fallthru
        _
      %p4808 = scmp.le.s32.totalorder 2, %s20
      // Predicated region
      $region81: #{tpu_custom_call.1} parent=5 // pred_check
        %p4809 = pneg %p4808
      $region82: #{tpu_custom_call.1} parent=5 // pred_check_branch
        %4811 = sbr.rel (%p4809) target = $region84
      $region83: #{tpu_custom_call.1} parent=5 // pred_region
        %s4812 = ssub.s32 %s20, 2
      $region84: #{tpu_custom_call.1} parent=5 // pred_fallthru
        _
    $region6: #{tpu_custom_call.1} parent=1 // loop_footer
      %s24 = sadd.s32 1, %s20
    $region7: #{tpu_custom_call.1} parent=1 // loop_footer_branch
      %19 = sbr.rel target = $region3
    $region8: #{tpu_custom_call.1} parent=1 // loop_exit
      _
    %4813 = vsyncpa [#allocation5], 1
    %s4814 = scalar_lea.sflag [#allocation5], 1
    %4815 = vsyncpa %s4814, 1
    %4816 = vsyncpa [#allocation8], 1
    %4817 = vsyncpa [#allocation11], 1
    %4818 = vsyncpa [#allocation6], 1
    %s4819 = scalar_lea.sflag [#allocation6], 1
    %4820 = vsyncpa %s4819, 1

</llo_original>
